<compile_context>
chip_gen: v6e
topology: v6e:2x2x1
jax: 0.10.0
libtpu: 0.0.40
codegen_flags: <defaults>
</compile_context>

<pallas_src>
import functools

import jax
import jax.numpy as jnp
from jax import lax
from jax.experimental import pallas as pl
from jax.experimental.pallas import tpu as pltpu


# ----------------------------- Pallas kernel --------------------------------


def _fused_kernel(xp_ref, ws_ref, ss_ref, bs_ref,
                  w1_ref, s1_ref, b1_ref, w2_ref, s2_ref, b2_ref,
                  h_ref, p_ref,
                  cbuf, rbuf, pbuf,
                  *, bb, ho, wo, po, qo, nshift, cpk):
    """Whole forward for a block of `bb` images, fully fused:
       conv7x7/s2+BN+ReLU -> maxpool3x3/s2 -> (conv3x3+BN+ReLU -> conv3x3+BN
       -> +identity -> ReLU) -> global average pool."""
    c0 = ws_ref.shape[-1]
    ms = bb * ho * wo                     # stem output pixels in this block
    m = bb * po * qo                      # pooled pixels in this block
    f32 = jnp.float32

    # Zero only the halo cells of the pooling / padding scratches.  The
    # interior is rewritten every step and never touches the halo; zeroing is
    # repeated each step so it is also correct when megacore gives each core a
    # private scratch instance.
    cbuf[:, :, 0:1, :] = jnp.zeros((bb, ho, 1, c0), f32)
    rbuf[:, 0:1, :, :] = jnp.zeros((bb, 1, qo, c0), f32)
    pbuf[:, 0:1, :, :] = jnp.zeros((bb, 1, qo + 2, c0), f32)
    pbuf[:, po + 1:po + 2, :, :] = jnp.zeros((bb, 1, qo + 2, c0), f32)
    pbuf[:, :, 0:1, :] = jnp.zeros((bb, po + 2, 1, c0), f32)
    pbuf[:, :, qo + 1:qo + 2, :] = jnp.zeros((bb, po + 2, 1, c0), f32)

    # ---- stem conv7x7 / stride 2 as ONE big-K matmul -------------------------
    # xp is the 2x2 space-to-depth phase pack of the padded input (bf16);
    # the nshift^2 shifted views are concatenated along K so the MXU sees a
    # single (ms, nshift^2*cpk) x (nshift^2*cpk, c0) contraction.
    parts = []
    for di in range(nshift):
        for dj in range(nshift):
            parts.append(xp_ref[:, di:di + ho, dj:dj + wo, :].reshape(ms, cpk))
    a_stem = jnp.concatenate(parts, axis=-1)                     # (ms, ns^2*cpk)
    acc = jnp.dot(a_stem, ws_ref[...], preferred_element_type=f32)
    h = jnp.maximum(acc * ss_ref[...] + bs_ref[...], 0.0)        # (ms, c0) f32

    # ---- fused maxpool 3x3 stride 2 pad 1 ------------------------------------
    # Zero padding is a valid pool pad because h >= 0 after ReLU.  Column
    # window-max and stride-2 decimation come from three sublane-strided loads
    # of cbuf (no selection matmul, no full-buffer zero fill).
    cbuf[:, :, 1:wo + 1, :] = h.reshape(bb, ho, wo, c0)
    cf = jnp.maximum(
        jnp.maximum(cbuf[:, :, pl.ds(0, qo, 2), :],
                    cbuf[:, :, pl.ds(1, qo, 2), :]),
        cbuf[:, :, pl.ds(2, qo, 2), :])                          # (bb, ho, qo, c0)
    cf5 = cf.reshape(bb, po, 2, qo, c0)                          # row parity split
    ev, od = cf5[:, :, 0], cf5[:, :, 1]                          # rows 2p / 2p+1
    rbuf[:, 1:po + 1, :, :] = od
    y4 = jnp.maximum(jnp.maximum(ev, od), rbuf[:, 0:po, :, :])   # rows 2p-1..2p+1
    y = y4.reshape(m, c0)                                        # f32 identity path

    # ---- residual basic block + pooler ---------------------------------------
    def conv3x3(src, w_ref):
        # 3x3 conv as ONE (m, 9*c0) x (9*c0, c0) bf16 matmul; pbuf supplies the
        # 1-pixel zero border (only the interior is rewritten per call).
        pbuf[:, 1:po + 1, 1:qo + 1, :] = src.reshape(bb, po, qo, c0)
        taps = [pbuf[:, i:i + po, j:j + qo, :].reshape(m, c0)
                for i in range(3) for j in range(3)]
        a = jnp.concatenate(taps, axis=-1).astype(jnp.bfloat16)   # (m, 9*c0)
        return jnp.dot(a, w_ref[...], preferred_element_type=f32)

    z1 = jnp.maximum(conv3x3(y, w1_ref) * s1_ref[...] + b1_ref[...], 0.0)
    z2 = conv3x3(z1, w2_ref) * s2_ref[...] + b2_ref[...]
    hx = jnp.maximum(z2 + y, 0.0)                                 # add + ReLU

    h_ref[...] = hx.reshape(bb, po, qo, c0)
    p_ref[...] = jnp.mean(hx.reshape(bb, po * qo, c0), axis=1, keepdims=True)


# ------------------------------- JAX glue -----------------------------------


def _pack_stem_weights(w, nshift):
    """(7,7,Cin,C0) -> (nshift^2*4*Cin, C0) bf16, matching the 2x2 phase pack
    and the (di, dj)-major K ordering used inside the kernel."""
    kh, kw, cin, c0 = w.shape
    blocks = []
    for di in range(nshift):
        for dj in range(nshift):
            sub = []
            for pi in range(2):
                for pj in range(2):
                    i, j = 2 * di + pi, 2 * dj + pj
                    if i < kh and j < kw:
                        sub.append(w[i, j])
                    else:
                        sub.append(jnp.zeros((cin, c0), w.dtype))
            blocks.append(jnp.concatenate(sub, axis=0))            # (4*Cin, C0)
    wp = jnp.stack(blocks, axis=0)                                 # (ns^2, 4Cin, C0)
    return wp.reshape(nshift * nshift * 4 * cin, c0).astype(jnp.bfloat16)


_COMPILER_PARAMS = pltpu.CompilerParams(
    dimension_semantics=("parallel",),       # megacore: batch blocks across TCs
    vmem_limit_bytes=32 * 1024 * 1024,       # >> ~2 MiB per-step working set
)


@functools.partial(jax.jit, static_argnames=("batch_block",))
def wrapped_model_forward(x_nchw, params, *, batch_block=None):
    """Mirrors WrappedModel.forward: returns the hf_model output tuple
    (last_hidden_state [N,C,H,W], pooler_output [N,C,1,1])."""
    n, cin, hin, win = x_nchw.shape
    kh = params["w_stem"].shape[0]
    c0 = params["w_stem"].shape[-1]
    cpk = 4 * cin
    x = jnp.transpose(x_nchw, (0, 2, 3, 1)).astype(jnp.float32)    # NHWC

    # ------------------ geometry -------------------
    pad = 3
    ho = (hin + 2 * pad - kh) // 2 + 1
    wo = (win + 2 * pad - kh) // 2 + 1
    po = (ho + 2 - 3) // 2 + 1
    qo = (wo + 2 - 3) // 2 + 1
    nshift = (kh + 1) // 2
    assert ho == 2 * po and wo == 2 * qo, "requires even stem output size"

    # 2x2 space-to-depth pack of the padded input (no HBM im2col expansion);
    # cast to bf16 up front: it is only ever an MXU operand and this halves the
    # largest per-step DMA.
    xpad = jnp.pad(x, ((0, 0), (pad, pad), (pad, pad), (0, 0)))
    xp = jnp.concatenate(
        [xpad[:, pi::2, pj::2, :] for pi in range(2) for pj in range(2)],
        axis=-1).astype(jnp.bfloat16)                              # (n, A, B, 4Cin)
    a_dim, b_dim = xp.shape[1], xp.shape[2]
    assert a_dim == ho + nshift - 1 and b_dim == wo + nshift - 1

    w_stem_big = _pack_stem_weights(params["w_stem"], nshift)      # (ns^2*4Cin, C0)
    w1_big = params["w1"].reshape(9 * c0, c0).astype(jnp.bfloat16)
    w2_big = params["w2"].reshape(9 * c0, c0).astype(jnp.bfloat16)

    if batch_block is None:
        # At most two grid steps: single-TC parts (v5e/v6e) get large blocks,
        # a megacore part (v7x) still gets one block per TensorCore.
        batch_block = n if (n < 2 or n % 2 != 0) else n // 2
    bb = batch_block
    assert n % bb == 0

    kern = functools.partial(_fused_kernel, bb=bb, ho=ho, wo=wo, po=po, qo=qo,
                             nshift=nshift, cpk=cpk)
    h, pooled = pl.pallas_call(
        kern,
        out_shape=(jax.ShapeDtypeStruct((n, po, qo, c0), jnp.float32),
                   jax.ShapeDtypeStruct((n, 1, c0), jnp.float32)),
        grid=(n // bb,),
        in_specs=[
            pl.BlockSpec((bb, a_dim, b_dim, cpk), lambda i: (i, 0, 0, 0)),
            pl.BlockSpec(w_stem_big.shape, lambda i: (0, 0)),       # resident
            pl.BlockSpec(params["s_stem"].shape, lambda i: (0, 0)),
            pl.BlockSpec(params["b_stem"].shape, lambda i: (0, 0)),
            pl.BlockSpec(w1_big.shape, lambda i: (0, 0)),
            pl.BlockSpec(params["s1"].shape, lambda i: (0, 0)),
            pl.BlockSpec(params["b1"].shape, lambda i: (0, 0)),
            pl.BlockSpec(w2_big.shape, lambda i: (0, 0)),
            pl.BlockSpec(params["s2"].shape, lambda i: (0, 0)),
            pl.BlockSpec(params["b2"].shape, lambda i: (0, 0)),
        ],
        out_specs=(pl.BlockSpec((bb, po, qo, c0), lambda i: (i, 0, 0, 0)),
                   pl.BlockSpec((bb, 1, c0), lambda i: (i, 0, 0))),
        scratch_shapes=[
            pltpu.VMEM((bb, ho, wo + 1, c0), jnp.float32),      # maxpool col halo
            pltpu.VMEM((bb, po + 1, qo, c0), jnp.float32),      # maxpool row halo
            pltpu.VMEM((bb, po + 2, qo + 2, c0), jnp.float32),  # conv3x3 zero pad
        ],
        compiler_params=_COMPILER_PARAMS,
    )(xp, w_stem_big, params["s_stem"], params["b_stem"],
      w1_big, params["s1"], params["b1"],
      w2_big, params["s2"], params["b2"])

    last_hidden = jnp.transpose(h, (0, 3, 1, 2))                   # NCHW
    pooler_out = pooled.reshape(n, c0, 1, 1)
    return last_hidden, pooler_out


# ----------------------------- model / params -------------------------------


def init_params(key, cin=3, c0=128):
    ks = jax.random.split(key, 9)
    eps = 1e-5

    def bn(kg, kb, c):
        gamma = 1.0 + 0.01 * jax.random.normal(kg, (c,), jnp.float32)
        beta = 0.01 * jax.random.normal(kb, (c,), jnp.float32)
        mean = jnp.zeros((c,), jnp.float32)
        var = jnp.ones((c,), jnp.float32)
        scale = gamma / jnp.sqrt(var + eps)
        bias = beta - mean * scale
        return scale.reshape(1, c), bias.reshape(1, c)

    s_stem, b_stem = bn(ks[3], ks[4], c0)
    s1, b1 = bn(ks[5], ks[6], c0)
    s2, b2 = bn(ks[7], ks[8], c0)
    std_stem = (2.0 / (7 * 7 * cin)) ** 0.5
    std_blk = (2.0 / (9 * c0)) ** 0.5
    return {
        "w_stem": std_stem * jax.random.normal(ks[0], (7, 7, cin, c0), jnp.float32),
        "s_stem": s_stem, "b_stem": b_stem,
        "w1": std_blk * jax.random.normal(ks[1], (3, 3, c0, c0), jnp.float32),
        "s1": s1, "b1": b1,
        "w2": std_blk * jax.random.normal(ks[2], (3, 3, c0, c0), jnp.float32),
        "s2": s2, "b2": b2,
    }


def reference_forward(x_nchw, params):
    """Pure-JAX reference with the same bf16-input / f32-accumulate quantization."""
    def conv(x, w, stride, p):
        xq = x.astype(jnp.bfloat16).astype(jnp.float32)
        wq = w.astype(jnp.bfloat16).astype(jnp.float32)
        return lax.conv_general_dilated(
            xq, wq, (stride, stride), [(p, p), (p, p)],
            dimension_numbers=("NHWC", "HWIO", "NHWC"),
            precision=lax.Precision.HIGHEST)

    x = jnp.transpose(x_nchw, (0, 2, 3, 1)).astype(jnp.float32)
    y = jnp.maximum(conv(x, params["w_stem"], 2, 3) * params["s_stem"]
                    + params["b_stem"], 0.0)
    y = lax.reduce_window(y, -jnp.inf, lax.max, (1, 3, 3, 1), (1, 2, 2, 1),
                          [(0, 0), (1, 1), (1, 1), (0, 0)])
    z = jnp.maximum(conv(y, params["w1"], 1, 1) * params["s1"] + params["b1"], 0.0)
    z = conv(z, params["w2"], 1, 1) * params["s2"] + params["b2"]
    h = jnp.maximum(z + y, 0.0)
    pooled = jnp.mean(h, axis=(1, 2)).reshape(h.shape[0], -1, 1, 1)
    return jnp.transpose(h, (0, 3, 1, 2)), pooled


if __name__ == "__main__":
    key = jax.random.PRNGKey(0)
    kx, kp = jax.random.split(key)
    x = jax.random.normal(kx, (2, 3, 32, 32), jnp.float32)   # NCHW, like PyTorch
    params = init_params(kp, cin=3, c0=128)

    last_hidden, pooler_out = wrapped_model_forward(x, params)
    jax.block_until_ready((last_hidden, pooler_out))

    assert last_hidden.shape == (2, 128, 8, 8)
    assert pooler_out.shape == (2, 128, 1, 1)

    # Correctness check against a pure-JAX reference.
    ref_h, ref_p = reference_forward(x, params)
    err_h = float(jnp.max(jnp.abs(last_hidden - ref_h)))
    err_p = float(jnp.max(jnp.abs(pooler_out - ref_p)))
    assert err_h < 5e-2, f"last_hidden mismatch, max abs err = {err_h}"
    assert err_p < 5e-2, f"pooler mismatch, max abs err = {err_p}"

    print("KERNEL_OK")
</pallas_src>

<mosaic_0001>
module attributes {stable_mosaic.version = 11 : i64} {
  func.func @_fused_kernel(%arg0: i32, %arg1: memref<1x19x19x12xbf16, #tpu.memory_space<vmem>>, %arg2: memref<192x128xbf16, #tpu.memory_space<vmem>>, %arg3: memref<1x128xf32, #tpu.memory_space<vmem>>, %arg4: memref<1x128xf32, #tpu.memory_space<vmem>>, %arg5: memref<1152x128xbf16, #tpu.memory_space<vmem>>, %arg6: memref<1x128xf32, #tpu.memory_space<vmem>>, %arg7: memref<1x128xf32, #tpu.memory_space<vmem>>, %arg8: memref<1152x128xbf16, #tpu.memory_space<vmem>>, %arg9: memref<1x128xf32, #tpu.memory_space<vmem>>, %arg10: memref<1x128xf32, #tpu.memory_space<vmem>>, %arg11: memref<1x8x8x128xf32, #tpu.memory_space<vmem>>, %arg12: memref<1x1x128xf32, #tpu.memory_space<vmem>>, %arg13: memref<1x16x17x128xf32, #tpu.memory_space<vmem>>, %arg14: memref<1x9x8x128xf32, #tpu.memory_space<vmem>>, %arg15: memref<1x10x10x128xf32, #tpu.memory_space<vmem>>) attributes {dimension_semantics = [#tpu.dimension_semantics<parallel>], iteration_bounds = array<i64: 2>, scalar_prefetch = 0 : i64, scratch_operands = 3 : i64, tpu.core_type = #tpu.core_type<tc>, window_params = [{transform_indices = @transform_0, window_bounds = array<i64: 1, 19, 19, 12>}, {pipeline_mode = #tpu.pipeline_mode<synchronous>, transform_indices = @transform_1, window_bounds = array<i64: 192, 128>}, {pipeline_mode = #tpu.pipeline_mode<synchronous>, transform_indices = @transform_2, window_bounds = array<i64: 1, 128>}, {pipeline_mode = #tpu.pipeline_mode<synchronous>, transform_indices = @transform_3, window_bounds = array<i64: 1, 128>}, {pipeline_mode = #tpu.pipeline_mode<synchronous>, transform_indices = @transform_4, window_bounds = array<i64: 1152, 128>}, {pipeline_mode = #tpu.pipeline_mode<synchronous>, transform_indices = @transform_5, window_bounds = array<i64: 1, 128>}, {pipeline_mode = #tpu.pipeline_mode<synchronous>, transform_indices = @transform_6, window_bounds = array<i64: 1, 128>}, {pipeline_mode = #tpu.pipeline_mode<synchronous>, transform_indices = @transform_7, window_bounds = array<i64: 1152, 128>}, {pipeline_mode = #tpu.pipeline_mode<synchronous>, transform_indices = @transform_8, window_bounds = array<i64: 1, 128>}, {pipeline_mode = #tpu.pipeline_mode<synchronous>, transform_indices = @transform_9, window_bounds = array<i64: 1, 128>}, {transform_indices = @transform_10, window_bounds = array<i64: 1, 8, 8, 128>}, {transform_indices = @transform_11, window_bounds = array<i64: 1, 1, 128>}]} {
    %cst = arith.constant 0.000000e+00 : f32
    %0 = vector.broadcast %cst : f32 to vector<1x16x1x128xf32>
    %c0 = arith.constant 0 : index
    %c0_0 = arith.constant 0 : index
    %c0_1 = arith.constant 0 : index
    %c0_2 = arith.constant 0 : index
    %1 = vector.load %arg13[%c0, %c0_0, %c0_1, %c0_2] : memref<1x16x17x128xf32, #tpu.memory_space<vmem>>, vector<1x16x1x128xf32>
    tpu.vector_store %arg13[%c0, %c0_0, %c0_1, %c0_2], %0 {strides = array<i32>} : memref<1x16x17x128xf32, #tpu.memory_space<vmem>>, vector<1x16x1x128xf32>,
    %cst_3 = arith.constant 0.000000e+00 : f32
    %2 = vector.broadcast %cst_3 : f32 to vector<1x1x8x128xf32>
    %c0_4 = arith.constant 0 : index
    %c0_5 = arith.constant 0 : index
    %c0_6 = arith.constant 0 : index
    %c0_7 = arith.constant 0 : index
    %3 = vector.load %arg14[%c0_4, %c0_5, %c0_6, %c0_7] : memref<1x9x8x128xf32, #tpu.memory_space<vmem>>, vector<1x1x8x128xf32>
    tpu.vector_store %arg14[%c0_4, %c0_5, %c0_6, %c0_7], %2 {strides = array<i32>} : memref<1x9x8x128xf32, #tpu.memory_space<vmem>>, vector<1x1x8x128xf32>,
    %cst_8 = arith.constant 0.000000e+00 : f32
    %4 = vector.broadcast %cst_8 : f32 to vector<1x1x10x128xf32>
    %c0_9 = arith.constant 0 : index
    %c0_10 = arith.constant 0 : index
    %c0_11 = arith.constant 0 : index
    %c0_12 = arith.constant 0 : index
    %5 = vector.load %arg15[%c0_9, %c0_10, %c0_11, %c0_12] : memref<1x10x10x128xf32, #tpu.memory_space<vmem>>, vector<1x1x10x128xf32>
    tpu.vector_store %arg15[%c0_9, %c0_10, %c0_11, %c0_12], %4 {strides = array<i32>} : memref<1x10x10x128xf32, #tpu.memory_space<vmem>>, vector<1x1x10x128xf32>,
    %cst_13 = arith.constant 0.000000e+00 : f32
    %6 = vector.broadcast %cst_13 : f32 to vector<1x1x10x128xf32>
    %c0_14 = arith.constant 0 : index
    %c9 = arith.constant 9 : index
    %c0_15 = arith.constant 0 : index
    %c0_16 = arith.constant 0 : index
    %7 = vector.load %arg15[%c0_14, %c9, %c0_15, %c0_16] : memref<1x10x10x128xf32, #tpu.memory_space<vmem>>, vector<1x1x10x128xf32>
    tpu.vector_store %arg15[%c0_14, %c9, %c0_15, %c0_16], %6 {strides = array<i32>} : memref<1x10x10x128xf32, #tpu.memory_space<vmem>>, vector<1x1x10x128xf32>,
    %cst_17 = arith.constant 0.000000e+00 : f32
    %8 = vector.broadcast %cst_17 : f32 to vector<1x10x1x128xf32>
    %c0_18 = arith.constant 0 : index
    %c0_19 = arith.constant 0 : index
    %c0_20 = arith.constant 0 : index
    %c0_21 = arith.constant 0 : index
    %9 = vector.load %arg15[%c0_18, %c0_19, %c0_20, %c0_21] : memref<1x10x10x128xf32, #tpu.memory_space<vmem>>, vector<1x10x1x128xf32>
    tpu.vector_store %arg15[%c0_18, %c0_19, %c0_20, %c0_21], %8 {strides = array<i32>} : memref<1x10x10x128xf32, #tpu.memory_space<vmem>>, vector<1x10x1x128xf32>,
    %cst_22 = arith.constant 0.000000e+00 : f32
    %10 = vector.broadcast %cst_22 : f32 to vector<1x10x1x128xf32>
    %c0_23 = arith.constant 0 : index
    %c0_24 = arith.constant 0 : index
    %c9_25 = arith.constant 9 : index
    %c0_26 = arith.constant 0 : index
    %11 = vector.load %arg15[%c0_23, %c0_24, %c9_25, %c0_26] : memref<1x10x10x128xf32, #tpu.memory_space<vmem>>, vector<1x10x1x128xf32>
    tpu.vector_store %arg15[%c0_23, %c0_24, %c9_25, %c0_26], %10 {strides = array<i32>} : memref<1x10x10x128xf32, #tpu.memory_space<vmem>>, vector<1x10x1x128xf32>,
    %c0_27 = arith.constant 0 : index
    %c0_28 = arith.constant 0 : index
    %c0_29 = arith.constant 0 : index
    %c0_30 = arith.constant 0 : index
    %12 = vector.load %arg1[%c0_27, %c0_28, %c0_29, %c0_30] : memref<1x19x19x12xbf16, #tpu.memory_space<vmem>>, vector<1x16x16x12xbf16>
    %13 = vector.shape_cast %12 : vector<1x16x16x12xbf16> to vector<256x12xbf16>
    %c0_31 = arith.constant 0 : index
    %c0_32 = arith.constant 0 : index
    %c1 = arith.constant 1 : index
    %c0_33 = arith.constant 0 : index
    %14 = vector.load %arg1[%c0_31, %c0_32, %c1, %c0_33] : memref<1x19x19x12xbf16, #tpu.memory_space<vmem>>, vector<1x16x16x12xbf16>
    %15 = vector.shape_cast %14 : vector<1x16x16x12xbf16> to vector<256x12xbf16>
    %c0_34 = arith.constant 0 : index
    %c0_35 = arith.constant 0 : index
    %c2 = arith.constant 2 : index
    %c0_36 = arith.constant 0 : index
    %16 = vector.load %arg1[%c0_34, %c0_35, %c2, %c0_36] : memref<1x19x19x12xbf16, #tpu.memory_space<vmem>>, vector<1x16x16x12xbf16>
    %17 = vector.shape_cast %16 : vector<1x16x16x12xbf16> to vector<256x12xbf16>
    %c0_37 = arith.constant 0 : index
    %c0_38 = arith.constant 0 : index
    %c3 = arith.constant 3 : index
    %c0_39 = arith.constant 0 : index
    %18 = vector.load %arg1[%c0_37, %c0_38, %c3, %c0_39] : memref<1x19x19x12xbf16, #tpu.memory_space<vmem>>, vector<1x16x16x12xbf16>
    %19 = vector.shape_cast %18 : vector<1x16x16x12xbf16> to vector<256x12xbf16>
    %c0_40 = arith.constant 0 : index
    %c1_41 = arith.constant 1 : index
    %c0_42 = arith.constant 0 : index
    %c0_43 = arith.constant 0 : index
    %20 = vector.load %arg1[%c0_40, %c1_41, %c0_42, %c0_43] : memref<1x19x19x12xbf16, #tpu.memory_space<vmem>>, vector<1x16x16x12xbf16>
    %21 = vector.shape_cast %20 : vector<1x16x16x12xbf16> to vector<256x12xbf16>
    %c0_44 = arith.constant 0 : index
    %c1_45 = arith.constant 1 : index
    %c1_46 = arith.constant 1 : index
    %c0_47 = arith.constant 0 : index
    %22 = vector.load %arg1[%c0_44, %c1_45, %c1_46, %c0_47] : memref<1x19x19x12xbf16, #tpu.memory_space<vmem>>, vector<1x16x16x12xbf16>
    %23 = vector.shape_cast %22 : vector<1x16x16x12xbf16> to vector<256x12xbf16>
    %c0_48 = arith.constant 0 : index
    %c1_49 = arith.constant 1 : index
    %c2_50 = arith.constant 2 : index
    %c0_51 = arith.constant 0 : index
    %24 = vector.load %arg1[%c0_48, %c1_49, %c2_50, %c0_51] : memref<1x19x19x12xbf16, #tpu.memory_space<vmem>>, vector<1x16x16x12xbf16>
    %25 = vector.shape_cast %24 : vector<1x16x16x12xbf16> to vector<256x12xbf16>
    %c0_52 = arith.constant 0 : index
    %c1_53 = arith.constant 1 : index
    %c3_54 = arith.constant 3 : index
    %c0_55 = arith.constant 0 : index
    %26 = vector.load %arg1[%c0_52, %c1_53, %c3_54, %c0_55] : memref<1x19x19x12xbf16, #tpu.memory_space<vmem>>, vector<1x16x16x12xbf16>
    %27 = vector.shape_cast %26 : vector<1x16x16x12xbf16> to vector<256x12xbf16>
    %c0_56 = arith.constant 0 : index
    %c2_57 = arith.constant 2 : index
    %c0_58 = arith.constant 0 : index
    %c0_59 = arith.constant 0 : index
    %28 = vector.load %arg1[%c0_56, %c2_57, %c0_58, %c0_59] : memref<1x19x19x12xbf16, #tpu.memory_space<vmem>>, vector<1x16x16x12xbf16>
    %29 = vector.shape_cast %28 : vector<1x16x16x12xbf16> to vector<256x12xbf16>
    %c0_60 = arith.constant 0 : index
    %c2_61 = arith.constant 2 : index
    %c1_62 = arith.constant 1 : index
    %c0_63 = arith.constant 0 : index
    %30 = vector.load %arg1[%c0_60, %c2_61, %c1_62, %c0_63] : memref<1x19x19x12xbf16, #tpu.memory_space<vmem>>, vector<1x16x16x12xbf16>
    %31 = vector.shape_cast %30 : vector<1x16x16x12xbf16> to vector<256x12xbf16>
    %c0_64 = arith.constant 0 : index
    %c2_65 = arith.constant 2 : index
    %c2_66 = arith.constant 2 : index
    %c0_67 = arith.constant 0 : index
    %32 = vector.load %arg1[%c0_64, %c2_65, %c2_66, %c0_67] : memref<1x19x19x12xbf16, #tpu.memory_space<vmem>>, vector<1x16x16x12xbf16>
    %33 = vector.shape_cast %32 : vector<1x16x16x12xbf16> to vector<256x12xbf16>
    %c0_68 = arith.constant 0 : index
    %c2_69 = arith.constant 2 : index
    %c3_70 = arith.constant 3 : index
    %c0_71 = arith.constant 0 : index
    %34 = vector.load %arg1[%c0_68, %c2_69, %c3_70, %c0_71] : memref<1x19x19x12xbf16, #tpu.memory_space<vmem>>, vector<1x16x16x12xbf16>
    %35 = vector.shape_cast %34 : vector<1x16x16x12xbf16> to vector<256x12xbf16>
    %c0_72 = arith.constant 0 : index
    %c3_73 = arith.constant 3 : index
    %c0_74 = arith.constant 0 : index
    %c0_75 = arith.constant 0 : index
    %36 = vector.load %arg1[%c0_72, %c3_73, %c0_74, %c0_75] : memref<1x19x19x12xbf16, #tpu.memory_space<vmem>>, vector<1x16x16x12xbf16>
    %37 = vector.shape_cast %36 : vector<1x16x16x12xbf16> to vector<256x12xbf16>
    %c0_76 = arith.constant 0 : index
    %c3_77 = arith.constant 3 : index
    %c1_78 = arith.constant 1 : index
    %c0_79 = arith.constant 0 : index
    %38 = vector.load %arg1[%c0_76, %c3_77, %c1_78, %c0_79] : memref<1x19x19x12xbf16, #tpu.memory_space<vmem>>, vector<1x16x16x12xbf16>
    %39 = vector.shape_cast %38 : vector<1x16x16x12xbf16> to vector<256x12xbf16>
    %c0_80 = arith.constant 0 : index
    %c3_81 = arith.constant 3 : index
    %c2_82 = arith.constant 2 : index
    %c0_83 = arith.constant 0 : index
    %40 = vector.load %arg1[%c0_80, %c3_81, %c2_82, %c0_83] : memref<1x19x19x12xbf16, #tpu.memory_space<vmem>>, vector<1x16x16x12xbf16>
    %41 = vector.shape_cast %40 : vector<1x16x16x12xbf16> to vector<256x12xbf16>
    %c0_84 = arith.constant 0 : index
    %c3_85 = arith.constant 3 : index
    %c3_86 = arith.constant 3 : index
    %c0_87 = arith.constant 0 : index
    %42 = vector.load %arg1[%c0_84, %c3_85, %c3_86, %c0_87] : memref<1x19x19x12xbf16, #tpu.memory_space<vmem>>, vector<1x16x16x12xbf16>
    %43 = vector.shape_cast %42 : vector<1x16x16x12xbf16> to vector<256x12xbf16>
    %44 = tpu.concatenate %13, %15, %17, %19, %21, %23, %25, %27, %29, %31, %33, %35, %37, %39, %41, %43 in 1 : vector<256x12xbf16>, vector<256x12xbf16>, vector<256x12xbf16>, vector<256x12xbf16>, vector<256x12xbf16>, vector<256x12xbf16>, vector<256x12xbf16>, vector<256x12xbf16>, vector<256x12xbf16>, vector<256x12xbf16>, vector<256x12xbf16>, vector<256x12xbf16>, vector<256x12xbf16>, vector<256x12xbf16>, vector<256x12xbf16>, vector<256x12xbf16> -> vector<256x192xbf16>
    %c0_88 = arith.constant 0 : index
    %c0_89 = arith.constant 0 : index
    %45 = vector.load %arg2[%c0_88, %c0_89] : memref<192x128xbf16, #tpu.memory_space<vmem>>, vector<192x128xbf16>
    %cst_90 = arith.constant dense<0.000000e+00> : vector<256x128xf32>
    %46 = tpu.matmul %44, %45, %cst_90 {dimension_numbers = #tpu.dot_dimension_numbers<[1], [0], [0], [1], [0, 0, 1, 1], [], []>} : vector<256x192xbf16>, vector<192x128xbf16>, vector<256x128xf32> -> vector<256x128xf32>
    %c0_91 = arith.constant 0 : index
    %c0_92 = arith.constant 0 : index
    %47 = vector.load %arg3[%c0_91, %c0_92] : memref<1x128xf32, #tpu.memory_space<vmem>>, vector<1x128xf32>
    %48 = vector.broadcast %47 : vector<1x128xf32> to vector<256x128xf32>
    %49 = arith.mulf %46, %48 : vector<256x128xf32>
    %c0_93 = arith.constant 0 : index
    %c0_94 = arith.constant 0 : index
    %50 = vector.load %arg4[%c0_93, %c0_94] : memref<1x128xf32, #tpu.memory_space<vmem>>, vector<1x128xf32>
    %51 = vector.broadcast %50 : vector<1x128xf32> to vector<256x128xf32>
    %52 = arith.addf %49, %51 : vector<256x128xf32>
    %cst_95 = arith.constant 0.000000e+00 : f32
    %53 = vector.broadcast %cst_95 : f32 to vector<256x128xf32>
    %54 = arith.maximumf %52, %53 : vector<256x128xf32>
    %55 = vector.shape_cast %54 : vector<256x128xf32> to vector<1x16x16x128xf32>
    %c0_96 = arith.constant 0 : index
    %c0_97 = arith.constant 0 : index
    %c1_98 = arith.constant 1 : index
    %c0_99 = arith.constant 0 : index
    %56 = vector.load %arg13[%c0_96, %c0_97, %c1_98, %c0_99] : memref<1x16x17x128xf32, #tpu.memory_space<vmem>>, vector<1x16x16x128xf32>
    tpu.vector_store %arg13[%c0_96, %c0_97, %c1_98, %c0_99], %55 {strides = array<i32>} : memref<1x16x17x128xf32, #tpu.memory_space<vmem>>, vector<1x16x16x128xf32>,
    %c0_100 = arith.constant 0 : index
    %c0_101 = arith.constant 0 : index
    %c0_102 = arith.constant 0 : index
    %c0_103 = arith.constant 0 : index
    %57 = tpu.strided_load %arg13[%c0_100, %c0_101, %c0_102, %c0_103] {strides = array<i32: 1, 1, 2, 1>} : memref<1x16x17x128xf32, #tpu.memory_space<vmem>>, vector<1x16x8x128xf32>
    %c0_104 = arith.constant 0 : index
    %c0_105 = arith.constant 0 : index
    %c1_106 = arith.constant 1 : index
    %c0_107 = arith.constant 0 : index
    %58 = tpu.strided_load %arg13[%c0_104, %c0_105, %c1_106, %c0_107] {strides = array<i32: 1, 1, 2, 1>} : memref<1x16x17x128xf32, #tpu.memory_space<vmem>>, vector<1x16x8x128xf32>
    %59 = arith.maximumf %57, %58 : vector<1x16x8x128xf32>
    %c0_108 = arith.constant 0 : index
    %c0_109 = arith.constant 0 : index
    %c2_110 = arith.constant 2 : index
    %c0_111 = arith.constant 0 : index
    %60 = tpu.strided_load %arg13[%c0_108, %c0_109, %c2_110, %c0_111] {strides = array<i32: 1, 1, 2, 1>} : memref<1x16x17x128xf32, #tpu.memory_space<vmem>>, vector<1x16x8x128xf32>
    %61 = arith.maximumf %59, %60 : vector<1x16x8x128xf32>
    %62 = vector.shape_cast %61 : vector<1x16x8x128xf32> to vector<1x8x2x8x128xf32>
    %63 = vector.extract_strided_slice %62 {offsets = [0, 0, 0, 0, 0], sizes = [1, 8, 1, 8, 128], strides = [1, 1, 1, 1, 1]} : vector<1x8x2x8x128xf32> to vector<1x8x1x8x128xf32>
    %64 = vector.shape_cast %63 : vector<1x8x1x8x128xf32> to vector<1x8x8x128xf32>
    %65 = vector.extract_strided_slice %62 {offsets = [0, 0, 1, 0, 0], sizes = [1, 8, 1, 8, 128], strides = [1, 1, 1, 1, 1]} : vector<1x8x2x8x128xf32> to vector<1x8x1x8x128xf32>
    %66 = vector.shape_cast %65 : vector<1x8x1x8x128xf32> to vector<1x8x8x128xf32>
    %c0_112 = arith.constant 0 : index
    %c1_113 = arith.constant 1 : index
    %c0_114 = arith.constant 0 : index
    %c0_115 = arith.constant 0 : index
    %67 = vector.load %arg14[%c0_112, %c1_113, %c0_114, %c0_115] : memref<1x9x8x128xf32, #tpu.memory_space<vmem>>, vector<1x8x8x128xf32>
    tpu.vector_store %arg14[%c0_112, %c1_113, %c0_114, %c0_115], %66 {strides = array<i32>} : memref<1x9x8x128xf32, #tpu.memory_space<vmem>>, vector<1x8x8x128xf32>,
    %68 = arith.maximumf %64, %66 : vector<1x8x8x128xf32>
    %c0_116 = arith.constant 0 : index
    %c0_117 = arith.constant 0 : index
    %c0_118 = arith.constant 0 : index
    %c0_119 = arith.constant 0 : index
    %69 = vector.load %arg14[%c0_116, %c0_117, %c0_118, %c0_119] : memref<1x9x8x128xf32, #tpu.memory_space<vmem>>, vector<1x8x8x128xf32>
    %70 = arith.maximumf %68, %69 : vector<1x8x8x128xf32>
    %71 = vector.shape_cast %70 : vector<1x8x8x128xf32> to vector<64x128xf32>
    %72 = vector.shape_cast %71 : vector<64x128xf32> to vector<1x8x8x128xf32>
    %c0_120 = arith.constant 0 : index
    %c1_121 = arith.constant 1 : index
    %c1_122 = arith.constant 1 : index
    %c0_123 = arith.constant 0 : index
    %73 = vector.load %arg15[%c0_120, %c1_121, %c1_122, %c0_123] : memref<1x10x10x128xf32, #tpu.memory_space<vmem>>, vector<1x8x8x128xf32>
    tpu.vector_store %arg15[%c0_120, %c1_121, %c1_122, %c0_123], %72 {strides = array<i32>} : memref<1x10x10x128xf32, #tpu.memory_space<vmem>>, vector<1x8x8x128xf32>,
    %c0_124 = arith.constant 0 : index
    %c0_125 = arith.constant 0 : index
    %c0_126 = arith.constant 0 : index
    %c0_127 = arith.constant 0 : index
    %74 = vector.load %arg15[%c0_124, %c0_125, %c0_126, %c0_127] : memref<1x10x10x128xf32, #tpu.memory_space<vmem>>, vector<1x8x8x128xf32>
    %75 = vector.shape_cast %74 : vector<1x8x8x128xf32> to vector<64x128xf32>
    %c0_128 = arith.constant 0 : index
    %c0_129 = arith.constant 0 : index
    %c1_130 = arith.constant 1 : index
    %c0_131 = arith.constant 0 : index
    %76 = vector.load %arg15[%c0_128, %c0_129, %c1_130, %c0_131] : memref<1x10x10x128xf32, #tpu.memory_space<vmem>>, vector<1x8x8x128xf32>
    %77 = vector.shape_cast %76 : vector<1x8x8x128xf32> to vector<64x128xf32>
    %c0_132 = arith.constant 0 : index
    %c0_133 = arith.constant 0 : index
    %c2_134 = arith.constant 2 : index
    %c0_135 = arith.constant 0 : index
    %78 = vector.load %arg15[%c0_132, %c0_133, %c2_134, %c0_135] : memref<1x10x10x128xf32, #tpu.memory_space<vmem>>, vector<1x8x8x128xf32>
    %79 = vector.shape_cast %78 : vector<1x8x8x128xf32> to vector<64x128xf32>
    %c0_136 = arith.constant 0 : index
    %c1_137 = arith.constant 1 : index
    %c0_138 = arith.constant 0 : index
    %c0_139 = arith.constant 0 : index
    %80 = vector.load %arg15[%c0_136, %c1_137, %c0_138, %c0_139] : memref<1x10x10x128xf32, #tpu.memory_space<vmem>>, vector<1x8x8x128xf32>
    %81 = vector.shape_cast %80 : vector<1x8x8x128xf32> to vector<64x128xf32>
    %c0_140 = arith.constant 0 : index
    %c1_141 = arith.constant 1 : index
    %c1_142 = arith.constant 1 : index
    %c0_143 = arith.constant 0 : index
    %82 = vector.load %arg15[%c0_140, %c1_141, %c1_142, %c0_143] : memref<1x10x10x128xf32, #tpu.memory_space<vmem>>, vector<1x8x8x128xf32>
    %83 = vector.shape_cast %82 : vector<1x8x8x128xf32> to vector<64x128xf32>
    %c0_144 = arith.constant 0 : index
    %c1_145 = arith.constant 1 : index
    %c2_146 = arith.constant 2 : index
    %c0_147 = arith.constant 0 : index
    %84 = vector.load %arg15[%c0_144, %c1_145, %c2_146, %c0_147] : memref<1x10x10x128xf32, #tpu.memory_space<vmem>>, vector<1x8x8x128xf32>
    %85 = vector.shape_cast %84 : vector<1x8x8x128xf32> to vector<64x128xf32>
    %c0_148 = arith.constant 0 : index
    %c2_149 = arith.constant 2 : index
    %c0_150 = arith.constant 0 : index
    %c0_151 = arith.constant 0 : index
    %86 = vector.load %arg15[%c0_148, %c2_149, %c0_150, %c0_151] : memref<1x10x10x128xf32, #tpu.memory_space<vmem>>, vector<1x8x8x128xf32>
    %87 = vector.shape_cast %86 : vector<1x8x8x128xf32> to vector<64x128xf32>
    %c0_152 = arith.constant 0 : index
    %c2_153 = arith.constant 2 : index
    %c1_154 = arith.constant 1 : index
    %c0_155 = arith.constant 0 : index
    %88 = vector.load %arg15[%c0_152, %c2_153, %c1_154, %c0_155] : memref<1x10x10x128xf32, #tpu.memory_space<vmem>>, vector<1x8x8x128xf32>
    %89 = vector.shape_cast %88 : vector<1x8x8x128xf32> to vector<64x128xf32>
    %c0_156 = arith.constant 0 : index
    %c2_157 = arith.constant 2 : index
    %c2_158 = arith.constant 2 : index
    %c0_159 = arith.constant 0 : index
    %90 = vector.load %arg15[%c0_156, %c2_157, %c2_158, %c0_159] : memref<1x10x10x128xf32, #tpu.memory_space<vmem>>, vector<1x8x8x128xf32>
    %91 = vector.shape_cast %90 : vector<1x8x8x128xf32> to vector<64x128xf32>
    %92 = tpu.concatenate %75, %77, %79, %81, %83, %85, %87, %89, %91 in 1 : vector<64x128xf32>, vector<64x128xf32>, vector<64x128xf32>, vector<64x128xf32>, vector<64x128xf32>, vector<64x128xf32>, vector<64x128xf32>, vector<64x128xf32>, vector<64x128xf32> -> vector<64x1152xf32>
    %93 = arith.truncf %92 : vector<64x1152xf32> to vector<64x1152xbf16>
    %c0_160 = arith.constant 0 : index
    %c0_161 = arith.constant 0 : index
    %94 = vector.load %arg5[%c0_160, %c0_161] : memref<1152x128xbf16, #tpu.memory_space<vmem>>, vector<1152x128xbf16>
    %cst_162 = arith.constant dense<0.000000e+00> : vector<64x128xf32>
    %95 = tpu.matmul %93, %94, %cst_162 {dimension_numbers = #tpu.dot_dimension_numbers<[1], [0], [0], [1], [0, 0, 1, 1], [], []>} : vector<64x1152xbf16>, vector<1152x128xbf16>, vector<64x128xf32> -> vector<64x128xf32>
    %c0_163 = arith.constant 0 : index
    %c0_164 = arith.constant 0 : index
    %96 = vector.load %arg6[%c0_163, %c0_164] : memref<1x128xf32, #tpu.memory_space<vmem>>, vector<1x128xf32>
    %97 = vector.broadcast %96 : vector<1x128xf32> to vector<64x128xf32>
    %98 = arith.mulf %95, %97 : vector<64x128xf32>
    %c0_165 = arith.constant 0 : index
    %c0_166 = arith.constant 0 : index
    %99 = vector.load %arg7[%c0_165, %c0_166] : memref<1x128xf32, #tpu.memory_space<vmem>>, vector<1x128xf32>
    %100 = vector.broadcast %99 : vector<1x128xf32> to vector<64x128xf32>
    %101 = arith.addf %98, %100 : vector<64x128xf32>
    %cst_167 = arith.constant 0.000000e+00 : f32
    %102 = vector.broadcast %cst_167 : f32 to vector<64x128xf32>
    %103 = arith.maximumf %101, %102 : vector<64x128xf32>
    %104 = vector.shape_cast %103 : vector<64x128xf32> to vector<1x8x8x128xf32>
    %c0_168 = arith.constant 0 : index
    %c1_169 = arith.constant 1 : index
    %c1_170 = arith.constant 1 : index
    %c0_171 = arith.constant 0 : index
    %105 = vector.load %arg15[%c0_168, %c1_169, %c1_170, %c0_171] : memref<1x10x10x128xf32, #tpu.memory_space<vmem>>, vector<1x8x8x128xf32>
    tpu.vector_store %arg15[%c0_168, %c1_169, %c1_170, %c0_171], %104 {strides = array<i32>} : memref<1x10x10x128xf32, #tpu.memory_space<vmem>>, vector<1x8x8x128xf32>,
    %c0_172 = arith.constant 0 : index
    %c0_173 = arith.constant 0 : index
    %c0_174 = arith.constant 0 : index
    %c0_175 = arith.constant 0 : index
    %106 = vector.load %arg15[%c0_172, %c0_173, %c0_174, %c0_175] : memref<1x10x10x128xf32, #tpu.memory_space<vmem>>, vector<1x8x8x128xf32>
    %107 = vector.shape_cast %106 : vector<1x8x8x128xf32> to vector<64x128xf32>
    %c0_176 = arith.constant 0 : index
    %c0_177 = arith.constant 0 : index
    %c1_178 = arith.constant 1 : index
    %c0_179 = arith.constant 0 : index
    %108 = vector.load %arg15[%c0_176, %c0_177, %c1_178, %c0_179] : memref<1x10x10x128xf32, #tpu.memory_space<vmem>>, vector<1x8x8x128xf32>
    %109 = vector.shape_cast %108 : vector<1x8x8x128xf32> to vector<64x128xf32>
    %c0_180 = arith.constant 0 : index
    %c0_181 = arith.constant 0 : index
    %c2_182 = arith.constant 2 : index
    %c0_183 = arith.constant 0 : index
    %110 = vector.load %arg15[%c0_180, %c0_181, %c2_182, %c0_183] : memref<1x10x10x128xf32, #tpu.memory_space<vmem>>, vector<1x8x8x128xf32>
    %111 = vector.shape_cast %110 : vector<1x8x8x128xf32> to vector<64x128xf32>
    %c0_184 = arith.constant 0 : index
    %c1_185 = arith.constant 1 : index
    %c0_186 = arith.constant 0 : index
    %c0_187 = arith.constant 0 : index
    %112 = vector.load %arg15[%c0_184, %c1_185, %c0_186, %c0_187] : memref<1x10x10x128xf32, #tpu.memory_space<vmem>>, vector<1x8x8x128xf32>
    %113 = vector.shape_cast %112 : vector<1x8x8x128xf32> to vector<64x128xf32>
    %c0_188 = arith.constant 0 : index
    %c1_189 = arith.constant 1 : index
    %c1_190 = arith.constant 1 : index
    %c0_191 = arith.constant 0 : index
    %114 = vector.load %arg15[%c0_188, %c1_189, %c1_190, %c0_191] : memref<1x10x10x128xf32, #tpu.memory_space<vmem>>, vector<1x8x8x128xf32>
    %115 = vector.shape_cast %114 : vector<1x8x8x128xf32> to vector<64x128xf32>
    %c0_192 = arith.constant 0 : index
    %c1_193 = arith.constant 1 : index
    %c2_194 = arith.constant 2 : index
    %c0_195 = arith.constant 0 : index
    %116 = vector.load %arg15[%c0_192, %c1_193, %c2_194, %c0_195] : memref<1x10x10x128xf32, #tpu.memory_space<vmem>>, vector<1x8x8x128xf32>
    %117 = vector.shape_cast %116 : vector<1x8x8x128xf32> to vector<64x128xf32>
    %c0_196 = arith.constant 0 : index
    %c2_197 = arith.constant 2 : index
    %c0_198 = arith.constant 0 : index
    %c0_199 = arith.constant 0 : index
    %118 = vector.load %arg15[%c0_196, %c2_197, %c0_198, %c0_199] : memref<1x10x10x128xf32, #tpu.memory_space<vmem>>, vector<1x8x8x128xf32>
    %119 = vector.shape_cast %118 : vector<1x8x8x128xf32> to vector<64x128xf32>
    %c0_200 = arith.constant 0 : index
    %c2_201 = arith.constant 2 : index
    %c1_202 = arith.constant 1 : index
    %c0_203 = arith.constant 0 : index
    %120 = vector.load %arg15[%c0_200, %c2_201, %c1_202, %c0_203] : memref<1x10x10x128xf32, #tpu.memory_space<vmem>>, vector<1x8x8x128xf32>
    %121 = vector.shape_cast %120 : vector<1x8x8x128xf32> to vector<64x128xf32>
    %c0_204 = arith.constant 0 : index
    %c2_205 = arith.constant 2 : index
    %c2_206 = arith.constant 2 : index
    %c0_207 = arith.constant 0 : index
    %122 = vector.load %arg15[%c0_204, %c2_205, %c2_206, %c0_207] : memref<1x10x10x128xf32, #tpu.memory_space<vmem>>, vector<1x8x8x128xf32>
    %123 = vector.shape_cast %122 : vector<1x8x8x128xf32> to vector<64x128xf32>
    %124 = tpu.concatenate %107, %109, %111, %113, %115, %117, %119, %121, %123 in 1 : vector<64x128xf32>, vector<64x128xf32>, vector<64x128xf32>, vector<64x128xf32>, vector<64x128xf32>, vector<64x128xf32>, vector<64x128xf32>, vector<64x128xf32>, vector<64x128xf32> -> vector<64x1152xf32>
    %125 = arith.truncf %124 : vector<64x1152xf32> to vector<64x1152xbf16>
    %c0_208 = arith.constant 0 : index
    %c0_209 = arith.constant 0 : index
    %126 = vector.load %arg8[%c0_208, %c0_209] : memref<1152x128xbf16, #tpu.memory_space<vmem>>, vector<1152x128xbf16>
    %cst_210 = arith.constant dense<0.000000e+00> : vector<64x128xf32>
    %127 = tpu.matmul %125, %126, %cst_210 {dimension_numbers = #tpu.dot_dimension_numbers<[1], [0], [0], [1], [0, 0, 1, 1], [], []>} : vector<64x1152xbf16>, vector<1152x128xbf16>, vector<64x128xf32> -> vector<64x128xf32>
    %c0_211 = arith.constant 0 : index
    %c0_212 = arith.constant 0 : index
    %128 = vector.load %arg9[%c0_211, %c0_212] : memref<1x128xf32, #tpu.memory_space<vmem>>, vector<1x128xf32>
    %129 = vector.broadcast %128 : vector<1x128xf32> to vector<64x128xf32>
    %130 = arith.mulf %127, %129 : vector<64x128xf32>
    %c0_213 = arith.constant 0 : index
    %c0_214 = arith.constant 0 : index
    %131 = vector.load %arg10[%c0_213, %c0_214] : memref<1x128xf32, #tpu.memory_space<vmem>>, vector<1x128xf32>
    %132 = vector.broadcast %131 : vector<1x128xf32> to vector<64x128xf32>
    %133 = arith.addf %130, %132 : vector<64x128xf32>
    %134 = arith.addf %133, %71 : vector<64x128xf32>
    %cst_215 = arith.constant 0.000000e+00 : f32
    %135 = vector.broadcast %cst_215 : f32 to vector<64x128xf32>
    %136 = arith.maximumf %134, %135 : vector<64x128xf32>
    %137 = vector.shape_cast %136 : vector<64x128xf32> to vector<1x8x8x128xf32>
    %c0_216 = arith.constant 0 : index
    %c0_217 = arith.constant 0 : index
    %c0_218 = arith.constant 0 : index
    %c0_219 = arith.constant 0 : index
    %138 = vector.load %arg11[%c0_216, %c0_217, %c0_218, %c0_219] : memref<1x8x8x128xf32, #tpu.memory_space<vmem>>, vector<1x8x8x128xf32>
    tpu.vector_store %arg11[%c0_216, %c0_217, %c0_218, %c0_219], %137 {strides = array<i32>} : memref<1x8x8x128xf32, #tpu.memory_space<vmem>>, vector<1x8x8x128xf32>,
    %139 = vector.shape_cast %136 : vector<64x128xf32> to vector<1x64x128xf32>
    %cst_220 = arith.constant dense<0.000000e+00> : vector<1x128xf32>
    %140 = vector.multi_reduction <add>, %139, %cst_220 [1] : vector<1x64x128xf32> to vector<1x128xf32>
    %141 = vector.shape_cast %140 : vector<1x128xf32> to vector<1x1x128xf32>
    %cst_221 = arith.constant 6.400000e+01 : f32
    %142 = vector.broadcast %cst_221 : f32 to vector<1x1x128xf32>
    %143 = arith.divf %141, %142 : vector<1x1x128xf32>
    %c0_222 = arith.constant 0 : index
    %c0_223 = arith.constant 0 : index
    %c0_224 = arith.constant 0 : index
    %144 = vector.load %arg12[%c0_222, %c0_223, %c0_224] : memref<1x1x128xf32, #tpu.memory_space<vmem>>, vector<1x1x128xf32>
    tpu.vector_store %arg12[%c0_222, %c0_223, %c0_224], %143 {strides = array<i32>} : memref<1x1x128xf32, #tpu.memory_space<vmem>>, vector<1x1x128xf32>,
    return
  }
  func.func @transform_0(%arg0: i32) -> (i32, i32, i32, i32) {
    %c0_i32 = arith.constant 0 : i32
    %c0_i32_0 = arith.constant 0 : i32
    %c0_i32_1 = arith.constant 0 : i32
    %c0_i32_2 = arith.constant 0 : i32
    return %arg0, %c0_i32, %c0_i32_0, %c0_i32_1 : i32, i32, i32, i32
  }
  func.func @transform_1(%arg0: i32) -> (i32, i32) {
    %c0_i32 = arith.constant 0 : i32
    %c0_i32_0 = arith.constant 0 : i32
    %c0_i32_1 = arith.constant 0 : i32
    return %c0_i32, %c0_i32_0 : i32, i32
  }
  func.func @transform_2(%arg0: i32) -> (i32, i32) {
    %c0_i32 = arith.constant 0 : i32
    %c0_i32_0 = arith.constant 0 : i32
    %c0_i32_1 = arith.constant 0 : i32
    return %c0_i32, %c0_i32_0 : i32, i32
  }
  func.func @transform_3(%arg0: i32) -> (i32, i32) {
    %c0_i32 = arith.constant 0 : i32
    %c0_i32_0 = arith.constant 0 : i32
    %c0_i32_1 = arith.constant 0 : i32
    return %c0_i32, %c0_i32_0 : i32, i32
  }
  func.func @transform_4(%arg0: i32) -> (i32, i32) {
    %c0_i32 = arith.constant 0 : i32
    %c0_i32_0 = arith.constant 0 : i32
    %c0_i32_1 = arith.constant 0 : i32
    return %c0_i32, %c0_i32_0 : i32, i32
  }
  func.func @transform_5(%arg0: i32) -> (i32, i32) {
    %c0_i32 = arith.constant 0 : i32
    %c0_i32_0 = arith.constant 0 : i32
    %c0_i32_1 = arith.constant 0 : i32
    return %c0_i32, %c0_i32_0 : i32, i32
  }
  func.func @transform_6(%arg0: i32) -> (i32, i32) {
    %c0_i32 = arith.constant 0 : i32
    %c0_i32_0 = arith.constant 0 : i32
    %c0_i32_1 = arith.constant 0 : i32
    return %c0_i32, %c0_i32_0 : i32, i32
  }
  func.func @transform_7(%arg0: i32) -> (i32, i32) {
    %c0_i32 = arith.constant 0 : i32
    %c0_i32_0 = arith.constant 0 : i32
    %c0_i32_1 = arith.constant 0 : i32
    return %c0_i32, %c0_i32_0 : i32, i32
  }
  func.func @transform_8(%arg0: i32) -> (i32, i32) {
    %c0_i32 = arith.constant 0 : i32
    %c0_i32_0 = arith.constant 0 : i32
    %c0_i32_1 = arith.constant 0 : i32
    return %c0_i32, %c0_i32_0 : i32, i32
  }
  func.func @transform_9(%arg0: i32) -> (i32, i32) {
    %c0_i32 = arith.constant 0 : i32
    %c0_i32_0 = arith.constant 0 : i32
    %c0_i32_1 = arith.constant 0 : i32
    return %c0_i32, %c0_i32_0 : i32, i32
  }
  func.func @transform_10(%arg0: i32) -> (i32, i32, i32, i32) {
    %c0_i32 = arith.constant 0 : i32
    %c0_i32_0 = arith.constant 0 : i32
    %c0_i32_1 = arith.constant 0 : i32
    %c0_i32_2 = arith.constant 0 : i32
    return %arg0, %c0_i32, %c0_i32_0, %c0_i32_1 : i32, i32, i32, i32
  }
  func.func @transform_11(%arg0: i32) -> (i32, i32, i32) {
    %c0_i32 = arith.constant 0 : i32
    %c0_i32_0 = arith.constant 0 : i32
    %c0_i32_1 = arith.constant 0 : i32
    return %arg0, %c0_i32, %c0_i32_0 : i32, i32, i32
  }
}

</mosaic_0001>

<llo_original>
// kernel: wrapped_model_forward.1
$region0: #{wrapped_model_forward.1}
  #allocation0 [shape = 'u32[]', space=smem, size = 0x4, offset = 0x4, fixed_abs, tag = 'smem constant byte address 0x4 - core index']
  #allocation1 [shape = 'u32[144,128]{1,0:T(1,128)}', space=vmem, size = 0x12000, scoped, tag = 'internal scratch']
  #allocation2 [shape = 'f32[1,16,17,128]{3,2,1,0:T(8,128)}', space=vmem, size = 0x30000, scoped, tag = 'scratch operand']
  #allocation3 [shape = 'f32[1,9,8,128]{3,2,1,0:T(8,128)}', space=vmem, size = 0x9000, scoped, tag = 'scratch operand']
  #allocation4 [shape = 'f32[1,10,10,128]{3,2,1,0:T(8,128)}', space=vmem, size = 0x14000, scoped, tag = 'scratch operand']
  %s0 = inlined_call_operand.vmem [shape: bf16[2,19,19,12], index: 0, kind: input, shape index: {}]
  %s1 = inlined_call_operand.vmem [shape: bf16[192,128], index: 1, kind: input, shape index: {}]
  %s2 = inlined_call_operand.vmem [shape: f32[1,128], index: 2, kind: input, shape index: {}]
  %s3 = inlined_call_operand.vmem [shape: f32[1,128], index: 3, kind: input, shape index: {}]
  %s4 = inlined_call_operand.vmem [shape: bf16[1152,128], index: 4, kind: input, shape index: {}]
  %s5 = inlined_call_operand.vmem [shape: f32[1,128], index: 5, kind: input, shape index: {}]
  %s6 = inlined_call_operand.vmem [shape: f32[1,128], index: 6, kind: input, shape index: {}]
  %s7 = inlined_call_operand.vmem [shape: bf16[1152,128], index: 7, kind: input, shape index: {}]
  %s8 = inlined_call_operand.vmem [shape: f32[1,128], index: 8, kind: input, shape index: {}]
  %s9 = inlined_call_operand.vmem [shape: f32[1,128], index: 9, kind: input, shape index: {}]
  %s10 = inlined_call_operand.hbm [shape: f32[2,8,8,128], index: 10, kind: output, shape index: {0}]
  %s11 = inlined_call_operand.hbm [shape: f32[2,1,128], index: 11, kind: output, shape index: {1}]
  %12 = xla_tuple %s10, %s11
  %s13 = sld [smem:[#allocation0]]
  $region81: #{wrapped_model_forward.1} parent=0
    _
  %s15 = ssub.s32 1, %s13
  %s16 = scalar_select 0, %s15, %s13
  $region1: #{wrapped_model_forward.1} parent=0
    #allocation5 [shape = 'u8[65536]{0}', space=vmem, size = 0x10000, scoped, tag = 'output window, operand 0']
    #allocation6 [shape = 's32[2]{0}', space=sflag, size = 0x8, scoped, tag = 'scoped memory for wrapped_model_forward.1']
    #allocation7 [shape = 'u8[1024]{0}', space=vmem, size = 0x400, scoped, tag = 'output window, operand 1']
    #allocation8 [shape = 's32[2]{0}', space=sflag, size = 0x8, scoped, tag = 'scoped memory for wrapped_model_forward.1']
    %17 = vsyncpa [#allocation6], 0
    %s18 = scalar_lea.sflag [#allocation6], 1
    %19 = vsyncpa %s18, 0
    %20 = vsyncpa [#allocation8], 0
    %s21 = scalar_lea.sflag [#allocation8], 1
    %22 = vsyncpa %s21, 0
    loop: start=0, step=1, limit=4
    $region2: #{wrapped_model_forward.1} parent=1 // loop_pre_header
      _
    $region3: #{wrapped_model_forward.1} parent=1 // loop_header
      %s24 = sphi 0, %s28
      %p25 = scmp.ge.s32.totalorder %s24, 4
      %s34 = sphi 0, %s36
      %s37 = sphi 0, %s34
      %s38 = sphi 0, %s37
      %s54 = sphi 0, %s38
      %s58 = sphi 0, %s58
      %s60 = sphi 0, %s58
      %s61 = sphi 0, %s60
      %s75 = sphi 0, %s61
      %s79 = sphi 0, %s79
      %s81 = sphi 0, %s79
      %s82 = sphi 0, %s81
      %s96 = sphi 0, %s82
      %s100 = sphi 0, %s100
      %s102 = sphi 0, %s100
      %s103 = sphi 0, %s102
      %s117 = sphi 0, %s103
      %s121 = sphi 0, %s121
      %s123 = sphi 0, %s121
      %s124 = sphi 0, %s123
      %s138 = sphi 0, %s124
      %s142 = sphi 0, %s142
      %s144 = sphi 0, %s142
      %s145 = sphi 0, %s144
      %s159 = sphi 0, %s145
      %s163 = sphi 0, %s163
      %s165 = sphi 0, %s163
      %s166 = sphi 0, %s165
      %s180 = sphi 0, %s166
      %s184 = sphi 0, %s184
      %s186 = sphi 0, %s184
      %s187 = sphi 0, %s186
      %s201 = sphi 0, %s187
      %s205 = sphi 0, %s205
      %s207 = sphi 0, %s205
      %s208 = sphi 0, %s207
      %s222 = sphi 0, %s208
      %s226 = sphi 0, %s226
      %s228 = sphi 0, %s226
      %s229 = sphi 0, %s228
      %s243 = sphi 0, %s229
      %s249 = sphi 0, %s251
      %s252 = sphi 0, %s249
      %s253 = sphi 0, %s252
      %s269 = sphi 0, %s253
      %s275 = sphi 0, %s277
      %s278 = sphi 0, %s275
      %s279 = sphi 0, %s278
      %s295 = sphi 0, %s279
    $region4: #{wrapped_model_forward.1} parent=1 // loop_header_branch
      %27 = sbr.rel (%p25) target = $region8
    $region5: #{wrapped_model_forward.1} parent=1 // loop_body
      %s29 = ssub.s32 %s24, 1
      %s30 = ssub.s32 %s24, 2
      %s31 = sadd.s32 %s24, 1
      %s32 = ssub.s32 %s24, %s31
      %p33 = scmp.eq.s32.totalorder %s32, 0
      %s35 = sadd.s32 %s34, 1
      %s36 = scalar_select %p33, %s34, %s35
      %p39 = pneg %p33
      %p40 = scmp.eq.s32.totalorder %s24, 1
      %p41 = por %p39, %p40
      %p42 = scmp.ne.s32.totalorder %s34, %s37
      %p43 = scmp.eq.s32.totalorder %s24, 0
      %p44 = por %p42, %p43
      %p45 = scmp.ne.s32.totalorder %s34, %s37
      %p46 = scmp.eq.s32.totalorder %s29, 1
      %p47 = por %p45, %p46
      %p48 = scmp.ne.s32.totalorder %s37, %s38
      %p49 = scmp.eq.s32.totalorder %s29, 0
      %p50 = por %p48, %p49
      %p51 = scmp.ne.s32.totalorder %s37, %s38
      %p52 = scmp.eq.s32.totalorder %s30, 1
      %p53 = por %p51, %p52
      %p55 = scmp.ne.s32.totalorder %s38, %s54
      %p56 = scmp.eq.s32.totalorder %s30, 0
      %p57 = por %p55, %p56
      %s59 = sadd.s32 %s58, 1
      %p62 = scmp.eq.s32.totalorder %s24, 1
      %p63 = scmp.ne.s32.totalorder %s58, %s60
      %p64 = scmp.eq.s32.totalorder %s24, 0
      %p65 = por %p63, %p64
      %p66 = scmp.ne.s32.totalorder %s58, %s60
      %p67 = scmp.eq.s32.totalorder %s29, 1
      %p68 = por %p66, %p67
      %p69 = scmp.ne.s32.totalorder %s60, %s61
      %p70 = scmp.eq.s32.totalorder %s29, 0
      %p71 = por %p69, %p70
      %p72 = scmp.ne.s32.totalorder %s60, %s61
      %p73 = scmp.eq.s32.totalorder %s30, 1
      %p74 = por %p72, %p73
      %p76 = scmp.ne.s32.totalorder %s61, %s75
      %p77 = scmp.eq.s32.totalorder %s30, 0
      %p78 = por %p76, %p77
      %s80 = sadd.s32 %s79, 1
      %p83 = scmp.eq.s32.totalorder %s24, 1
      %p84 = scmp.ne.s32.totalorder %s79, %s81
      %p85 = scmp.eq.s32.totalorder %s24, 0
      %p86 = por %p84, %p85
      %p87 = scmp.ne.s32.totalorder %s79, %s81
      %p88 = scmp.eq.s32.totalorder %s29, 1
      %p89 = por %p87, %p88
      %p90 = scmp.ne.s32.totalorder %s81, %s82
      %p91 = scmp.eq.s32.totalorder %s29, 0
      %p92 = por %p90, %p91
      %p93 = scmp.ne.s32.totalorder %s81, %s82
      %p94 = scmp.eq.s32.totalorder %s30, 1
      %p95 = por %p93, %p94
      %p97 = scmp.ne.s32.totalorder %s82, %s96
      %p98 = scmp.eq.s32.totalorder %s30, 0
      %p99 = por %p97, %p98
      %s101 = sadd.s32 %s100, 1
      %p104 = scmp.eq.s32.totalorder %s24, 1
      %p105 = scmp.ne.s32.totalorder %s100, %s102
      %p106 = scmp.eq.s32.totalorder %s24, 0
      %p107 = por %p105, %p106
      %p108 = scmp.ne.s32.totalorder %s100, %s102
      %p109 = scmp.eq.s32.totalorder %s29, 1
      %p110 = por %p108, %p109
      %p111 = scmp.ne.s32.totalorder %s102, %s103
      %p112 = scmp.eq.s32.totalorder %s29, 0
      %p113 = por %p111, %p112
      %p114 = scmp.ne.s32.totalorder %s102, %s103
      %p115 = scmp.eq.s32.totalorder %s30, 1
      %p116 = por %p114, %p115
      %p118 = scmp.ne.s32.totalorder %s103, %s117
      %p119 = scmp.eq.s32.totalorder %s30, 0
      %p120 = por %p118, %p119
      %s122 = sadd.s32 %s121, 1
      %p125 = scmp.eq.s32.totalorder %s24, 1
      %p126 = scmp.ne.s32.totalorder %s121, %s123
      %p127 = scmp.eq.s32.totalorder %s24, 0
      %p128 = por %p126, %p127
      %p129 = scmp.ne.s32.totalorder %s121, %s123
      %p130 = scmp.eq.s32.totalorder %s29, 1
      %p131 = por %p129, %p130
      %p132 = scmp.ne.s32.totalorder %s123, %s124
      %p133 = scmp.eq.s32.totalorder %s29, 0
      %p134 = por %p132, %p133
      %p135 = scmp.ne.s32.totalorder %s123, %s124
      %p136 = scmp.eq.s32.totalorder %s30, 1
      %p137 = por %p135, %p136
      %p139 = scmp.ne.s32.totalorder %s124, %s138
      %p140 = scmp.eq.s32.totalorder %s30, 0
      %p141 = por %p139, %p140
      %s143 = sadd.s32 %s142, 1
      %p146 = scmp.eq.s32.totalorder %s24, 1
      %p147 = scmp.ne.s32.totalorder %s142, %s144
      %p148 = scmp.eq.s32.totalorder %s24, 0
      %p149 = por %p147, %p148
      %p150 = scmp.ne.s32.totalorder %s142, %s144
      %p151 = scmp.eq.s32.totalorder %s29, 1
      %p152 = por %p150, %p151
      %p153 = scmp.ne.s32.totalorder %s144, %s145
      %p154 = scmp.eq.s32.totalorder %s29, 0
      %p155 = por %p153, %p154
      %p156 = scmp.ne.s32.totalorder %s144, %s145
      %p157 = scmp.eq.s32.totalorder %s30, 1
      %p158 = por %p156, %p157
      %p160 = scmp.ne.s32.totalorder %s145, %s159
      %p161 = scmp.eq.s32.totalorder %s30, 0
      %p162 = por %p160, %p161
      %s164 = sadd.s32 %s163, 1
      %p167 = scmp.eq.s32.totalorder %s24, 1
      %p168 = scmp.ne.s32.totalorder %s163, %s165
      %p169 = scmp.eq.s32.totalorder %s24, 0
      %p170 = por %p168, %p169
      %p171 = scmp.ne.s32.totalorder %s163, %s165
      %p172 = scmp.eq.s32.totalorder %s29, 1
      %p173 = por %p171, %p172
      %p174 = scmp.ne.s32.totalorder %s165, %s166
      %p175 = scmp.eq.s32.totalorder %s29, 0
      %p176 = por %p174, %p175
      %p177 = scmp.ne.s32.totalorder %s165, %s166
      %p178 = scmp.eq.s32.totalorder %s30, 1
      %p179 = por %p177, %p178
      %p181 = scmp.ne.s32.totalorder %s166, %s180
      %p182 = scmp.eq.s32.totalorder %s30, 0
      %p183 = por %p181, %p182
      %s185 = sadd.s32 %s184, 1
      %p188 = scmp.eq.s32.totalorder %s24, 1
      %p189 = scmp.ne.s32.totalorder %s184, %s186
      %p190 = scmp.eq.s32.totalorder %s24, 0
      %p191 = por %p189, %p190
      %p192 = scmp.ne.s32.totalorder %s184, %s186
      %p193 = scmp.eq.s32.totalorder %s29, 1
      %p194 = por %p192, %p193
      %p195 = scmp.ne.s32.totalorder %s186, %s187
      %p196 = scmp.eq.s32.totalorder %s29, 0
      %p197 = por %p195, %p196
      %p198 = scmp.ne.s32.totalorder %s186, %s187
      %p199 = scmp.eq.s32.totalorder %s30, 1
      %p200 = por %p198, %p199
      %p202 = scmp.ne.s32.totalorder %s187, %s201
      %p203 = scmp.eq.s32.totalorder %s30, 0
      %p204 = por %p202, %p203
      %s206 = sadd.s32 %s205, 1
      %p209 = scmp.eq.s32.totalorder %s24, 1
      %p210 = scmp.ne.s32.totalorder %s205, %s207
      %p211 = scmp.eq.s32.totalorder %s24, 0
      %p212 = por %p210, %p211
      %p213 = scmp.ne.s32.totalorder %s205, %s207
      %p214 = scmp.eq.s32.totalorder %s29, 1
      %p215 = por %p213, %p214
      %p216 = scmp.ne.s32.totalorder %s207, %s208
      %p217 = scmp.eq.s32.totalorder %s29, 0
      %p218 = por %p216, %p217
      %p219 = scmp.ne.s32.totalorder %s207, %s208
      %p220 = scmp.eq.s32.totalorder %s30, 1
      %p221 = por %p219, %p220
      %p223 = scmp.ne.s32.totalorder %s208, %s222
      %p224 = scmp.eq.s32.totalorder %s30, 0
      %p225 = por %p223, %p224
      %s227 = sadd.s32 %s226, 1
      %p230 = scmp.eq.s32.totalorder %s24, 1
      %p231 = scmp.ne.s32.totalorder %s226, %s228
      %p232 = scmp.eq.s32.totalorder %s24, 0
      %p233 = por %p231, %p232
      %p234 = scmp.ne.s32.totalorder %s226, %s228
      %p235 = scmp.eq.s32.totalorder %s29, 1
      %p236 = por %p234, %p235
      %p237 = scmp.ne.s32.totalorder %s228, %s229
      %p238 = scmp.eq.s32.totalorder %s29, 0
      %p239 = por %p237, %p238
      %p240 = scmp.ne.s32.totalorder %s228, %s229
      %p241 = scmp.eq.s32.totalorder %s30, 1
      %p242 = por %p240, %p241
      %p244 = scmp.ne.s32.totalorder %s229, %s243
      %p245 = scmp.eq.s32.totalorder %s30, 0
      %p246 = por %p244, %p245
      %s247 = ssub.s32 %s24, %s31
      %p248 = scmp.eq.s32.totalorder %s247, 0
      %s250 = sadd.s32 %s249, 1
      %s251 = scalar_select %p248, %s249, %s250
      %p254 = pneg %p248
      %p255 = scmp.eq.s32.totalorder %s24, 1
      %p256 = por %p254, %p255
      %p257 = scmp.ne.s32.totalorder %s249, %s252
      %p258 = scmp.eq.s32.totalorder %s24, 0
      %p259 = por %p257, %p258
      %p260 = scmp.ne.s32.totalorder %s249, %s252
      %p261 = scmp.eq.s32.totalorder %s29, 1
      %p262 = por %p260, %p261
      %p263 = scmp.ne.s32.totalorder %s252, %s253
      %p264 = scmp.eq.s32.totalorder %s29, 0
      %p265 = por %p263, %p264
      %p266 = scmp.ne.s32.totalorder %s252, %s253
      %p267 = scmp.eq.s32.totalorder %s30, 1
      %p268 = por %p266, %p267
      %p270 = scmp.ne.s32.totalorder %s253, %s269
      %p271 = scmp.eq.s32.totalorder %s30, 0
      %p272 = por %p270, %p271
      %s273 = ssub.s32 %s24, %s31
      %p274 = scmp.eq.s32.totalorder %s273, 0
      %s276 = sadd.s32 %s275, 1
      %s277 = scalar_select %p274, %s275, %s276
      %p280 = pneg %p274
      %p281 = scmp.eq.s32.totalorder %s24, 1
      %p282 = por %p280, %p281
      %p283 = scmp.ne.s32.totalorder %s275, %s278
      %p284 = scmp.eq.s32.totalorder %s24, 0
      %p285 = por %p283, %p284
      %p286 = scmp.ne.s32.totalorder %s275, %s278
      %p287 = scmp.eq.s32.totalorder %s29, 1
      %p288 = por %p286, %p287
      %p289 = scmp.ne.s32.totalorder %s278, %s279
      %p290 = scmp.eq.s32.totalorder %s29, 0
      %p291 = por %p289, %p290
      %p292 = scmp.ne.s32.totalorder %s278, %s279
      %p293 = scmp.eq.s32.totalorder %s30, 1
      %p294 = por %p292, %p293
      %p296 = scmp.ne.s32.totalorder %s279, %s295
      %p297 = scmp.eq.s32.totalorder %s30, 0
      %p298 = por %p296, %p297
      %p299 = scmp.le.s32.totalorder 1, %s24
      %p300 = scmp.lt.s32.totalorder %s24, 3
      %p301 = pnand %p299, %p300
      %p302 = pneg %p301
      // Predicated region
      $region9: #{wrapped_model_forward.1} parent=5 // pred_check
        _
      $region10: #{wrapped_model_forward.1} parent=5 // pred_check_branch
        %304 = sbr.rel (%p301) target = $region12
      $region11: #{wrapped_model_forward.1} parent=5 // pred_region
        %s305 = ssub.s32 %s24, 1
        // Predicated region
        $region13: #{wrapped_model_forward.1} parent=11 // pred_check
          %p306 = pneg %p71
        $region14: #{wrapped_model_forward.1} parent=11 // pred_check_branch
          %308 = sbr.rel (%p306) target = $region16
        $region15: #{wrapped_model_forward.1} parent=11 // pred_region
          _
        $region16: #{wrapped_model_forward.1} parent=11 // pred_fallthru
          _
        // Predicated region
        $region17: #{wrapped_model_forward.1} parent=11 // pred_check
          %p309 = pneg %p92
        $region18: #{wrapped_model_forward.1} parent=11 // pred_check_branch
          %311 = sbr.rel (%p309) target = $region20
        $region19: #{wrapped_model_forward.1} parent=11 // pred_region
          _
        $region20: #{wrapped_model_forward.1} parent=11 // pred_fallthru
          _
        // Predicated region
        $region21: #{wrapped_model_forward.1} parent=11 // pred_check
          %p312 = pneg %p113
        $region22: #{wrapped_model_forward.1} parent=11 // pred_check_branch
          %314 = sbr.rel (%p312) target = $region24
        $region23: #{wrapped_model_forward.1} parent=11 // pred_region
          _
        $region24: #{wrapped_model_forward.1} parent=11 // pred_fallthru
          _
        // Predicated region
        $region25: #{wrapped_model_forward.1} parent=11 // pred_check
          %p315 = pneg %p134
        $region26: #{wrapped_model_forward.1} parent=11 // pred_check_branch
          %317 = sbr.rel (%p315) target = $region28
        $region27: #{wrapped_model_forward.1} parent=11 // pred_region
          _
        $region28: #{wrapped_model_forward.1} parent=11 // pred_fallthru
          _
        // Predicated region
        $region29: #{wrapped_model_forward.1} parent=11 // pred_check
          %p318 = pneg %p155
        $region30: #{wrapped_model_forward.1} parent=11 // pred_check_branch
          %320 = sbr.rel (%p318) target = $region32
        $region31: #{wrapped_model_forward.1} parent=11 // pred_region
          _
        $region32: #{wrapped_model_forward.1} parent=11 // pred_fallthru
          _
        // Predicated region
        $region33: #{wrapped_model_forward.1} parent=11 // pred_check
          %p321 = pneg %p176
        $region34: #{wrapped_model_forward.1} parent=11 // pred_check_branch
          %323 = sbr.rel (%p321) target = $region36
        $region35: #{wrapped_model_forward.1} parent=11 // pred_region
          _
        $region36: #{wrapped_model_forward.1} parent=11 // pred_fallthru
          _
        // Predicated region
        $region37: #{wrapped_model_forward.1} parent=11 // pred_check
          %p324 = pneg %p197
        $region38: #{wrapped_model_forward.1} parent=11 // pred_check_branch
          %326 = sbr.rel (%p324) target = $region40
        $region39: #{wrapped_model_forward.1} parent=11 // pred_region
          _
        $region40: #{wrapped_model_forward.1} parent=11 // pred_fallthru
          _
        // Predicated region
        $region41: #{wrapped_model_forward.1} parent=11 // pred_check
          %p327 = pneg %p218
        $region42: #{wrapped_model_forward.1} parent=11 // pred_check_branch
          %329 = sbr.rel (%p327) target = $region44
        $region43: #{wrapped_model_forward.1} parent=11 // pred_region
          _
        $region44: #{wrapped_model_forward.1} parent=11 // pred_fallthru
          _
        // Predicated region
        $region45: #{wrapped_model_forward.1} parent=11 // pred_check
          %p330 = pneg %p239
        $region46: #{wrapped_model_forward.1} parent=11 // pred_check_branch
          %332 = sbr.rel (%p330) target = $region48
        $region47: #{wrapped_model_forward.1} parent=11 // pred_region
          _
        $region48: #{wrapped_model_forward.1} parent=11 // pred_fallthru
          _
      $region12: #{wrapped_model_forward.1} parent=5 // pred_fallthru
        _
      %p333 = scmp.lt.s32.totalorder %s24, 2
      // Predicated region
      $region49: #{wrapped_model_forward.1} parent=5 // pred_check
        %p334 = pneg %p333
      $region50: #{wrapped_model_forward.1} parent=5 // pred_check_branch
        %336 = sbr.rel (%p334) target = $region52
      $region51: #{wrapped_model_forward.1} parent=5 // pred_region
        // Predicated region
        $region53: #{wrapped_model_forward.1} parent=51 // pred_check
          %p337 = pneg %p44
        $region54: #{wrapped_model_forward.1} parent=51 // pred_check_branch
          %339 = sbr.rel (%p337) target = $region56
        $region55: #{wrapped_model_forward.1} parent=51 // pred_region
          %p340 = scmp.lt.s32.totalorder %s24, 1
          %s341 = scalar_select %p340, %s24, 1
          %s342 = smul.addr %s341, 57
          %s343 = smul.addr %s342, 4
          %s344 = scalar_lea.vmem %s0, %s343
        $region56: #{wrapped_model_forward.1} parent=51 // pred_fallthru
          _
      $region52: #{wrapped_model_forward.1} parent=5 // pred_fallthru
        _
      %p345 = scmp.le.s32.totalorder 1, %s24
      %p346 = scmp.lt.s32.totalorder %s24, 3
      %p347 = pnand %p345, %p346
      %p348 = pneg %p347
      // Predicated region
      $region57: #{wrapped_model_forward.1} parent=5 // pred_check
        _
      $region58: #{wrapped_model_forward.1} parent=5 // pred_check_branch
        %350 = sbr.rel (%p347) target = $region60
      $region59: #{wrapped_model_forward.1} parent=5 // pred_region
        %s351 = ssub.s32 %s24, 1
        %p352 = scmp.lt.s32.totalorder %s29, 1
        %s353 = scalar_select %p352, %s29, 1
        %s354 = smul.addr %s353, 57
        %s355 = smul.addr %s354, 4
        %s356 = scalar_lea.vmem %s0, %s355
        %p357 = pneg %p50
        %p358 = pneg %p47
        %p359 = pneg %p71
        %p360 = pneg %p68
        %p361 = pneg %p92
        %p362 = pneg %p89
        %p363 = pneg %p113
        %p364 = pneg %p110
        %p365 = pneg %p134
        %p366 = pneg %p131
        %p367 = pneg %p155
        %p368 = pneg %p152
        %p369 = pneg %p176
        %p370 = pneg %p173
        %p371 = pneg %p197
        %p372 = pneg %p194
        %p373 = pneg %p218
        %p374 = pneg %p215
        %p375 = pneg %p239
        %p376 = pneg %p236
        %p377 = pneg %p265
        %p378 = pneg %p262
        %s379 = sand.u32 %s252, 1
        %s380 = scalar_lea.sflag [#allocation6], %s379
        %s381 = sand.u32 %s252, 1
        %s382 = smul.addr %s381, 64
        %s383 = scalar_lea.vmem [#allocation5], %s382
        %p384 = pneg %p291
        %p385 = pneg %p288
        %s386 = sand.u32 %s278, 1
        %s387 = scalar_lea.sflag [#allocation8], %s386
        %s388 = sand.u32 %s278, 1
        %s389 = scalar_lea.vmem [#allocation7], %s388
        %p390 = scmp.lt.s32.totalorder %s29, 1
        %s391 = scalar_select %p390, %s29, 1
        %s392 = smul.addr %s391, 57
        %s393 = smul.addr %s392, 4
        %s394 = scalar_lea.vmem %s0, %s393
        %396 = vst [vmem:[#allocation2] sm:$0x1] 0.0
        %397 = vst [vmem:[#allocation2 + $0x18] sm:$0x1] 0.0
        %398 = vst [vmem:[#allocation2 + $0x30] sm:$0x1] 0.0
        %399 = vst [vmem:[#allocation2 + $0x48] sm:$0x1] 0.0
        %400 = vst [vmem:[#allocation2 + $0x60] sm:$0x1] 0.0
        %401 = vst [vmem:[#allocation2 + $0x78] sm:$0x1] 0.0
        %402 = vst [vmem:[#allocation2 + $0x90] sm:$0x1] 0.0
        %403 = vst [vmem:[#allocation2 + $0xa8] sm:$0x1] 0.0
        %404 = vst [vmem:[#allocation2 + $0xc0] sm:$0x1] 0.0
        %405 = vst [vmem:[#allocation2 + $0xd8] sm:$0x1] 0.0
        %406 = vst [vmem:[#allocation2 + $0xf0] sm:$0x1] 0.0
        %407 = vst [vmem:[#allocation2 + $0x108] sm:$0x1] 0.0
        %408 = vst [vmem:[#allocation2 + $0x120] sm:$0x1] 0.0
        %409 = vst [vmem:[#allocation2 + $0x138] sm:$0x1] 0.0
        %410 = vst [vmem:[#allocation2 + $0x150] sm:$0x1] 0.0
        %411 = vst [vmem:[#allocation2 + $0x168] sm:$0x1] 0.0
        %412 = vst [vmem:[#allocation3] sm:$0xff] 0.0
        %413 = vst [vmem:[#allocation4] sm:$0xff] 0.0
        %414 = vst [vmem:[#allocation4 + $0x8] sm:$0x3] 0.0
        %s415 = scalar_lea.vmem [#allocation4], 144
        %416 = vst [vmem:[%s415] sm:$0xff] 0.0
        %417 = vst [vmem:[%s415 + $0x8] sm:$0x3] 0.0
        %418 = vst [vmem:[#allocation4] sm:$0x1] 0.0
        %419 = vst [vmem:[#allocation4 + $0x10] sm:$0x1] 0.0
        %420 = vst [vmem:[#allocation4 + $0x20] sm:$0x1] 0.0
        %421 = vst [vmem:[#allocation4 + $0x30] sm:$0x1] 0.0
        %422 = vst [vmem:[#allocation4 + $0x40] sm:$0x1] 0.0
        %423 = vst [vmem:[#allocation4 + $0x50] sm:$0x1] 0.0
        %424 = vst [vmem:[#allocation4 + $0x60] sm:$0x1] 0.0
        %425 = vst [vmem:[#allocation4 + $0x70] sm:$0x1] 0.0
        %426 = vst [vmem:[#allocation4 + $0x80] sm:$0x1] 0.0
        %427 = vst [vmem:[#allocation4 + $0x90] sm:$0x1] 0.0
        %428 = vst [vmem:[#allocation4 + $0x9] sm:$0x1] 0.0
        %429 = vst [vmem:[#allocation4 + $0x19] sm:$0x1] 0.0
        %430 = vst [vmem:[#allocation4 + $0x29] sm:$0x1] 0.0
        %431 = vst [vmem:[#allocation4 + $0x39] sm:$0x1] 0.0
        %432 = vst [vmem:[#allocation4 + $0x49] sm:$0x1] 0.0
        %433 = vst [vmem:[#allocation4 + $0x59] sm:$0x1] 0.0
        %434 = vst [vmem:[#allocation4 + $0x69] sm:$0x1] 0.0
        %435 = vst [vmem:[#allocation4 + $0x79] sm:$0x1] 0.0
        %436 = vst [vmem:[#allocation4 + $0x89] sm:$0x1] 0.0
        %437 = vst [vmem:[#allocation4 + $0x99] sm:$0x1] 0.0
        %v438 = vld [vmem:[%s394] sm:$0xf]
        %v439 = vld [vmem:[%s394 + $0x4] sm:$0xf]
        %v440 = vld [vmem:[%s394 + $0xc] sm:$0xf]
        %v441 = vld [vmem:[%s394 + $0x10] sm:$0xf]
        %v442 = vld [vmem:[%s394 + $0x18] sm:$0xf]
        %v443 = vld [vmem:[%s394 + $0x1c] sm:$0xf]
        %v444 = vld [vmem:[%s394 + $0x24] sm:$0xf]
        %v445 = vld [vmem:[%s394 + $0x28] sm:$0xf]
        %v446 = vld [vmem:[%s394 + $0x30] sm:$0xf]
        %v447 = vld [vmem:[%s394 + $0x34] sm:$0xf]
        %v448 = vld [vmem:[%s394 + $0x3c] sm:$0xf]
        %v449 = vld [vmem:[%s394 + $0x40] sm:$0xf]
        %v450 = vld [vmem:[%s394 + $0x48] sm:$0xf]
        %v451 = vld [vmem:[%s394 + $0x4c] sm:$0xf]
        %v452 = vld [vmem:[%s394 + $0x54] sm:$0xf]
        %v453 = vld [vmem:[%s394 + $0x58] sm:$0xf]
        %v454 = vld [vmem:[%s394 + $0x60] sm:$0xf]
        %v455 = vld [vmem:[%s394 + $0x64] sm:$0xf]
        %v456 = vld [vmem:[%s394 + $0x6c] sm:$0xf]
        %v457 = vld [vmem:[%s394 + $0x70] sm:$0xf]
        %v458 = vld [vmem:[%s394 + $0x78] sm:$0xf]
        %v459 = vld [vmem:[%s394 + $0x7c] sm:$0xf]
        %v460 = vld [vmem:[%s394 + $0x84] sm:$0xf]
        %v461 = vld [vmem:[%s394 + $0x88] sm:$0xf]
        %v462 = vld [vmem:[%s394 + $0x90] sm:$0xf]
        %v463 = vld [vmem:[%s394 + $0x94] sm:$0xf]
        %v464 = vld [vmem:[%s394 + $0x9c] sm:$0xf]
        %v465 = vld [vmem:[%s394 + $0xa0] sm:$0xf]
        %v466 = vld [vmem:[%s394 + $0xa8] sm:$0xf]
        %v467 = vld [vmem:[%s394 + $0xac] sm:$0xf]
        %v468 = vld [vmem:[%s394 + $0xb4] sm:$0xf]
        %v469 = vld [vmem:[%s394 + $0xb8] sm:$0xf]
        %v470 = vld [vmem:[%s394 + $0x8] sm:$0x1]
        %v471 = vld [vmem:[%s394 + $0x14] sm:$0x1]
        %v472 = vld [vmem:[%s394 + $0x20] sm:$0x1]
        %v473 = vld [vmem:[%s394 + $0x2c] sm:$0x1]
        %v474 = vld [vmem:[%s394 + $0x38] sm:$0x1]
        %v475 = vld [vmem:[%s394 + $0x44] sm:$0x1]
        %v476 = vld [vmem:[%s394 + $0x50] sm:$0x1]
        %v477 = vld [vmem:[%s394 + $0x5c] sm:$0x1]
        %v478 = vld [vmem:[%s394 + $0x68] sm:$0x1]
        %v479 = vld [vmem:[%s394 + $0x74] sm:$0x1]
        %v480 = vld [vmem:[%s394 + $0x80] sm:$0x1]
        %v481 = vld [vmem:[%s394 + $0x8c] sm:$0x1]
        %v482 = vld [vmem:[%s394 + $0x98] sm:$0x1]
        %v483 = vld [vmem:[%s394 + $0xa4] sm:$0x1]
        %v484 = vld [vmem:[%s394 + $0xb0] sm:$0x1]
        %v485 = vld [vmem:[%s394 + $0xbc] sm:$0x1]
        %vm486 = vsmask.f32 3328
        %vm487 = vsmask.f32 7440
        %vm488 = vmor %vm486, %vm487
        %v490 = vshrl.u32 %v438, 16
        %v492 = vrot.slane %v490, 4
        %v493 = vshll.u32 %v438, 16
        %v495 = vrot.slane %v493, 5
        %v496 = vor.u32 %v492, %v495
        %v497 = vrot.slane %v496, 4
        %v499 = vshll.u32 %v439, 16
        %v501 = vrot.slane %v499, 5
        %v502 = vsel %vm488, %v497, %v501
        %v503 = vshrl.u32 %v439, 16
        %v505 = vrot.slane %v503, 4
        %v506 = vor.u32 %v505, %v501
        %v507 = vrot.slane %v506, 4
        %v509 = vshll.u32 %v470, 16
        %v511 = vrot.slane %v509, 5
        %v512 = vsel %vm488, %v507, %v511
        %v514 = vshrl.u32 %v440, 16
        %v516 = vrot.slane %v514, 4
        %v517 = vshll.u32 %v440, 16
        %v519 = vrot.slane %v517, 5
        %v520 = vor.u32 %v516, %v519
        %v521 = vrot.slane %v520, 4
        %v523 = vshll.u32 %v441, 16
        %v525 = vrot.slane %v523, 5
        %v526 = vsel %vm488, %v521, %v525
        %v527 = vshrl.u32 %v441, 16
        %v529 = vrot.slane %v527, 4
        %v530 = vor.u32 %v529, %v525
        %v531 = vrot.slane %v530, 4
        %v533 = vshll.u32 %v471, 16
        %v535 = vrot.slane %v533, 5
        %v536 = vsel %vm488, %v531, %v535
        %v538 = vshrl.u32 %v442, 16
        %v540 = vrot.slane %v538, 4
        %v541 = vshll.u32 %v442, 16
        %v543 = vrot.slane %v541, 5
        %v544 = vor.u32 %v540, %v543
        %v545 = vrot.slane %v544, 4
        %v547 = vshll.u32 %v443, 16
        %v549 = vrot.slane %v547, 5
        %v550 = vsel %vm488, %v545, %v549
        %v551 = vshrl.u32 %v443, 16
        %v553 = vrot.slane %v551, 4
        %v554 = vor.u32 %v553, %v549
        %v555 = vrot.slane %v554, 4
        %v557 = vshll.u32 %v472, 16
        %v559 = vrot.slane %v557, 5
        %v560 = vsel %vm488, %v555, %v559
        %v562 = vshrl.u32 %v444, 16
        %v564 = vrot.slane %v562, 4
        %v565 = vshll.u32 %v444, 16
        %v567 = vrot.slane %v565, 5
        %v568 = vor.u32 %v564, %v567
        %v569 = vrot.slane %v568, 4
        %v571 = vshll.u32 %v445, 16
        %v573 = vrot.slane %v571, 5
        %v574 = vsel %vm488, %v569, %v573
        %v575 = vshrl.u32 %v445, 16
        %v577 = vrot.slane %v575, 4
        %v578 = vor.u32 %v577, %v573
        %v579 = vrot.slane %v578, 4
        %v581 = vshll.u32 %v473, 16
        %v583 = vrot.slane %v581, 5
        %v584 = vsel %vm488, %v579, %v583
        %v586 = vshrl.u32 %v446, 16
        %v588 = vrot.slane %v586, 4
        %v589 = vshll.u32 %v446, 16
        %v591 = vrot.slane %v589, 5
        %v592 = vor.u32 %v588, %v591
        %v593 = vrot.slane %v592, 4
        %v595 = vshll.u32 %v447, 16
        %v597 = vrot.slane %v595, 5
        %v598 = vsel %vm488, %v593, %v597
        %v599 = vshrl.u32 %v447, 16
        %v601 = vrot.slane %v599, 4
        %v602 = vor.u32 %v601, %v597
        %v603 = vrot.slane %v602, 4
        %v605 = vshll.u32 %v474, 16
        %v607 = vrot.slane %v605, 5
        %v608 = vsel %vm488, %v603, %v607
        %v610 = vshrl.u32 %v448, 16
        %v612 = vrot.slane %v610, 4
        %v613 = vshll.u32 %v448, 16
        %v615 = vrot.slane %v613, 5
        %v616 = vor.u32 %v612, %v615
        %v617 = vrot.slane %v616, 4
        %v619 = vshll.u32 %v449, 16
        %v621 = vrot.slane %v619, 5
        %v622 = vsel %vm488, %v617, %v621
        %v623 = vshrl.u32 %v449, 16
        %v625 = vrot.slane %v623, 4
        %v626 = vor.u32 %v625, %v621
        %v627 = vrot.slane %v626, 4
        %v629 = vshll.u32 %v475, 16
        %v631 = vrot.slane %v629, 5
        %v632 = vsel %vm488, %v627, %v631
        %v634 = vshrl.u32 %v450, 16
        %v636 = vrot.slane %v634, 4
        %v637 = vshll.u32 %v450, 16
        %v639 = vrot.slane %v637, 5
        %v640 = vor.u32 %v636, %v639
        %v641 = vrot.slane %v640, 4
        %v643 = vshll.u32 %v451, 16
        %v645 = vrot.slane %v643, 5
        %v646 = vsel %vm488, %v641, %v645
        %v647 = vshrl.u32 %v451, 16
        %v649 = vrot.slane %v647, 4
        %v650 = vor.u32 %v649, %v645
        %v651 = vrot.slane %v650, 4
        %v653 = vshll.u32 %v476, 16
        %v655 = vrot.slane %v653, 5
        %v656 = vsel %vm488, %v651, %v655
        %v658 = vshrl.u32 %v452, 16
        %v660 = vrot.slane %v658, 4
        %v661 = vshll.u32 %v452, 16
        %v663 = vrot.slane %v661, 5
        %v664 = vor.u32 %v660, %v663
        %v665 = vrot.slane %v664, 4
        %v667 = vshll.u32 %v453, 16
        %v669 = vrot.slane %v667, 5
        %v670 = vsel %vm488, %v665, %v669
        %v671 = vshrl.u32 %v453, 16
        %v673 = vrot.slane %v671, 4
        %v674 = vor.u32 %v673, %v669
        %v675 = vrot.slane %v674, 4
        %v677 = vshll.u32 %v477, 16
        %v679 = vrot.slane %v677, 5
        %v680 = vsel %vm488, %v675, %v679
        %v682 = vshrl.u32 %v454, 16
        %v684 = vrot.slane %v682, 4
        %v685 = vshll.u32 %v454, 16
        %v687 = vrot.slane %v685, 5
        %v688 = vor.u32 %v684, %v687
        %v689 = vrot.slane %v688, 4
        %v691 = vshll.u32 %v455, 16
        %v693 = vrot.slane %v691, 5
        %v694 = vsel %vm488, %v689, %v693
        %v695 = vshrl.u32 %v455, 16
        %v697 = vrot.slane %v695, 4
        %v698 = vor.u32 %v697, %v693
        %v699 = vrot.slane %v698, 4
        %v701 = vshll.u32 %v478, 16
        %v703 = vrot.slane %v701, 5
        %v704 = vsel %vm488, %v699, %v703
        %v706 = vshrl.u32 %v456, 16
        %v708 = vrot.slane %v706, 4
        %v709 = vshll.u32 %v456, 16
        %v711 = vrot.slane %v709, 5
        %v712 = vor.u32 %v708, %v711
        %v713 = vrot.slane %v712, 4
        %v715 = vshll.u32 %v457, 16
        %v717 = vrot.slane %v715, 5
        %v718 = vsel %vm488, %v713, %v717
        %v719 = vshrl.u32 %v457, 16
        %v721 = vrot.slane %v719, 4
        %v722 = vor.u32 %v721, %v717
        %v723 = vrot.slane %v722, 4
        %v725 = vshll.u32 %v479, 16
        %v727 = vrot.slane %v725, 5
        %v728 = vsel %vm488, %v723, %v727
        %v730 = vshrl.u32 %v458, 16
        %v732 = vrot.slane %v730, 4
        %v733 = vshll.u32 %v458, 16
        %v735 = vrot.slane %v733, 5
        %v736 = vor.u32 %v732, %v735
        %v737 = vrot.slane %v736, 4
        %v739 = vshll.u32 %v459, 16
        %v741 = vrot.slane %v739, 5
        %v742 = vsel %vm488, %v737, %v741
        %v743 = vshrl.u32 %v459, 16
        %v745 = vrot.slane %v743, 4
        %v746 = vor.u32 %v745, %v741
        %v747 = vrot.slane %v746, 4
        %v749 = vshll.u32 %v480, 16
        %v751 = vrot.slane %v749, 5
        %v752 = vsel %vm488, %v747, %v751
        %v754 = vshrl.u32 %v460, 16
        %v756 = vrot.slane %v754, 4
        %v757 = vshll.u32 %v460, 16
        %v759 = vrot.slane %v757, 5
        %v760 = vor.u32 %v756, %v759
        %v761 = vrot.slane %v760, 4
        %v763 = vshll.u32 %v461, 16
        %v765 = vrot.slane %v763, 5
        %v766 = vsel %vm488, %v761, %v765
        %v767 = vshrl.u32 %v461, 16
        %v769 = vrot.slane %v767, 4
        %v770 = vor.u32 %v769, %v765
        %v771 = vrot.slane %v770, 4
        %v773 = vshll.u32 %v481, 16
        %v775 = vrot.slane %v773, 5
        %v776 = vsel %vm488, %v771, %v775
        %v778 = vshrl.u32 %v462, 16
        %v780 = vrot.slane %v778, 4
        %v781 = vshll.u32 %v462, 16
        %v783 = vrot.slane %v781, 5
        %v784 = vor.u32 %v780, %v783
        %v785 = vrot.slane %v784, 4
        %v787 = vshll.u32 %v463, 16
        %v789 = vrot.slane %v787, 5
        %v790 = vsel %vm488, %v785, %v789
        %v791 = vshrl.u32 %v463, 16
        %v793 = vrot.slane %v791, 4
        %v794 = vor.u32 %v793, %v789
        %v795 = vrot.slane %v794, 4
        %v797 = vshll.u32 %v482, 16
        %v799 = vrot.slane %v797, 5
        %v800 = vsel %vm488, %v795, %v799
        %v802 = vshrl.u32 %v464, 16
        %v804 = vrot.slane %v802, 4
        %v805 = vshll.u32 %v464, 16
        %v807 = vrot.slane %v805, 5
        %v808 = vor.u32 %v804, %v807
        %v809 = vrot.slane %v808, 4
        %v811 = vshll.u32 %v465, 16
        %v813 = vrot.slane %v811, 5
        %v814 = vsel %vm488, %v809, %v813
        %v815 = vshrl.u32 %v465, 16
        %v817 = vrot.slane %v815, 4
        %v818 = vor.u32 %v817, %v813
        %v819 = vrot.slane %v818, 4
        %v821 = vshll.u32 %v483, 16
        %v823 = vrot.slane %v821, 5
        %v824 = vsel %vm488, %v819, %v823
        %v826 = vshrl.u32 %v466, 16
        %v828 = vrot.slane %v826, 4
        %v829 = vshll.u32 %v466, 16
        %v831 = vrot.slane %v829, 5
        %v832 = vor.u32 %v828, %v831
        %v833 = vrot.slane %v832, 4
        %v835 = vshll.u32 %v467, 16
        %v837 = vrot.slane %v835, 5
        %v838 = vsel %vm488, %v833, %v837
        %v839 = vshrl.u32 %v467, 16
        %v841 = vrot.slane %v839, 4
        %v842 = vor.u32 %v841, %v837
        %v843 = vrot.slane %v842, 4
        %v845 = vshll.u32 %v484, 16
        %v847 = vrot.slane %v845, 5
        %v848 = vsel %vm488, %v843, %v847
        %v850 = vshrl.u32 %v468, 16
        %v852 = vrot.slane %v850, 4
        %v853 = vshll.u32 %v468, 16
        %v855 = vrot.slane %v853, 5
        %v856 = vor.u32 %v852, %v855
        %v857 = vrot.slane %v856, 4
        %v859 = vshll.u32 %v469, 16
        %v861 = vrot.slane %v859, 5
        %v862 = vsel %vm488, %v857, %v861
        %v863 = vshrl.u32 %v469, 16
        %v865 = vrot.slane %v863, 4
        %v866 = vor.u32 %v865, %v861
        %v867 = vrot.slane %v866, 4
        %v869 = vshll.u32 %v485, 16
        %v871 = vrot.slane %v869, 5
        %v872 = vsel %vm488, %v867, %v871
        %v873 = vld [vmem:[%s394] sm:$0xe]
        %v874 = vld [vmem:[%s394 + $0xc] sm:$0xe]
        %v875 = vld [vmem:[%s394 + $0x18] sm:$0xe]
        %v876 = vld [vmem:[%s394 + $0x24] sm:$0xe]
        %v877 = vld [vmem:[%s394 + $0x30] sm:$0xe]
        %v878 = vld [vmem:[%s394 + $0x3c] sm:$0xe]
        %v879 = vld [vmem:[%s394 + $0x48] sm:$0xe]
        %v880 = vld [vmem:[%s394 + $0x54] sm:$0xe]
        %v881 = vld [vmem:[%s394 + $0x60] sm:$0xe]
        %v882 = vld [vmem:[%s394 + $0x6c] sm:$0xe]
        %v883 = vld [vmem:[%s394 + $0x78] sm:$0xe]
        %v884 = vld [vmem:[%s394 + $0x84] sm:$0xe]
        %v885 = vld [vmem:[%s394 + $0x90] sm:$0xe]
        %v886 = vld [vmem:[%s394 + $0x9c] sm:$0xe]
        %v887 = vld [vmem:[%s394 + $0xa8] sm:$0xe]
        %v888 = vld [vmem:[%s394 + $0xb4] sm:$0xe]
        %vm937 = vcmask 1042432
        %vm938 = vcmask 1046532
        %vm939 = vmor %vm937, %vm938
        %v940 = vrot.slane %v873, 5
        %v941 = vrot.slane %v940, 4
        %v942 = vrot.slane %v439, 5
        %v943 = vsel %vm939, %v941, %v942
        %v944 = vrot.slane %v942, 4
        %v945 = vrot.slane %v470, 5
        %v946 = vsel %vm939, %v944, %v945
        %v947 = vrot.slane %v874, 5
        %v948 = vrot.slane %v947, 4
        %v949 = vrot.slane %v441, 5
        %v950 = vsel %vm939, %v948, %v949
        %v951 = vrot.slane %v949, 4
        %v952 = vrot.slane %v471, 5
        %v953 = vsel %vm939, %v951, %v952
        %v954 = vrot.slane %v875, 5
        %v955 = vrot.slane %v954, 4
        %v956 = vrot.slane %v443, 5
        %v957 = vsel %vm939, %v955, %v956
        %v958 = vrot.slane %v956, 4
        %v959 = vrot.slane %v472, 5
        %v960 = vsel %vm939, %v958, %v959
        %v961 = vrot.slane %v876, 5
        %v962 = vrot.slane %v961, 4
        %v963 = vrot.slane %v445, 5
        %v964 = vsel %vm939, %v962, %v963
        %v965 = vrot.slane %v963, 4
        %v966 = vrot.slane %v473, 5
        %v967 = vsel %vm939, %v965, %v966
        %v968 = vrot.slane %v877, 5
        %v969 = vrot.slane %v968, 4
        %v970 = vrot.slane %v447, 5
        %v971 = vsel %vm939, %v969, %v970
        %v972 = vrot.slane %v970, 4
        %v973 = vrot.slane %v474, 5
        %v974 = vsel %vm939, %v972, %v973
        %v975 = vrot.slane %v878, 5
        %v976 = vrot.slane %v975, 4
        %v977 = vrot.slane %v449, 5
        %v978 = vsel %vm939, %v976, %v977
        %v979 = vrot.slane %v977, 4
        %v980 = vrot.slane %v475, 5
        %v981 = vsel %vm939, %v979, %v980
        %v982 = vrot.slane %v879, 5
        %v983 = vrot.slane %v982, 4
        %v984 = vrot.slane %v451, 5
        %v985 = vsel %vm939, %v983, %v984
        %v986 = vrot.slane %v984, 4
        %v987 = vrot.slane %v476, 5
        %v988 = vsel %vm939, %v986, %v987
        %v989 = vrot.slane %v880, 5
        %v990 = vrot.slane %v989, 4
        %v991 = vrot.slane %v453, 5
        %v992 = vsel %vm939, %v990, %v991
        %v993 = vrot.slane %v991, 4
        %v994 = vrot.slane %v477, 5
        %v995 = vsel %vm939, %v993, %v994
        %v996 = vrot.slane %v881, 5
        %v997 = vrot.slane %v996, 4
        %v998 = vrot.slane %v455, 5
        %v999 = vsel %vm939, %v997, %v998
        %v1000 = vrot.slane %v998, 4
        %v1001 = vrot.slane %v478, 5
        %v1002 = vsel %vm939, %v1000, %v1001
        %v1003 = vrot.slane %v882, 5
        %v1004 = vrot.slane %v1003, 4
        %v1005 = vrot.slane %v457, 5
        %v1006 = vsel %vm939, %v1004, %v1005
        %v1007 = vrot.slane %v1005, 4
        %v1008 = vrot.slane %v479, 5
        %v1009 = vsel %vm939, %v1007, %v1008
        %v1010 = vrot.slane %v883, 5
        %v1011 = vrot.slane %v1010, 4
        %v1012 = vrot.slane %v459, 5
        %v1013 = vsel %vm939, %v1011, %v1012
        %v1014 = vrot.slane %v1012, 4
        %v1015 = vrot.slane %v480, 5
        %v1016 = vsel %vm939, %v1014, %v1015
        %v1017 = vrot.slane %v884, 5
        %v1018 = vrot.slane %v1017, 4
        %v1019 = vrot.slane %v461, 5
        %v1020 = vsel %vm939, %v1018, %v1019
        %v1021 = vrot.slane %v1019, 4
        %v1022 = vrot.slane %v481, 5
        %v1023 = vsel %vm939, %v1021, %v1022
        %v1024 = vrot.slane %v885, 5
        %v1025 = vrot.slane %v1024, 4
        %v1026 = vrot.slane %v463, 5
        %v1027 = vsel %vm939, %v1025, %v1026
        %v1028 = vrot.slane %v1026, 4
        %v1029 = vrot.slane %v482, 5
        %v1030 = vsel %vm939, %v1028, %v1029
        %v1031 = vrot.slane %v886, 5
        %v1032 = vrot.slane %v1031, 4
        %v1033 = vrot.slane %v465, 5
        %v1034 = vsel %vm939, %v1032, %v1033
        %v1035 = vrot.slane %v1033, 4
        %v1036 = vrot.slane %v483, 5
        %v1037 = vsel %vm939, %v1035, %v1036
        %v1038 = vrot.slane %v887, 5
        %v1039 = vrot.slane %v1038, 4
        %v1040 = vrot.slane %v467, 5
        %v1041 = vsel %vm939, %v1039, %v1040
        %v1042 = vrot.slane %v1040, 4
        %v1043 = vrot.slane %v484, 5
        %v1044 = vsel %vm939, %v1042, %v1043
        %v1045 = vrot.slane %v888, 5
        %v1046 = vrot.slane %v1045, 4
        %v1047 = vrot.slane %v469, 5
        %v1048 = vsel %vm939, %v1046, %v1047
        %v1049 = vrot.slane %v1047, 4
        %v1050 = vrot.slane %v485, 5
        %v1051 = vsel %vm939, %v1049, %v1050
        %v1052 = vld [vmem:[%s394 + $0x8] sm:$0x3]
        %v1053 = vld [vmem:[%s394 + $0x14] sm:$0x3]
        %v1054 = vld [vmem:[%s394 + $0x20] sm:$0x3]
        %v1055 = vld [vmem:[%s394 + $0x2c] sm:$0x3]
        %v1056 = vld [vmem:[%s394 + $0x38] sm:$0x3]
        %v1057 = vld [vmem:[%s394 + $0x44] sm:$0x3]
        %v1058 = vld [vmem:[%s394 + $0x50] sm:$0x3]
        %v1059 = vld [vmem:[%s394 + $0x5c] sm:$0x3]
        %v1060 = vld [vmem:[%s394 + $0x68] sm:$0x3]
        %v1061 = vld [vmem:[%s394 + $0x74] sm:$0x3]
        %v1062 = vld [vmem:[%s394 + $0x80] sm:$0x3]
        %v1063 = vld [vmem:[%s394 + $0x8c] sm:$0x3]
        %v1064 = vld [vmem:[%s394 + $0x98] sm:$0x3]
        %v1065 = vld [vmem:[%s394 + $0xa4] sm:$0x3]
        %v1066 = vld [vmem:[%s394 + $0xb0] sm:$0x3]
        %v1067 = vld [vmem:[%s394 + $0xbc] sm:$0x3]
        %vm1068 = vsmask.f32 2304
        %vm1069 = vsmask.f32 6416
        %vm1070 = vmor %vm1068, %vm1069
        %v1072 = vshrl.u32 %v873, 16
        %v1074 = vrot.slane %v1072, 5
        %v1075 = vshll.u32 %v873, 16
        %v1077 = vrot.slane %v1075, 6
        %v1078 = vor.u32 %v1074, %v1077
        %v1079 = vrot.slane %v1078, 4
        %v1080 = vrot.slane %v503, 5
        %v1081 = vrot.slane %v499, 6
        %v1082 = vor.u32 %v1080, %v1081
        %v1083 = vsel %vm1070, %v1079, %v1082
        %v1084 = vrot.slane %v1082, 4
        %v1086 = vshrl.u32 %v1052, 16
        %v1088 = vrot.slane %v1086, 5
        %v1089 = vshll.u32 %v1052, 16
        %v1091 = vrot.slane %v1089, 6
        %v1092 = vor.u32 %v1088, %v1091
        %v1093 = vsel %vm1070, %v1084, %v1092
        %v1095 = vshrl.u32 %v874, 16
        %v1097 = vrot.slane %v1095, 5
        %v1098 = vshll.u32 %v874, 16
        %v1100 = vrot.slane %v1098, 6
        %v1101 = vor.u32 %v1097, %v1100
        %v1102 = vrot.slane %v1101, 4
        %v1103 = vrot.slane %v527, 5
        %v1104 = vrot.slane %v523, 6
        %v1105 = vor.u32 %v1103, %v1104
        %v1106 = vsel %vm1070, %v1102, %v1105
        %v1107 = vrot.slane %v1105, 4
        %v1109 = vshrl.u32 %v1053, 16
        %v1111 = vrot.slane %v1109, 5
        %v1112 = vshll.u32 %v1053, 16
        %v1114 = vrot.slane %v1112, 6
        %v1115 = vor.u32 %v1111, %v1114
        %v1116 = vsel %vm1070, %v1107, %v1115
        %v1118 = vshrl.u32 %v875, 16
        %v1120 = vrot.slane %v1118, 5
        %v1121 = vshll.u32 %v875, 16
        %v1123 = vrot.slane %v1121, 6
        %v1124 = vor.u32 %v1120, %v1123
        %v1125 = vrot.slane %v1124, 4
        %v1126 = vrot.slane %v551, 5
        %v1127 = vrot.slane %v547, 6
        %v1128 = vor.u32 %v1126, %v1127
        %v1129 = vsel %vm1070, %v1125, %v1128
        %v1130 = vrot.slane %v1128, 4
        %v1132 = vshrl.u32 %v1054, 16
        %v1134 = vrot.slane %v1132, 5
        %v1135 = vshll.u32 %v1054, 16
        %v1137 = vrot.slane %v1135, 6
        %v1138 = vor.u32 %v1134, %v1137
        %v1139 = vsel %vm1070, %v1130, %v1138
        %v1141 = vshrl.u32 %v876, 16
        %v1143 = vrot.slane %v1141, 5
        %v1144 = vshll.u32 %v876, 16
        %v1146 = vrot.slane %v1144, 6
        %v1147 = vor.u32 %v1143, %v1146
        %v1148 = vrot.slane %v1147, 4
        %v1149 = vrot.slane %v575, 5
        %v1150 = vrot.slane %v571, 6
        %v1151 = vor.u32 %v1149, %v1150
        %v1152 = vsel %vm1070, %v1148, %v1151
        %v1153 = vrot.slane %v1151, 4
        %v1155 = vshrl.u32 %v1055, 16
        %v1157 = vrot.slane %v1155, 5
        %v1158 = vshll.u32 %v1055, 16
        %v1160 = vrot.slane %v1158, 6
        %v1161 = vor.u32 %v1157, %v1160
        %v1162 = vsel %vm1070, %v1153, %v1161
        %v1164 = vshrl.u32 %v877, 16
        %v1166 = vrot.slane %v1164, 5
        %v1167 = vshll.u32 %v877, 16
        %v1169 = vrot.slane %v1167, 6
        %v1170 = vor.u32 %v1166, %v1169
        %v1171 = vrot.slane %v1170, 4
        %v1172 = vrot.slane %v599, 5
        %v1173 = vrot.slane %v595, 6
        %v1174 = vor.u32 %v1172, %v1173
        %v1175 = vsel %vm1070, %v1171, %v1174
        %v1176 = vrot.slane %v1174, 4
        %v1178 = vshrl.u32 %v1056, 16
        %v1180 = vrot.slane %v1178, 5
        %v1181 = vshll.u32 %v1056, 16
        %v1183 = vrot.slane %v1181, 6
        %v1184 = vor.u32 %v1180, %v1183
        %v1185 = vsel %vm1070, %v1176, %v1184
        %v1187 = vshrl.u32 %v878, 16
        %v1189 = vrot.slane %v1187, 5
        %v1190 = vshll.u32 %v878, 16
        %v1192 = vrot.slane %v1190, 6
        %v1193 = vor.u32 %v1189, %v1192
        %v1194 = vrot.slane %v1193, 4
        %v1195 = vrot.slane %v623, 5
        %v1196 = vrot.slane %v619, 6
        %v1197 = vor.u32 %v1195, %v1196
        %v1198 = vsel %vm1070, %v1194, %v1197
        %v1199 = vrot.slane %v1197, 4
        %v1201 = vshrl.u32 %v1057, 16
        %v1203 = vrot.slane %v1201, 5
        %v1204 = vshll.u32 %v1057, 16
        %v1206 = vrot.slane %v1204, 6
        %v1207 = vor.u32 %v1203, %v1206
        %v1208 = vsel %vm1070, %v1199, %v1207
        %v1210 = vshrl.u32 %v879, 16
        %v1212 = vrot.slane %v1210, 5
        %v1213 = vshll.u32 %v879, 16
        %v1215 = vrot.slane %v1213, 6
        %v1216 = vor.u32 %v1212, %v1215
        %v1217 = vrot.slane %v1216, 4
        %v1218 = vrot.slane %v647, 5
        %v1219 = vrot.slane %v643, 6
        %v1220 = vor.u32 %v1218, %v1219
        %v1221 = vsel %vm1070, %v1217, %v1220
        %v1222 = vrot.slane %v1220, 4
        %v1224 = vshrl.u32 %v1058, 16
        %v1226 = vrot.slane %v1224, 5
        %v1227 = vshll.u32 %v1058, 16
        %v1229 = vrot.slane %v1227, 6
        %v1230 = vor.u32 %v1226, %v1229
        %v1231 = vsel %vm1070, %v1222, %v1230
        %v1233 = vshrl.u32 %v880, 16
        %v1235 = vrot.slane %v1233, 5
        %v1236 = vshll.u32 %v880, 16
        %v1238 = vrot.slane %v1236, 6
        %v1239 = vor.u32 %v1235, %v1238
        %v1240 = vrot.slane %v1239, 4
        %v1241 = vrot.slane %v671, 5
        %v1242 = vrot.slane %v667, 6
        %v1243 = vor.u32 %v1241, %v1242
        %v1244 = vsel %vm1070, %v1240, %v1243
        %v1245 = vrot.slane %v1243, 4
        %v1247 = vshrl.u32 %v1059, 16
        %v1249 = vrot.slane %v1247, 5
        %v1250 = vshll.u32 %v1059, 16
        %v1252 = vrot.slane %v1250, 6
        %v1253 = vor.u32 %v1249, %v1252
        %v1254 = vsel %vm1070, %v1245, %v1253
        %v1256 = vshrl.u32 %v881, 16
        %v1258 = vrot.slane %v1256, 5
        %v1259 = vshll.u32 %v881, 16
        %v1261 = vrot.slane %v1259, 6
        %v1262 = vor.u32 %v1258, %v1261
        %v1263 = vrot.slane %v1262, 4
        %v1264 = vrot.slane %v695, 5
        %v1265 = vrot.slane %v691, 6
        %v1266 = vor.u32 %v1264, %v1265
        %v1267 = vsel %vm1070, %v1263, %v1266
        %v1268 = vrot.slane %v1266, 4
        %v1270 = vshrl.u32 %v1060, 16
        %v1272 = vrot.slane %v1270, 5
        %v1273 = vshll.u32 %v1060, 16
        %v1275 = vrot.slane %v1273, 6
        %v1276 = vor.u32 %v1272, %v1275
        %v1277 = vsel %vm1070, %v1268, %v1276
        %v1279 = vshrl.u32 %v882, 16
        %v1281 = vrot.slane %v1279, 5
        %v1282 = vshll.u32 %v882, 16
        %v1284 = vrot.slane %v1282, 6
        %v1285 = vor.u32 %v1281, %v1284
        %v1286 = vrot.slane %v1285, 4
        %v1287 = vrot.slane %v719, 5
        %v1288 = vrot.slane %v715, 6
        %v1289 = vor.u32 %v1287, %v1288
        %v1290 = vsel %vm1070, %v1286, %v1289
        %v1291 = vrot.slane %v1289, 4
        %v1293 = vshrl.u32 %v1061, 16
        %v1295 = vrot.slane %v1293, 5
        %v1296 = vshll.u32 %v1061, 16
        %v1298 = vrot.slane %v1296, 6
        %v1299 = vor.u32 %v1295, %v1298
        %v1300 = vsel %vm1070, %v1291, %v1299
        %v1302 = vshrl.u32 %v883, 16
        %v1304 = vrot.slane %v1302, 5
        %v1305 = vshll.u32 %v883, 16
        %v1307 = vrot.slane %v1305, 6
        %v1308 = vor.u32 %v1304, %v1307
        %v1309 = vrot.slane %v1308, 4
        %v1310 = vrot.slane %v743, 5
        %v1311 = vrot.slane %v739, 6
        %v1312 = vor.u32 %v1310, %v1311
        %v1313 = vsel %vm1070, %v1309, %v1312
        %v1314 = vrot.slane %v1312, 4
        %v1316 = vshrl.u32 %v1062, 16
        %v1318 = vrot.slane %v1316, 5
        %v1319 = vshll.u32 %v1062, 16
        %v1321 = vrot.slane %v1319, 6
        %v1322 = vor.u32 %v1318, %v1321
        %v1323 = vsel %vm1070, %v1314, %v1322
        %v1325 = vshrl.u32 %v884, 16
        %v1327 = vrot.slane %v1325, 5
        %v1328 = vshll.u32 %v884, 16
        %v1330 = vrot.slane %v1328, 6
        %v1331 = vor.u32 %v1327, %v1330
        %v1332 = vrot.slane %v1331, 4
        %v1333 = vrot.slane %v767, 5
        %v1334 = vrot.slane %v763, 6
        %v1335 = vor.u32 %v1333, %v1334
        %v1336 = vsel %vm1070, %v1332, %v1335
        %v1337 = vrot.slane %v1335, 4
        %v1339 = vshrl.u32 %v1063, 16
        %v1341 = vrot.slane %v1339, 5
        %v1342 = vshll.u32 %v1063, 16
        %v1344 = vrot.slane %v1342, 6
        %v1345 = vor.u32 %v1341, %v1344
        %v1346 = vsel %vm1070, %v1337, %v1345
        %v1348 = vshrl.u32 %v885, 16
        %v1350 = vrot.slane %v1348, 5
        %v1351 = vshll.u32 %v885, 16
        %v1353 = vrot.slane %v1351, 6
        %v1354 = vor.u32 %v1350, %v1353
        %v1355 = vrot.slane %v1354, 4
        %v1356 = vrot.slane %v791, 5
        %v1357 = vrot.slane %v787, 6
        %v1358 = vor.u32 %v1356, %v1357
        %v1359 = vsel %vm1070, %v1355, %v1358
        %v1360 = vrot.slane %v1358, 4
        %v1362 = vshrl.u32 %v1064, 16
        %v1364 = vrot.slane %v1362, 5
        %v1365 = vshll.u32 %v1064, 16
        %v1367 = vrot.slane %v1365, 6
        %v1368 = vor.u32 %v1364, %v1367
        %v1369 = vsel %vm1070, %v1360, %v1368
        %v1371 = vshrl.u32 %v886, 16
        %v1373 = vrot.slane %v1371, 5
        %v1374 = vshll.u32 %v886, 16
        %v1376 = vrot.slane %v1374, 6
        %v1377 = vor.u32 %v1373, %v1376
        %v1378 = vrot.slane %v1377, 4
        %v1379 = vrot.slane %v815, 5
        %v1380 = vrot.slane %v811, 6
        %v1381 = vor.u32 %v1379, %v1380
        %v1382 = vsel %vm1070, %v1378, %v1381
        %v1383 = vrot.slane %v1381, 4
        %v1385 = vshrl.u32 %v1065, 16
        %v1387 = vrot.slane %v1385, 5
        %v1388 = vshll.u32 %v1065, 16
        %v1390 = vrot.slane %v1388, 6
        %v1391 = vor.u32 %v1387, %v1390
        %v1392 = vsel %vm1070, %v1383, %v1391
        %v1394 = vshrl.u32 %v887, 16
        %v1396 = vrot.slane %v1394, 5
        %v1397 = vshll.u32 %v887, 16
        %v1399 = vrot.slane %v1397, 6
        %v1400 = vor.u32 %v1396, %v1399
        %v1401 = vrot.slane %v1400, 4
        %v1402 = vrot.slane %v839, 5
        %v1403 = vrot.slane %v835, 6
        %v1404 = vor.u32 %v1402, %v1403
        %v1405 = vsel %vm1070, %v1401, %v1404
        %v1406 = vrot.slane %v1404, 4
        %v1408 = vshrl.u32 %v1066, 16
        %v1410 = vrot.slane %v1408, 5
        %v1411 = vshll.u32 %v1066, 16
        %v1413 = vrot.slane %v1411, 6
        %v1414 = vor.u32 %v1410, %v1413
        %v1415 = vsel %vm1070, %v1406, %v1414
        %v1417 = vshrl.u32 %v888, 16
        %v1419 = vrot.slane %v1417, 5
        %v1420 = vshll.u32 %v888, 16
        %v1422 = vrot.slane %v1420, 6
        %v1423 = vor.u32 %v1419, %v1422
        %v1424 = vrot.slane %v1423, 4
        %v1425 = vrot.slane %v863, 5
        %v1426 = vrot.slane %v859, 6
        %v1427 = vor.u32 %v1425, %v1426
        %v1428 = vsel %vm1070, %v1424, %v1427
        %v1429 = vrot.slane %v1427, 4
        %v1431 = vshrl.u32 %v1067, 16
        %v1433 = vrot.slane %v1431, 5
        %v1434 = vshll.u32 %v1067, 16
        %v1436 = vrot.slane %v1434, 6
        %v1437 = vor.u32 %v1433, %v1436
        %v1438 = vsel %vm1070, %v1429, %v1437
        %s1439 = scalar_lea.vmem %s394, 12
        %v1440 = vld [vmem:[%s1439] sm:$0xf]
        %v1441 = vld [vmem:[%s1439 + $0x4] sm:$0xf]
        %v1442 = vld [vmem:[%s1439 + $0xc] sm:$0xf]
        %v1443 = vld [vmem:[%s1439 + $0x10] sm:$0xf]
        %v1444 = vld [vmem:[%s1439 + $0x18] sm:$0xf]
        %v1445 = vld [vmem:[%s1439 + $0x1c] sm:$0xf]
        %v1446 = vld [vmem:[%s1439 + $0x24] sm:$0xf]
        %v1447 = vld [vmem:[%s1439 + $0x28] sm:$0xf]
        %v1448 = vld [vmem:[%s1439 + $0x30] sm:$0xf]
        %v1449 = vld [vmem:[%s1439 + $0x34] sm:$0xf]
        %v1450 = vld [vmem:[%s1439 + $0x3c] sm:$0xf]
        %v1451 = vld [vmem:[%s1439 + $0x40] sm:$0xf]
        %v1452 = vld [vmem:[%s1439 + $0x48] sm:$0xf]
        %v1453 = vld [vmem:[%s1439 + $0x4c] sm:$0xf]
        %v1454 = vld [vmem:[%s1439 + $0x54] sm:$0xf]
        %v1455 = vld [vmem:[%s1439 + $0x58] sm:$0xf]
        %v1456 = vld [vmem:[%s1439 + $0x60] sm:$0xf]
        %v1457 = vld [vmem:[%s1439 + $0x64] sm:$0xf]
        %v1458 = vld [vmem:[%s1439 + $0x6c] sm:$0xf]
        %v1459 = vld [vmem:[%s1439 + $0x70] sm:$0xf]
        %v1460 = vld [vmem:[%s1439 + $0x78] sm:$0xf]
        %v1461 = vld [vmem:[%s1439 + $0x7c] sm:$0xf]
        %v1462 = vld [vmem:[%s1439 + $0x84] sm:$0xf]
        %v1463 = vld [vmem:[%s1439 + $0x88] sm:$0xf]
        %v1464 = vld [vmem:[%s1439 + $0x90] sm:$0xf]
        %v1465 = vld [vmem:[%s1439 + $0x94] sm:$0xf]
        %v1466 = vld [vmem:[%s1439 + $0x9c] sm:$0xf]
        %v1467 = vld [vmem:[%s1439 + $0xa0] sm:$0xf]
        %v1468 = vld [vmem:[%s1439 + $0xa8] sm:$0xf]
        %v1469 = vld [vmem:[%s1439 + $0xac] sm:$0xf]
        %v1470 = vld [vmem:[%s1439 + $0xb4] sm:$0xf]
        %v1471 = vld [vmem:[%s1439 + $0xb8] sm:$0xf]
        %v1472 = vld [vmem:[%s1439 + $0x8] sm:$0x1]
        %v1473 = vld [vmem:[%s1439 + $0x14] sm:$0x1]
        %v1474 = vld [vmem:[%s1439 + $0x20] sm:$0x1]
        %v1475 = vld [vmem:[%s1439 + $0x2c] sm:$0x1]
        %v1476 = vld [vmem:[%s1439 + $0x38] sm:$0x1]
        %v1477 = vld [vmem:[%s1439 + $0x44] sm:$0x1]
        %v1478 = vld [vmem:[%s1439 + $0x50] sm:$0x1]
        %v1479 = vld [vmem:[%s1439 + $0x5c] sm:$0x1]
        %v1480 = vld [vmem:[%s1439 + $0x68] sm:$0x1]
        %v1481 = vld [vmem:[%s1439 + $0x74] sm:$0x1]
        %v1482 = vld [vmem:[%s1439 + $0x80] sm:$0x1]
        %v1483 = vld [vmem:[%s1439 + $0x8c] sm:$0x1]
        %v1484 = vld [vmem:[%s1439 + $0x98] sm:$0x1]
        %v1485 = vld [vmem:[%s1439 + $0xa4] sm:$0x1]
        %v1486 = vld [vmem:[%s1439 + $0xb0] sm:$0x1]
        %v1487 = vld [vmem:[%s1439 + $0xbc] sm:$0x1]
        %v1489 = vshrl.u32 %v1440, 16
        %v1491 = vrot.slane %v1489, 4
        %v1492 = vshll.u32 %v1440, 16
        %v1494 = vrot.slane %v1492, 5
        %v1495 = vor.u32 %v1491, %v1494
        %v1496 = vrot.slane %v1495, 4
        %v1498 = vshll.u32 %v1441, 16
        %v1500 = vrot.slane %v1498, 5
        %v1501 = vsel %vm488, %v1496, %v1500
        %v1502 = vshrl.u32 %v1441, 16
        %v1504 = vrot.slane %v1502, 4
        %v1505 = vor.u32 %v1504, %v1500
        %v1506 = vrot.slane %v1505, 4
        %v1508 = vshll.u32 %v1472, 16
        %v1510 = vrot.slane %v1508, 5
        %v1511 = vsel %vm488, %v1506, %v1510
        %v1513 = vshrl.u32 %v1442, 16
        %v1515 = vrot.slane %v1513, 4
        %v1516 = vshll.u32 %v1442, 16
        %v1518 = vrot.slane %v1516, 5
        %v1519 = vor.u32 %v1515, %v1518
        %v1520 = vrot.slane %v1519, 4
        %v1522 = vshll.u32 %v1443, 16
        %v1524 = vrot.slane %v1522, 5
        %v1525 = vsel %vm488, %v1520, %v1524
        %v1526 = vshrl.u32 %v1443, 16
        %v1528 = vrot.slane %v1526, 4
        %v1529 = vor.u32 %v1528, %v1524
        %v1530 = vrot.slane %v1529, 4
        %v1532 = vshll.u32 %v1473, 16
        %v1534 = vrot.slane %v1532, 5
        %v1535 = vsel %vm488, %v1530, %v1534
        %v1537 = vshrl.u32 %v1444, 16
        %v1539 = vrot.slane %v1537, 4
        %v1540 = vshll.u32 %v1444, 16
        %v1542 = vrot.slane %v1540, 5
        %v1543 = vor.u32 %v1539, %v1542
        %v1544 = vrot.slane %v1543, 4
        %v1546 = vshll.u32 %v1445, 16
        %v1548 = vrot.slane %v1546, 5
        %v1549 = vsel %vm488, %v1544, %v1548
        %v1550 = vshrl.u32 %v1445, 16
        %v1552 = vrot.slane %v1550, 4
        %v1553 = vor.u32 %v1552, %v1548
        %v1554 = vrot.slane %v1553, 4
        %v1556 = vshll.u32 %v1474, 16
        %v1558 = vrot.slane %v1556, 5
        %v1559 = vsel %vm488, %v1554, %v1558
        %v1561 = vshrl.u32 %v1446, 16
        %v1563 = vrot.slane %v1561, 4
        %v1564 = vshll.u32 %v1446, 16
        %v1566 = vrot.slane %v1564, 5
        %v1567 = vor.u32 %v1563, %v1566
        %v1568 = vrot.slane %v1567, 4
        %v1570 = vshll.u32 %v1447, 16
        %v1572 = vrot.slane %v1570, 5
        %v1573 = vsel %vm488, %v1568, %v1572
        %v1574 = vshrl.u32 %v1447, 16
        %v1576 = vrot.slane %v1574, 4
        %v1577 = vor.u32 %v1576, %v1572
        %v1578 = vrot.slane %v1577, 4
        %v1580 = vshll.u32 %v1475, 16
        %v1582 = vrot.slane %v1580, 5
        %v1583 = vsel %vm488, %v1578, %v1582
        %v1585 = vshrl.u32 %v1448, 16
        %v1587 = vrot.slane %v1585, 4
        %v1588 = vshll.u32 %v1448, 16
        %v1590 = vrot.slane %v1588, 5
        %v1591 = vor.u32 %v1587, %v1590
        %v1592 = vrot.slane %v1591, 4
        %v1594 = vshll.u32 %v1449, 16
        %v1596 = vrot.slane %v1594, 5
        %v1597 = vsel %vm488, %v1592, %v1596
        %v1598 = vshrl.u32 %v1449, 16
        %v1600 = vrot.slane %v1598, 4
        %v1601 = vor.u32 %v1600, %v1596
        %v1602 = vrot.slane %v1601, 4
        %v1604 = vshll.u32 %v1476, 16
        %v1606 = vrot.slane %v1604, 5
        %v1607 = vsel %vm488, %v1602, %v1606
        %v1609 = vshrl.u32 %v1450, 16
        %v1611 = vrot.slane %v1609, 4
        %v1612 = vshll.u32 %v1450, 16
        %v1614 = vrot.slane %v1612, 5
        %v1615 = vor.u32 %v1611, %v1614
        %v1616 = vrot.slane %v1615, 4
        %v1618 = vshll.u32 %v1451, 16
        %v1620 = vrot.slane %v1618, 5
        %v1621 = vsel %vm488, %v1616, %v1620
        %v1622 = vshrl.u32 %v1451, 16
        %v1624 = vrot.slane %v1622, 4
        %v1625 = vor.u32 %v1624, %v1620
        %v1626 = vrot.slane %v1625, 4
        %v1628 = vshll.u32 %v1477, 16
        %v1630 = vrot.slane %v1628, 5
        %v1631 = vsel %vm488, %v1626, %v1630
        %v1633 = vshrl.u32 %v1452, 16
        %v1635 = vrot.slane %v1633, 4
        %v1636 = vshll.u32 %v1452, 16
        %v1638 = vrot.slane %v1636, 5
        %v1639 = vor.u32 %v1635, %v1638
        %v1640 = vrot.slane %v1639, 4
        %v1642 = vshll.u32 %v1453, 16
        %v1644 = vrot.slane %v1642, 5
        %v1645 = vsel %vm488, %v1640, %v1644
        %v1646 = vshrl.u32 %v1453, 16
        %v1648 = vrot.slane %v1646, 4
        %v1649 = vor.u32 %v1648, %v1644
        %v1650 = vrot.slane %v1649, 4
        %v1652 = vshll.u32 %v1478, 16
        %v1654 = vrot.slane %v1652, 5
        %v1655 = vsel %vm488, %v1650, %v1654
        %v1657 = vshrl.u32 %v1454, 16
        %v1659 = vrot.slane %v1657, 4
        %v1660 = vshll.u32 %v1454, 16
        %v1662 = vrot.slane %v1660, 5
        %v1663 = vor.u32 %v1659, %v1662
        %v1664 = vrot.slane %v1663, 4
        %v1666 = vshll.u32 %v1455, 16
        %v1668 = vrot.slane %v1666, 5
        %v1669 = vsel %vm488, %v1664, %v1668
        %v1670 = vshrl.u32 %v1455, 16
        %v1672 = vrot.slane %v1670, 4
        %v1673 = vor.u32 %v1672, %v1668
        %v1674 = vrot.slane %v1673, 4
        %v1676 = vshll.u32 %v1479, 16
        %v1678 = vrot.slane %v1676, 5
        %v1679 = vsel %vm488, %v1674, %v1678
        %v1681 = vshrl.u32 %v1456, 16
        %v1683 = vrot.slane %v1681, 4
        %v1684 = vshll.u32 %v1456, 16
        %v1686 = vrot.slane %v1684, 5
        %v1687 = vor.u32 %v1683, %v1686
        %v1688 = vrot.slane %v1687, 4
        %v1690 = vshll.u32 %v1457, 16
        %v1692 = vrot.slane %v1690, 5
        %v1693 = vsel %vm488, %v1688, %v1692
        %v1694 = vshrl.u32 %v1457, 16
        %v1696 = vrot.slane %v1694, 4
        %v1697 = vor.u32 %v1696, %v1692
        %v1698 = vrot.slane %v1697, 4
        %v1700 = vshll.u32 %v1480, 16
        %v1702 = vrot.slane %v1700, 5
        %v1703 = vsel %vm488, %v1698, %v1702
        %v1705 = vshrl.u32 %v1458, 16
        %v1707 = vrot.slane %v1705, 4
        %v1708 = vshll.u32 %v1458, 16
        %v1710 = vrot.slane %v1708, 5
        %v1711 = vor.u32 %v1707, %v1710
        %v1712 = vrot.slane %v1711, 4
        %v1714 = vshll.u32 %v1459, 16
        %v1716 = vrot.slane %v1714, 5
        %v1717 = vsel %vm488, %v1712, %v1716
        %v1718 = vshrl.u32 %v1459, 16
        %v1720 = vrot.slane %v1718, 4
        %v1721 = vor.u32 %v1720, %v1716
        %v1722 = vrot.slane %v1721, 4
        %v1724 = vshll.u32 %v1481, 16
        %v1726 = vrot.slane %v1724, 5
        %v1727 = vsel %vm488, %v1722, %v1726
        %v1729 = vshrl.u32 %v1460, 16
        %v1731 = vrot.slane %v1729, 4
        %v1732 = vshll.u32 %v1460, 16
        %v1734 = vrot.slane %v1732, 5
        %v1735 = vor.u32 %v1731, %v1734
        %v1736 = vrot.slane %v1735, 4
        %v1738 = vshll.u32 %v1461, 16
        %v1740 = vrot.slane %v1738, 5
        %v1741 = vsel %vm488, %v1736, %v1740
        %v1742 = vshrl.u32 %v1461, 16
        %v1744 = vrot.slane %v1742, 4
        %v1745 = vor.u32 %v1744, %v1740
        %v1746 = vrot.slane %v1745, 4
        %v1748 = vshll.u32 %v1482, 16
        %v1750 = vrot.slane %v1748, 5
        %v1751 = vsel %vm488, %v1746, %v1750
        %v1753 = vshrl.u32 %v1462, 16
        %v1755 = vrot.slane %v1753, 4
        %v1756 = vshll.u32 %v1462, 16
        %v1758 = vrot.slane %v1756, 5
        %v1759 = vor.u32 %v1755, %v1758
        %v1760 = vrot.slane %v1759, 4
        %v1762 = vshll.u32 %v1463, 16
        %v1764 = vrot.slane %v1762, 5
        %v1765 = vsel %vm488, %v1760, %v1764
        %v1766 = vshrl.u32 %v1463, 16
        %v1768 = vrot.slane %v1766, 4
        %v1769 = vor.u32 %v1768, %v1764
        %v1770 = vrot.slane %v1769, 4
        %v1772 = vshll.u32 %v1483, 16
        %v1774 = vrot.slane %v1772, 5
        %v1775 = vsel %vm488, %v1770, %v1774
        %v1777 = vshrl.u32 %v1464, 16
        %v1779 = vrot.slane %v1777, 4
        %v1780 = vshll.u32 %v1464, 16
        %v1782 = vrot.slane %v1780, 5
        %v1783 = vor.u32 %v1779, %v1782
        %v1784 = vrot.slane %v1783, 4
        %v1786 = vshll.u32 %v1465, 16
        %v1788 = vrot.slane %v1786, 5
        %v1789 = vsel %vm488, %v1784, %v1788
        %v1790 = vshrl.u32 %v1465, 16
        %v1792 = vrot.slane %v1790, 4
        %v1793 = vor.u32 %v1792, %v1788
        %v1794 = vrot.slane %v1793, 4
        %v1796 = vshll.u32 %v1484, 16
        %v1798 = vrot.slane %v1796, 5
        %v1799 = vsel %vm488, %v1794, %v1798
        %v1801 = vshrl.u32 %v1466, 16
        %v1803 = vrot.slane %v1801, 4
        %v1804 = vshll.u32 %v1466, 16
        %v1806 = vrot.slane %v1804, 5
        %v1807 = vor.u32 %v1803, %v1806
        %v1808 = vrot.slane %v1807, 4
        %v1810 = vshll.u32 %v1467, 16
        %v1812 = vrot.slane %v1810, 5
        %v1813 = vsel %vm488, %v1808, %v1812
        %v1814 = vshrl.u32 %v1467, 16
        %v1816 = vrot.slane %v1814, 4
        %v1817 = vor.u32 %v1816, %v1812
        %v1818 = vrot.slane %v1817, 4
        %v1820 = vshll.u32 %v1485, 16
        %v1822 = vrot.slane %v1820, 5
        %v1823 = vsel %vm488, %v1818, %v1822
        %v1825 = vshrl.u32 %v1468, 16
        %v1827 = vrot.slane %v1825, 4
        %v1828 = vshll.u32 %v1468, 16
        %v1830 = vrot.slane %v1828, 5
        %v1831 = vor.u32 %v1827, %v1830
        %v1832 = vrot.slane %v1831, 4
        %v1834 = vshll.u32 %v1469, 16
        %v1836 = vrot.slane %v1834, 5
        %v1837 = vsel %vm488, %v1832, %v1836
        %v1838 = vshrl.u32 %v1469, 16
        %v1840 = vrot.slane %v1838, 4
        %v1841 = vor.u32 %v1840, %v1836
        %v1842 = vrot.slane %v1841, 4
        %v1844 = vshll.u32 %v1486, 16
        %v1846 = vrot.slane %v1844, 5
        %v1847 = vsel %vm488, %v1842, %v1846
        %v1849 = vshrl.u32 %v1470, 16
        %v1851 = vrot.slane %v1849, 4
        %v1852 = vshll.u32 %v1470, 16
        %v1854 = vrot.slane %v1852, 5
        %v1855 = vor.u32 %v1851, %v1854
        %v1856 = vrot.slane %v1855, 4
        %v1858 = vshll.u32 %v1471, 16
        %v1860 = vrot.slane %v1858, 5
        %v1861 = vsel %vm488, %v1856, %v1860
        %v1862 = vshrl.u32 %v1471, 16
        %v1864 = vrot.slane %v1862, 4
        %v1865 = vor.u32 %v1864, %v1860
        %v1866 = vrot.slane %v1865, 4
        %v1868 = vshll.u32 %v1487, 16
        %v1870 = vrot.slane %v1868, 5
        %v1871 = vsel %vm488, %v1866, %v1870
        %v1872 = vld [vmem:[%s1439] sm:$0xe]
        %v1873 = vld [vmem:[%s1439 + $0xc] sm:$0xe]
        %v1874 = vld [vmem:[%s1439 + $0x18] sm:$0xe]
        %v1875 = vld [vmem:[%s1439 + $0x24] sm:$0xe]
        %v1876 = vld [vmem:[%s1439 + $0x30] sm:$0xe]
        %v1877 = vld [vmem:[%s1439 + $0x3c] sm:$0xe]
        %v1878 = vld [vmem:[%s1439 + $0x48] sm:$0xe]
        %v1879 = vld [vmem:[%s1439 + $0x54] sm:$0xe]
        %v1880 = vld [vmem:[%s1439 + $0x60] sm:$0xe]
        %v1881 = vld [vmem:[%s1439 + $0x6c] sm:$0xe]
        %v1882 = vld [vmem:[%s1439 + $0x78] sm:$0xe]
        %v1883 = vld [vmem:[%s1439 + $0x84] sm:$0xe]
        %v1884 = vld [vmem:[%s1439 + $0x90] sm:$0xe]
        %v1885 = vld [vmem:[%s1439 + $0x9c] sm:$0xe]
        %v1886 = vld [vmem:[%s1439 + $0xa8] sm:$0xe]
        %v1887 = vld [vmem:[%s1439 + $0xb4] sm:$0xe]
        %v1936 = vrot.slane %v1872, 5
        %v1937 = vrot.slane %v1936, 4
        %v1938 = vrot.slane %v1441, 5
        %v1939 = vsel %vm939, %v1937, %v1938
        %v1940 = vrot.slane %v1938, 4
        %v1941 = vrot.slane %v1472, 5
        %v1942 = vsel %vm939, %v1940, %v1941
        %v1943 = vrot.slane %v1873, 5
        %v1944 = vrot.slane %v1943, 4
        %v1945 = vrot.slane %v1443, 5
        %v1946 = vsel %vm939, %v1944, %v1945
        %v1947 = vrot.slane %v1945, 4
        %v1948 = vrot.slane %v1473, 5
        %v1949 = vsel %vm939, %v1947, %v1948
        %v1950 = vrot.slane %v1874, 5
        %v1951 = vrot.slane %v1950, 4
        %v1952 = vrot.slane %v1445, 5
        %v1953 = vsel %vm939, %v1951, %v1952
        %v1954 = vrot.slane %v1952, 4
        %v1955 = vrot.slane %v1474, 5
        %v1956 = vsel %vm939, %v1954, %v1955
        %v1957 = vrot.slane %v1875, 5
        %v1958 = vrot.slane %v1957, 4
        %v1959 = vrot.slane %v1447, 5
        %v1960 = vsel %vm939, %v1958, %v1959
        %v1961 = vrot.slane %v1959, 4
        %v1962 = vrot.slane %v1475, 5
        %v1963 = vsel %vm939, %v1961, %v1962
        %v1964 = vrot.slane %v1876, 5
        %v1965 = vrot.slane %v1964, 4
        %v1966 = vrot.slane %v1449, 5
        %v1967 = vsel %vm939, %v1965, %v1966
        %v1968 = vrot.slane %v1966, 4
        %v1969 = vrot.slane %v1476, 5
        %v1970 = vsel %vm939, %v1968, %v1969
        %v1971 = vrot.slane %v1877, 5
        %v1972 = vrot.slane %v1971, 4
        %v1973 = vrot.slane %v1451, 5
        %v1974 = vsel %vm939, %v1972, %v1973
        %v1975 = vrot.slane %v1973, 4
        %v1976 = vrot.slane %v1477, 5
        %v1977 = vsel %vm939, %v1975, %v1976
        %v1978 = vrot.slane %v1878, 5
        %v1979 = vrot.slane %v1978, 4
        %v1980 = vrot.slane %v1453, 5
        %v1981 = vsel %vm939, %v1979, %v1980
        %v1982 = vrot.slane %v1980, 4
        %v1983 = vrot.slane %v1478, 5
        %v1984 = vsel %vm939, %v1982, %v1983
        %v1985 = vrot.slane %v1879, 5
        %v1986 = vrot.slane %v1985, 4
        %v1987 = vrot.slane %v1455, 5
        %v1988 = vsel %vm939, %v1986, %v1987
        %v1989 = vrot.slane %v1987, 4
        %v1990 = vrot.slane %v1479, 5
        %v1991 = vsel %vm939, %v1989, %v1990
        %v1992 = vrot.slane %v1880, 5
        %v1993 = vrot.slane %v1992, 4
        %v1994 = vrot.slane %v1457, 5
        %v1995 = vsel %vm939, %v1993, %v1994
        %v1996 = vrot.slane %v1994, 4
        %v1997 = vrot.slane %v1480, 5
        %v1998 = vsel %vm939, %v1996, %v1997
        %v1999 = vrot.slane %v1881, 5
        %v2000 = vrot.slane %v1999, 4
        %v2001 = vrot.slane %v1459, 5
        %v2002 = vsel %vm939, %v2000, %v2001
        %v2003 = vrot.slane %v2001, 4
        %v2004 = vrot.slane %v1481, 5
        %v2005 = vsel %vm939, %v2003, %v2004
        %v2006 = vrot.slane %v1882, 5
        %v2007 = vrot.slane %v2006, 4
        %v2008 = vrot.slane %v1461, 5
        %v2009 = vsel %vm939, %v2007, %v2008
        %v2010 = vrot.slane %v2008, 4
        %v2011 = vrot.slane %v1482, 5
        %v2012 = vsel %vm939, %v2010, %v2011
        %v2013 = vrot.slane %v1883, 5
        %v2014 = vrot.slane %v2013, 4
        %v2015 = vrot.slane %v1463, 5
        %v2016 = vsel %vm939, %v2014, %v2015
        %v2017 = vrot.slane %v2015, 4
        %v2018 = vrot.slane %v1483, 5
        %v2019 = vsel %vm939, %v2017, %v2018
        %v2020 = vrot.slane %v1884, 5
        %v2021 = vrot.slane %v2020, 4
        %v2022 = vrot.slane %v1465, 5
        %v2023 = vsel %vm939, %v2021, %v2022
        %v2024 = vrot.slane %v2022, 4
        %v2025 = vrot.slane %v1484, 5
        %v2026 = vsel %vm939, %v2024, %v2025
        %v2027 = vrot.slane %v1885, 5
        %v2028 = vrot.slane %v2027, 4
        %v2029 = vrot.slane %v1467, 5
        %v2030 = vsel %vm939, %v2028, %v2029
        %v2031 = vrot.slane %v2029, 4
        %v2032 = vrot.slane %v1485, 5
        %v2033 = vsel %vm939, %v2031, %v2032
        %v2034 = vrot.slane %v1886, 5
        %v2035 = vrot.slane %v2034, 4
        %v2036 = vrot.slane %v1469, 5
        %v2037 = vsel %vm939, %v2035, %v2036
        %v2038 = vrot.slane %v2036, 4
        %v2039 = vrot.slane %v1486, 5
        %v2040 = vsel %vm939, %v2038, %v2039
        %v2041 = vrot.slane %v1887, 5
        %v2042 = vrot.slane %v2041, 4
        %v2043 = vrot.slane %v1471, 5
        %v2044 = vsel %vm939, %v2042, %v2043
        %v2045 = vrot.slane %v2043, 4
        %v2046 = vrot.slane %v1487, 5
        %v2047 = vsel %vm939, %v2045, %v2046
        %v2048 = vld [vmem:[%s1439 + $0x8] sm:$0x3]
        %v2049 = vld [vmem:[%s1439 + $0x14] sm:$0x3]
        %v2050 = vld [vmem:[%s1439 + $0x20] sm:$0x3]
        %v2051 = vld [vmem:[%s1439 + $0x2c] sm:$0x3]
        %v2052 = vld [vmem:[%s1439 + $0x38] sm:$0x3]
        %v2053 = vld [vmem:[%s1439 + $0x44] sm:$0x3]
        %v2054 = vld [vmem:[%s1439 + $0x50] sm:$0x3]
        %v2055 = vld [vmem:[%s1439 + $0x5c] sm:$0x3]
        %v2056 = vld [vmem:[%s1439 + $0x68] sm:$0x3]
        %v2057 = vld [vmem:[%s1439 + $0x74] sm:$0x3]
        %v2058 = vld [vmem:[%s1439 + $0x80] sm:$0x3]
        %v2059 = vld [vmem:[%s1439 + $0x8c] sm:$0x3]
        %v2060 = vld [vmem:[%s1439 + $0x98] sm:$0x3]
        %v2061 = vld [vmem:[%s1439 + $0xa4] sm:$0x3]
        %v2062 = vld [vmem:[%s1439 + $0xb0] sm:$0x3]
        %v2063 = vld [vmem:[%s1439 + $0xbc] sm:$0x3]
        %v2065 = vshrl.u32 %v1872, 16
        %v2067 = vrot.slane %v2065, 5
        %v2068 = vshll.u32 %v1872, 16
        %v2070 = vrot.slane %v2068, 6
        %v2071 = vor.u32 %v2067, %v2070
        %v2072 = vrot.slane %v2071, 4
        %v2073 = vrot.slane %v1502, 5
        %v2074 = vrot.slane %v1498, 6
        %v2075 = vor.u32 %v2073, %v2074
        %v2076 = vsel %vm1070, %v2072, %v2075
        %v2077 = vrot.slane %v2075, 4
        %v2079 = vshrl.u32 %v2048, 16
        %v2081 = vrot.slane %v2079, 5
        %v2082 = vshll.u32 %v2048, 16
        %v2084 = vrot.slane %v2082, 6
        %v2085 = vor.u32 %v2081, %v2084
        %v2086 = vsel %vm1070, %v2077, %v2085
        %v2088 = vshrl.u32 %v1873, 16
        %v2090 = vrot.slane %v2088, 5
        %v2091 = vshll.u32 %v1873, 16
        %v2093 = vrot.slane %v2091, 6
        %v2094 = vor.u32 %v2090, %v2093
        %v2095 = vrot.slane %v2094, 4
        %v2096 = vrot.slane %v1526, 5
        %v2097 = vrot.slane %v1522, 6
        %v2098 = vor.u32 %v2096, %v2097
        %v2099 = vsel %vm1070, %v2095, %v2098
        %v2100 = vrot.slane %v2098, 4
        %v2102 = vshrl.u32 %v2049, 16
        %v2104 = vrot.slane %v2102, 5
        %v2105 = vshll.u32 %v2049, 16
        %v2107 = vrot.slane %v2105, 6
        %v2108 = vor.u32 %v2104, %v2107
        %v2109 = vsel %vm1070, %v2100, %v2108
        %v2111 = vshrl.u32 %v1874, 16
        %v2113 = vrot.slane %v2111, 5
        %v2114 = vshll.u32 %v1874, 16
        %v2116 = vrot.slane %v2114, 6
        %v2117 = vor.u32 %v2113, %v2116
        %v2118 = vrot.slane %v2117, 4
        %v2119 = vrot.slane %v1550, 5
        %v2120 = vrot.slane %v1546, 6
        %v2121 = vor.u32 %v2119, %v2120
        %v2122 = vsel %vm1070, %v2118, %v2121
        %v2123 = vrot.slane %v2121, 4
        %v2125 = vshrl.u32 %v2050, 16
        %v2127 = vrot.slane %v2125, 5
        %v2128 = vshll.u32 %v2050, 16
        %v2130 = vrot.slane %v2128, 6
        %v2131 = vor.u32 %v2127, %v2130
        %v2132 = vsel %vm1070, %v2123, %v2131
        %v2134 = vshrl.u32 %v1875, 16
        %v2136 = vrot.slane %v2134, 5
        %v2137 = vshll.u32 %v1875, 16
        %v2139 = vrot.slane %v2137, 6
        %v2140 = vor.u32 %v2136, %v2139
        %v2141 = vrot.slane %v2140, 4
        %v2142 = vrot.slane %v1574, 5
        %v2143 = vrot.slane %v1570, 6
        %v2144 = vor.u32 %v2142, %v2143
        %v2145 = vsel %vm1070, %v2141, %v2144
        %v2146 = vrot.slane %v2144, 4
        %v2148 = vshrl.u32 %v2051, 16
        %v2150 = vrot.slane %v2148, 5
        %v2151 = vshll.u32 %v2051, 16
        %v2153 = vrot.slane %v2151, 6
        %v2154 = vor.u32 %v2150, %v2153
        %v2155 = vsel %vm1070, %v2146, %v2154
        %v2157 = vshrl.u32 %v1876, 16
        %v2159 = vrot.slane %v2157, 5
        %v2160 = vshll.u32 %v1876, 16
        %v2162 = vrot.slane %v2160, 6
        %v2163 = vor.u32 %v2159, %v2162
        %v2164 = vrot.slane %v2163, 4
        %v2165 = vrot.slane %v1598, 5
        %v2166 = vrot.slane %v1594, 6
        %v2167 = vor.u32 %v2165, %v2166
        %v2168 = vsel %vm1070, %v2164, %v2167
        %v2169 = vrot.slane %v2167, 4
        %v2171 = vshrl.u32 %v2052, 16
        %v2173 = vrot.slane %v2171, 5
        %v2174 = vshll.u32 %v2052, 16
        %v2176 = vrot.slane %v2174, 6
        %v2177 = vor.u32 %v2173, %v2176
        %v2178 = vsel %vm1070, %v2169, %v2177
        %v2180 = vshrl.u32 %v1877, 16
        %v2182 = vrot.slane %v2180, 5
        %v2183 = vshll.u32 %v1877, 16
        %v2185 = vrot.slane %v2183, 6
        %v2186 = vor.u32 %v2182, %v2185
        %v2187 = vrot.slane %v2186, 4
        %v2188 = vrot.slane %v1622, 5
        %v2189 = vrot.slane %v1618, 6
        %v2190 = vor.u32 %v2188, %v2189
        %v2191 = vsel %vm1070, %v2187, %v2190
        %v2192 = vrot.slane %v2190, 4
        %v2194 = vshrl.u32 %v2053, 16
        %v2196 = vrot.slane %v2194, 5
        %v2197 = vshll.u32 %v2053, 16
        %v2199 = vrot.slane %v2197, 6
        %v2200 = vor.u32 %v2196, %v2199
        %v2201 = vsel %vm1070, %v2192, %v2200
        %v2203 = vshrl.u32 %v1878, 16
        %v2205 = vrot.slane %v2203, 5
        %v2206 = vshll.u32 %v1878, 16
        %v2208 = vrot.slane %v2206, 6
        %v2209 = vor.u32 %v2205, %v2208
        %v2210 = vrot.slane %v2209, 4
        %v2211 = vrot.slane %v1646, 5
        %v2212 = vrot.slane %v1642, 6
        %v2213 = vor.u32 %v2211, %v2212
        %v2214 = vsel %vm1070, %v2210, %v2213
        %v2215 = vrot.slane %v2213, 4
        %v2217 = vshrl.u32 %v2054, 16
        %v2219 = vrot.slane %v2217, 5
        %v2220 = vshll.u32 %v2054, 16
        %v2222 = vrot.slane %v2220, 6
        %v2223 = vor.u32 %v2219, %v2222
        %v2224 = vsel %vm1070, %v2215, %v2223
        %v2226 = vshrl.u32 %v1879, 16
        %v2228 = vrot.slane %v2226, 5
        %v2229 = vshll.u32 %v1879, 16
        %v2231 = vrot.slane %v2229, 6
        %v2232 = vor.u32 %v2228, %v2231
        %v2233 = vrot.slane %v2232, 4
        %v2234 = vrot.slane %v1670, 5
        %v2235 = vrot.slane %v1666, 6
        %v2236 = vor.u32 %v2234, %v2235
        %v2237 = vsel %vm1070, %v2233, %v2236
        %v2238 = vrot.slane %v2236, 4
        %v2240 = vshrl.u32 %v2055, 16
        %v2242 = vrot.slane %v2240, 5
        %v2243 = vshll.u32 %v2055, 16
        %v2245 = vrot.slane %v2243, 6
        %v2246 = vor.u32 %v2242, %v2245
        %v2247 = vsel %vm1070, %v2238, %v2246
        %v2249 = vshrl.u32 %v1880, 16
        %v2251 = vrot.slane %v2249, 5
        %v2252 = vshll.u32 %v1880, 16
        %v2254 = vrot.slane %v2252, 6
        %v2255 = vor.u32 %v2251, %v2254
        %v2256 = vrot.slane %v2255, 4
        %v2257 = vrot.slane %v1694, 5
        %v2258 = vrot.slane %v1690, 6
        %v2259 = vor.u32 %v2257, %v2258
        %v2260 = vsel %vm1070, %v2256, %v2259
        %v2261 = vrot.slane %v2259, 4
        %v2263 = vshrl.u32 %v2056, 16
        %v2265 = vrot.slane %v2263, 5
        %v2266 = vshll.u32 %v2056, 16
        %v2268 = vrot.slane %v2266, 6
        %v2269 = vor.u32 %v2265, %v2268
        %v2270 = vsel %vm1070, %v2261, %v2269
        %v2272 = vshrl.u32 %v1881, 16
        %v2274 = vrot.slane %v2272, 5
        %v2275 = vshll.u32 %v1881, 16
        %v2277 = vrot.slane %v2275, 6
        %v2278 = vor.u32 %v2274, %v2277
        %v2279 = vrot.slane %v2278, 4
        %v2280 = vrot.slane %v1718, 5
        %v2281 = vrot.slane %v1714, 6
        %v2282 = vor.u32 %v2280, %v2281
        %v2283 = vsel %vm1070, %v2279, %v2282
        %v2284 = vrot.slane %v2282, 4
        %v2286 = vshrl.u32 %v2057, 16
        %v2288 = vrot.slane %v2286, 5
        %v2289 = vshll.u32 %v2057, 16
        %v2291 = vrot.slane %v2289, 6
        %v2292 = vor.u32 %v2288, %v2291
        %v2293 = vsel %vm1070, %v2284, %v2292
        %v2295 = vshrl.u32 %v1882, 16
        %v2297 = vrot.slane %v2295, 5
        %v2298 = vshll.u32 %v1882, 16
        %v2300 = vrot.slane %v2298, 6
        %v2301 = vor.u32 %v2297, %v2300
        %v2302 = vrot.slane %v2301, 4
        %v2303 = vrot.slane %v1742, 5
        %v2304 = vrot.slane %v1738, 6
        %v2305 = vor.u32 %v2303, %v2304
        %v2306 = vsel %vm1070, %v2302, %v2305
        %v2307 = vrot.slane %v2305, 4
        %v2309 = vshrl.u32 %v2058, 16
        %v2311 = vrot.slane %v2309, 5
        %v2312 = vshll.u32 %v2058, 16
        %v2314 = vrot.slane %v2312, 6
        %v2315 = vor.u32 %v2311, %v2314
        %v2316 = vsel %vm1070, %v2307, %v2315
        %v2318 = vshrl.u32 %v1883, 16
        %v2320 = vrot.slane %v2318, 5
        %v2321 = vshll.u32 %v1883, 16
        %v2323 = vrot.slane %v2321, 6
        %v2324 = vor.u32 %v2320, %v2323
        %v2325 = vrot.slane %v2324, 4
        %v2326 = vrot.slane %v1766, 5
        %v2327 = vrot.slane %v1762, 6
        %v2328 = vor.u32 %v2326, %v2327
        %v2329 = vsel %vm1070, %v2325, %v2328
        %v2330 = vrot.slane %v2328, 4
        %v2332 = vshrl.u32 %v2059, 16
        %v2334 = vrot.slane %v2332, 5
        %v2335 = vshll.u32 %v2059, 16
        %v2337 = vrot.slane %v2335, 6
        %v2338 = vor.u32 %v2334, %v2337
        %v2339 = vsel %vm1070, %v2330, %v2338
        %v2341 = vshrl.u32 %v1884, 16
        %v2343 = vrot.slane %v2341, 5
        %v2344 = vshll.u32 %v1884, 16
        %v2346 = vrot.slane %v2344, 6
        %v2347 = vor.u32 %v2343, %v2346
        %v2348 = vrot.slane %v2347, 4
        %v2349 = vrot.slane %v1790, 5
        %v2350 = vrot.slane %v1786, 6
        %v2351 = vor.u32 %v2349, %v2350
        %v2352 = vsel %vm1070, %v2348, %v2351
        %v2353 = vrot.slane %v2351, 4
        %v2355 = vshrl.u32 %v2060, 16
        %v2357 = vrot.slane %v2355, 5
        %v2358 = vshll.u32 %v2060, 16
        %v2360 = vrot.slane %v2358, 6
        %v2361 = vor.u32 %v2357, %v2360
        %v2362 = vsel %vm1070, %v2353, %v2361
        %v2364 = vshrl.u32 %v1885, 16
        %v2366 = vrot.slane %v2364, 5
        %v2367 = vshll.u32 %v1885, 16
        %v2369 = vrot.slane %v2367, 6
        %v2370 = vor.u32 %v2366, %v2369
        %v2371 = vrot.slane %v2370, 4
        %v2372 = vrot.slane %v1814, 5
        %v2373 = vrot.slane %v1810, 6
        %v2374 = vor.u32 %v2372, %v2373
        %v2375 = vsel %vm1070, %v2371, %v2374
        %v2376 = vrot.slane %v2374, 4
        %v2378 = vshrl.u32 %v2061, 16
        %v2380 = vrot.slane %v2378, 5
        %v2381 = vshll.u32 %v2061, 16
        %v2383 = vrot.slane %v2381, 6
        %v2384 = vor.u32 %v2380, %v2383
        %v2385 = vsel %vm1070, %v2376, %v2384
        %v2387 = vshrl.u32 %v1886, 16
        %v2389 = vrot.slane %v2387, 5
        %v2390 = vshll.u32 %v1886, 16
        %v2392 = vrot.slane %v2390, 6
        %v2393 = vor.u32 %v2389, %v2392
        %v2394 = vrot.slane %v2393, 4
        %v2395 = vrot.slane %v1838, 5
        %v2396 = vrot.slane %v1834, 6
        %v2397 = vor.u32 %v2395, %v2396
        %v2398 = vsel %vm1070, %v2394, %v2397
        %v2399 = vrot.slane %v2397, 4
        %v2401 = vshrl.u32 %v2062, 16
        %v2403 = vrot.slane %v2401, 5
        %v2404 = vshll.u32 %v2062, 16
        %v2406 = vrot.slane %v2404, 6
        %v2407 = vor.u32 %v2403, %v2406
        %v2408 = vsel %vm1070, %v2399, %v2407
        %v2410 = vshrl.u32 %v1887, 16
        %v2412 = vrot.slane %v2410, 5
        %v2413 = vshll.u32 %v1887, 16
        %v2415 = vrot.slane %v2413, 6
        %v2416 = vor.u32 %v2412, %v2415
        %v2417 = vrot.slane %v2416, 4
        %v2418 = vrot.slane %v1862, 5
        %v2419 = vrot.slane %v1858, 6
        %v2420 = vor.u32 %v2418, %v2419
        %v2421 = vsel %vm1070, %v2417, %v2420
        %v2422 = vrot.slane %v2420, 4
        %v2424 = vshrl.u32 %v2063, 16
        %v2426 = vrot.slane %v2424, 5
        %v2427 = vshll.u32 %v2063, 16
        %v2429 = vrot.slane %v2427, 6
        %v2430 = vor.u32 %v2426, %v2429
        %v2431 = vsel %vm1070, %v2422, %v2430
        %s2432 = scalar_lea.vmem %s394, 24
        %v2433 = vld [vmem:[%s2432] sm:$0xf]
        %v2434 = vld [vmem:[%s2432 + $0x4] sm:$0xf]
        %v2435 = vld [vmem:[%s2432 + $0xc] sm:$0xf]
        %v2436 = vld [vmem:[%s2432 + $0x10] sm:$0xf]
        %v2437 = vld [vmem:[%s2432 + $0x18] sm:$0xf]
        %v2438 = vld [vmem:[%s2432 + $0x1c] sm:$0xf]
        %v2439 = vld [vmem:[%s2432 + $0x24] sm:$0xf]
        %v2440 = vld [vmem:[%s2432 + $0x28] sm:$0xf]
        %v2441 = vld [vmem:[%s2432 + $0x30] sm:$0xf]
        %v2442 = vld [vmem:[%s2432 + $0x34] sm:$0xf]
        %v2443 = vld [vmem:[%s2432 + $0x3c] sm:$0xf]
        %v2444 = vld [vmem:[%s2432 + $0x40] sm:$0xf]
        %v2445 = vld [vmem:[%s2432 + $0x48] sm:$0xf]
        %v2446 = vld [vmem:[%s2432 + $0x4c] sm:$0xf]
        %v2447 = vld [vmem:[%s2432 + $0x54] sm:$0xf]
        %v2448 = vld [vmem:[%s2432 + $0x58] sm:$0xf]
        %v2449 = vld [vmem:[%s2432 + $0x60] sm:$0xf]
        %v2450 = vld [vmem:[%s2432 + $0x64] sm:$0xf]
        %v2451 = vld [vmem:[%s2432 + $0x6c] sm:$0xf]
        %v2452 = vld [vmem:[%s2432 + $0x70] sm:$0xf]
        %v2453 = vld [vmem:[%s2432 + $0x78] sm:$0xf]
        %v2454 = vld [vmem:[%s2432 + $0x7c] sm:$0xf]
        %v2455 = vld [vmem:[%s2432 + $0x84] sm:$0xf]
        %v2456 = vld [vmem:[%s2432 + $0x88] sm:$0xf]
        %v2457 = vld [vmem:[%s2432 + $0x90] sm:$0xf]
        %v2458 = vld [vmem:[%s2432 + $0x94] sm:$0xf]
        %v2459 = vld [vmem:[%s2432 + $0x9c] sm:$0xf]
        %v2460 = vld [vmem:[%s2432 + $0xa0] sm:$0xf]
        %v2461 = vld [vmem:[%s2432 + $0xa8] sm:$0xf]
        %v2462 = vld [vmem:[%s2432 + $0xac] sm:$0xf]
        %v2463 = vld [vmem:[%s2432 + $0xb4] sm:$0xf]
        %v2464 = vld [vmem:[%s2432 + $0xb8] sm:$0xf]
        %v2465 = vld [vmem:[%s2432 + $0x8] sm:$0x1]
        %v2466 = vld [vmem:[%s2432 + $0x14] sm:$0x1]
        %v2467 = vld [vmem:[%s2432 + $0x20] sm:$0x1]
        %v2468 = vld [vmem:[%s2432 + $0x2c] sm:$0x1]
        %v2469 = vld [vmem:[%s2432 + $0x38] sm:$0x1]
        %v2470 = vld [vmem:[%s2432 + $0x44] sm:$0x1]
        %v2471 = vld [vmem:[%s2432 + $0x50] sm:$0x1]
        %v2472 = vld [vmem:[%s2432 + $0x5c] sm:$0x1]
        %v2473 = vld [vmem:[%s2432 + $0x68] sm:$0x1]
        %v2474 = vld [vmem:[%s2432 + $0x74] sm:$0x1]
        %v2475 = vld [vmem:[%s2432 + $0x80] sm:$0x1]
        %v2476 = vld [vmem:[%s2432 + $0x8c] sm:$0x1]
        %v2477 = vld [vmem:[%s2432 + $0x98] sm:$0x1]
        %v2478 = vld [vmem:[%s2432 + $0xa4] sm:$0x1]
        %v2479 = vld [vmem:[%s2432 + $0xb0] sm:$0x1]
        %v2480 = vld [vmem:[%s2432 + $0xbc] sm:$0x1]
        %v2482 = vshrl.u32 %v2433, 16
        %v2484 = vrot.slane %v2482, 4
        %v2485 = vshll.u32 %v2433, 16
        %v2487 = vrot.slane %v2485, 5
        %v2488 = vor.u32 %v2484, %v2487
        %v2489 = vrot.slane %v2488, 4
        %v2491 = vshll.u32 %v2434, 16
        %v2493 = vrot.slane %v2491, 5
        %v2494 = vsel %vm488, %v2489, %v2493
        %v2495 = vshrl.u32 %v2434, 16
        %v2497 = vrot.slane %v2495, 4
        %v2498 = vor.u32 %v2497, %v2493
        %v2499 = vrot.slane %v2498, 4
        %v2501 = vshll.u32 %v2465, 16
        %v2503 = vrot.slane %v2501, 5
        %v2504 = vsel %vm488, %v2499, %v2503
        %v2506 = vshrl.u32 %v2435, 16
        %v2508 = vrot.slane %v2506, 4
        %v2509 = vshll.u32 %v2435, 16
        %v2511 = vrot.slane %v2509, 5
        %v2512 = vor.u32 %v2508, %v2511
        %v2513 = vrot.slane %v2512, 4
        %v2515 = vshll.u32 %v2436, 16
        %v2517 = vrot.slane %v2515, 5
        %v2518 = vsel %vm488, %v2513, %v2517
        %v2519 = vshrl.u32 %v2436, 16
        %v2521 = vrot.slane %v2519, 4
        %v2522 = vor.u32 %v2521, %v2517
        %v2523 = vrot.slane %v2522, 4
        %v2525 = vshll.u32 %v2466, 16
        %v2527 = vrot.slane %v2525, 5
        %v2528 = vsel %vm488, %v2523, %v2527
        %v2530 = vshrl.u32 %v2437, 16
        %v2532 = vrot.slane %v2530, 4
        %v2533 = vshll.u32 %v2437, 16
        %v2535 = vrot.slane %v2533, 5
        %v2536 = vor.u32 %v2532, %v2535
        %v2537 = vrot.slane %v2536, 4
        %v2539 = vshll.u32 %v2438, 16
        %v2541 = vrot.slane %v2539, 5
        %v2542 = vsel %vm488, %v2537, %v2541
        %v2543 = vshrl.u32 %v2438, 16
        %v2545 = vrot.slane %v2543, 4
        %v2546 = vor.u32 %v2545, %v2541
        %v2547 = vrot.slane %v2546, 4
        %v2549 = vshll.u32 %v2467, 16
        %v2551 = vrot.slane %v2549, 5
        %v2552 = vsel %vm488, %v2547, %v2551
        %v2554 = vshrl.u32 %v2439, 16
        %v2556 = vrot.slane %v2554, 4
        %v2557 = vshll.u32 %v2439, 16
        %v2559 = vrot.slane %v2557, 5
        %v2560 = vor.u32 %v2556, %v2559
        %v2561 = vrot.slane %v2560, 4
        %v2563 = vshll.u32 %v2440, 16
        %v2565 = vrot.slane %v2563, 5
        %v2566 = vsel %vm488, %v2561, %v2565
        %v2567 = vshrl.u32 %v2440, 16
        %v2569 = vrot.slane %v2567, 4
        %v2570 = vor.u32 %v2569, %v2565
        %v2571 = vrot.slane %v2570, 4
        %v2573 = vshll.u32 %v2468, 16
        %v2575 = vrot.slane %v2573, 5
        %v2576 = vsel %vm488, %v2571, %v2575
        %v2578 = vshrl.u32 %v2441, 16
        %v2580 = vrot.slane %v2578, 4
        %v2581 = vshll.u32 %v2441, 16
        %v2583 = vrot.slane %v2581, 5
        %v2584 = vor.u32 %v2580, %v2583
        %v2585 = vrot.slane %v2584, 4
        %v2587 = vshll.u32 %v2442, 16
        %v2589 = vrot.slane %v2587, 5
        %v2590 = vsel %vm488, %v2585, %v2589
        %v2591 = vshrl.u32 %v2442, 16
        %v2593 = vrot.slane %v2591, 4
        %v2594 = vor.u32 %v2593, %v2589
        %v2595 = vrot.slane %v2594, 4
        %v2597 = vshll.u32 %v2469, 16
        %v2599 = vrot.slane %v2597, 5
        %v2600 = vsel %vm488, %v2595, %v2599
        %v2602 = vshrl.u32 %v2443, 16
        %v2604 = vrot.slane %v2602, 4
        %v2605 = vshll.u32 %v2443, 16
        %v2607 = vrot.slane %v2605, 5
        %v2608 = vor.u32 %v2604, %v2607
        %v2609 = vrot.slane %v2608, 4
        %v2611 = vshll.u32 %v2444, 16
        %v2613 = vrot.slane %v2611, 5
        %v2614 = vsel %vm488, %v2609, %v2613
        %v2615 = vshrl.u32 %v2444, 16
        %v2617 = vrot.slane %v2615, 4
        %v2618 = vor.u32 %v2617, %v2613
        %v2619 = vrot.slane %v2618, 4
        %v2621 = vshll.u32 %v2470, 16
        %v2623 = vrot.slane %v2621, 5
        %v2624 = vsel %vm488, %v2619, %v2623
        %v2626 = vshrl.u32 %v2445, 16
        %v2628 = vrot.slane %v2626, 4
        %v2629 = vshll.u32 %v2445, 16
        %v2631 = vrot.slane %v2629, 5
        %v2632 = vor.u32 %v2628, %v2631
        %v2633 = vrot.slane %v2632, 4
        %v2635 = vshll.u32 %v2446, 16
        %v2637 = vrot.slane %v2635, 5
        %v2638 = vsel %vm488, %v2633, %v2637
        %v2639 = vshrl.u32 %v2446, 16
        %v2641 = vrot.slane %v2639, 4
        %v2642 = vor.u32 %v2641, %v2637
        %v2643 = vrot.slane %v2642, 4
        %v2645 = vshll.u32 %v2471, 16
        %v2647 = vrot.slane %v2645, 5
        %v2648 = vsel %vm488, %v2643, %v2647
        %v2650 = vshrl.u32 %v2447, 16
        %v2652 = vrot.slane %v2650, 4
        %v2653 = vshll.u32 %v2447, 16
        %v2655 = vrot.slane %v2653, 5
        %v2656 = vor.u32 %v2652, %v2655
        %v2657 = vrot.slane %v2656, 4
        %v2659 = vshll.u32 %v2448, 16
        %v2661 = vrot.slane %v2659, 5
        %v2662 = vsel %vm488, %v2657, %v2661
        %v2663 = vshrl.u32 %v2448, 16
        %v2665 = vrot.slane %v2663, 4
        %v2666 = vor.u32 %v2665, %v2661
        %v2667 = vrot.slane %v2666, 4
        %v2669 = vshll.u32 %v2472, 16
        %v2671 = vrot.slane %v2669, 5
        %v2672 = vsel %vm488, %v2667, %v2671
        %v2674 = vshrl.u32 %v2449, 16
        %v2676 = vrot.slane %v2674, 4
        %v2677 = vshll.u32 %v2449, 16
        %v2679 = vrot.slane %v2677, 5
        %v2680 = vor.u32 %v2676, %v2679
        %v2681 = vrot.slane %v2680, 4
        %v2683 = vshll.u32 %v2450, 16
        %v2685 = vrot.slane %v2683, 5
        %v2686 = vsel %vm488, %v2681, %v2685
        %v2687 = vshrl.u32 %v2450, 16
        %v2689 = vrot.slane %v2687, 4
        %v2690 = vor.u32 %v2689, %v2685
        %v2691 = vrot.slane %v2690, 4
        %v2693 = vshll.u32 %v2473, 16
        %v2695 = vrot.slane %v2693, 5
        %v2696 = vsel %vm488, %v2691, %v2695
        %v2698 = vshrl.u32 %v2451, 16
        %v2700 = vrot.slane %v2698, 4
        %v2701 = vshll.u32 %v2451, 16
        %v2703 = vrot.slane %v2701, 5
        %v2704 = vor.u32 %v2700, %v2703
        %v2705 = vrot.slane %v2704, 4
        %v2707 = vshll.u32 %v2452, 16
        %v2709 = vrot.slane %v2707, 5
        %v2710 = vsel %vm488, %v2705, %v2709
        %v2711 = vshrl.u32 %v2452, 16
        %v2713 = vrot.slane %v2711, 4
        %v2714 = vor.u32 %v2713, %v2709
        %v2715 = vrot.slane %v2714, 4
        %v2717 = vshll.u32 %v2474, 16
        %v2719 = vrot.slane %v2717, 5
        %v2720 = vsel %vm488, %v2715, %v2719
        %v2722 = vshrl.u32 %v2453, 16
        %v2724 = vrot.slane %v2722, 4
        %v2725 = vshll.u32 %v2453, 16
        %v2727 = vrot.slane %v2725, 5
        %v2728 = vor.u32 %v2724, %v2727
        %v2729 = vrot.slane %v2728, 4
        %v2731 = vshll.u32 %v2454, 16
        %v2733 = vrot.slane %v2731, 5
        %v2734 = vsel %vm488, %v2729, %v2733
        %v2735 = vshrl.u32 %v2454, 16
        %v2737 = vrot.slane %v2735, 4
        %v2738 = vor.u32 %v2737, %v2733
        %v2739 = vrot.slane %v2738, 4
        %v2741 = vshll.u32 %v2475, 16
        %v2743 = vrot.slane %v2741, 5
        %v2744 = vsel %vm488, %v2739, %v2743
        %v2746 = vshrl.u32 %v2455, 16
        %v2748 = vrot.slane %v2746, 4
        %v2749 = vshll.u32 %v2455, 16
        %v2751 = vrot.slane %v2749, 5
        %v2752 = vor.u32 %v2748, %v2751
        %v2753 = vrot.slane %v2752, 4
        %v2755 = vshll.u32 %v2456, 16
        %v2757 = vrot.slane %v2755, 5
        %v2758 = vsel %vm488, %v2753, %v2757
        %v2759 = vshrl.u32 %v2456, 16
        %v2761 = vrot.slane %v2759, 4
        %v2762 = vor.u32 %v2761, %v2757
        %v2763 = vrot.slane %v2762, 4
        %v2765 = vshll.u32 %v2476, 16
        %v2767 = vrot.slane %v2765, 5
        %v2768 = vsel %vm488, %v2763, %v2767
        %v2770 = vshrl.u32 %v2457, 16
        %v2772 = vrot.slane %v2770, 4
        %v2773 = vshll.u32 %v2457, 16
        %v2775 = vrot.slane %v2773, 5
        %v2776 = vor.u32 %v2772, %v2775
        %v2777 = vrot.slane %v2776, 4
        %v2779 = vshll.u32 %v2458, 16
        %v2781 = vrot.slane %v2779, 5
        %v2782 = vsel %vm488, %v2777, %v2781
        %v2783 = vshrl.u32 %v2458, 16
        %v2785 = vrot.slane %v2783, 4
        %v2786 = vor.u32 %v2785, %v2781
        %v2787 = vrot.slane %v2786, 4
        %v2789 = vshll.u32 %v2477, 16
        %v2791 = vrot.slane %v2789, 5
        %v2792 = vsel %vm488, %v2787, %v2791
        %v2794 = vshrl.u32 %v2459, 16
        %v2796 = vrot.slane %v2794, 4
        %v2797 = vshll.u32 %v2459, 16
        %v2799 = vrot.slane %v2797, 5
        %v2800 = vor.u32 %v2796, %v2799
        %v2801 = vrot.slane %v2800, 4
        %v2803 = vshll.u32 %v2460, 16
        %v2805 = vrot.slane %v2803, 5
        %v2806 = vsel %vm488, %v2801, %v2805
        %v2807 = vshrl.u32 %v2460, 16
        %v2809 = vrot.slane %v2807, 4
        %v2810 = vor.u32 %v2809, %v2805
        %v2811 = vrot.slane %v2810, 4
        %v2813 = vshll.u32 %v2478, 16
        %v2815 = vrot.slane %v2813, 5
        %v2816 = vsel %vm488, %v2811, %v2815
        %v2818 = vshrl.u32 %v2461, 16
        %v2820 = vrot.slane %v2818, 4
        %v2821 = vshll.u32 %v2461, 16
        %v2823 = vrot.slane %v2821, 5
        %v2824 = vor.u32 %v2820, %v2823
        %v2825 = vrot.slane %v2824, 4
        %v2827 = vshll.u32 %v2462, 16
        %v2829 = vrot.slane %v2827, 5
        %v2830 = vsel %vm488, %v2825, %v2829
        %v2831 = vshrl.u32 %v2462, 16
        %v2833 = vrot.slane %v2831, 4
        %v2834 = vor.u32 %v2833, %v2829
        %v2835 = vrot.slane %v2834, 4
        %v2837 = vshll.u32 %v2479, 16
        %v2839 = vrot.slane %v2837, 5
        %v2840 = vsel %vm488, %v2835, %v2839
        %v2842 = vshrl.u32 %v2463, 16
        %v2844 = vrot.slane %v2842, 4
        %v2845 = vshll.u32 %v2463, 16
        %v2847 = vrot.slane %v2845, 5
        %v2848 = vor.u32 %v2844, %v2847
        %v2849 = vrot.slane %v2848, 4
        %v2851 = vshll.u32 %v2464, 16
        %v2853 = vrot.slane %v2851, 5
        %v2854 = vsel %vm488, %v2849, %v2853
        %v2855 = vshrl.u32 %v2464, 16
        %v2857 = vrot.slane %v2855, 4
        %v2858 = vor.u32 %v2857, %v2853
        %v2859 = vrot.slane %v2858, 4
        %v2861 = vshll.u32 %v2480, 16
        %v2863 = vrot.slane %v2861, 5
        %v2864 = vsel %vm488, %v2859, %v2863
        %v2865 = vld [vmem:[%s2432] sm:$0xe]
        %v2866 = vld [vmem:[%s2432 + $0xc] sm:$0xe]
        %v2867 = vld [vmem:[%s2432 + $0x18] sm:$0xe]
        %v2868 = vld [vmem:[%s2432 + $0x24] sm:$0xe]
        %v2869 = vld [vmem:[%s2432 + $0x30] sm:$0xe]
        %v2870 = vld [vmem:[%s2432 + $0x3c] sm:$0xe]
        %v2871 = vld [vmem:[%s2432 + $0x48] sm:$0xe]
        %v2872 = vld [vmem:[%s2432 + $0x54] sm:$0xe]
        %v2873 = vld [vmem:[%s2432 + $0x60] sm:$0xe]
        %v2874 = vld [vmem:[%s2432 + $0x6c] sm:$0xe]
        %v2875 = vld [vmem:[%s2432 + $0x78] sm:$0xe]
        %v2876 = vld [vmem:[%s2432 + $0x84] sm:$0xe]
        %v2877 = vld [vmem:[%s2432 + $0x90] sm:$0xe]
        %v2878 = vld [vmem:[%s2432 + $0x9c] sm:$0xe]
        %v2879 = vld [vmem:[%s2432 + $0xa8] sm:$0xe]
        %v2880 = vld [vmem:[%s2432 + $0xb4] sm:$0xe]
        %v2929 = vrot.slane %v2865, 5
        %v2930 = vrot.slane %v2929, 4
        %v2931 = vrot.slane %v2434, 5
        %v2932 = vsel %vm939, %v2930, %v2931
        %v2933 = vrot.slane %v2931, 4
        %v2934 = vrot.slane %v2465, 5
        %v2935 = vsel %vm939, %v2933, %v2934
        %v2936 = vrot.slane %v2866, 5
        %v2937 = vrot.slane %v2936, 4
        %v2938 = vrot.slane %v2436, 5
        %v2939 = vsel %vm939, %v2937, %v2938
        %v2940 = vrot.slane %v2938, 4
        %v2941 = vrot.slane %v2466, 5
        %v2942 = vsel %vm939, %v2940, %v2941
        %v2943 = vrot.slane %v2867, 5
        %v2944 = vrot.slane %v2943, 4
        %v2945 = vrot.slane %v2438, 5
        %v2946 = vsel %vm939, %v2944, %v2945
        %v2947 = vrot.slane %v2945, 4
        %v2948 = vrot.slane %v2467, 5
        %v2949 = vsel %vm939, %v2947, %v2948
        %v2950 = vrot.slane %v2868, 5
        %v2951 = vrot.slane %v2950, 4
        %v2952 = vrot.slane %v2440, 5
        %v2953 = vsel %vm939, %v2951, %v2952
        %v2954 = vrot.slane %v2952, 4
        %v2955 = vrot.slane %v2468, 5
        %v2956 = vsel %vm939, %v2954, %v2955
        %v2957 = vrot.slane %v2869, 5
        %v2958 = vrot.slane %v2957, 4
        %v2959 = vrot.slane %v2442, 5
        %v2960 = vsel %vm939, %v2958, %v2959
        %v2961 = vrot.slane %v2959, 4
        %v2962 = vrot.slane %v2469, 5
        %v2963 = vsel %vm939, %v2961, %v2962
        %v2964 = vrot.slane %v2870, 5
        %v2965 = vrot.slane %v2964, 4
        %v2966 = vrot.slane %v2444, 5
        %v2967 = vsel %vm939, %v2965, %v2966
        %v2968 = vrot.slane %v2966, 4
        %v2969 = vrot.slane %v2470, 5
        %v2970 = vsel %vm939, %v2968, %v2969
        %v2971 = vrot.slane %v2871, 5
        %v2972 = vrot.slane %v2971, 4
        %v2973 = vrot.slane %v2446, 5
        %v2974 = vsel %vm939, %v2972, %v2973
        %v2975 = vrot.slane %v2973, 4
        %v2976 = vrot.slane %v2471, 5
        %v2977 = vsel %vm939, %v2975, %v2976
        %v2978 = vrot.slane %v2872, 5
        %v2979 = vrot.slane %v2978, 4
        %v2980 = vrot.slane %v2448, 5
        %v2981 = vsel %vm939, %v2979, %v2980
        %v2982 = vrot.slane %v2980, 4
        %v2983 = vrot.slane %v2472, 5
        %v2984 = vsel %vm939, %v2982, %v2983
        %v2985 = vrot.slane %v2873, 5
        %v2986 = vrot.slane %v2985, 4
        %v2987 = vrot.slane %v2450, 5
        %v2988 = vsel %vm939, %v2986, %v2987
        %v2989 = vrot.slane %v2987, 4
        %v2990 = vrot.slane %v2473, 5
        %v2991 = vsel %vm939, %v2989, %v2990
        %v2992 = vrot.slane %v2874, 5
        %v2993 = vrot.slane %v2992, 4
        %v2994 = vrot.slane %v2452, 5
        %v2995 = vsel %vm939, %v2993, %v2994
        %v2996 = vrot.slane %v2994, 4
        %v2997 = vrot.slane %v2474, 5
        %v2998 = vsel %vm939, %v2996, %v2997
        %v2999 = vrot.slane %v2875, 5
        %v3000 = vrot.slane %v2999, 4
        %v3001 = vrot.slane %v2454, 5
        %v3002 = vsel %vm939, %v3000, %v3001
        %v3003 = vrot.slane %v3001, 4
        %v3004 = vrot.slane %v2475, 5
        %v3005 = vsel %vm939, %v3003, %v3004
        %v3006 = vrot.slane %v2876, 5
        %v3007 = vrot.slane %v3006, 4
        %v3008 = vrot.slane %v2456, 5
        %v3009 = vsel %vm939, %v3007, %v3008
        %v3010 = vrot.slane %v3008, 4
        %v3011 = vrot.slane %v2476, 5
        %v3012 = vsel %vm939, %v3010, %v3011
        %v3013 = vrot.slane %v2877, 5
        %v3014 = vrot.slane %v3013, 4
        %v3015 = vrot.slane %v2458, 5
        %v3016 = vsel %vm939, %v3014, %v3015
        %v3017 = vrot.slane %v3015, 4
        %v3018 = vrot.slane %v2477, 5
        %v3019 = vsel %vm939, %v3017, %v3018
        %v3020 = vrot.slane %v2878, 5
        %v3021 = vrot.slane %v3020, 4
        %v3022 = vrot.slane %v2460, 5
        %v3023 = vsel %vm939, %v3021, %v3022
        %v3024 = vrot.slane %v3022, 4
        %v3025 = vrot.slane %v2478, 5
        %v3026 = vsel %vm939, %v3024, %v3025
        %v3027 = vrot.slane %v2879, 5
        %v3028 = vrot.slane %v3027, 4
        %v3029 = vrot.slane %v2462, 5
        %v3030 = vsel %vm939, %v3028, %v3029
        %v3031 = vrot.slane %v3029, 4
        %v3032 = vrot.slane %v2479, 5
        %v3033 = vsel %vm939, %v3031, %v3032
        %v3034 = vrot.slane %v2880, 5
        %v3035 = vrot.slane %v3034, 4
        %v3036 = vrot.slane %v2464, 5
        %v3037 = vsel %vm939, %v3035, %v3036
        %v3038 = vrot.slane %v3036, 4
        %v3039 = vrot.slane %v2480, 5
        %v3040 = vsel %vm939, %v3038, %v3039
        %v3041 = vld [vmem:[%s2432 + $0x8] sm:$0x3]
        %v3042 = vld [vmem:[%s2432 + $0x14] sm:$0x3]
        %v3043 = vld [vmem:[%s2432 + $0x20] sm:$0x3]
        %v3044 = vld [vmem:[%s2432 + $0x2c] sm:$0x3]
        %v3045 = vld [vmem:[%s2432 + $0x38] sm:$0x3]
        %v3046 = vld [vmem:[%s2432 + $0x44] sm:$0x3]
        %v3047 = vld [vmem:[%s2432 + $0x50] sm:$0x3]
        %v3048 = vld [vmem:[%s2432 + $0x5c] sm:$0x3]
        %v3049 = vld [vmem:[%s2432 + $0x68] sm:$0x3]
        %v3050 = vld [vmem:[%s2432 + $0x74] sm:$0x3]
        %v3051 = vld [vmem:[%s2432 + $0x80] sm:$0x3]
        %v3052 = vld [vmem:[%s2432 + $0x8c] sm:$0x3]
        %v3053 = vld [vmem:[%s2432 + $0x98] sm:$0x3]
        %v3054 = vld [vmem:[%s2432 + $0xa4] sm:$0x3]
        %v3055 = vld [vmem:[%s2432 + $0xb0] sm:$0x3]
        %v3056 = vld [vmem:[%s2432 + $0xbc] sm:$0x3]
        %v3058 = vshrl.u32 %v2865, 16
        %v3060 = vrot.slane %v3058, 5
        %v3061 = vshll.u32 %v2865, 16
        %v3063 = vrot.slane %v3061, 6
        %v3064 = vor.u32 %v3060, %v3063
        %v3065 = vrot.slane %v3064, 4
        %v3066 = vrot.slane %v2495, 5
        %v3067 = vrot.slane %v2491, 6
        %v3068 = vor.u32 %v3066, %v3067
        %v3069 = vsel %vm1070, %v3065, %v3068
        %v3070 = vrot.slane %v3068, 4
        %v3072 = vshrl.u32 %v3041, 16
        %v3074 = vrot.slane %v3072, 5
        %v3075 = vshll.u32 %v3041, 16
        %v3077 = vrot.slane %v3075, 6
        %v3078 = vor.u32 %v3074, %v3077
        %v3079 = vsel %vm1070, %v3070, %v3078
        %v3081 = vshrl.u32 %v2866, 16
        %v3083 = vrot.slane %v3081, 5
        %v3084 = vshll.u32 %v2866, 16
        %v3086 = vrot.slane %v3084, 6
        %v3087 = vor.u32 %v3083, %v3086
        %v3088 = vrot.slane %v3087, 4
        %v3089 = vrot.slane %v2519, 5
        %v3090 = vrot.slane %v2515, 6
        %v3091 = vor.u32 %v3089, %v3090
        %v3092 = vsel %vm1070, %v3088, %v3091
        %v3093 = vrot.slane %v3091, 4
        %v3095 = vshrl.u32 %v3042, 16
        %v3097 = vrot.slane %v3095, 5
        %v3098 = vshll.u32 %v3042, 16
        %v3100 = vrot.slane %v3098, 6
        %v3101 = vor.u32 %v3097, %v3100
        %v3102 = vsel %vm1070, %v3093, %v3101
        %v3104 = vshrl.u32 %v2867, 16
        %v3106 = vrot.slane %v3104, 5
        %v3107 = vshll.u32 %v2867, 16
        %v3109 = vrot.slane %v3107, 6
        %v3110 = vor.u32 %v3106, %v3109
        %v3111 = vrot.slane %v3110, 4
        %v3112 = vrot.slane %v2543, 5
        %v3113 = vrot.slane %v2539, 6
        %v3114 = vor.u32 %v3112, %v3113
        %v3115 = vsel %vm1070, %v3111, %v3114
        %v3116 = vrot.slane %v3114, 4
        %v3118 = vshrl.u32 %v3043, 16
        %v3120 = vrot.slane %v3118, 5
        %v3121 = vshll.u32 %v3043, 16
        %v3123 = vrot.slane %v3121, 6
        %v3124 = vor.u32 %v3120, %v3123
        %v3125 = vsel %vm1070, %v3116, %v3124
        %v3127 = vshrl.u32 %v2868, 16
        %v3129 = vrot.slane %v3127, 5
        %v3130 = vshll.u32 %v2868, 16
        %v3132 = vrot.slane %v3130, 6
        %v3133 = vor.u32 %v3129, %v3132
        %v3134 = vrot.slane %v3133, 4
        %v3135 = vrot.slane %v2567, 5
        %v3136 = vrot.slane %v2563, 6
        %v3137 = vor.u32 %v3135, %v3136
        %v3138 = vsel %vm1070, %v3134, %v3137
        %v3139 = vrot.slane %v3137, 4
        %v3141 = vshrl.u32 %v3044, 16
        %v3143 = vrot.slane %v3141, 5
        %v3144 = vshll.u32 %v3044, 16
        %v3146 = vrot.slane %v3144, 6
        %v3147 = vor.u32 %v3143, %v3146
        %v3148 = vsel %vm1070, %v3139, %v3147
        %v3150 = vshrl.u32 %v2869, 16
        %v3152 = vrot.slane %v3150, 5
        %v3153 = vshll.u32 %v2869, 16
        %v3155 = vrot.slane %v3153, 6
        %v3156 = vor.u32 %v3152, %v3155
        %v3157 = vrot.slane %v3156, 4
        %v3158 = vrot.slane %v2591, 5
        %v3159 = vrot.slane %v2587, 6
        %v3160 = vor.u32 %v3158, %v3159
        %v3161 = vsel %vm1070, %v3157, %v3160
        %v3162 = vrot.slane %v3160, 4
        %v3164 = vshrl.u32 %v3045, 16
        %v3166 = vrot.slane %v3164, 5
        %v3167 = vshll.u32 %v3045, 16
        %v3169 = vrot.slane %v3167, 6
        %v3170 = vor.u32 %v3166, %v3169
        %v3171 = vsel %vm1070, %v3162, %v3170
        %v3173 = vshrl.u32 %v2870, 16
        %v3175 = vrot.slane %v3173, 5
        %v3176 = vshll.u32 %v2870, 16
        %v3178 = vrot.slane %v3176, 6
        %v3179 = vor.u32 %v3175, %v3178
        %v3180 = vrot.slane %v3179, 4
        %v3181 = vrot.slane %v2615, 5
        %v3182 = vrot.slane %v2611, 6
        %v3183 = vor.u32 %v3181, %v3182
        %v3184 = vsel %vm1070, %v3180, %v3183
        %v3185 = vrot.slane %v3183, 4
        %v3187 = vshrl.u32 %v3046, 16
        %v3189 = vrot.slane %v3187, 5
        %v3190 = vshll.u32 %v3046, 16
        %v3192 = vrot.slane %v3190, 6
        %v3193 = vor.u32 %v3189, %v3192
        %v3194 = vsel %vm1070, %v3185, %v3193
        %v3196 = vshrl.u32 %v2871, 16
        %v3198 = vrot.slane %v3196, 5
        %v3199 = vshll.u32 %v2871, 16
        %v3201 = vrot.slane %v3199, 6
        %v3202 = vor.u32 %v3198, %v3201
        %v3203 = vrot.slane %v3202, 4
        %v3204 = vrot.slane %v2639, 5
        %v3205 = vrot.slane %v2635, 6
        %v3206 = vor.u32 %v3204, %v3205
        %v3207 = vsel %vm1070, %v3203, %v3206
        %v3208 = vrot.slane %v3206, 4
        %v3210 = vshrl.u32 %v3047, 16
        %v3212 = vrot.slane %v3210, 5
        %v3213 = vshll.u32 %v3047, 16
        %v3215 = vrot.slane %v3213, 6
        %v3216 = vor.u32 %v3212, %v3215
        %v3217 = vsel %vm1070, %v3208, %v3216
        %v3219 = vshrl.u32 %v2872, 16
        %v3221 = vrot.slane %v3219, 5
        %v3222 = vshll.u32 %v2872, 16
        %v3224 = vrot.slane %v3222, 6
        %v3225 = vor.u32 %v3221, %v3224
        %v3226 = vrot.slane %v3225, 4
        %v3227 = vrot.slane %v2663, 5
        %v3228 = vrot.slane %v2659, 6
        %v3229 = vor.u32 %v3227, %v3228
        %v3230 = vsel %vm1070, %v3226, %v3229
        %v3231 = vrot.slane %v3229, 4
        %v3233 = vshrl.u32 %v3048, 16
        %v3235 = vrot.slane %v3233, 5
        %v3236 = vshll.u32 %v3048, 16
        %v3238 = vrot.slane %v3236, 6
        %v3239 = vor.u32 %v3235, %v3238
        %v3240 = vsel %vm1070, %v3231, %v3239
        %v3242 = vshrl.u32 %v2873, 16
        %v3244 = vrot.slane %v3242, 5
        %v3245 = vshll.u32 %v2873, 16
        %v3247 = vrot.slane %v3245, 6
        %v3248 = vor.u32 %v3244, %v3247
        %v3249 = vrot.slane %v3248, 4
        %v3250 = vrot.slane %v2687, 5
        %v3251 = vrot.slane %v2683, 6
        %v3252 = vor.u32 %v3250, %v3251
        %v3253 = vsel %vm1070, %v3249, %v3252
        %v3254 = vrot.slane %v3252, 4
        %v3256 = vshrl.u32 %v3049, 16
        %v3258 = vrot.slane %v3256, 5
        %v3259 = vshll.u32 %v3049, 16
        %v3261 = vrot.slane %v3259, 6
        %v3262 = vor.u32 %v3258, %v3261
        %v3263 = vsel %vm1070, %v3254, %v3262
        %v3265 = vshrl.u32 %v2874, 16
        %v3267 = vrot.slane %v3265, 5
        %v3268 = vshll.u32 %v2874, 16
        %v3270 = vrot.slane %v3268, 6
        %v3271 = vor.u32 %v3267, %v3270
        %v3272 = vrot.slane %v3271, 4
        %v3273 = vrot.slane %v2711, 5
        %v3274 = vrot.slane %v2707, 6
        %v3275 = vor.u32 %v3273, %v3274
        %v3276 = vsel %vm1070, %v3272, %v3275
        %v3277 = vrot.slane %v3275, 4
        %v3279 = vshrl.u32 %v3050, 16
        %v3281 = vrot.slane %v3279, 5
        %v3282 = vshll.u32 %v3050, 16
        %v3284 = vrot.slane %v3282, 6
        %v3285 = vor.u32 %v3281, %v3284
        %v3286 = vsel %vm1070, %v3277, %v3285
        %v3288 = vshrl.u32 %v2875, 16
        %v3290 = vrot.slane %v3288, 5
        %v3291 = vshll.u32 %v2875, 16
        %v3293 = vrot.slane %v3291, 6
        %v3294 = vor.u32 %v3290, %v3293
        %v3295 = vrot.slane %v3294, 4
        %v3296 = vrot.slane %v2735, 5
        %v3297 = vrot.slane %v2731, 6
        %v3298 = vor.u32 %v3296, %v3297
        %v3299 = vsel %vm1070, %v3295, %v3298
        %v3300 = vrot.slane %v3298, 4
        %v3302 = vshrl.u32 %v3051, 16
        %v3304 = vrot.slane %v3302, 5
        %v3305 = vshll.u32 %v3051, 16
        %v3307 = vrot.slane %v3305, 6
        %v3308 = vor.u32 %v3304, %v3307
        %v3309 = vsel %vm1070, %v3300, %v3308
        %v3311 = vshrl.u32 %v2876, 16
        %v3313 = vrot.slane %v3311, 5
        %v3314 = vshll.u32 %v2876, 16
        %v3316 = vrot.slane %v3314, 6
        %v3317 = vor.u32 %v3313, %v3316
        %v3318 = vrot.slane %v3317, 4
        %v3319 = vrot.slane %v2759, 5
        %v3320 = vrot.slane %v2755, 6
        %v3321 = vor.u32 %v3319, %v3320
        %v3322 = vsel %vm1070, %v3318, %v3321
        %v3323 = vrot.slane %v3321, 4
        %v3325 = vshrl.u32 %v3052, 16
        %v3327 = vrot.slane %v3325, 5
        %v3328 = vshll.u32 %v3052, 16
        %v3330 = vrot.slane %v3328, 6
        %v3331 = vor.u32 %v3327, %v3330
        %v3332 = vsel %vm1070, %v3323, %v3331
        %v3334 = vshrl.u32 %v2877, 16
        %v3336 = vrot.slane %v3334, 5
        %v3337 = vshll.u32 %v2877, 16
        %v3339 = vrot.slane %v3337, 6
        %v3340 = vor.u32 %v3336, %v3339
        %v3341 = vrot.slane %v3340, 4
        %v3342 = vrot.slane %v2783, 5
        %v3343 = vrot.slane %v2779, 6
        %v3344 = vor.u32 %v3342, %v3343
        %v3345 = vsel %vm1070, %v3341, %v3344
        %v3346 = vrot.slane %v3344, 4
        %v3348 = vshrl.u32 %v3053, 16
        %v3350 = vrot.slane %v3348, 5
        %v3351 = vshll.u32 %v3053, 16
        %v3353 = vrot.slane %v3351, 6
        %v3354 = vor.u32 %v3350, %v3353
        %v3355 = vsel %vm1070, %v3346, %v3354
        %v3357 = vshrl.u32 %v2878, 16
        %v3359 = vrot.slane %v3357, 5
        %v3360 = vshll.u32 %v2878, 16
        %v3362 = vrot.slane %v3360, 6
        %v3363 = vor.u32 %v3359, %v3362
        %v3364 = vrot.slane %v3363, 4
        %v3365 = vrot.slane %v2807, 5
        %v3366 = vrot.slane %v2803, 6
        %v3367 = vor.u32 %v3365, %v3366
        %v3368 = vsel %vm1070, %v3364, %v3367
        %v3369 = vrot.slane %v3367, 4
        %v3371 = vshrl.u32 %v3054, 16
        %v3373 = vrot.slane %v3371, 5
        %v3374 = vshll.u32 %v3054, 16
        %v3376 = vrot.slane %v3374, 6
        %v3377 = vor.u32 %v3373, %v3376
        %v3378 = vsel %vm1070, %v3369, %v3377
        %v3380 = vshrl.u32 %v2879, 16
        %v3382 = vrot.slane %v3380, 5
        %v3383 = vshll.u32 %v2879, 16
        %v3385 = vrot.slane %v3383, 6
        %v3386 = vor.u32 %v3382, %v3385
        %v3387 = vrot.slane %v3386, 4
        %v3388 = vrot.slane %v2831, 5
        %v3389 = vrot.slane %v2827, 6
        %v3390 = vor.u32 %v3388, %v3389
        %v3391 = vsel %vm1070, %v3387, %v3390
        %v3392 = vrot.slane %v3390, 4
        %v3394 = vshrl.u32 %v3055, 16
        %v3396 = vrot.slane %v3394, 5
        %v3397 = vshll.u32 %v3055, 16
        %v3399 = vrot.slane %v3397, 6
        %v3400 = vor.u32 %v3396, %v3399
        %v3401 = vsel %vm1070, %v3392, %v3400
        %v3403 = vshrl.u32 %v2880, 16
        %v3405 = vrot.slane %v3403, 5
        %v3406 = vshll.u32 %v2880, 16
        %v3408 = vrot.slane %v3406, 6
        %v3409 = vor.u32 %v3405, %v3408
        %v3410 = vrot.slane %v3409, 4
        %v3411 = vrot.slane %v2855, 5
        %v3412 = vrot.slane %v2851, 6
        %v3413 = vor.u32 %v3411, %v3412
        %v3414 = vsel %vm1070, %v3410, %v3413
        %v3415 = vrot.slane %v3413, 4
        %v3417 = vshrl.u32 %v3056, 16
        %v3419 = vrot.slane %v3417, 5
        %v3420 = vshll.u32 %v3056, 16
        %v3422 = vrot.slane %v3420, 6
        %v3423 = vor.u32 %v3419, %v3422
        %v3424 = vsel %vm1070, %v3415, %v3423
        %s3425 = scalar_lea.vmem %s394, 36
        %v3426 = vld [vmem:[%s3425] sm:$0xf]
        %v3427 = vld [vmem:[%s3425 + $0x4] sm:$0xf]
        %v3428 = vld [vmem:[%s3425 + $0xc] sm:$0xf]
        %v3429 = vld [vmem:[%s3425 + $0x10] sm:$0xf]
        %v3430 = vld [vmem:[%s3425 + $0x18] sm:$0xf]
        %v3431 = vld [vmem:[%s3425 + $0x1c] sm:$0xf]
        %v3432 = vld [vmem:[%s3425 + $0x24] sm:$0xf]
        %v3433 = vld [vmem:[%s3425 + $0x28] sm:$0xf]
        %v3434 = vld [vmem:[%s3425 + $0x30] sm:$0xf]
        %v3435 = vld [vmem:[%s3425 + $0x34] sm:$0xf]
        %v3436 = vld [vmem:[%s3425 + $0x3c] sm:$0xf]
        %v3437 = vld [vmem:[%s3425 + $0x40] sm:$0xf]
        %v3438 = vld [vmem:[%s3425 + $0x48] sm:$0xf]
        %v3439 = vld [vmem:[%s3425 + $0x4c] sm:$0xf]
        %v3440 = vld [vmem:[%s3425 + $0x54] sm:$0xf]
        %v3441 = vld [vmem:[%s3425 + $0x58] sm:$0xf]
        %v3442 = vld [vmem:[%s3425 + $0x60] sm:$0xf]
        %v3443 = vld [vmem:[%s3425 + $0x64] sm:$0xf]
        %v3444 = vld [vmem:[%s3425 + $0x6c] sm:$0xf]
        %v3445 = vld [vmem:[%s3425 + $0x70] sm:$0xf]
        %v3446 = vld [vmem:[%s3425 + $0x78] sm:$0xf]
        %v3447 = vld [vmem:[%s3425 + $0x7c] sm:$0xf]
        %v3448 = vld [vmem:[%s3425 + $0x84] sm:$0xf]
        %v3449 = vld [vmem:[%s3425 + $0x88] sm:$0xf]
        %v3450 = vld [vmem:[%s3425 + $0x90] sm:$0xf]
        %v3451 = vld [vmem:[%s3425 + $0x94] sm:$0xf]
        %v3452 = vld [vmem:[%s3425 + $0x9c] sm:$0xf]
        %v3453 = vld [vmem:[%s3425 + $0xa0] sm:$0xf]
        %v3454 = vld [vmem:[%s3425 + $0xa8] sm:$0xf]
        %v3455 = vld [vmem:[%s3425 + $0xac] sm:$0xf]
        %v3456 = vld [vmem:[%s3425 + $0xb4] sm:$0xf]
        %v3457 = vld [vmem:[%s3425 + $0xb8] sm:$0xf]
        %v3458 = vld [vmem:[%s3425 + $0x8] sm:$0x1]
        %v3459 = vld [vmem:[%s3425 + $0x14] sm:$0x1]
        %v3460 = vld [vmem:[%s3425 + $0x20] sm:$0x1]
        %v3461 = vld [vmem:[%s3425 + $0x2c] sm:$0x1]
        %v3462 = vld [vmem:[%s3425 + $0x38] sm:$0x1]
        %v3463 = vld [vmem:[%s3425 + $0x44] sm:$0x1]
        %v3464 = vld [vmem:[%s3425 + $0x50] sm:$0x1]
        %v3465 = vld [vmem:[%s3425 + $0x5c] sm:$0x1]
        %v3466 = vld [vmem:[%s3425 + $0x68] sm:$0x1]
        %v3467 = vld [vmem:[%s3425 + $0x74] sm:$0x1]
        %v3468 = vld [vmem:[%s3425 + $0x80] sm:$0x1]
        %v3469 = vld [vmem:[%s3425 + $0x8c] sm:$0x1]
        %v3470 = vld [vmem:[%s3425 + $0x98] sm:$0x1]
        %v3471 = vld [vmem:[%s3425 + $0xa4] sm:$0x1]
        %v3472 = vld [vmem:[%s3425 + $0xb0] sm:$0x1]
        %v3473 = vld [vmem:[%s3425 + $0xbc] sm:$0x1]
        %v3475 = vshrl.u32 %v3426, 16
        %v3477 = vrot.slane %v3475, 4
        %v3478 = vshll.u32 %v3426, 16
        %v3480 = vrot.slane %v3478, 5
        %v3481 = vor.u32 %v3477, %v3480
        %v3482 = vrot.slane %v3481, 4
        %v3484 = vshll.u32 %v3427, 16
        %v3486 = vrot.slane %v3484, 5
        %v3487 = vsel %vm488, %v3482, %v3486
        %v3488 = vshrl.u32 %v3427, 16
        %v3490 = vrot.slane %v3488, 4
        %v3491 = vor.u32 %v3490, %v3486
        %v3492 = vrot.slane %v3491, 4
        %v3494 = vshll.u32 %v3458, 16
        %v3496 = vrot.slane %v3494, 5
        %v3497 = vsel %vm488, %v3492, %v3496
        %v3499 = vshrl.u32 %v3428, 16
        %v3501 = vrot.slane %v3499, 4
        %v3502 = vshll.u32 %v3428, 16
        %v3504 = vrot.slane %v3502, 5
        %v3505 = vor.u32 %v3501, %v3504
        %v3506 = vrot.slane %v3505, 4
        %v3508 = vshll.u32 %v3429, 16
        %v3510 = vrot.slane %v3508, 5
        %v3511 = vsel %vm488, %v3506, %v3510
        %v3512 = vshrl.u32 %v3429, 16
        %v3514 = vrot.slane %v3512, 4
        %v3515 = vor.u32 %v3514, %v3510
        %v3516 = vrot.slane %v3515, 4
        %v3518 = vshll.u32 %v3459, 16
        %v3520 = vrot.slane %v3518, 5
        %v3521 = vsel %vm488, %v3516, %v3520
        %v3523 = vshrl.u32 %v3430, 16
        %v3525 = vrot.slane %v3523, 4
        %v3526 = vshll.u32 %v3430, 16
        %v3528 = vrot.slane %v3526, 5
        %v3529 = vor.u32 %v3525, %v3528
        %v3530 = vrot.slane %v3529, 4
        %v3532 = vshll.u32 %v3431, 16
        %v3534 = vrot.slane %v3532, 5
        %v3535 = vsel %vm488, %v3530, %v3534
        %v3536 = vshrl.u32 %v3431, 16
        %v3538 = vrot.slane %v3536, 4
        %v3539 = vor.u32 %v3538, %v3534
        %v3540 = vrot.slane %v3539, 4
        %v3542 = vshll.u32 %v3460, 16
        %v3544 = vrot.slane %v3542, 5
        %v3545 = vsel %vm488, %v3540, %v3544
        %v3547 = vshrl.u32 %v3432, 16
        %v3549 = vrot.slane %v3547, 4
        %v3550 = vshll.u32 %v3432, 16
        %v3552 = vrot.slane %v3550, 5
        %v3553 = vor.u32 %v3549, %v3552
        %v3554 = vrot.slane %v3553, 4
        %v3556 = vshll.u32 %v3433, 16
        %v3558 = vrot.slane %v3556, 5
        %v3559 = vsel %vm488, %v3554, %v3558
        %v3560 = vshrl.u32 %v3433, 16
        %v3562 = vrot.slane %v3560, 4
        %v3563 = vor.u32 %v3562, %v3558
        %v3564 = vrot.slane %v3563, 4
        %v3566 = vshll.u32 %v3461, 16
        %v3568 = vrot.slane %v3566, 5
        %v3569 = vsel %vm488, %v3564, %v3568
        %v3571 = vshrl.u32 %v3434, 16
        %v3573 = vrot.slane %v3571, 4
        %v3574 = vshll.u32 %v3434, 16
        %v3576 = vrot.slane %v3574, 5
        %v3577 = vor.u32 %v3573, %v3576
        %v3578 = vrot.slane %v3577, 4
        %v3580 = vshll.u32 %v3435, 16
        %v3582 = vrot.slane %v3580, 5
        %v3583 = vsel %vm488, %v3578, %v3582
        %v3584 = vshrl.u32 %v3435, 16
        %v3586 = vrot.slane %v3584, 4
        %v3587 = vor.u32 %v3586, %v3582
        %v3588 = vrot.slane %v3587, 4
        %v3590 = vshll.u32 %v3462, 16
        %v3592 = vrot.slane %v3590, 5
        %v3593 = vsel %vm488, %v3588, %v3592
        %v3595 = vshrl.u32 %v3436, 16
        %v3597 = vrot.slane %v3595, 4
        %v3598 = vshll.u32 %v3436, 16
        %v3600 = vrot.slane %v3598, 5
        %v3601 = vor.u32 %v3597, %v3600
        %v3602 = vrot.slane %v3601, 4
        %v3604 = vshll.u32 %v3437, 16
        %v3606 = vrot.slane %v3604, 5
        %v3607 = vsel %vm488, %v3602, %v3606
        %v3608 = vshrl.u32 %v3437, 16
        %v3610 = vrot.slane %v3608, 4
        %v3611 = vor.u32 %v3610, %v3606
        %v3612 = vrot.slane %v3611, 4
        %v3614 = vshll.u32 %v3463, 16
        %v3616 = vrot.slane %v3614, 5
        %v3617 = vsel %vm488, %v3612, %v3616
        %v3619 = vshrl.u32 %v3438, 16
        %v3621 = vrot.slane %v3619, 4
        %v3622 = vshll.u32 %v3438, 16
        %v3624 = vrot.slane %v3622, 5
        %v3625 = vor.u32 %v3621, %v3624
        %v3626 = vrot.slane %v3625, 4
        %v3628 = vshll.u32 %v3439, 16
        %v3630 = vrot.slane %v3628, 5
        %v3631 = vsel %vm488, %v3626, %v3630
        %v3632 = vshrl.u32 %v3439, 16
        %v3634 = vrot.slane %v3632, 4
        %v3635 = vor.u32 %v3634, %v3630
        %v3636 = vrot.slane %v3635, 4
        %v3638 = vshll.u32 %v3464, 16
        %v3640 = vrot.slane %v3638, 5
        %v3641 = vsel %vm488, %v3636, %v3640
        %v3643 = vshrl.u32 %v3440, 16
        %v3645 = vrot.slane %v3643, 4
        %v3646 = vshll.u32 %v3440, 16
        %v3648 = vrot.slane %v3646, 5
        %v3649 = vor.u32 %v3645, %v3648
        %v3650 = vrot.slane %v3649, 4
        %v3652 = vshll.u32 %v3441, 16
        %v3654 = vrot.slane %v3652, 5
        %v3655 = vsel %vm488, %v3650, %v3654
        %v3656 = vshrl.u32 %v3441, 16
        %v3658 = vrot.slane %v3656, 4
        %v3659 = vor.u32 %v3658, %v3654
        %v3660 = vrot.slane %v3659, 4
        %v3662 = vshll.u32 %v3465, 16
        %v3664 = vrot.slane %v3662, 5
        %v3665 = vsel %vm488, %v3660, %v3664
        %v3667 = vshrl.u32 %v3442, 16
        %v3669 = vrot.slane %v3667, 4
        %v3670 = vshll.u32 %v3442, 16
        %v3672 = vrot.slane %v3670, 5
        %v3673 = vor.u32 %v3669, %v3672
        %v3674 = vrot.slane %v3673, 4
        %v3676 = vshll.u32 %v3443, 16
        %v3678 = vrot.slane %v3676, 5
        %v3679 = vsel %vm488, %v3674, %v3678
        %v3680 = vshrl.u32 %v3443, 16
        %v3682 = vrot.slane %v3680, 4
        %v3683 = vor.u32 %v3682, %v3678
        %v3684 = vrot.slane %v3683, 4
        %v3686 = vshll.u32 %v3466, 16
        %v3688 = vrot.slane %v3686, 5
        %v3689 = vsel %vm488, %v3684, %v3688
        %v3691 = vshrl.u32 %v3444, 16
        %v3693 = vrot.slane %v3691, 4
        %v3694 = vshll.u32 %v3444, 16
        %v3696 = vrot.slane %v3694, 5
        %v3697 = vor.u32 %v3693, %v3696
        %v3698 = vrot.slane %v3697, 4
        %v3700 = vshll.u32 %v3445, 16
        %v3702 = vrot.slane %v3700, 5
        %v3703 = vsel %vm488, %v3698, %v3702
        %v3704 = vshrl.u32 %v3445, 16
        %v3706 = vrot.slane %v3704, 4
        %v3707 = vor.u32 %v3706, %v3702
        %v3708 = vrot.slane %v3707, 4
        %v3710 = vshll.u32 %v3467, 16
        %v3712 = vrot.slane %v3710, 5
        %v3713 = vsel %vm488, %v3708, %v3712
        %v3715 = vshrl.u32 %v3446, 16
        %v3717 = vrot.slane %v3715, 4
        %v3718 = vshll.u32 %v3446, 16
        %v3720 = vrot.slane %v3718, 5
        %v3721 = vor.u32 %v3717, %v3720
        %v3722 = vrot.slane %v3721, 4
        %v3724 = vshll.u32 %v3447, 16
        %v3726 = vrot.slane %v3724, 5
        %v3727 = vsel %vm488, %v3722, %v3726
        %v3728 = vshrl.u32 %v3447, 16
        %v3730 = vrot.slane %v3728, 4
        %v3731 = vor.u32 %v3730, %v3726
        %v3732 = vrot.slane %v3731, 4
        %v3734 = vshll.u32 %v3468, 16
        %v3736 = vrot.slane %v3734, 5
        %v3737 = vsel %vm488, %v3732, %v3736
        %v3739 = vshrl.u32 %v3448, 16
        %v3741 = vrot.slane %v3739, 4
        %v3742 = vshll.u32 %v3448, 16
        %v3744 = vrot.slane %v3742, 5
        %v3745 = vor.u32 %v3741, %v3744
        %v3746 = vrot.slane %v3745, 4
        %v3748 = vshll.u32 %v3449, 16
        %v3750 = vrot.slane %v3748, 5
        %v3751 = vsel %vm488, %v3746, %v3750
        %v3752 = vshrl.u32 %v3449, 16
        %v3754 = vrot.slane %v3752, 4
        %v3755 = vor.u32 %v3754, %v3750
        %v3756 = vrot.slane %v3755, 4
        %v3758 = vshll.u32 %v3469, 16
        %v3760 = vrot.slane %v3758, 5
        %v3761 = vsel %vm488, %v3756, %v3760
        %v3763 = vshrl.u32 %v3450, 16
        %v3765 = vrot.slane %v3763, 4
        %v3766 = vshll.u32 %v3450, 16
        %v3768 = vrot.slane %v3766, 5
        %v3769 = vor.u32 %v3765, %v3768
        %v3770 = vrot.slane %v3769, 4
        %v3772 = vshll.u32 %v3451, 16
        %v3774 = vrot.slane %v3772, 5
        %v3775 = vsel %vm488, %v3770, %v3774
        %v3776 = vshrl.u32 %v3451, 16
        %v3778 = vrot.slane %v3776, 4
        %v3779 = vor.u32 %v3778, %v3774
        %v3780 = vrot.slane %v3779, 4
        %v3782 = vshll.u32 %v3470, 16
        %v3784 = vrot.slane %v3782, 5
        %v3785 = vsel %vm488, %v3780, %v3784
        %v3787 = vshrl.u32 %v3452, 16
        %v3789 = vrot.slane %v3787, 4
        %v3790 = vshll.u32 %v3452, 16
        %v3792 = vrot.slane %v3790, 5
        %v3793 = vor.u32 %v3789, %v3792
        %v3794 = vrot.slane %v3793, 4
        %v3796 = vshll.u32 %v3453, 16
        %v3798 = vrot.slane %v3796, 5
        %v3799 = vsel %vm488, %v3794, %v3798
        %v3800 = vshrl.u32 %v3453, 16
        %v3802 = vrot.slane %v3800, 4
        %v3803 = vor.u32 %v3802, %v3798
        %v3804 = vrot.slane %v3803, 4
        %v3806 = vshll.u32 %v3471, 16
        %v3808 = vrot.slane %v3806, 5
        %v3809 = vsel %vm488, %v3804, %v3808
        %v3811 = vshrl.u32 %v3454, 16
        %v3813 = vrot.slane %v3811, 4
        %v3814 = vshll.u32 %v3454, 16
        %v3816 = vrot.slane %v3814, 5
        %v3817 = vor.u32 %v3813, %v3816
        %v3818 = vrot.slane %v3817, 4
        %v3820 = vshll.u32 %v3455, 16
        %v3822 = vrot.slane %v3820, 5
        %v3823 = vsel %vm488, %v3818, %v3822
        %v3824 = vshrl.u32 %v3455, 16
        %v3826 = vrot.slane %v3824, 4
        %v3827 = vor.u32 %v3826, %v3822
        %v3828 = vrot.slane %v3827, 4
        %v3830 = vshll.u32 %v3472, 16
        %v3832 = vrot.slane %v3830, 5
        %v3833 = vsel %vm488, %v3828, %v3832
        %v3835 = vshrl.u32 %v3456, 16
        %v3837 = vrot.slane %v3835, 4
        %v3838 = vshll.u32 %v3456, 16
        %v3840 = vrot.slane %v3838, 5
        %v3841 = vor.u32 %v3837, %v3840
        %v3842 = vrot.slane %v3841, 4
        %v3844 = vshll.u32 %v3457, 16
        %v3846 = vrot.slane %v3844, 5
        %v3847 = vsel %vm488, %v3842, %v3846
        %v3848 = vshrl.u32 %v3457, 16
        %v3850 = vrot.slane %v3848, 4
        %v3851 = vor.u32 %v3850, %v3846
        %v3852 = vrot.slane %v3851, 4
        %v3854 = vshll.u32 %v3473, 16
        %v3856 = vrot.slane %v3854, 5
        %v3857 = vsel %vm488, %v3852, %v3856
        %v3858 = vld [vmem:[%s3425] sm:$0xe]
        %v3859 = vld [vmem:[%s3425 + $0xc] sm:$0xe]
        %v3860 = vld [vmem:[%s3425 + $0x18] sm:$0xe]
        %v3861 = vld [vmem:[%s3425 + $0x24] sm:$0xe]
        %v3862 = vld [vmem:[%s3425 + $0x30] sm:$0xe]
        %v3863 = vld [vmem:[%s3425 + $0x3c] sm:$0xe]
        %v3864 = vld [vmem:[%s3425 + $0x48] sm:$0xe]
        %v3865 = vld [vmem:[%s3425 + $0x54] sm:$0xe]
        %v3866 = vld [vmem:[%s3425 + $0x60] sm:$0xe]
        %v3867 = vld [vmem:[%s3425 + $0x6c] sm:$0xe]
        %v3868 = vld [vmem:[%s3425 + $0x78] sm:$0xe]
        %v3869 = vld [vmem:[%s3425 + $0x84] sm:$0xe]
        %v3870 = vld [vmem:[%s3425 + $0x90] sm:$0xe]
        %v3871 = vld [vmem:[%s3425 + $0x9c] sm:$0xe]
        %v3872 = vld [vmem:[%s3425 + $0xa8] sm:$0xe]
        %v3873 = vld [vmem:[%s3425 + $0xb4] sm:$0xe]
        %v3922 = vrot.slane %v3858, 5
        %v3923 = vrot.slane %v3922, 4
        %v3924 = vrot.slane %v3427, 5
        %v3925 = vsel %vm939, %v3923, %v3924
        %v3926 = vrot.slane %v3924, 4
        %v3927 = vrot.slane %v3458, 5
        %v3928 = vsel %vm939, %v3926, %v3927
        %v3929 = vrot.slane %v3859, 5
        %v3930 = vrot.slane %v3929, 4
        %v3931 = vrot.slane %v3429, 5
        %v3932 = vsel %vm939, %v3930, %v3931
        %v3933 = vrot.slane %v3931, 4
        %v3934 = vrot.slane %v3459, 5
        %v3935 = vsel %vm939, %v3933, %v3934
        %v3936 = vrot.slane %v3860, 5
        %v3937 = vrot.slane %v3936, 4
        %v3938 = vrot.slane %v3431, 5
        %v3939 = vsel %vm939, %v3937, %v3938
        %v3940 = vrot.slane %v3938, 4
        %v3941 = vrot.slane %v3460, 5
        %v3942 = vsel %vm939, %v3940, %v3941
        %v3943 = vrot.slane %v3861, 5
        %v3944 = vrot.slane %v3943, 4
        %v3945 = vrot.slane %v3433, 5
        %v3946 = vsel %vm939, %v3944, %v3945
        %v3947 = vrot.slane %v3945, 4
        %v3948 = vrot.slane %v3461, 5
        %v3949 = vsel %vm939, %v3947, %v3948
        %v3950 = vrot.slane %v3862, 5
        %v3951 = vrot.slane %v3950, 4
        %v3952 = vrot.slane %v3435, 5
        %v3953 = vsel %vm939, %v3951, %v3952
        %v3954 = vrot.slane %v3952, 4
        %v3955 = vrot.slane %v3462, 5
        %v3956 = vsel %vm939, %v3954, %v3955
        %v3957 = vrot.slane %v3863, 5
        %v3958 = vrot.slane %v3957, 4
        %v3959 = vrot.slane %v3437, 5
        %v3960 = vsel %vm939, %v3958, %v3959
        %v3961 = vrot.slane %v3959, 4
        %v3962 = vrot.slane %v3463, 5
        %v3963 = vsel %vm939, %v3961, %v3962
        %v3964 = vrot.slane %v3864, 5
        %v3965 = vrot.slane %v3964, 4
        %v3966 = vrot.slane %v3439, 5
        %v3967 = vsel %vm939, %v3965, %v3966
        %v3968 = vrot.slane %v3966, 4
        %v3969 = vrot.slane %v3464, 5
        %v3970 = vsel %vm939, %v3968, %v3969
        %v3971 = vrot.slane %v3865, 5
        %v3972 = vrot.slane %v3971, 4
        %v3973 = vrot.slane %v3441, 5
        %v3974 = vsel %vm939, %v3972, %v3973
        %v3975 = vrot.slane %v3973, 4
        %v3976 = vrot.slane %v3465, 5
        %v3977 = vsel %vm939, %v3975, %v3976
        %v3978 = vrot.slane %v3866, 5
        %v3979 = vrot.slane %v3978, 4
        %v3980 = vrot.slane %v3443, 5
        %v3981 = vsel %vm939, %v3979, %v3980
        %v3982 = vrot.slane %v3980, 4
        %v3983 = vrot.slane %v3466, 5
        %v3984 = vsel %vm939, %v3982, %v3983
        %v3985 = vrot.slane %v3867, 5
        %v3986 = vrot.slane %v3985, 4
        %v3987 = vrot.slane %v3445, 5
        %v3988 = vsel %vm939, %v3986, %v3987
        %v3989 = vrot.slane %v3987, 4
        %v3990 = vrot.slane %v3467, 5
        %v3991 = vsel %vm939, %v3989, %v3990
        %v3992 = vrot.slane %v3868, 5
        %v3993 = vrot.slane %v3992, 4
        %v3994 = vrot.slane %v3447, 5
        %v3995 = vsel %vm939, %v3993, %v3994
        %v3996 = vrot.slane %v3994, 4
        %v3997 = vrot.slane %v3468, 5
        %v3998 = vsel %vm939, %v3996, %v3997
        %v3999 = vrot.slane %v3869, 5
        %v4000 = vrot.slane %v3999, 4
        %v4001 = vrot.slane %v3449, 5
        %v4002 = vsel %vm939, %v4000, %v4001
        %v4003 = vrot.slane %v4001, 4
        %v4004 = vrot.slane %v3469, 5
        %v4005 = vsel %vm939, %v4003, %v4004
        %v4006 = vrot.slane %v3870, 5
        %v4007 = vrot.slane %v4006, 4
        %v4008 = vrot.slane %v3451, 5
        %v4009 = vsel %vm939, %v4007, %v4008
        %v4010 = vrot.slane %v4008, 4
        %v4011 = vrot.slane %v3470, 5
        %v4012 = vsel %vm939, %v4010, %v4011
        %v4013 = vrot.slane %v3871, 5
        %v4014 = vrot.slane %v4013, 4
        %v4015 = vrot.slane %v3453, 5
        %v4016 = vsel %vm939, %v4014, %v4015
        %v4017 = vrot.slane %v4015, 4
        %v4018 = vrot.slane %v3471, 5
        %v4019 = vsel %vm939, %v4017, %v4018
        %v4020 = vrot.slane %v3872, 5
        %v4021 = vrot.slane %v4020, 4
        %v4022 = vrot.slane %v3455, 5
        %v4023 = vsel %vm939, %v4021, %v4022
        %v4024 = vrot.slane %v4022, 4
        %v4025 = vrot.slane %v3472, 5
        %v4026 = vsel %vm939, %v4024, %v4025
        %v4027 = vrot.slane %v3873, 5
        %v4028 = vrot.slane %v4027, 4
        %v4029 = vrot.slane %v3457, 5
        %v4030 = vsel %vm939, %v4028, %v4029
        %v4031 = vrot.slane %v4029, 4
        %v4032 = vrot.slane %v3473, 5
        %v4033 = vsel %vm939, %v4031, %v4032
        %v4034 = vld [vmem:[%s3425 + $0x8] sm:$0x3]
        %v4035 = vld [vmem:[%s3425 + $0x14] sm:$0x3]
        %v4036 = vld [vmem:[%s3425 + $0x20] sm:$0x3]
        %v4037 = vld [vmem:[%s3425 + $0x2c] sm:$0x3]
        %v4038 = vld [vmem:[%s3425 + $0x38] sm:$0x3]
        %v4039 = vld [vmem:[%s3425 + $0x44] sm:$0x3]
        %v4040 = vld [vmem:[%s3425 + $0x50] sm:$0x3]
        %v4041 = vld [vmem:[%s3425 + $0x5c] sm:$0x3]
        %v4042 = vld [vmem:[%s3425 + $0x68] sm:$0x3]
        %v4043 = vld [vmem:[%s3425 + $0x74] sm:$0x3]
        %v4044 = vld [vmem:[%s3425 + $0x80] sm:$0x3]
        %v4045 = vld [vmem:[%s3425 + $0x8c] sm:$0x3]
        %v4046 = vld [vmem:[%s3425 + $0x98] sm:$0x3]
        %v4047 = vld [vmem:[%s3425 + $0xa4] sm:$0x3]
        %v4048 = vld [vmem:[%s3425 + $0xb0] sm:$0x3]
        %v4049 = vld [vmem:[%s3425 + $0xbc] sm:$0x3]
        %v4051 = vshrl.u32 %v3858, 16
        %v4053 = vrot.slane %v4051, 5
        %v4054 = vshll.u32 %v3858, 16
        %v4056 = vrot.slane %v4054, 6
        %v4057 = vor.u32 %v4053, %v4056
        %v4058 = vrot.slane %v4057, 4
        %v4059 = vrot.slane %v3488, 5
        %v4060 = vrot.slane %v3484, 6
        %v4061 = vor.u32 %v4059, %v4060
        %v4062 = vsel %vm1070, %v4058, %v4061
        %v4063 = vrot.slane %v4061, 4
        %v4065 = vshrl.u32 %v4034, 16
        %v4067 = vrot.slane %v4065, 5
        %v4068 = vshll.u32 %v4034, 16
        %v4070 = vrot.slane %v4068, 6
        %v4071 = vor.u32 %v4067, %v4070
        %v4072 = vsel %vm1070, %v4063, %v4071
        %v4074 = vshrl.u32 %v3859, 16
        %v4076 = vrot.slane %v4074, 5
        %v4077 = vshll.u32 %v3859, 16
        %v4079 = vrot.slane %v4077, 6
        %v4080 = vor.u32 %v4076, %v4079
        %v4081 = vrot.slane %v4080, 4
        %v4082 = vrot.slane %v3512, 5
        %v4083 = vrot.slane %v3508, 6
        %v4084 = vor.u32 %v4082, %v4083
        %v4085 = vsel %vm1070, %v4081, %v4084
        %v4086 = vrot.slane %v4084, 4
        %v4088 = vshrl.u32 %v4035, 16
        %v4090 = vrot.slane %v4088, 5
        %v4091 = vshll.u32 %v4035, 16
        %v4093 = vrot.slane %v4091, 6
        %v4094 = vor.u32 %v4090, %v4093
        %v4095 = vsel %vm1070, %v4086, %v4094
        %v4097 = vshrl.u32 %v3860, 16
        %v4099 = vrot.slane %v4097, 5
        %v4100 = vshll.u32 %v3860, 16
        %v4102 = vrot.slane %v4100, 6
        %v4103 = vor.u32 %v4099, %v4102
        %v4104 = vrot.slane %v4103, 4
        %v4105 = vrot.slane %v3536, 5
        %v4106 = vrot.slane %v3532, 6
        %v4107 = vor.u32 %v4105, %v4106
        %v4108 = vsel %vm1070, %v4104, %v4107
        %v4109 = vrot.slane %v4107, 4
        %v4111 = vshrl.u32 %v4036, 16
        %v4113 = vrot.slane %v4111, 5
        %v4114 = vshll.u32 %v4036, 16
        %v4116 = vrot.slane %v4114, 6
        %v4117 = vor.u32 %v4113, %v4116
        %v4118 = vsel %vm1070, %v4109, %v4117
        %v4120 = vshrl.u32 %v3861, 16
        %v4122 = vrot.slane %v4120, 5
        %v4123 = vshll.u32 %v3861, 16
        %v4125 = vrot.slane %v4123, 6
        %v4126 = vor.u32 %v4122, %v4125
        %v4127 = vrot.slane %v4126, 4
        %v4128 = vrot.slane %v3560, 5
        %v4129 = vrot.slane %v3556, 6
        %v4130 = vor.u32 %v4128, %v4129
        %v4131 = vsel %vm1070, %v4127, %v4130
        %v4132 = vrot.slane %v4130, 4
        %v4134 = vshrl.u32 %v4037, 16
        %v4136 = vrot.slane %v4134, 5
        %v4137 = vshll.u32 %v4037, 16
        %v4139 = vrot.slane %v4137, 6
        %v4140 = vor.u32 %v4136, %v4139
        %v4141 = vsel %vm1070, %v4132, %v4140
        %v4143 = vshrl.u32 %v3862, 16
        %v4145 = vrot.slane %v4143, 5
        %v4146 = vshll.u32 %v3862, 16
        %v4148 = vrot.slane %v4146, 6
        %v4149 = vor.u32 %v4145, %v4148
        %v4150 = vrot.slane %v4149, 4
        %v4151 = vrot.slane %v3584, 5
        %v4152 = vrot.slane %v3580, 6
        %v4153 = vor.u32 %v4151, %v4152
        %v4154 = vsel %vm1070, %v4150, %v4153
        %v4155 = vrot.slane %v4153, 4
        %v4157 = vshrl.u32 %v4038, 16
        %v4159 = vrot.slane %v4157, 5
        %v4160 = vshll.u32 %v4038, 16
        %v4162 = vrot.slane %v4160, 6
        %v4163 = vor.u32 %v4159, %v4162
        %v4164 = vsel %vm1070, %v4155, %v4163
        %v4166 = vshrl.u32 %v3863, 16
        %v4168 = vrot.slane %v4166, 5
        %v4169 = vshll.u32 %v3863, 16
        %v4171 = vrot.slane %v4169, 6
        %v4172 = vor.u32 %v4168, %v4171
        %v4173 = vrot.slane %v4172, 4
        %v4174 = vrot.slane %v3608, 5
        %v4175 = vrot.slane %v3604, 6
        %v4176 = vor.u32 %v4174, %v4175
        %v4177 = vsel %vm1070, %v4173, %v4176
        %v4178 = vrot.slane %v4176, 4
        %v4180 = vshrl.u32 %v4039, 16
        %v4182 = vrot.slane %v4180, 5
        %v4183 = vshll.u32 %v4039, 16
        %v4185 = vrot.slane %v4183, 6
        %v4186 = vor.u32 %v4182, %v4185
        %v4187 = vsel %vm1070, %v4178, %v4186
        %v4189 = vshrl.u32 %v3864, 16
        %v4191 = vrot.slane %v4189, 5
        %v4192 = vshll.u32 %v3864, 16
        %v4194 = vrot.slane %v4192, 6
        %v4195 = vor.u32 %v4191, %v4194
        %v4196 = vrot.slane %v4195, 4
        %v4197 = vrot.slane %v3632, 5
        %v4198 = vrot.slane %v3628, 6
        %v4199 = vor.u32 %v4197, %v4198
        %v4200 = vsel %vm1070, %v4196, %v4199
        %v4201 = vrot.slane %v4199, 4
        %v4203 = vshrl.u32 %v4040, 16
        %v4205 = vrot.slane %v4203, 5
        %v4206 = vshll.u32 %v4040, 16
        %v4208 = vrot.slane %v4206, 6
        %v4209 = vor.u32 %v4205, %v4208
        %v4210 = vsel %vm1070, %v4201, %v4209
        %v4212 = vshrl.u32 %v3865, 16
        %v4214 = vrot.slane %v4212, 5
        %v4215 = vshll.u32 %v3865, 16
        %v4217 = vrot.slane %v4215, 6
        %v4218 = vor.u32 %v4214, %v4217
        %v4219 = vrot.slane %v4218, 4
        %v4220 = vrot.slane %v3656, 5
        %v4221 = vrot.slane %v3652, 6
        %v4222 = vor.u32 %v4220, %v4221
        %v4223 = vsel %vm1070, %v4219, %v4222
        %v4224 = vrot.slane %v4222, 4
        %v4226 = vshrl.u32 %v4041, 16
        %v4228 = vrot.slane %v4226, 5
        %v4229 = vshll.u32 %v4041, 16
        %v4231 = vrot.slane %v4229, 6
        %v4232 = vor.u32 %v4228, %v4231
        %v4233 = vsel %vm1070, %v4224, %v4232
        %v4235 = vshrl.u32 %v3866, 16
        %v4237 = vrot.slane %v4235, 5
        %v4238 = vshll.u32 %v3866, 16
        %v4240 = vrot.slane %v4238, 6
        %v4241 = vor.u32 %v4237, %v4240
        %v4242 = vrot.slane %v4241, 4
        %v4243 = vrot.slane %v3680, 5
        %v4244 = vrot.slane %v3676, 6
        %v4245 = vor.u32 %v4243, %v4244
        %v4246 = vsel %vm1070, %v4242, %v4245
        %v4247 = vrot.slane %v4245, 4
        %v4249 = vshrl.u32 %v4042, 16
        %v4251 = vrot.slane %v4249, 5
        %v4252 = vshll.u32 %v4042, 16
        %v4254 = vrot.slane %v4252, 6
        %v4255 = vor.u32 %v4251, %v4254
        %v4256 = vsel %vm1070, %v4247, %v4255
        %v4258 = vshrl.u32 %v3867, 16
        %v4260 = vrot.slane %v4258, 5
        %v4261 = vshll.u32 %v3867, 16
        %v4263 = vrot.slane %v4261, 6
        %v4264 = vor.u32 %v4260, %v4263
        %v4265 = vrot.slane %v4264, 4
        %v4266 = vrot.slane %v3704, 5
        %v4267 = vrot.slane %v3700, 6
        %v4268 = vor.u32 %v4266, %v4267
        %v4269 = vsel %vm1070, %v4265, %v4268
        %v4270 = vrot.slane %v4268, 4
        %v4272 = vshrl.u32 %v4043, 16
        %v4274 = vrot.slane %v4272, 5
        %v4275 = vshll.u32 %v4043, 16
        %v4277 = vrot.slane %v4275, 6
        %v4278 = vor.u32 %v4274, %v4277
        %v4279 = vsel %vm1070, %v4270, %v4278
        %v4281 = vshrl.u32 %v3868, 16
        %v4283 = vrot.slane %v4281, 5
        %v4284 = vshll.u32 %v3868, 16
        %v4286 = vrot.slane %v4284, 6
        %v4287 = vor.u32 %v4283, %v4286
        %v4288 = vrot.slane %v4287, 4
        %v4289 = vrot.slane %v3728, 5
        %v4290 = vrot.slane %v3724, 6
        %v4291 = vor.u32 %v4289, %v4290
        %v4292 = vsel %vm1070, %v4288, %v4291
        %v4293 = vrot.slane %v4291, 4
        %v4295 = vshrl.u32 %v4044, 16
        %v4297 = vrot.slane %v4295, 5
        %v4298 = vshll.u32 %v4044, 16
        %v4300 = vrot.slane %v4298, 6
        %v4301 = vor.u32 %v4297, %v4300
        %v4302 = vsel %vm1070, %v4293, %v4301
        %v4304 = vshrl.u32 %v3869, 16
        %v4306 = vrot.slane %v4304, 5
        %v4307 = vshll.u32 %v3869, 16
        %v4309 = vrot.slane %v4307, 6
        %v4310 = vor.u32 %v4306, %v4309
        %v4311 = vrot.slane %v4310, 4
        %v4312 = vrot.slane %v3752, 5
        %v4313 = vrot.slane %v3748, 6
        %v4314 = vor.u32 %v4312, %v4313
        %v4315 = vsel %vm1070, %v4311, %v4314
        %v4316 = vrot.slane %v4314, 4
        %v4318 = vshrl.u32 %v4045, 16
        %v4320 = vrot.slane %v4318, 5
        %v4321 = vshll.u32 %v4045, 16
        %v4323 = vrot.slane %v4321, 6
        %v4324 = vor.u32 %v4320, %v4323
        %v4325 = vsel %vm1070, %v4316, %v4324
        %v4327 = vshrl.u32 %v3870, 16
        %v4329 = vrot.slane %v4327, 5
        %v4330 = vshll.u32 %v3870, 16
        %v4332 = vrot.slane %v4330, 6
        %v4333 = vor.u32 %v4329, %v4332
        %v4334 = vrot.slane %v4333, 4
        %v4335 = vrot.slane %v3776, 5
        %v4336 = vrot.slane %v3772, 6
        %v4337 = vor.u32 %v4335, %v4336
        %v4338 = vsel %vm1070, %v4334, %v4337
        %v4339 = vrot.slane %v4337, 4
        %v4341 = vshrl.u32 %v4046, 16
        %v4343 = vrot.slane %v4341, 5
        %v4344 = vshll.u32 %v4046, 16
        %v4346 = vrot.slane %v4344, 6
        %v4347 = vor.u32 %v4343, %v4346
        %v4348 = vsel %vm1070, %v4339, %v4347
        %v4350 = vshrl.u32 %v3871, 16
        %v4352 = vrot.slane %v4350, 5
        %v4353 = vshll.u32 %v3871, 16
        %v4355 = vrot.slane %v4353, 6
        %v4356 = vor.u32 %v4352, %v4355
        %v4357 = vrot.slane %v4356, 4
        %v4358 = vrot.slane %v3800, 5
        %v4359 = vrot.slane %v3796, 6
        %v4360 = vor.u32 %v4358, %v4359
        %v4361 = vsel %vm1070, %v4357, %v4360
        %v4362 = vrot.slane %v4360, 4
        %v4364 = vshrl.u32 %v4047, 16
        %v4366 = vrot.slane %v4364, 5
        %v4367 = vshll.u32 %v4047, 16
        %v4369 = vrot.slane %v4367, 6
        %v4370 = vor.u32 %v4366, %v4369
        %v4371 = vsel %vm1070, %v4362, %v4370
        %v4373 = vshrl.u32 %v3872, 16
        %v4375 = vrot.slane %v4373, 5
        %v4376 = vshll.u32 %v3872, 16
        %v4378 = vrot.slane %v4376, 6
        %v4379 = vor.u32 %v4375, %v4378
        %v4380 = vrot.slane %v4379, 4
        %v4381 = vrot.slane %v3824, 5
        %v4382 = vrot.slane %v3820, 6
        %v4383 = vor.u32 %v4381, %v4382
        %v4384 = vsel %vm1070, %v4380, %v4383
        %v4385 = vrot.slane %v4383, 4
        %v4387 = vshrl.u32 %v4048, 16
        %v4389 = vrot.slane %v4387, 5
        %v4390 = vshll.u32 %v4048, 16
        %v4392 = vrot.slane %v4390, 6
        %v4393 = vor.u32 %v4389, %v4392
        %v4394 = vsel %vm1070, %v4385, %v4393
        %v4396 = vshrl.u32 %v3873, 16
        %v4398 = vrot.slane %v4396, 5
        %v4399 = vshll.u32 %v3873, 16
        %v4401 = vrot.slane %v4399, 6
        %v4402 = vor.u32 %v4398, %v4401
        %v4403 = vrot.slane %v4402, 4
        %v4404 = vrot.slane %v3848, 5
        %v4405 = vrot.slane %v3844, 6
        %v4406 = vor.u32 %v4404, %v4405
        %v4407 = vsel %vm1070, %v4403, %v4406
        %v4408 = vrot.slane %v4406, 4
        %v4410 = vshrl.u32 %v4049, 16
        %v4412 = vrot.slane %v4410, 5
        %v4413 = vshll.u32 %v4049, 16
        %v4415 = vrot.slane %v4413, 6
        %v4416 = vor.u32 %v4412, %v4415
        %v4417 = vsel %vm1070, %v4408, %v4416
        %v4434 = vunpack.c.l.b16 %v438
        %v4435 = vunpack.c.l.b16 %v439
        %v4436 = vunpack.c.l.b16 %v440
        %v4437 = vunpack.c.l.b16 %v441
        %v4438 = vunpack.c.l.b16 %v442
        %v4439 = vunpack.c.l.b16 %v443
        %v4440 = vunpack.c.l.b16 %v444
        %v4441 = vunpack.c.l.b16 %v445
        %v4442 = vunpack.c.l.b16 %v446
        %v4443 = vunpack.c.l.b16 %v447
        %v4444 = vunpack.c.l.b16 %v448
        %v4445 = vunpack.c.l.b16 %v449
        %v4446 = vunpack.c.l.b16 %v450
        %v4447 = vunpack.c.l.b16 %v451
        %v4448 = vunpack.c.l.b16 %v452
        %v4449 = vunpack.c.l.b16 %v453
        %v4450 = vunpack.c.l.b16 %v454
        %v4451 = vunpack.c.l.b16 %v455
        %v4452 = vunpack.c.l.b16 %v456
        %v4453 = vunpack.c.l.b16 %v457
        %v4454 = vunpack.c.l.b16 %v458
        %v4455 = vunpack.c.l.b16 %v459
        %v4456 = vunpack.c.l.b16 %v460
        %v4457 = vunpack.c.l.b16 %v461
        %v4458 = vunpack.c.l.b16 %v462
        %v4459 = vunpack.c.l.b16 %v463
        %v4460 = vunpack.c.l.b16 %v464
        %v4461 = vunpack.c.l.b16 %v465
        %v4462 = vunpack.c.l.b16 %v466
        %v4463 = vunpack.c.l.b16 %v467
        %v4464 = vunpack.c.l.b16 %v468
        %v4465 = vunpack.c.l.b16 %v469
        %v4466 = vpack.c.b16 %v4435, %v4434
        %v4467 = vpack.c.b16 %v4437, %v4436
        %v4468 = vpack.c.b16 %v4439, %v4438
        %v4469 = vpack.c.b16 %v4441, %v4440
        %v4470 = vpack.c.b16 %v4443, %v4442
        %v4471 = vpack.c.b16 %v4445, %v4444
        %v4472 = vpack.c.b16 %v4447, %v4446
        %v4473 = vpack.c.b16 %v4449, %v4448
        %v4474 = vpack.c.b16 %v4451, %v4450
        %v4475 = vpack.c.b16 %v4453, %v4452
        %v4476 = vpack.c.b16 %v4455, %v4454
        %v4477 = vpack.c.b16 %v4457, %v4456
        %v4478 = vpack.c.b16 %v4459, %v4458
        %v4479 = vpack.c.b16 %v4461, %v4460
        %v4480 = vpack.c.b16 %v4463, %v4462
        %v4481 = vpack.c.b16 %v4465, %v4464
        %v4482 = vunpack.c.l.b16 %v502
        %v4483 = vunpack.c.l.b16 %v512
        %v4484 = vunpack.c.l.b16 %v526
        %v4485 = vunpack.c.l.b16 %v536
        %v4486 = vunpack.c.l.b16 %v550
        %v4487 = vunpack.c.l.b16 %v560
        %v4488 = vunpack.c.l.b16 %v574
        %v4489 = vunpack.c.l.b16 %v584
        %v4490 = vunpack.c.l.b16 %v598
        %v4491 = vunpack.c.l.b16 %v608
        %v4492 = vunpack.c.l.b16 %v622
        %v4493 = vunpack.c.l.b16 %v632
        %v4494 = vunpack.c.l.b16 %v646
        %v4495 = vunpack.c.l.b16 %v656
        %v4496 = vunpack.c.l.b16 %v670
        %v4497 = vunpack.c.l.b16 %v680
        %v4498 = vunpack.c.l.b16 %v694
        %v4499 = vunpack.c.l.b16 %v704
        %v4500 = vunpack.c.l.b16 %v718
        %v4501 = vunpack.c.l.b16 %v728
        %v4502 = vunpack.c.l.b16 %v742
        %v4503 = vunpack.c.l.b16 %v752
        %v4504 = vunpack.c.l.b16 %v766
        %v4505 = vunpack.c.l.b16 %v776
        %v4506 = vunpack.c.l.b16 %v790
        %v4507 = vunpack.c.l.b16 %v800
        %v4508 = vunpack.c.l.b16 %v814
        %v4509 = vunpack.c.l.b16 %v824
        %v4510 = vunpack.c.l.b16 %v838
        %v4511 = vunpack.c.l.b16 %v848
        %v4512 = vunpack.c.l.b16 %v862
        %v4513 = vunpack.c.l.b16 %v872
        %v4514 = vpack.c.b16 %v4483, %v4482
        %v4515 = vpack.c.b16 %v4485, %v4484
        %v4516 = vpack.c.b16 %v4487, %v4486
        %v4517 = vpack.c.b16 %v4489, %v4488
        %v4518 = vpack.c.b16 %v4491, %v4490
        %v4519 = vpack.c.b16 %v4493, %v4492
        %v4520 = vpack.c.b16 %v4495, %v4494
        %v4521 = vpack.c.b16 %v4497, %v4496
        %v4522 = vpack.c.b16 %v4499, %v4498
        %v4523 = vpack.c.b16 %v4501, %v4500
        %v4524 = vpack.c.b16 %v4503, %v4502
        %v4525 = vpack.c.b16 %v4505, %v4504
        %v4526 = vpack.c.b16 %v4507, %v4506
        %v4527 = vpack.c.b16 %v4509, %v4508
        %v4528 = vpack.c.b16 %v4511, %v4510
        %v4529 = vpack.c.b16 %v4513, %v4512
        %4530 = vrot.lane.b32.xlu0 %v4514, 12
        %v4531 = vpop.permute.xlu0 %4530
        %4532 = vrot.lane.b32.xlu0 %v4515, 12
        %v4533 = vpop.permute.xlu0 %4532
        %4534 = vrot.lane.b32.xlu0 %v4516, 12
        %v4535 = vpop.permute.xlu0 %4534
        %4536 = vrot.lane.b32.xlu0 %v4517, 12
        %v4537 = vpop.permute.xlu0 %4536
        %4538 = vrot.lane.b32.xlu0 %v4518, 12
        %v4539 = vpop.permute.xlu0 %4538
        %4540 = vrot.lane.b32.xlu0 %v4519, 12
        %v4541 = vpop.permute.xlu0 %4540
        %4542 = vrot.lane.b32.xlu0 %v4520, 12
        %v4543 = vpop.permute.xlu0 %4542
        %4544 = vrot.lane.b32.xlu0 %v4521, 12
        %v4545 = vpop.permute.xlu0 %4544
        %4546 = vrot.lane.b32.xlu0 %v4522, 12
        %v4547 = vpop.permute.xlu0 %4546
        %4548 = vrot.lane.b32.xlu0 %v4523, 12
        %v4549 = vpop.permute.xlu0 %4548
        %4550 = vrot.lane.b32.xlu0 %v4524, 12
        %v4551 = vpop.permute.xlu0 %4550
        %4552 = vrot.lane.b32.xlu0 %v4525, 12
        %v4553 = vpop.permute.xlu0 %4552
        %4554 = vrot.lane.b32.xlu0 %v4526, 12
        %v4555 = vpop.permute.xlu0 %4554
        %4556 = vrot.lane.b32.xlu0 %v4527, 12
        %v4557 = vpop.permute.xlu0 %4556
        %4558 = vrot.lane.b32.xlu0 %v4528, 12
        %v4559 = vpop.permute.xlu0 %4558
        %4560 = vrot.lane.b32.xlu0 %v4529, 12
        %v4561 = vpop.permute.xlu0 %4560
        %v4562 = vunpack.c.l.b16 %v943
        %v4563 = vunpack.c.l.b16 %v946
        %v4564 = vunpack.c.l.b16 %v950
        %v4565 = vunpack.c.l.b16 %v953
        %v4566 = vunpack.c.l.b16 %v957
        %v4567 = vunpack.c.l.b16 %v960
        %v4568 = vunpack.c.l.b16 %v964
        %v4569 = vunpack.c.l.b16 %v967
        %v4570 = vunpack.c.l.b16 %v971
        %v4571 = vunpack.c.l.b16 %v974
        %v4572 = vunpack.c.l.b16 %v978
        %v4573 = vunpack.c.l.b16 %v981
        %v4574 = vunpack.c.l.b16 %v985
        %v4575 = vunpack.c.l.b16 %v988
        %v4576 = vunpack.c.l.b16 %v992
        %v4577 = vunpack.c.l.b16 %v995
        %v4578 = vunpack.c.l.b16 %v999
        %v4579 = vunpack.c.l.b16 %v1002
        %v4580 = vunpack.c.l.b16 %v1006
        %v4581 = vunpack.c.l.b16 %v1009
        %v4582 = vunpack.c.l.b16 %v1013
        %v4583 = vunpack.c.l.b16 %v1016
        %v4584 = vunpack.c.l.b16 %v1020
        %v4585 = vunpack.c.l.b16 %v1023
        %v4586 = vunpack.c.l.b16 %v1027
        %v4587 = vunpack.c.l.b16 %v1030
        %v4588 = vunpack.c.l.b16 %v1034
        %v4589 = vunpack.c.l.b16 %v1037
        %v4590 = vunpack.c.l.b16 %v1041
        %v4591 = vunpack.c.l.b16 %v1044
        %v4592 = vunpack.c.l.b16 %v1048
        %v4593 = vunpack.c.l.b16 %v1051
        %v4594 = vpack.c.b16 %v4563, %v4562
        %v4595 = vpack.c.b16 %v4565, %v4564
        %v4596 = vpack.c.b16 %v4567, %v4566
        %v4597 = vpack.c.b16 %v4569, %v4568
        %v4598 = vpack.c.b16 %v4571, %v4570
        %v4599 = vpack.c.b16 %v4573, %v4572
        %v4600 = vpack.c.b16 %v4575, %v4574
        %v4601 = vpack.c.b16 %v4577, %v4576
        %v4602 = vpack.c.b16 %v4579, %v4578
        %v4603 = vpack.c.b16 %v4581, %v4580
        %v4604 = vpack.c.b16 %v4583, %v4582
        %v4605 = vpack.c.b16 %v4585, %v4584
        %v4606 = vpack.c.b16 %v4587, %v4586
        %v4607 = vpack.c.b16 %v4589, %v4588
        %v4608 = vpack.c.b16 %v4591, %v4590
        %v4609 = vpack.c.b16 %v4593, %v4592
        %4610 = vrot.lane.b32.xlu0 %v4594, 24
        %v4611 = vpop.permute.xlu0 %4610
        %4612 = vrot.lane.b32.xlu0 %v4595, 24
        %v4613 = vpop.permute.xlu0 %4612
        %4614 = vrot.lane.b32.xlu0 %v4596, 24
        %v4615 = vpop.permute.xlu0 %4614
        %4616 = vrot.lane.b32.xlu0 %v4597, 24
        %v4617 = vpop.permute.xlu0 %4616
        %4618 = vrot.lane.b32.xlu0 %v4598, 24
        %v4619 = vpop.permute.xlu0 %4618
        %4620 = vrot.lane.b32.xlu0 %v4599, 24
        %v4621 = vpop.permute.xlu0 %4620
        %4622 = vrot.lane.b32.xlu0 %v4600, 24
        %v4623 = vpop.permute.xlu0 %4622
        %4624 = vrot.lane.b32.xlu0 %v4601, 24
        %v4625 = vpop.permute.xlu0 %4624
        %4626 = vrot.lane.b32.xlu0 %v4602, 24
        %v4627 = vpop.permute.xlu0 %4626
        %4628 = vrot.lane.b32.xlu0 %v4603, 24
        %v4629 = vpop.permute.xlu0 %4628
        %4630 = vrot.lane.b32.xlu0 %v4604, 24
        %v4631 = vpop.permute.xlu0 %4630
        %4632 = vrot.lane.b32.xlu0 %v4605, 24
        %v4633 = vpop.permute.xlu0 %4632
        %4634 = vrot.lane.b32.xlu0 %v4606, 24
        %v4635 = vpop.permute.xlu0 %4634
        %4636 = vrot.lane.b32.xlu0 %v4607, 24
        %v4637 = vpop.permute.xlu0 %4636
        %4638 = vrot.lane.b32.xlu0 %v4608, 24
        %v4639 = vpop.permute.xlu0 %4638
        %4640 = vrot.lane.b32.xlu0 %v4609, 24
        %v4641 = vpop.permute.xlu0 %4640
        %v4642 = vunpack.c.l.b16 %v1083
        %v4643 = vunpack.c.l.b16 %v1093
        %v4644 = vunpack.c.l.b16 %v1106
        %v4645 = vunpack.c.l.b16 %v1116
        %v4646 = vunpack.c.l.b16 %v1129
        %v4647 = vunpack.c.l.b16 %v1139
        %v4648 = vunpack.c.l.b16 %v1152
        %v4649 = vunpack.c.l.b16 %v1162
        %v4650 = vunpack.c.l.b16 %v1175
        %v4651 = vunpack.c.l.b16 %v1185
        %v4652 = vunpack.c.l.b16 %v1198
        %v4653 = vunpack.c.l.b16 %v1208
        %v4654 = vunpack.c.l.b16 %v1221
        %v4655 = vunpack.c.l.b16 %v1231
        %v4656 = vunpack.c.l.b16 %v1244
        %v4657 = vunpack.c.l.b16 %v1254
        %v4658 = vunpack.c.l.b16 %v1267
        %v4659 = vunpack.c.l.b16 %v1277
        %v4660 = vunpack.c.l.b16 %v1290
        %v4661 = vunpack.c.l.b16 %v1300
        %v4662 = vunpack.c.l.b16 %v1313
        %v4663 = vunpack.c.l.b16 %v1323
        %v4664 = vunpack.c.l.b16 %v1336
        %v4665 = vunpack.c.l.b16 %v1346
        %v4666 = vunpack.c.l.b16 %v1359
        %v4667 = vunpack.c.l.b16 %v1369
        %v4668 = vunpack.c.l.b16 %v1382
        %v4669 = vunpack.c.l.b16 %v1392
        %v4670 = vunpack.c.l.b16 %v1405
        %v4671 = vunpack.c.l.b16 %v1415
        %v4672 = vunpack.c.l.b16 %v1428
        %v4673 = vunpack.c.l.b16 %v1438
        %v4674 = vpack.c.b16 %v4643, %v4642
        %v4675 = vpack.c.b16 %v4645, %v4644
        %v4676 = vpack.c.b16 %v4647, %v4646
        %v4677 = vpack.c.b16 %v4649, %v4648
        %v4678 = vpack.c.b16 %v4651, %v4650
        %v4679 = vpack.c.b16 %v4653, %v4652
        %v4680 = vpack.c.b16 %v4655, %v4654
        %v4681 = vpack.c.b16 %v4657, %v4656
        %v4682 = vpack.c.b16 %v4659, %v4658
        %v4683 = vpack.c.b16 %v4661, %v4660
        %v4684 = vpack.c.b16 %v4663, %v4662
        %v4685 = vpack.c.b16 %v4665, %v4664
        %v4686 = vpack.c.b16 %v4667, %v4666
        %v4687 = vpack.c.b16 %v4669, %v4668
        %v4688 = vpack.c.b16 %v4671, %v4670
        %v4689 = vpack.c.b16 %v4673, %v4672
        %4690 = vrot.lane.b32.xlu0 %v4674, 36
        %v4691 = vpop.permute.xlu0 %4690
        %4692 = vrot.lane.b32.xlu0 %v4675, 36
        %v4693 = vpop.permute.xlu0 %4692
        %4694 = vrot.lane.b32.xlu0 %v4676, 36
        %v4695 = vpop.permute.xlu0 %4694
        %4696 = vrot.lane.b32.xlu0 %v4677, 36
        %v4697 = vpop.permute.xlu0 %4696
        %4698 = vrot.lane.b32.xlu0 %v4678, 36
        %v4699 = vpop.permute.xlu0 %4698
        %4700 = vrot.lane.b32.xlu0 %v4679, 36
        %v4701 = vpop.permute.xlu0 %4700
        %4702 = vrot.lane.b32.xlu0 %v4680, 36
        %v4703 = vpop.permute.xlu0 %4702
        %4704 = vrot.lane.b32.xlu0 %v4681, 36
        %v4705 = vpop.permute.xlu0 %4704
        %4706 = vrot.lane.b32.xlu0 %v4682, 36
        %v4707 = vpop.permute.xlu0 %4706
        %4708 = vrot.lane.b32.xlu0 %v4683, 36
        %v4709 = vpop.permute.xlu0 %4708
        %4710 = vrot.lane.b32.xlu0 %v4684, 36
        %v4711 = vpop.permute.xlu0 %4710
        %4712 = vrot.lane.b32.xlu0 %v4685, 36
        %v4713 = vpop.permute.xlu0 %4712
        %4714 = vrot.lane.b32.xlu0 %v4686, 36
        %v4715 = vpop.permute.xlu0 %4714
        %4716 = vrot.lane.b32.xlu0 %v4687, 36
        %v4717 = vpop.permute.xlu0 %4716
        %4718 = vrot.lane.b32.xlu0 %v4688, 36
        %v4719 = vpop.permute.xlu0 %4718
        %4720 = vrot.lane.b32.xlu0 %v4689, 36
        %v4721 = vpop.permute.xlu0 %4720
        %v4738 = vunpack.c.l.b16 %v1440
        %v4739 = vunpack.c.l.b16 %v1441
        %v4740 = vunpack.c.l.b16 %v1442
        %v4741 = vunpack.c.l.b16 %v1443
        %v4742 = vunpack.c.l.b16 %v1444
        %v4743 = vunpack.c.l.b16 %v1445
        %v4744 = vunpack.c.l.b16 %v1446
        %v4745 = vunpack.c.l.b16 %v1447
        %v4746 = vunpack.c.l.b16 %v1448
        %v4747 = vunpack.c.l.b16 %v1449
        %v4748 = vunpack.c.l.b16 %v1450
        %v4749 = vunpack.c.l.b16 %v1451
        %v4750 = vunpack.c.l.b16 %v1452
        %v4751 = vunpack.c.l.b16 %v1453
        %v4752 = vunpack.c.l.b16 %v1454
        %v4753 = vunpack.c.l.b16 %v1455
        %v4754 = vunpack.c.l.b16 %v1456
        %v4755 = vunpack.c.l.b16 %v1457
        %v4756 = vunpack.c.l.b16 %v1458
        %v4757 = vunpack.c.l.b16 %v1459
        %v4758 = vunpack.c.l.b16 %v1460
        %v4759 = vunpack.c.l.b16 %v1461
        %v4760 = vunpack.c.l.b16 %v1462
        %v4761 = vunpack.c.l.b16 %v1463
        %v4762 = vunpack.c.l.b16 %v1464
        %v4763 = vunpack.c.l.b16 %v1465
        %v4764 = vunpack.c.l.b16 %v1466
        %v4765 = vunpack.c.l.b16 %v1467
        %v4766 = vunpack.c.l.b16 %v1468
        %v4767 = vunpack.c.l.b16 %v1469
        %v4768 = vunpack.c.l.b16 %v1470
        %v4769 = vunpack.c.l.b16 %v1471
        %v4770 = vpack.c.b16 %v4739, %v4738
        %v4771 = vpack.c.b16 %v4741, %v4740
        %v4772 = vpack.c.b16 %v4743, %v4742
        %v4773 = vpack.c.b16 %v4745, %v4744
        %v4774 = vpack.c.b16 %v4747, %v4746
        %v4775 = vpack.c.b16 %v4749, %v4748
        %v4776 = vpack.c.b16 %v4751, %v4750
        %v4777 = vpack.c.b16 %v4753, %v4752
        %v4778 = vpack.c.b16 %v4755, %v4754
        %v4779 = vpack.c.b16 %v4757, %v4756
        %v4780 = vpack.c.b16 %v4759, %v4758
        %v4781 = vpack.c.b16 %v4761, %v4760
        %v4782 = vpack.c.b16 %v4763, %v4762
        %v4783 = vpack.c.b16 %v4765, %v4764
        %v4784 = vpack.c.b16 %v4767, %v4766
        %v4785 = vpack.c.b16 %v4769, %v4768
        %4786 = vrot.lane.b32.xlu0 %v4770, 48
        %v4787 = vpop.permute.xlu0 %4786
        %4788 = vrot.lane.b32.xlu0 %v4771, 48
        %v4789 = vpop.permute.xlu0 %4788
        %4790 = vrot.lane.b32.xlu0 %v4772, 48
        %v4791 = vpop.permute.xlu0 %4790
        %4792 = vrot.lane.b32.xlu0 %v4773, 48
        %v4793 = vpop.permute.xlu0 %4792
        %4794 = vrot.lane.b32.xlu0 %v4774, 48
        %v4795 = vpop.permute.xlu0 %4794
        %4796 = vrot.lane.b32.xlu0 %v4775, 48
        %v4797 = vpop.permute.xlu0 %4796
        %4798 = vrot.lane.b32.xlu0 %v4776, 48
        %v4799 = vpop.permute.xlu0 %4798
        %4800 = vrot.lane.b32.xlu0 %v4777, 48
        %v4801 = vpop.permute.xlu0 %4800
        %4802 = vrot.lane.b32.xlu0 %v4778, 48
        %v4803 = vpop.permute.xlu0 %4802
        %4804 = vrot.lane.b32.xlu0 %v4779, 48
        %v4805 = vpop.permute.xlu0 %4804
        %4806 = vrot.lane.b32.xlu0 %v4780, 48
        %v4807 = vpop.permute.xlu0 %4806
        %4808 = vrot.lane.b32.xlu0 %v4781, 48
        %v4809 = vpop.permute.xlu0 %4808
        %4810 = vrot.lane.b32.xlu0 %v4782, 48
        %v4811 = vpop.permute.xlu0 %4810
        %4812 = vrot.lane.b32.xlu0 %v4783, 48
        %v4813 = vpop.permute.xlu0 %4812
        %4814 = vrot.lane.b32.xlu0 %v4784, 48
        %v4815 = vpop.permute.xlu0 %4814
        %4816 = vrot.lane.b32.xlu0 %v4785, 48
        %v4817 = vpop.permute.xlu0 %4816
        %v4818 = vunpack.c.l.b16 %v1501
        %v4819 = vunpack.c.l.b16 %v1511
        %v4820 = vunpack.c.l.b16 %v1525
        %v4821 = vunpack.c.l.b16 %v1535
        %v4822 = vunpack.c.l.b16 %v1549
        %v4823 = vunpack.c.l.b16 %v1559
        %v4824 = vunpack.c.l.b16 %v1573
        %v4825 = vunpack.c.l.b16 %v1583
        %v4826 = vunpack.c.l.b16 %v1597
        %v4827 = vunpack.c.l.b16 %v1607
        %v4828 = vunpack.c.l.b16 %v1621
        %v4829 = vunpack.c.l.b16 %v1631
        %v4830 = vunpack.c.l.b16 %v1645
        %v4831 = vunpack.c.l.b16 %v1655
        %v4832 = vunpack.c.l.b16 %v1669
        %v4833 = vunpack.c.l.b16 %v1679
        %v4834 = vunpack.c.l.b16 %v1693
        %v4835 = vunpack.c.l.b16 %v1703
        %v4836 = vunpack.c.l.b16 %v1717
        %v4837 = vunpack.c.l.b16 %v1727
        %v4838 = vunpack.c.l.b16 %v1741
        %v4839 = vunpack.c.l.b16 %v1751
        %v4840 = vunpack.c.l.b16 %v1765
        %v4841 = vunpack.c.l.b16 %v1775
        %v4842 = vunpack.c.l.b16 %v1789
        %v4843 = vunpack.c.l.b16 %v1799
        %v4844 = vunpack.c.l.b16 %v1813
        %v4845 = vunpack.c.l.b16 %v1823
        %v4846 = vunpack.c.l.b16 %v1837
        %v4847 = vunpack.c.l.b16 %v1847
        %v4848 = vunpack.c.l.b16 %v1861
        %v4849 = vunpack.c.l.b16 %v1871
        %v4850 = vpack.c.b16 %v4819, %v4818
        %v4851 = vpack.c.b16 %v4821, %v4820
        %v4852 = vpack.c.b16 %v4823, %v4822
        %v4853 = vpack.c.b16 %v4825, %v4824
        %v4854 = vpack.c.b16 %v4827, %v4826
        %v4855 = vpack.c.b16 %v4829, %v4828
        %v4856 = vpack.c.b16 %v4831, %v4830
        %v4857 = vpack.c.b16 %v4833, %v4832
        %v4858 = vpack.c.b16 %v4835, %v4834
        %v4859 = vpack.c.b16 %v4837, %v4836
        %v4860 = vpack.c.b16 %v4839, %v4838
        %v4861 = vpack.c.b16 %v4841, %v4840
        %v4862 = vpack.c.b16 %v4843, %v4842
        %v4863 = vpack.c.b16 %v4845, %v4844
        %v4864 = vpack.c.b16 %v4847, %v4846
        %v4865 = vpack.c.b16 %v4849, %v4848
        %4866 = vrot.lane.b32.xlu0 %v4850, 60
        %v4867 = vpop.permute.xlu0 %4866
        %4868 = vrot.lane.b32.xlu0 %v4851, 60
        %v4869 = vpop.permute.xlu0 %4868
        %4870 = vrot.lane.b32.xlu0 %v4852, 60
        %v4871 = vpop.permute.xlu0 %4870
        %4872 = vrot.lane.b32.xlu0 %v4853, 60
        %v4873 = vpop.permute.xlu0 %4872
        %4874 = vrot.lane.b32.xlu0 %v4854, 60
        %v4875 = vpop.permute.xlu0 %4874
        %4876 = vrot.lane.b32.xlu0 %v4855, 60
        %v4877 = vpop.permute.xlu0 %4876
        %4878 = vrot.lane.b32.xlu0 %v4856, 60
        %v4879 = vpop.permute.xlu0 %4878
        %4880 = vrot.lane.b32.xlu0 %v4857, 60
        %v4881 = vpop.permute.xlu0 %4880
        %4882 = vrot.lane.b32.xlu0 %v4858, 60
        %v4883 = vpop.permute.xlu0 %4882
        %4884 = vrot.lane.b32.xlu0 %v4859, 60
        %v4885 = vpop.permute.xlu0 %4884
        %4886 = vrot.lane.b32.xlu0 %v4860, 60
        %v4887 = vpop.permute.xlu0 %4886
        %4888 = vrot.lane.b32.xlu0 %v4861, 60
        %v4889 = vpop.permute.xlu0 %4888
        %4890 = vrot.lane.b32.xlu0 %v4862, 60
        %v4891 = vpop.permute.xlu0 %4890
        %4892 = vrot.lane.b32.xlu0 %v4863, 60
        %v4893 = vpop.permute.xlu0 %4892
        %4894 = vrot.lane.b32.xlu0 %v4864, 60
        %v4895 = vpop.permute.xlu0 %4894
        %4896 = vrot.lane.b32.xlu0 %v4865, 60
        %v4897 = vpop.permute.xlu0 %4896
        %v4898 = vunpack.c.l.b16 %v1939
        %v4899 = vunpack.c.l.b16 %v1942
        %v4900 = vunpack.c.l.b16 %v1946
        %v4901 = vunpack.c.l.b16 %v1949
        %v4902 = vunpack.c.l.b16 %v1953
        %v4903 = vunpack.c.l.b16 %v1956
        %v4904 = vunpack.c.l.b16 %v1960
        %v4905 = vunpack.c.l.b16 %v1963
        %v4906 = vunpack.c.l.b16 %v1967
        %v4907 = vunpack.c.l.b16 %v1970
        %v4908 = vunpack.c.l.b16 %v1974
        %v4909 = vunpack.c.l.b16 %v1977
        %v4910 = vunpack.c.l.b16 %v1981
        %v4911 = vunpack.c.l.b16 %v1984
        %v4912 = vunpack.c.l.b16 %v1988
        %v4913 = vunpack.c.l.b16 %v1991
        %v4914 = vunpack.c.l.b16 %v1995
        %v4915 = vunpack.c.l.b16 %v1998
        %v4916 = vunpack.c.l.b16 %v2002
        %v4917 = vunpack.c.l.b16 %v2005
        %v4918 = vunpack.c.l.b16 %v2009
        %v4919 = vunpack.c.l.b16 %v2012
        %v4920 = vunpack.c.l.b16 %v2016
        %v4921 = vunpack.c.l.b16 %v2019
        %v4922 = vunpack.c.l.b16 %v2023
        %v4923 = vunpack.c.l.b16 %v2026
        %v4924 = vunpack.c.l.b16 %v2030
        %v4925 = vunpack.c.l.b16 %v2033
        %v4926 = vunpack.c.l.b16 %v2037
        %v4927 = vunpack.c.l.b16 %v2040
        %v4928 = vunpack.c.l.b16 %v2044
        %v4929 = vunpack.c.l.b16 %v2047
        %v4930 = vpack.c.b16 %v4899, %v4898
        %v4931 = vpack.c.b16 %v4901, %v4900
        %v4932 = vpack.c.b16 %v4903, %v4902
        %v4933 = vpack.c.b16 %v4905, %v4904
        %v4934 = vpack.c.b16 %v4907, %v4906
        %v4935 = vpack.c.b16 %v4909, %v4908
        %v4936 = vpack.c.b16 %v4911, %v4910
        %v4937 = vpack.c.b16 %v4913, %v4912
        %v4938 = vpack.c.b16 %v4915, %v4914
        %v4939 = vpack.c.b16 %v4917, %v4916
        %v4940 = vpack.c.b16 %v4919, %v4918
        %v4941 = vpack.c.b16 %v4921, %v4920
        %v4942 = vpack.c.b16 %v4923, %v4922
        %v4943 = vpack.c.b16 %v4925, %v4924
        %v4944 = vpack.c.b16 %v4927, %v4926
        %v4945 = vpack.c.b16 %v4929, %v4928
        %4946 = vrot.lane.b32.xlu0 %v4930, 72
        %v4947 = vpop.permute.xlu0 %4946
        %4948 = vrot.lane.b32.xlu0 %v4931, 72
        %v4949 = vpop.permute.xlu0 %4948
        %4950 = vrot.lane.b32.xlu0 %v4932, 72
        %v4951 = vpop.permute.xlu0 %4950
        %4952 = vrot.lane.b32.xlu0 %v4933, 72
        %v4953 = vpop.permute.xlu0 %4952
        %4954 = vrot.lane.b32.xlu0 %v4934, 72
        %v4955 = vpop.permute.xlu0 %4954
        %4956 = vrot.lane.b32.xlu0 %v4935, 72
        %v4957 = vpop.permute.xlu0 %4956
        %4958 = vrot.lane.b32.xlu0 %v4936, 72
        %v4959 = vpop.permute.xlu0 %4958
        %4960 = vrot.lane.b32.xlu0 %v4937, 72
        %v4961 = vpop.permute.xlu0 %4960
        %4962 = vrot.lane.b32.xlu0 %v4938, 72
        %v4963 = vpop.permute.xlu0 %4962
        %4964 = vrot.lane.b32.xlu0 %v4939, 72
        %v4965 = vpop.permute.xlu0 %4964
        %4966 = vrot.lane.b32.xlu0 %v4940, 72
        %v4967 = vpop.permute.xlu0 %4966
        %4968 = vrot.lane.b32.xlu0 %v4941, 72
        %v4969 = vpop.permute.xlu0 %4968
        %4970 = vrot.lane.b32.xlu0 %v4942, 72
        %v4971 = vpop.permute.xlu0 %4970
        %4972 = vrot.lane.b32.xlu0 %v4943, 72
        %v4973 = vpop.permute.xlu0 %4972
        %4974 = vrot.lane.b32.xlu0 %v4944, 72
        %v4975 = vpop.permute.xlu0 %4974
        %4976 = vrot.lane.b32.xlu0 %v4945, 72
        %v4977 = vpop.permute.xlu0 %4976
        %v4978 = vunpack.c.l.b16 %v2076
        %v4979 = vunpack.c.l.b16 %v2086
        %v4980 = vunpack.c.l.b16 %v2099
        %v4981 = vunpack.c.l.b16 %v2109
        %v4982 = vunpack.c.l.b16 %v2122
        %v4983 = vunpack.c.l.b16 %v2132
        %v4984 = vunpack.c.l.b16 %v2145
        %v4985 = vunpack.c.l.b16 %v2155
        %v4986 = vunpack.c.l.b16 %v2168
        %v4987 = vunpack.c.l.b16 %v2178
        %v4988 = vunpack.c.l.b16 %v2191
        %v4989 = vunpack.c.l.b16 %v2201
        %v4990 = vunpack.c.l.b16 %v2214
        %v4991 = vunpack.c.l.b16 %v2224
        %v4992 = vunpack.c.l.b16 %v2237
        %v4993 = vunpack.c.l.b16 %v2247
        %v4994 = vunpack.c.l.b16 %v2260
        %v4995 = vunpack.c.l.b16 %v2270
        %v4996 = vunpack.c.l.b16 %v2283
        %v4997 = vunpack.c.l.b16 %v2293
        %v4998 = vunpack.c.l.b16 %v2306
        %v4999 = vunpack.c.l.b16 %v2316
        %v5000 = vunpack.c.l.b16 %v2329
        %v5001 = vunpack.c.l.b16 %v2339
        %v5002 = vunpack.c.l.b16 %v2352
        %v5003 = vunpack.c.l.b16 %v2362
        %v5004 = vunpack.c.l.b16 %v2375
        %v5005 = vunpack.c.l.b16 %v2385
        %v5006 = vunpack.c.l.b16 %v2398
        %v5007 = vunpack.c.l.b16 %v2408
        %v5008 = vunpack.c.l.b16 %v2421
        %v5009 = vunpack.c.l.b16 %v2431
        %v5010 = vpack.c.b16 %v4979, %v4978
        %v5011 = vpack.c.b16 %v4981, %v4980
        %v5012 = vpack.c.b16 %v4983, %v4982
        %v5013 = vpack.c.b16 %v4985, %v4984
        %v5014 = vpack.c.b16 %v4987, %v4986
        %v5015 = vpack.c.b16 %v4989, %v4988
        %v5016 = vpack.c.b16 %v4991, %v4990
        %v5017 = vpack.c.b16 %v4993, %v4992
        %v5018 = vpack.c.b16 %v4995, %v4994
        %v5019 = vpack.c.b16 %v4997, %v4996
        %v5020 = vpack.c.b16 %v4999, %v4998
        %v5021 = vpack.c.b16 %v5001, %v5000
        %v5022 = vpack.c.b16 %v5003, %v5002
        %v5023 = vpack.c.b16 %v5005, %v5004
        %v5024 = vpack.c.b16 %v5007, %v5006
        %v5025 = vpack.c.b16 %v5009, %v5008
        %5026 = vrot.lane.b32.xlu0 %v5010, 84
        %v5027 = vpop.permute.xlu0 %5026
        %5028 = vrot.lane.b32.xlu0 %v5011, 84
        %v5029 = vpop.permute.xlu0 %5028
        %5030 = vrot.lane.b32.xlu0 %v5012, 84
        %v5031 = vpop.permute.xlu0 %5030
        %5032 = vrot.lane.b32.xlu0 %v5013, 84
        %v5033 = vpop.permute.xlu0 %5032
        %5034 = vrot.lane.b32.xlu0 %v5014, 84
        %v5035 = vpop.permute.xlu0 %5034
        %5036 = vrot.lane.b32.xlu0 %v5015, 84
        %v5037 = vpop.permute.xlu0 %5036
        %5038 = vrot.lane.b32.xlu0 %v5016, 84
        %v5039 = vpop.permute.xlu0 %5038
        %5040 = vrot.lane.b32.xlu0 %v5017, 84
        %v5041 = vpop.permute.xlu0 %5040
        %5042 = vrot.lane.b32.xlu0 %v5018, 84
        %v5043 = vpop.permute.xlu0 %5042
        %5044 = vrot.lane.b32.xlu0 %v5019, 84
        %v5045 = vpop.permute.xlu0 %5044
        %5046 = vrot.lane.b32.xlu0 %v5020, 84
        %v5047 = vpop.permute.xlu0 %5046
        %5048 = vrot.lane.b32.xlu0 %v5021, 84
        %v5049 = vpop.permute.xlu0 %5048
        %5050 = vrot.lane.b32.xlu0 %v5022, 84
        %v5051 = vpop.permute.xlu0 %5050
        %5052 = vrot.lane.b32.xlu0 %v5023, 84
        %v5053 = vpop.permute.xlu0 %5052
        %5054 = vrot.lane.b32.xlu0 %v5024, 84
        %v5055 = vpop.permute.xlu0 %5054
        %5056 = vrot.lane.b32.xlu0 %v5025, 84
        %v5057 = vpop.permute.xlu0 %5056
        %v5074 = vunpack.c.l.b16 %v2433
        %v5075 = vunpack.c.l.b16 %v2434
        %v5076 = vunpack.c.l.b16 %v2435
        %v5077 = vunpack.c.l.b16 %v2436
        %v5078 = vunpack.c.l.b16 %v2437
        %v5079 = vunpack.c.l.b16 %v2438
        %v5080 = vunpack.c.l.b16 %v2439
        %v5081 = vunpack.c.l.b16 %v2440
        %v5082 = vunpack.c.l.b16 %v2441
        %v5083 = vunpack.c.l.b16 %v2442
        %v5084 = vunpack.c.l.b16 %v2443
        %v5085 = vunpack.c.l.b16 %v2444
        %v5086 = vunpack.c.l.b16 %v2445
        %v5087 = vunpack.c.l.b16 %v2446
        %v5088 = vunpack.c.l.b16 %v2447
        %v5089 = vunpack.c.l.b16 %v2448
        %v5090 = vunpack.c.l.b16 %v2449
        %v5091 = vunpack.c.l.b16 %v2450
        %v5092 = vunpack.c.l.b16 %v2451
        %v5093 = vunpack.c.l.b16 %v2452
        %v5094 = vunpack.c.l.b16 %v2453
        %v5095 = vunpack.c.l.b16 %v2454
        %v5096 = vunpack.c.l.b16 %v2455
        %v5097 = vunpack.c.l.b16 %v2456
        %v5098 = vunpack.c.l.b16 %v2457
        %v5099 = vunpack.c.l.b16 %v2458
        %v5100 = vunpack.c.l.b16 %v2459
        %v5101 = vunpack.c.l.b16 %v2460
        %v5102 = vunpack.c.l.b16 %v2461
        %v5103 = vunpack.c.l.b16 %v2462
        %v5104 = vunpack.c.l.b16 %v2463
        %v5105 = vunpack.c.l.b16 %v2464
        %v5106 = vpack.c.b16 %v5075, %v5074
        %v5107 = vpack.c.b16 %v5077, %v5076
        %v5108 = vpack.c.b16 %v5079, %v5078
        %v5109 = vpack.c.b16 %v5081, %v5080
        %v5110 = vpack.c.b16 %v5083, %v5082
        %v5111 = vpack.c.b16 %v5085, %v5084
        %v5112 = vpack.c.b16 %v5087, %v5086
        %v5113 = vpack.c.b16 %v5089, %v5088
        %v5114 = vpack.c.b16 %v5091, %v5090
        %v5115 = vpack.c.b16 %v5093, %v5092
        %v5116 = vpack.c.b16 %v5095, %v5094
        %v5117 = vpack.c.b16 %v5097, %v5096
        %v5118 = vpack.c.b16 %v5099, %v5098
        %v5119 = vpack.c.b16 %v5101, %v5100
        %v5120 = vpack.c.b16 %v5103, %v5102
        %v5121 = vpack.c.b16 %v5105, %v5104
        %5122 = vrot.lane.b32.xlu0 %v5106, 96
        %v5123 = vpop.permute.xlu0 %5122
        %5124 = vrot.lane.b32.xlu0 %v5107, 96
        %v5125 = vpop.permute.xlu0 %5124
        %5126 = vrot.lane.b32.xlu0 %v5108, 96
        %v5127 = vpop.permute.xlu0 %5126
        %5128 = vrot.lane.b32.xlu0 %v5109, 96
        %v5129 = vpop.permute.xlu0 %5128
        %5130 = vrot.lane.b32.xlu0 %v5110, 96
        %v5131 = vpop.permute.xlu0 %5130
        %5132 = vrot.lane.b32.xlu0 %v5111, 96
        %v5133 = vpop.permute.xlu0 %5132
        %5134 = vrot.lane.b32.xlu0 %v5112, 96
        %v5135 = vpop.permute.xlu0 %5134
        %5136 = vrot.lane.b32.xlu0 %v5113, 96
        %v5137 = vpop.permute.xlu0 %5136
        %5138 = vrot.lane.b32.xlu0 %v5114, 96
        %v5139 = vpop.permute.xlu0 %5138
        %5140 = vrot.lane.b32.xlu0 %v5115, 96
        %v5141 = vpop.permute.xlu0 %5140
        %5142 = vrot.lane.b32.xlu0 %v5116, 96
        %v5143 = vpop.permute.xlu0 %5142
        %5144 = vrot.lane.b32.xlu0 %v5117, 96
        %v5145 = vpop.permute.xlu0 %5144
        %5146 = vrot.lane.b32.xlu0 %v5118, 96
        %v5147 = vpop.permute.xlu0 %5146
        %5148 = vrot.lane.b32.xlu0 %v5119, 96
        %v5149 = vpop.permute.xlu0 %5148
        %5150 = vrot.lane.b32.xlu0 %v5120, 96
        %v5151 = vpop.permute.xlu0 %5150
        %5152 = vrot.lane.b32.xlu0 %v5121, 96
        %v5153 = vpop.permute.xlu0 %5152
        %v5154 = vunpack.c.l.b16 %v2494
        %v5155 = vunpack.c.l.b16 %v2504
        %v5156 = vunpack.c.l.b16 %v2518
        %v5157 = vunpack.c.l.b16 %v2528
        %v5158 = vunpack.c.l.b16 %v2542
        %v5159 = vunpack.c.l.b16 %v2552
        %v5160 = vunpack.c.l.b16 %v2566
        %v5161 = vunpack.c.l.b16 %v2576
        %v5162 = vunpack.c.l.b16 %v2590
        %v5163 = vunpack.c.l.b16 %v2600
        %v5164 = vunpack.c.l.b16 %v2614
        %v5165 = vunpack.c.l.b16 %v2624
        %v5166 = vunpack.c.l.b16 %v2638
        %v5167 = vunpack.c.l.b16 %v2648
        %v5168 = vunpack.c.l.b16 %v2662
        %v5169 = vunpack.c.l.b16 %v2672
        %v5170 = vunpack.c.l.b16 %v2686
        %v5171 = vunpack.c.l.b16 %v2696
        %v5172 = vunpack.c.l.b16 %v2710
        %v5173 = vunpack.c.l.b16 %v2720
        %v5174 = vunpack.c.l.b16 %v2734
        %v5175 = vunpack.c.l.b16 %v2744
        %v5176 = vunpack.c.l.b16 %v2758
        %v5177 = vunpack.c.l.b16 %v2768
        %v5178 = vunpack.c.l.b16 %v2782
        %v5179 = vunpack.c.l.b16 %v2792
        %v5180 = vunpack.c.l.b16 %v2806
        %v5181 = vunpack.c.l.b16 %v2816
        %v5182 = vunpack.c.l.b16 %v2830
        %v5183 = vunpack.c.l.b16 %v2840
        %v5184 = vunpack.c.l.b16 %v2854
        %v5185 = vunpack.c.l.b16 %v2864
        %v5186 = vpack.c.b16 %v5155, %v5154
        %v5187 = vpack.c.b16 %v5157, %v5156
        %v5188 = vpack.c.b16 %v5159, %v5158
        %v5189 = vpack.c.b16 %v5161, %v5160
        %v5190 = vpack.c.b16 %v5163, %v5162
        %v5191 = vpack.c.b16 %v5165, %v5164
        %v5192 = vpack.c.b16 %v5167, %v5166
        %v5193 = vpack.c.b16 %v5169, %v5168
        %v5194 = vpack.c.b16 %v5171, %v5170
        %v5195 = vpack.c.b16 %v5173, %v5172
        %v5196 = vpack.c.b16 %v5175, %v5174
        %v5197 = vpack.c.b16 %v5177, %v5176
        %v5198 = vpack.c.b16 %v5179, %v5178
        %v5199 = vpack.c.b16 %v5181, %v5180
        %v5200 = vpack.c.b16 %v5183, %v5182
        %v5201 = vpack.c.b16 %v5185, %v5184
        %5202 = vrot.lane.b32.xlu0 %v5186, 108
        %v5203 = vpop.permute.xlu0 %5202
        %5204 = vrot.lane.b32.xlu0 %v5187, 108
        %v5205 = vpop.permute.xlu0 %5204
        %5206 = vrot.lane.b32.xlu0 %v5188, 108
        %v5207 = vpop.permute.xlu0 %5206
        %5208 = vrot.lane.b32.xlu0 %v5189, 108
        %v5209 = vpop.permute.xlu0 %5208
        %5210 = vrot.lane.b32.xlu0 %v5190, 108
        %v5211 = vpop.permute.xlu0 %5210
        %5212 = vrot.lane.b32.xlu0 %v5191, 108
        %v5213 = vpop.permute.xlu0 %5212
        %5214 = vrot.lane.b32.xlu0 %v5192, 108
        %v5215 = vpop.permute.xlu0 %5214
        %5216 = vrot.lane.b32.xlu0 %v5193, 108
        %v5217 = vpop.permute.xlu0 %5216
        %5218 = vrot.lane.b32.xlu0 %v5194, 108
        %v5219 = vpop.permute.xlu0 %5218
        %5220 = vrot.lane.b32.xlu0 %v5195, 108
        %v5221 = vpop.permute.xlu0 %5220
        %5222 = vrot.lane.b32.xlu0 %v5196, 108
        %v5223 = vpop.permute.xlu0 %5222
        %5224 = vrot.lane.b32.xlu0 %v5197, 108
        %v5225 = vpop.permute.xlu0 %5224
        %5226 = vrot.lane.b32.xlu0 %v5198, 108
        %v5227 = vpop.permute.xlu0 %5226
        %5228 = vrot.lane.b32.xlu0 %v5199, 108
        %v5229 = vpop.permute.xlu0 %5228
        %5230 = vrot.lane.b32.xlu0 %v5200, 108
        %v5231 = vpop.permute.xlu0 %5230
        %5232 = vrot.lane.b32.xlu0 %v5201, 108
        %v5233 = vpop.permute.xlu0 %5232
        %v5234 = vunpack.c.l.b16 %v2932
        %v5235 = vunpack.c.l.b16 %v2935
        %v5236 = vunpack.c.l.b16 %v2939
        %v5237 = vunpack.c.l.b16 %v2942
        %v5238 = vunpack.c.l.b16 %v2946
        %v5239 = vunpack.c.l.b16 %v2949
        %v5240 = vunpack.c.l.b16 %v2953
        %v5241 = vunpack.c.l.b16 %v2956
        %v5242 = vunpack.c.l.b16 %v2960
        %v5243 = vunpack.c.l.b16 %v2963
        %v5244 = vunpack.c.l.b16 %v2967
        %v5245 = vunpack.c.l.b16 %v2970
        %v5246 = vunpack.c.l.b16 %v2974
        %v5247 = vunpack.c.l.b16 %v2977
        %v5248 = vunpack.c.l.b16 %v2981
        %v5249 = vunpack.c.l.b16 %v2984
        %v5250 = vunpack.c.l.b16 %v2988
        %v5251 = vunpack.c.l.b16 %v2991
        %v5252 = vunpack.c.l.b16 %v2995
        %v5253 = vunpack.c.l.b16 %v2998
        %v5254 = vunpack.c.l.b16 %v3002
        %v5255 = vunpack.c.l.b16 %v3005
        %v5256 = vunpack.c.l.b16 %v3009
        %v5257 = vunpack.c.l.b16 %v3012
        %v5258 = vunpack.c.l.b16 %v3016
        %v5259 = vunpack.c.l.b16 %v3019
        %v5260 = vunpack.c.l.b16 %v3023
        %v5261 = vunpack.c.l.b16 %v3026
        %v5262 = vunpack.c.l.b16 %v3030
        %v5263 = vunpack.c.l.b16 %v3033
        %v5264 = vunpack.c.l.b16 %v3037
        %v5265 = vunpack.c.l.b16 %v3040
        %v5266 = vpack.c.b16 %v5235, %v5234
        %v5267 = vpack.c.b16 %v5237, %v5236
        %v5268 = vpack.c.b16 %v5239, %v5238
        %v5269 = vpack.c.b16 %v5241, %v5240
        %v5270 = vpack.c.b16 %v5243, %v5242
        %v5271 = vpack.c.b16 %v5245, %v5244
        %v5272 = vpack.c.b16 %v5247, %v5246
        %v5273 = vpack.c.b16 %v5249, %v5248
        %v5274 = vpack.c.b16 %v5251, %v5250
        %v5275 = vpack.c.b16 %v5253, %v5252
        %v5276 = vpack.c.b16 %v5255, %v5254
        %v5277 = vpack.c.b16 %v5257, %v5256
        %v5278 = vpack.c.b16 %v5259, %v5258
        %v5279 = vpack.c.b16 %v5261, %v5260
        %v5280 = vpack.c.b16 %v5263, %v5262
        %v5281 = vpack.c.b16 %v5265, %v5264
        %5282 = vrot.lane.b32.xlu0 %v5266, 120
        %v5283 = vpop.permute.xlu0 %5282
        %5284 = vrot.lane.b32.xlu0 %v5267, 120
        %v5285 = vpop.permute.xlu0 %5284
        %5286 = vrot.lane.b32.xlu0 %v5268, 120
        %v5287 = vpop.permute.xlu0 %5286
        %5288 = vrot.lane.b32.xlu0 %v5269, 120
        %v5289 = vpop.permute.xlu0 %5288
        %5290 = vrot.lane.b32.xlu0 %v5270, 120
        %v5291 = vpop.permute.xlu0 %5290
        %5292 = vrot.lane.b32.xlu0 %v5271, 120
        %v5293 = vpop.permute.xlu0 %5292
        %5294 = vrot.lane.b32.xlu0 %v5272, 120
        %v5295 = vpop.permute.xlu0 %5294
        %5296 = vrot.lane.b32.xlu0 %v5273, 120
        %v5297 = vpop.permute.xlu0 %5296
        %5298 = vrot.lane.b32.xlu0 %v5274, 120
        %v5299 = vpop.permute.xlu0 %5298
        %5300 = vrot.lane.b32.xlu0 %v5275, 120
        %v5301 = vpop.permute.xlu0 %5300
        %5302 = vrot.lane.b32.xlu0 %v5276, 120
        %v5303 = vpop.permute.xlu0 %5302
        %5304 = vrot.lane.b32.xlu0 %v5277, 120
        %v5305 = vpop.permute.xlu0 %5304
        %5306 = vrot.lane.b32.xlu0 %v5278, 120
        %v5307 = vpop.permute.xlu0 %5306
        %5308 = vrot.lane.b32.xlu0 %v5279, 120
        %v5309 = vpop.permute.xlu0 %5308
        %5310 = vrot.lane.b32.xlu0 %v5280, 120
        %v5311 = vpop.permute.xlu0 %5310
        %5312 = vrot.lane.b32.xlu0 %v5281, 120
        %v5313 = vpop.permute.xlu0 %5312
        %v5314 = vunpack.c.l.b16 %v3069
        %v5315 = vunpack.c.l.b16 %v3079
        %v5316 = vunpack.c.l.b16 %v3092
        %v5317 = vunpack.c.l.b16 %v3102
        %v5318 = vunpack.c.l.b16 %v3115
        %v5319 = vunpack.c.l.b16 %v3125
        %v5320 = vunpack.c.l.b16 %v3138
        %v5321 = vunpack.c.l.b16 %v3148
        %v5322 = vunpack.c.l.b16 %v3161
        %v5323 = vunpack.c.l.b16 %v3171
        %v5324 = vunpack.c.l.b16 %v3184
        %v5325 = vunpack.c.l.b16 %v3194
        %v5326 = vunpack.c.l.b16 %v3207
        %v5327 = vunpack.c.l.b16 %v3217
        %v5328 = vunpack.c.l.b16 %v3230
        %v5329 = vunpack.c.l.b16 %v3240
        %v5330 = vunpack.c.l.b16 %v3253
        %v5331 = vunpack.c.l.b16 %v3263
        %v5332 = vunpack.c.l.b16 %v3276
        %v5333 = vunpack.c.l.b16 %v3286
        %v5334 = vunpack.c.l.b16 %v3299
        %v5335 = vunpack.c.l.b16 %v3309
        %v5336 = vunpack.c.l.b16 %v3322
        %v5337 = vunpack.c.l.b16 %v3332
        %v5338 = vunpack.c.l.b16 %v3345
        %v5339 = vunpack.c.l.b16 %v3355
        %v5340 = vunpack.c.l.b16 %v3368
        %v5341 = vunpack.c.l.b16 %v3378
        %v5342 = vunpack.c.l.b16 %v3391
        %v5343 = vunpack.c.l.b16 %v3401
        %v5344 = vunpack.c.l.b16 %v3414
        %v5345 = vunpack.c.l.b16 %v3424
        %v5346 = vpack.c.b16 %v5315, %v5314
        %v5347 = vpack.c.b16 %v5317, %v5316
        %v5348 = vpack.c.b16 %v5319, %v5318
        %v5349 = vpack.c.b16 %v5321, %v5320
        %v5350 = vpack.c.b16 %v5323, %v5322
        %v5351 = vpack.c.b16 %v5325, %v5324
        %v5352 = vpack.c.b16 %v5327, %v5326
        %v5353 = vpack.c.b16 %v5329, %v5328
        %v5354 = vpack.c.b16 %v5331, %v5330
        %v5355 = vpack.c.b16 %v5333, %v5332
        %v5356 = vpack.c.b16 %v5335, %v5334
        %v5357 = vpack.c.b16 %v5337, %v5336
        %v5358 = vpack.c.b16 %v5339, %v5338
        %v5359 = vpack.c.b16 %v5341, %v5340
        %v5360 = vpack.c.b16 %v5343, %v5342
        %v5361 = vpack.c.b16 %v5345, %v5344
        %5362 = vrot.lane.b32.xlu0 %v5346, 4
        %v5363 = vpop.permute.xlu0 %5362
        %5364 = vrot.lane.b32.xlu0 %v5347, 4
        %v5365 = vpop.permute.xlu0 %5364
        %5366 = vrot.lane.b32.xlu0 %v5348, 4
        %v5367 = vpop.permute.xlu0 %5366
        %5368 = vrot.lane.b32.xlu0 %v5349, 4
        %v5369 = vpop.permute.xlu0 %5368
        %5370 = vrot.lane.b32.xlu0 %v5350, 4
        %v5371 = vpop.permute.xlu0 %5370
        %5372 = vrot.lane.b32.xlu0 %v5351, 4
        %v5373 = vpop.permute.xlu0 %5372
        %5374 = vrot.lane.b32.xlu0 %v5352, 4
        %v5375 = vpop.permute.xlu0 %5374
        %5376 = vrot.lane.b32.xlu0 %v5353, 4
        %v5377 = vpop.permute.xlu0 %5376
        %5378 = vrot.lane.b32.xlu0 %v5354, 4
        %v5379 = vpop.permute.xlu0 %5378
        %5380 = vrot.lane.b32.xlu0 %v5355, 4
        %v5381 = vpop.permute.xlu0 %5380
        %5382 = vrot.lane.b32.xlu0 %v5356, 4
        %v5383 = vpop.permute.xlu0 %5382
        %5384 = vrot.lane.b32.xlu0 %v5357, 4
        %v5385 = vpop.permute.xlu0 %5384
        %5386 = vrot.lane.b32.xlu0 %v5358, 4
        %v5387 = vpop.permute.xlu0 %5386
        %5388 = vrot.lane.b32.xlu0 %v5359, 4
        %v5389 = vpop.permute.xlu0 %5388
        %5390 = vrot.lane.b32.xlu0 %v5360, 4
        %v5391 = vpop.permute.xlu0 %5390
        %5392 = vrot.lane.b32.xlu0 %v5361, 4
        %v5393 = vpop.permute.xlu0 %5392
        %v5410 = vunpack.c.l.b16 %v3426
        %v5411 = vunpack.c.l.b16 %v3427
        %v5412 = vunpack.c.l.b16 %v3428
        %v5413 = vunpack.c.l.b16 %v3429
        %v5414 = vunpack.c.l.b16 %v3430
        %v5415 = vunpack.c.l.b16 %v3431
        %v5416 = vunpack.c.l.b16 %v3432
        %v5417 = vunpack.c.l.b16 %v3433
        %v5418 = vunpack.c.l.b16 %v3434
        %v5419 = vunpack.c.l.b16 %v3435
        %v5420 = vunpack.c.l.b16 %v3436
        %v5421 = vunpack.c.l.b16 %v3437
        %v5422 = vunpack.c.l.b16 %v3438
        %v5423 = vunpack.c.l.b16 %v3439
        %v5424 = vunpack.c.l.b16 %v3440
        %v5425 = vunpack.c.l.b16 %v3441
        %v5426 = vunpack.c.l.b16 %v3442
        %v5427 = vunpack.c.l.b16 %v3443
        %v5428 = vunpack.c.l.b16 %v3444
        %v5429 = vunpack.c.l.b16 %v3445
        %v5430 = vunpack.c.l.b16 %v3446
        %v5431 = vunpack.c.l.b16 %v3447
        %v5432 = vunpack.c.l.b16 %v3448
        %v5433 = vunpack.c.l.b16 %v3449
        %v5434 = vunpack.c.l.b16 %v3450
        %v5435 = vunpack.c.l.b16 %v3451
        %v5436 = vunpack.c.l.b16 %v3452
        %v5437 = vunpack.c.l.b16 %v3453
        %v5438 = vunpack.c.l.b16 %v3454
        %v5439 = vunpack.c.l.b16 %v3455
        %v5440 = vunpack.c.l.b16 %v3456
        %v5441 = vunpack.c.l.b16 %v3457
        %v5442 = vpack.c.b16 %v5411, %v5410
        %v5443 = vpack.c.b16 %v5413, %v5412
        %v5444 = vpack.c.b16 %v5415, %v5414
        %v5445 = vpack.c.b16 %v5417, %v5416
        %v5446 = vpack.c.b16 %v5419, %v5418
        %v5447 = vpack.c.b16 %v5421, %v5420
        %v5448 = vpack.c.b16 %v5423, %v5422
        %v5449 = vpack.c.b16 %v5425, %v5424
        %v5450 = vpack.c.b16 %v5427, %v5426
        %v5451 = vpack.c.b16 %v5429, %v5428
        %v5452 = vpack.c.b16 %v5431, %v5430
        %v5453 = vpack.c.b16 %v5433, %v5432
        %v5454 = vpack.c.b16 %v5435, %v5434
        %v5455 = vpack.c.b16 %v5437, %v5436
        %v5456 = vpack.c.b16 %v5439, %v5438
        %v5457 = vpack.c.b16 %v5441, %v5440
        %5458 = vrot.lane.b32.xlu0 %v5442, 16
        %v5459 = vpop.permute.xlu0 %5458
        %5460 = vrot.lane.b32.xlu0 %v5443, 16
        %v5461 = vpop.permute.xlu0 %5460
        %5462 = vrot.lane.b32.xlu0 %v5444, 16
        %v5463 = vpop.permute.xlu0 %5462
        %5464 = vrot.lane.b32.xlu0 %v5445, 16
        %v5465 = vpop.permute.xlu0 %5464
        %5466 = vrot.lane.b32.xlu0 %v5446, 16
        %v5467 = vpop.permute.xlu0 %5466
        %5468 = vrot.lane.b32.xlu0 %v5447, 16
        %v5469 = vpop.permute.xlu0 %5468
        %5470 = vrot.lane.b32.xlu0 %v5448, 16
        %v5471 = vpop.permute.xlu0 %5470
        %5472 = vrot.lane.b32.xlu0 %v5449, 16
        %v5473 = vpop.permute.xlu0 %5472
        %5474 = vrot.lane.b32.xlu0 %v5450, 16
        %v5475 = vpop.permute.xlu0 %5474
        %5476 = vrot.lane.b32.xlu0 %v5451, 16
        %v5477 = vpop.permute.xlu0 %5476
        %5478 = vrot.lane.b32.xlu0 %v5452, 16
        %v5479 = vpop.permute.xlu0 %5478
        %5480 = vrot.lane.b32.xlu0 %v5453, 16
        %v5481 = vpop.permute.xlu0 %5480
        %5482 = vrot.lane.b32.xlu0 %v5454, 16
        %v5483 = vpop.permute.xlu0 %5482
        %5484 = vrot.lane.b32.xlu0 %v5455, 16
        %v5485 = vpop.permute.xlu0 %5484
        %5486 = vrot.lane.b32.xlu0 %v5456, 16
        %v5487 = vpop.permute.xlu0 %5486
        %5488 = vrot.lane.b32.xlu0 %v5457, 16
        %v5489 = vpop.permute.xlu0 %5488
        %v5490 = vunpack.c.l.b16 %v3487
        %v5491 = vunpack.c.l.b16 %v3497
        %v5492 = vunpack.c.l.b16 %v3511
        %v5493 = vunpack.c.l.b16 %v3521
        %v5494 = vunpack.c.l.b16 %v3535
        %v5495 = vunpack.c.l.b16 %v3545
        %v5496 = vunpack.c.l.b16 %v3559
        %v5497 = vunpack.c.l.b16 %v3569
        %v5498 = vunpack.c.l.b16 %v3583
        %v5499 = vunpack.c.l.b16 %v3593
        %v5500 = vunpack.c.l.b16 %v3607
        %v5501 = vunpack.c.l.b16 %v3617
        %v5502 = vunpack.c.l.b16 %v3631
        %v5503 = vunpack.c.l.b16 %v3641
        %v5504 = vunpack.c.l.b16 %v3655
        %v5505 = vunpack.c.l.b16 %v3665
        %v5506 = vunpack.c.l.b16 %v3679
        %v5507 = vunpack.c.l.b16 %v3689
        %v5508 = vunpack.c.l.b16 %v3703
        %v5509 = vunpack.c.l.b16 %v3713
        %v5510 = vunpack.c.l.b16 %v3727
        %v5511 = vunpack.c.l.b16 %v3737
        %v5512 = vunpack.c.l.b16 %v3751
        %v5513 = vunpack.c.l.b16 %v3761
        %v5514 = vunpack.c.l.b16 %v3775
        %v5515 = vunpack.c.l.b16 %v3785
        %v5516 = vunpack.c.l.b16 %v3799
        %v5517 = vunpack.c.l.b16 %v3809
        %v5518 = vunpack.c.l.b16 %v3823
        %v5519 = vunpack.c.l.b16 %v3833
        %v5520 = vunpack.c.l.b16 %v3847
        %v5521 = vunpack.c.l.b16 %v3857
        %v5522 = vpack.c.b16 %v5491, %v5490
        %v5523 = vpack.c.b16 %v5493, %v5492
        %v5524 = vpack.c.b16 %v5495, %v5494
        %v5525 = vpack.c.b16 %v5497, %v5496
        %v5526 = vpack.c.b16 %v5499, %v5498
        %v5527 = vpack.c.b16 %v5501, %v5500
        %v5528 = vpack.c.b16 %v5503, %v5502
        %v5529 = vpack.c.b16 %v5505, %v5504
        %v5530 = vpack.c.b16 %v5507, %v5506
        %v5531 = vpack.c.b16 %v5509, %v5508
        %v5532 = vpack.c.b16 %v5511, %v5510
        %v5533 = vpack.c.b16 %v5513, %v5512
        %v5534 = vpack.c.b16 %v5515, %v5514
        %v5535 = vpack.c.b16 %v5517, %v5516
        %v5536 = vpack.c.b16 %v5519, %v5518
        %v5537 = vpack.c.b16 %v5521, %v5520
        %5538 = vrot.lane.b32.xlu0 %v5522, 28
        %v5539 = vpop.permute.xlu0 %5538
        %5540 = vrot.lane.b32.xlu0 %v5523, 28
        %v5541 = vpop.permute.xlu0 %5540
        %5542 = vrot.lane.b32.xlu0 %v5524, 28
        %v5543 = vpop.permute.xlu0 %5542
        %5544 = vrot.lane.b32.xlu0 %v5525, 28
        %v5545 = vpop.permute.xlu0 %5544
        %5546 = vrot.lane.b32.xlu0 %v5526, 28
        %v5547 = vpop.permute.xlu0 %5546
        %5548 = vrot.lane.b32.xlu0 %v5527, 28
        %v5549 = vpop.permute.xlu0 %5548
        %5550 = vrot.lane.b32.xlu0 %v5528, 28
        %v5551 = vpop.permute.xlu0 %5550
        %5552 = vrot.lane.b32.xlu0 %v5529, 28
        %v5553 = vpop.permute.xlu0 %5552
        %5554 = vrot.lane.b32.xlu0 %v5530, 28
        %v5555 = vpop.permute.xlu0 %5554
        %5556 = vrot.lane.b32.xlu0 %v5531, 28
        %v5557 = vpop.permute.xlu0 %5556
        %5558 = vrot.lane.b32.xlu0 %v5532, 28
        %v5559 = vpop.permute.xlu0 %5558
        %5560 = vrot.lane.b32.xlu0 %v5533, 28
        %v5561 = vpop.permute.xlu0 %5560
        %5562 = vrot.lane.b32.xlu0 %v5534, 28
        %v5563 = vpop.permute.xlu0 %5562
        %5564 = vrot.lane.b32.xlu0 %v5535, 28
        %v5565 = vpop.permute.xlu0 %5564
        %5566 = vrot.lane.b32.xlu0 %v5536, 28
        %v5567 = vpop.permute.xlu0 %5566
        %5568 = vrot.lane.b32.xlu0 %v5537, 28
        %v5569 = vpop.permute.xlu0 %5568
        %v5570 = vunpack.c.l.b16 %v3925
        %v5571 = vunpack.c.l.b16 %v3928
        %v5572 = vunpack.c.l.b16 %v3932
        %v5573 = vunpack.c.l.b16 %v3935
        %v5574 = vunpack.c.l.b16 %v3939
        %v5575 = vunpack.c.l.b16 %v3942
        %v5576 = vunpack.c.l.b16 %v3946
        %v5577 = vunpack.c.l.b16 %v3949
        %v5578 = vunpack.c.l.b16 %v3953
        %v5579 = vunpack.c.l.b16 %v3956
        %v5580 = vunpack.c.l.b16 %v3960
        %v5581 = vunpack.c.l.b16 %v3963
        %v5582 = vunpack.c.l.b16 %v3967
        %v5583 = vunpack.c.l.b16 %v3970
        %v5584 = vunpack.c.l.b16 %v3974
        %v5585 = vunpack.c.l.b16 %v3977
        %v5586 = vunpack.c.l.b16 %v3981
        %v5587 = vunpack.c.l.b16 %v3984
        %v5588 = vunpack.c.l.b16 %v3988
        %v5589 = vunpack.c.l.b16 %v3991
        %v5590 = vunpack.c.l.b16 %v3995
        %v5591 = vunpack.c.l.b16 %v3998
        %v5592 = vunpack.c.l.b16 %v4002
        %v5593 = vunpack.c.l.b16 %v4005
        %v5594 = vunpack.c.l.b16 %v4009
        %v5595 = vunpack.c.l.b16 %v4012
        %v5596 = vunpack.c.l.b16 %v4016
        %v5597 = vunpack.c.l.b16 %v4019
        %v5598 = vunpack.c.l.b16 %v4023
        %v5599 = vunpack.c.l.b16 %v4026
        %v5600 = vunpack.c.l.b16 %v4030
        %v5601 = vunpack.c.l.b16 %v4033
        %v5602 = vpack.c.b16 %v5571, %v5570
        %v5603 = vpack.c.b16 %v5573, %v5572
        %v5604 = vpack.c.b16 %v5575, %v5574
        %v5605 = vpack.c.b16 %v5577, %v5576
        %v5606 = vpack.c.b16 %v5579, %v5578
        %v5607 = vpack.c.b16 %v5581, %v5580
        %v5608 = vpack.c.b16 %v5583, %v5582
        %v5609 = vpack.c.b16 %v5585, %v5584
        %v5610 = vpack.c.b16 %v5587, %v5586
        %v5611 = vpack.c.b16 %v5589, %v5588
        %v5612 = vpack.c.b16 %v5591, %v5590
        %v5613 = vpack.c.b16 %v5593, %v5592
        %v5614 = vpack.c.b16 %v5595, %v5594
        %v5615 = vpack.c.b16 %v5597, %v5596
        %v5616 = vpack.c.b16 %v5599, %v5598
        %v5617 = vpack.c.b16 %v5601, %v5600
        %5618 = vrot.lane.b32.xlu0 %v5602, 40
        %v5619 = vpop.permute.xlu0 %5618
        %5620 = vrot.lane.b32.xlu0 %v5603, 40
        %v5621 = vpop.permute.xlu0 %5620
        %5622 = vrot.lane.b32.xlu0 %v5604, 40
        %v5623 = vpop.permute.xlu0 %5622
        %5624 = vrot.lane.b32.xlu0 %v5605, 40
        %v5625 = vpop.permute.xlu0 %5624
        %5626 = vrot.lane.b32.xlu0 %v5606, 40
        %v5627 = vpop.permute.xlu0 %5626
        %5628 = vrot.lane.b32.xlu0 %v5607, 40
        %v5629 = vpop.permute.xlu0 %5628
        %5630 = vrot.lane.b32.xlu0 %v5608, 40
        %v5631 = vpop.permute.xlu0 %5630
        %5632 = vrot.lane.b32.xlu0 %v5609, 40
        %v5633 = vpop.permute.xlu0 %5632
        %5634 = vrot.lane.b32.xlu0 %v5610, 40
        %v5635 = vpop.permute.xlu0 %5634
        %5636 = vrot.lane.b32.xlu0 %v5611, 40
        %v5637 = vpop.permute.xlu0 %5636
        %5638 = vrot.lane.b32.xlu0 %v5612, 40
        %v5639 = vpop.permute.xlu0 %5638
        %5640 = vrot.lane.b32.xlu0 %v5613, 40
        %v5641 = vpop.permute.xlu0 %5640
        %5642 = vrot.lane.b32.xlu0 %v5614, 40
        %v5643 = vpop.permute.xlu0 %5642
        %5644 = vrot.lane.b32.xlu0 %v5615, 40
        %v5645 = vpop.permute.xlu0 %5644
        %5646 = vrot.lane.b32.xlu0 %v5616, 40
        %v5647 = vpop.permute.xlu0 %5646
        %5648 = vrot.lane.b32.xlu0 %v5617, 40
        %v5649 = vpop.permute.xlu0 %5648
        %v5650 = vunpack.c.l.b16 %v4062
        %v5651 = vunpack.c.l.b16 %v4072
        %v5652 = vunpack.c.l.b16 %v4085
        %v5653 = vunpack.c.l.b16 %v4095
        %v5654 = vunpack.c.l.b16 %v4108
        %v5655 = vunpack.c.l.b16 %v4118
        %v5656 = vunpack.c.l.b16 %v4131
        %v5657 = vunpack.c.l.b16 %v4141
        %v5658 = vunpack.c.l.b16 %v4154
        %v5659 = vunpack.c.l.b16 %v4164
        %v5660 = vunpack.c.l.b16 %v4177
        %v5661 = vunpack.c.l.b16 %v4187
        %v5662 = vunpack.c.l.b16 %v4200
        %v5663 = vunpack.c.l.b16 %v4210
        %v5664 = vunpack.c.l.b16 %v4223
        %v5665 = vunpack.c.l.b16 %v4233
        %v5666 = vunpack.c.l.b16 %v4246
        %v5667 = vunpack.c.l.b16 %v4256
        %v5668 = vunpack.c.l.b16 %v4269
        %v5669 = vunpack.c.l.b16 %v4279
        %v5670 = vunpack.c.l.b16 %v4292
        %v5671 = vunpack.c.l.b16 %v4302
        %v5672 = vunpack.c.l.b16 %v4315
        %v5673 = vunpack.c.l.b16 %v4325
        %v5674 = vunpack.c.l.b16 %v4338
        %v5675 = vunpack.c.l.b16 %v4348
        %v5676 = vunpack.c.l.b16 %v4361
        %v5677 = vunpack.c.l.b16 %v4371
        %v5678 = vunpack.c.l.b16 %v4384
        %v5679 = vunpack.c.l.b16 %v4394
        %v5680 = vunpack.c.l.b16 %v4407
        %v5681 = vunpack.c.l.b16 %v4417
        %v5682 = vpack.c.b16 %v5651, %v5650
        %v5683 = vpack.c.b16 %v5653, %v5652
        %v5684 = vpack.c.b16 %v5655, %v5654
        %v5685 = vpack.c.b16 %v5657, %v5656
        %v5686 = vpack.c.b16 %v5659, %v5658
        %v5687 = vpack.c.b16 %v5661, %v5660
        %v5688 = vpack.c.b16 %v5663, %v5662
        %v5689 = vpack.c.b16 %v5665, %v5664
        %v5690 = vpack.c.b16 %v5667, %v5666
        %v5691 = vpack.c.b16 %v5669, %v5668
        %v5692 = vpack.c.b16 %v5671, %v5670
        %v5693 = vpack.c.b16 %v5673, %v5672
        %v5694 = vpack.c.b16 %v5675, %v5674
        %v5695 = vpack.c.b16 %v5677, %v5676
        %v5696 = vpack.c.b16 %v5679, %v5678
        %v5697 = vpack.c.b16 %v5681, %v5680
        %5698 = vrot.lane.b32.xlu0 %v5682, 52
        %v5699 = vpop.permute.xlu0 %5698
        %5700 = vrot.lane.b32.xlu0 %v5683, 52
        %v5701 = vpop.permute.xlu0 %5700
        %5702 = vrot.lane.b32.xlu0 %v5684, 52
        %v5703 = vpop.permute.xlu0 %5702
        %5704 = vrot.lane.b32.xlu0 %v5685, 52
        %v5705 = vpop.permute.xlu0 %5704
        %5706 = vrot.lane.b32.xlu0 %v5686, 52
        %v5707 = vpop.permute.xlu0 %5706
        %5708 = vrot.lane.b32.xlu0 %v5687, 52
        %v5709 = vpop.permute.xlu0 %5708
        %5710 = vrot.lane.b32.xlu0 %v5688, 52
        %v5711 = vpop.permute.xlu0 %5710
        %5712 = vrot.lane.b32.xlu0 %v5689, 52
        %v5713 = vpop.permute.xlu0 %5712
        %5714 = vrot.lane.b32.xlu0 %v5690, 52
        %v5715 = vpop.permute.xlu0 %5714
        %5716 = vrot.lane.b32.xlu0 %v5691, 52
        %v5717 = vpop.permute.xlu0 %5716
        %5718 = vrot.lane.b32.xlu0 %v5692, 52
        %v5719 = vpop.permute.xlu0 %5718
        %5720 = vrot.lane.b32.xlu0 %v5693, 52
        %v5721 = vpop.permute.xlu0 %5720
        %5722 = vrot.lane.b32.xlu0 %v5694, 52
        %v5723 = vpop.permute.xlu0 %5722
        %5724 = vrot.lane.b32.xlu0 %v5695, 52
        %v5725 = vpop.permute.xlu0 %5724
        %5726 = vrot.lane.b32.xlu0 %v5696, 52
        %v5727 = vpop.permute.xlu0 %5726
        %5728 = vrot.lane.b32.xlu0 %v5697, 52
        %v5729 = vpop.permute.xlu0 %5728
        %vm5730 = vcmask 97280
        %v5733 = vsel %vm5730, %v4466, %v4531
        %v5736 = vsel %vm5730, %v4467, %v4533
        %v5739 = vsel %vm5730, %v4468, %v4535
        %v5742 = vsel %vm5730, %v4469, %v4537
        %v5745 = vsel %vm5730, %v4470, %v4539
        %v5748 = vsel %vm5730, %v4471, %v4541
        %v5751 = vsel %vm5730, %v4472, %v4543
        %v5754 = vsel %vm5730, %v4473, %v4545
        %v5757 = vsel %vm5730, %v4474, %v4547
        %v5760 = vsel %vm5730, %v4475, %v4549
        %v5763 = vsel %vm5730, %v4476, %v4551
        %v5766 = vsel %vm5730, %v4477, %v4553
        %v5769 = vsel %vm5730, %v4478, %v4555
        %v5772 = vsel %vm5730, %v4479, %v4557
        %v5775 = vsel %vm5730, %v4480, %v4559
        %v5778 = vsel %vm5730, %v4481, %v4561
        %vm5779 = vcmask 195584
        %v5781 = vsel %vm5779, %v5733, %v4611
        %v5783 = vsel %vm5779, %v5736, %v4613
        %v5785 = vsel %vm5779, %v5739, %v4615
        %v5787 = vsel %vm5779, %v5742, %v4617
        %v5789 = vsel %vm5779, %v5745, %v4619
        %v5791 = vsel %vm5779, %v5748, %v4621
        %v5793 = vsel %vm5779, %v5751, %v4623
        %v5795 = vsel %vm5779, %v5754, %v4625
        %v5797 = vsel %vm5779, %v5757, %v4627
        %v5799 = vsel %vm5779, %v5760, %v4629
        %v5801 = vsel %vm5779, %v5763, %v4631
        %v5803 = vsel %vm5779, %v5766, %v4633
        %v5805 = vsel %vm5779, %v5769, %v4635
        %v5807 = vsel %vm5779, %v5772, %v4637
        %v5809 = vsel %vm5779, %v5775, %v4639
        %v5811 = vsel %vm5779, %v5778, %v4641
        %vm5812 = vcmask 293888
        %v5814 = vsel %vm5812, %v5781, %v4691
        %v5816 = vsel %vm5812, %v5783, %v4693
        %v5818 = vsel %vm5812, %v5785, %v4695
        %v5820 = vsel %vm5812, %v5787, %v4697
        %v5822 = vsel %vm5812, %v5789, %v4699
        %v5824 = vsel %vm5812, %v5791, %v4701
        %v5826 = vsel %vm5812, %v5793, %v4703
        %v5828 = vsel %vm5812, %v5795, %v4705
        %v5830 = vsel %vm5812, %v5797, %v4707
        %v5832 = vsel %vm5812, %v5799, %v4709
        %v5834 = vsel %vm5812, %v5801, %v4711
        %v5836 = vsel %vm5812, %v5803, %v4713
        %v5838 = vsel %vm5812, %v5805, %v4715
        %v5840 = vsel %vm5812, %v5807, %v4717
        %v5842 = vsel %vm5812, %v5809, %v4719
        %v5844 = vsel %vm5812, %v5811, %v4721
        %vm5845 = vcmask 392192
        %v5847 = vsel %vm5845, %v5814, %v4787
        %v5849 = vsel %vm5845, %v5816, %v4789
        %v5851 = vsel %vm5845, %v5818, %v4791
        %v5853 = vsel %vm5845, %v5820, %v4793
        %v5855 = vsel %vm5845, %v5822, %v4795
        %v5857 = vsel %vm5845, %v5824, %v4797
        %v5859 = vsel %vm5845, %v5826, %v4799
        %v5861 = vsel %vm5845, %v5828, %v4801
        %v5863 = vsel %vm5845, %v5830, %v4803
        %v5865 = vsel %vm5845, %v5832, %v4805
        %v5867 = vsel %vm5845, %v5834, %v4807
        %v5869 = vsel %vm5845, %v5836, %v4809
        %v5871 = vsel %vm5845, %v5838, %v4811
        %v5873 = vsel %vm5845, %v5840, %v4813
        %v5875 = vsel %vm5845, %v5842, %v4815
        %v5877 = vsel %vm5845, %v5844, %v4817
        %vm5878 = vcmask 490496
        %v5880 = vsel %vm5878, %v5847, %v4867
        %v5882 = vsel %vm5878, %v5849, %v4869
        %v5884 = vsel %vm5878, %v5851, %v4871
        %v5886 = vsel %vm5878, %v5853, %v4873
        %v5888 = vsel %vm5878, %v5855, %v4875
        %v5890 = vsel %vm5878, %v5857, %v4877
        %v5892 = vsel %vm5878, %v5859, %v4879
        %v5894 = vsel %vm5878, %v5861, %v4881
        %v5896 = vsel %vm5878, %v5863, %v4883
        %v5898 = vsel %vm5878, %v5865, %v4885
        %v5900 = vsel %vm5878, %v5867, %v4887
        %v5902 = vsel %vm5878, %v5869, %v4889
        %v5904 = vsel %vm5878, %v5871, %v4891
        %v5906 = vsel %vm5878, %v5873, %v4893
        %v5908 = vsel %vm5878, %v5875, %v4895
        %v5910 = vsel %vm5878, %v5877, %v4897
        %vm5911 = vcmask 588800
        %v5913 = vsel %vm5911, %v5880, %v4947
        %v5915 = vsel %vm5911, %v5882, %v4949
        %v5917 = vsel %vm5911, %v5884, %v4951
        %v5919 = vsel %vm5911, %v5886, %v4953
        %v5921 = vsel %vm5911, %v5888, %v4955
        %v5923 = vsel %vm5911, %v5890, %v4957
        %v5925 = vsel %vm5911, %v5892, %v4959
        %v5927 = vsel %vm5911, %v5894, %v4961
        %v5929 = vsel %vm5911, %v5896, %v4963
        %v5931 = vsel %vm5911, %v5898, %v4965
        %v5933 = vsel %vm5911, %v5900, %v4967
        %v5935 = vsel %vm5911, %v5902, %v4969
        %v5937 = vsel %vm5911, %v5904, %v4971
        %v5939 = vsel %vm5911, %v5906, %v4973
        %v5941 = vsel %vm5911, %v5908, %v4975
        %v5943 = vsel %vm5911, %v5910, %v4977
        %vm5944 = vcmask 687104
        %v5946 = vsel %vm5944, %v5913, %v5027
        %v5948 = vsel %vm5944, %v5915, %v5029
        %v5950 = vsel %vm5944, %v5917, %v5031
        %v5952 = vsel %vm5944, %v5919, %v5033
        %v5954 = vsel %vm5944, %v5921, %v5035
        %v5956 = vsel %vm5944, %v5923, %v5037
        %v5958 = vsel %vm5944, %v5925, %v5039
        %v5960 = vsel %vm5944, %v5927, %v5041
        %v5962 = vsel %vm5944, %v5929, %v5043
        %v5964 = vsel %vm5944, %v5931, %v5045
        %v5966 = vsel %vm5944, %v5933, %v5047
        %v5968 = vsel %vm5944, %v5935, %v5049
        %v5970 = vsel %vm5944, %v5937, %v5051
        %v5972 = vsel %vm5944, %v5939, %v5053
        %v5974 = vsel %vm5944, %v5941, %v5055
        %v5976 = vsel %vm5944, %v5943, %v5057
        %vm5977 = vcmask 785408
        %v5979 = vsel %vm5977, %v5946, %v5123
        %v5981 = vsel %vm5977, %v5948, %v5125
        %v5983 = vsel %vm5977, %v5950, %v5127
        %v5985 = vsel %vm5977, %v5952, %v5129
        %v5987 = vsel %vm5977, %v5954, %v5131
        %v5989 = vsel %vm5977, %v5956, %v5133
        %v5991 = vsel %vm5977, %v5958, %v5135
        %v5993 = vsel %vm5977, %v5960, %v5137
        %v5995 = vsel %vm5977, %v5962, %v5139
        %v5997 = vsel %vm5977, %v5964, %v5141
        %v5999 = vsel %vm5977, %v5966, %v5143
        %v6001 = vsel %vm5977, %v5968, %v5145
        %v6003 = vsel %vm5977, %v5970, %v5147
        %v6005 = vsel %vm5977, %v5972, %v5149
        %v6007 = vsel %vm5977, %v5974, %v5151
        %v6009 = vsel %vm5977, %v5976, %v5153
        %vm6010 = vcmask 883712
        %v6012 = vsel %vm6010, %v5979, %v5203
        %v6014 = vsel %vm6010, %v5981, %v5205
        %v6016 = vsel %vm6010, %v5983, %v5207
        %v6018 = vsel %vm6010, %v5985, %v5209
        %v6020 = vsel %vm6010, %v5987, %v5211
        %v6022 = vsel %vm6010, %v5989, %v5213
        %v6024 = vsel %vm6010, %v5991, %v5215
        %v6026 = vsel %vm6010, %v5993, %v5217
        %v6028 = vsel %vm6010, %v5995, %v5219
        %v6030 = vsel %vm6010, %v5997, %v5221
        %v6032 = vsel %vm6010, %v5999, %v5223
        %v6034 = vsel %vm6010, %v6001, %v5225
        %v6036 = vsel %vm6010, %v6003, %v5227
        %v6038 = vsel %vm6010, %v6005, %v5229
        %v6040 = vsel %vm6010, %v6007, %v5231
        %v6042 = vsel %vm6010, %v6009, %v5233
        %vm6043 = vcmask 982016
        %v6045 = vsel %vm6043, %v6012, %v5283
        %v6048 = vsel %vm6043, %v6014, %v5285
        %v6051 = vsel %vm6043, %v6016, %v5287
        %v6054 = vsel %vm6043, %v6018, %v5289
        %v6057 = vsel %vm6043, %v6020, %v5291
        %v6060 = vsel %vm6043, %v6022, %v5293
        %v6063 = vsel %vm6043, %v6024, %v5295
        %v6066 = vsel %vm6043, %v6026, %v5297
        %v6069 = vsel %vm6043, %v6028, %v5299
        %v6072 = vsel %vm6043, %v6030, %v5301
        %v6075 = vsel %vm6043, %v6032, %v5303
        %v6078 = vsel %vm6043, %v6034, %v5305
        %v6081 = vsel %vm6043, %v6036, %v5307
        %v6084 = vsel %vm6043, %v6038, %v5309
        %v6087 = vsel %vm6043, %v6040, %v5311
        %v6090 = vsel %vm6043, %v6042, %v5313
        %vm6092 = vcmask 31744
        %v6094 = vsel %vm6092, %v5283, %v5363
        %v6096 = vsel %vm6092, %v5285, %v5365
        %v6098 = vsel %vm6092, %v5287, %v5367
        %v6100 = vsel %vm6092, %v5289, %v5369
        %v6102 = vsel %vm6092, %v5291, %v5371
        %v6104 = vsel %vm6092, %v5293, %v5373
        %v6106 = vsel %vm6092, %v5295, %v5375
        %v6108 = vsel %vm6092, %v5297, %v5377
        %v6110 = vsel %vm6092, %v5299, %v5379
        %v6112 = vsel %vm6092, %v5301, %v5381
        %v6114 = vsel %vm6092, %v5303, %v5383
        %v6116 = vsel %vm6092, %v5305, %v5385
        %v6118 = vsel %vm6092, %v5307, %v5387
        %v6120 = vsel %vm6092, %v5309, %v5389
        %v6122 = vsel %vm6092, %v5311, %v5391
        %v6124 = vsel %vm6092, %v5313, %v5393
        %vm6125 = vcmask 130048
        %v6127 = vsel %vm6125, %v6094, %v5459
        %v6129 = vsel %vm6125, %v6096, %v5461
        %v6131 = vsel %vm6125, %v6098, %v5463
        %v6133 = vsel %vm6125, %v6100, %v5465
        %v6135 = vsel %vm6125, %v6102, %v5467
        %v6137 = vsel %vm6125, %v6104, %v5469
        %v6139 = vsel %vm6125, %v6106, %v5471
        %v6141 = vsel %vm6125, %v6108, %v5473
        %v6143 = vsel %vm6125, %v6110, %v5475
        %v6145 = vsel %vm6125, %v6112, %v5477
        %v6147 = vsel %vm6125, %v6114, %v5479
        %v6149 = vsel %vm6125, %v6116, %v5481
        %v6151 = vsel %vm6125, %v6118, %v5483
        %v6153 = vsel %vm6125, %v6120, %v5485
        %v6155 = vsel %vm6125, %v6122, %v5487
        %v6157 = vsel %vm6125, %v6124, %v5489
        %vm6158 = vcmask 228352
        %v6160 = vsel %vm6158, %v6127, %v5539
        %v6162 = vsel %vm6158, %v6129, %v5541
        %v6164 = vsel %vm6158, %v6131, %v5543
        %v6166 = vsel %vm6158, %v6133, %v5545
        %v6168 = vsel %vm6158, %v6135, %v5547
        %v6170 = vsel %vm6158, %v6137, %v5549
        %v6172 = vsel %vm6158, %v6139, %v5551
        %v6174 = vsel %vm6158, %v6141, %v5553
        %v6176 = vsel %vm6158, %v6143, %v5555
        %v6178 = vsel %vm6158, %v6145, %v5557
        %v6180 = vsel %vm6158, %v6147, %v5559
        %v6182 = vsel %vm6158, %v6149, %v5561
        %v6184 = vsel %vm6158, %v6151, %v5563
        %v6186 = vsel %vm6158, %v6153, %v5565
        %v6188 = vsel %vm6158, %v6155, %v5567
        %v6190 = vsel %vm6158, %v6157, %v5569
        %vm6191 = vcmask 326656
        %v6193 = vsel %vm6191, %v6160, %v5619
        %v6195 = vsel %vm6191, %v6162, %v5621
        %v6197 = vsel %vm6191, %v6164, %v5623
        %v6199 = vsel %vm6191, %v6166, %v5625
        %v6201 = vsel %vm6191, %v6168, %v5627
        %v6203 = vsel %vm6191, %v6170, %v5629
        %v6205 = vsel %vm6191, %v6172, %v5631
        %v6207 = vsel %vm6191, %v6174, %v5633
        %v6209 = vsel %vm6191, %v6176, %v5635
        %v6211 = vsel %vm6191, %v6178, %v5637
        %v6213 = vsel %vm6191, %v6180, %v5639
        %v6215 = vsel %vm6191, %v6182, %v5641
        %v6217 = vsel %vm6191, %v6184, %v5643
        %v6219 = vsel %vm6191, %v6186, %v5645
        %v6221 = vsel %vm6191, %v6188, %v5647
        %v6223 = vsel %vm6191, %v6190, %v5649
        %vm6224 = vcmask 424960
        %v6226 = vsel %vm6224, %v6193, %v5699
        %v6228 = vsel %vm6224, %v6195, %v5701
        %v6230 = vsel %vm6224, %v6197, %v5703
        %v6232 = vsel %vm6224, %v6199, %v5705
        %v6234 = vsel %vm6224, %v6201, %v5707
        %v6236 = vsel %vm6224, %v6203, %v5709
        %v6238 = vsel %vm6224, %v6205, %v5711
        %v6240 = vsel %vm6224, %v6207, %v5713
        %v6242 = vsel %vm6224, %v6209, %v5715
        %v6244 = vsel %vm6224, %v6211, %v5717
        %v6246 = vsel %vm6224, %v6213, %v5719
        %v6248 = vsel %vm6224, %v6215, %v5721
        %v6250 = vsel %vm6224, %v6217, %v5723
        %v6252 = vsel %vm6224, %v6219, %v5725
        %v6254 = vsel %vm6224, %v6221, %v5727
        %v6256 = vsel %vm6224, %v6223, %v5729
        %v6257 = vld [vmem:[%s1] sm:$0xf]
        %v6258 = vld [vmem:[%s1 + $0x4] sm:$0xf]
        %v6259 = vld [vmem:[%s1 + $0x8] sm:$0xf]
        %v6260 = vld [vmem:[%s1 + $0xc] sm:$0xf]
        %v6261 = vld [vmem:[%s1 + $0x10] sm:$0xf]
        %v6262 = vld [vmem:[%s1 + $0x14] sm:$0xf]
        %v6263 = vld [vmem:[%s1 + $0x18] sm:$0xf]
        %v6264 = vld [vmem:[%s1 + $0x1c] sm:$0xf]
        %v6265 = vld [vmem:[%s1 + $0x20] sm:$0xf]
        %v6266 = vld [vmem:[%s1 + $0x24] sm:$0xf]
        %v6267 = vld [vmem:[%s1 + $0x28] sm:$0xf]
        %v6268 = vld [vmem:[%s1 + $0x2c] sm:$0xf]
        %v6269 = vld [vmem:[%s1 + $0x30] sm:$0xf]
        %v6270 = vld [vmem:[%s1 + $0x34] sm:$0xf]
        %v6271 = vld [vmem:[%s1 + $0x38] sm:$0xf]
        %v6272 = vld [vmem:[%s1 + $0x3c] sm:$0xf]
        %v6273 = vld [vmem:[%s1 + $0x40] sm:$0xf]
        %v6274 = vld [vmem:[%s1 + $0x44] sm:$0xf]
        %v6275 = vld [vmem:[%s1 + $0x48] sm:$0xf]
        %v6276 = vld [vmem:[%s1 + $0x4c] sm:$0xf]
        %v6277 = vld [vmem:[%s1 + $0x50] sm:$0xf]
        %v6278 = vld [vmem:[%s1 + $0x54] sm:$0xf]
        %v6279 = vld [vmem:[%s1 + $0x58] sm:$0xf]
        %v6280 = vld [vmem:[%s1 + $0x5c] sm:$0xf]
        %v6305 = vunpack.c.l.b16 %v6257
        %v6306 = vunpack.c.l.b16 %v6258
        %v6307 = vunpack.c.l.b16 %v6259
        %v6308 = vunpack.c.l.b16 %v6260
        %v6309 = vunpack.c.l.b16 %v6261
        %v6310 = vunpack.c.l.b16 %v6262
        %v6311 = vunpack.c.l.b16 %v6263
        %v6312 = vunpack.c.l.b16 %v6264
        %v6313 = vunpack.c.l.b16 %v6265
        %v6314 = vunpack.c.l.b16 %v6266
        %v6315 = vunpack.c.l.b16 %v6267
        %v6316 = vunpack.c.l.b16 %v6268
        %v6317 = vunpack.c.l.b16 %v6269
        %v6318 = vunpack.c.l.b16 %v6270
        %v6319 = vunpack.c.l.b16 %v6271
        %v6320 = vunpack.c.l.b16 %v6272
        %v6321 = vunpack.c.l.b16 %v6273
        %v6322 = vunpack.c.l.b16 %v6274
        %v6323 = vunpack.c.l.b16 %v6275
        %v6324 = vunpack.c.l.b16 %v6276
        %v6325 = vunpack.c.l.b16 %v6277
        %v6326 = vunpack.c.l.b16 %v6278
        %v6327 = vunpack.c.l.b16 %v6279
        %v6328 = vunpack.c.l.b16 %v6280
        %v6329 = vpack.c.b16 %v6306, %v6305
        %v6330 = vpack.c.b16 %v6308, %v6307
        %v6331 = vpack.c.b16 %v6310, %v6309
        %v6332 = vpack.c.b16 %v6312, %v6311
        %v6333 = vpack.c.b16 %v6314, %v6313
        %v6334 = vpack.c.b16 %v6316, %v6315
        %v6335 = vpack.c.b16 %v6318, %v6317
        %v6336 = vpack.c.b16 %v6320, %v6319
        %v6337 = vpack.c.b16 %v6322, %v6321
        %v6338 = vpack.c.b16 %v6324, %v6323
        %v6339 = vpack.c.b16 %v6326, %v6325
        %v6340 = vpack.c.b16 %v6328, %v6327
        %vm6353 = vcmask 523264
        %v6354 = vsel %vm6353, %v6226, 0
        %v6356 = vsel %vm6353, %v6228, 0
        %v6358 = vsel %vm6353, %v6230, 0
        %v6360 = vsel %vm6353, %v6232, 0
        %v6362 = vsel %vm6353, %v6234, 0
        %v6364 = vsel %vm6353, %v6236, 0
        %v6366 = vsel %vm6353, %v6238, 0
        %v6368 = vsel %vm6353, %v6240, 0
        %v6370 = vsel %vm6353, %v6242, 0
        %v6372 = vsel %vm6353, %v6244, 0
        %v6374 = vsel %vm6353, %v6246, 0
        %v6376 = vsel %vm6353, %v6248, 0
        %v6378 = vsel %vm6353, %v6250, 0
        %v6380 = vsel %vm6353, %v6252, 0
        %v6382 = vsel %vm6353, %v6254, 0
        %v6384 = vsel %vm6353, %v6256, 0
        %6386 = vmatprep.subr.bf16.mxu0 0
        %6387 = vmatpush1.bf16.msra.mxu0 %v6336
        %6388 = vmatprep.subr.bf16.mxu0 0
        %6389 = vmatpush1.bf16.msra.mxu0 %v6335
        %6390 = vmatprep.subr.bf16.mxu0 0
        %6391 = vmatpush1.bf16.msra.mxu0 %v6334
        %6392 = vmatprep.subr.bf16.mxu0 0
        %6393 = vmatpush1.bf16.msra.mxu0 %v6333
        %6394 = vmatprep.subr.bf16.mxu0 0
        %6395 = vmatpush1.bf16.msra.mxu0 %v6332
        %6396 = vmatprep.subr.bf16.mxu0 0
        %6397 = vmatpush1.bf16.msra.mxu0 %v6331
        %6398 = vmatprep.subr.bf16.mxu0 0
        %6399 = vmatpush1.bf16.msra.mxu0 %v6330
        %6400 = vmatprep.subr.bf16.mxu0 0
        %6401 = vmatpush1.bf16.msra.mxu0 %v6329
        %6402 = vmatprep.subr.bf16.mxu0 0
        %6403 = vmatpush2.bf16.msra.mxu0 0
        %6404 = vmatprep.subr.bf16.mxu0 0
        %6405 = vmatpush2.bf16.msra.mxu0 0
        %6406 = vmatprep.subr.bf16.mxu0 0
        %6407 = vmatpush2.bf16.msra.mxu0 0
        %6408 = vmatprep.subr.bf16.mxu0 0
        %6409 = vmatpush2.bf16.msra.mxu0 0
        %6410 = vmatprep.subr.bf16.mxu0 0
        %6411 = vmatpush2.bf16.msra.mxu0 %v6340
        %6412 = vmatprep.subr.bf16.mxu0 0
        %6413 = vmatpush2.bf16.msra.mxu0 %v6339
        %6414 = vmatprep.subr.bf16.mxu0 0
        %6415 = vmatpush2.bf16.msra.mxu0 %v6338
        %6416 = vmatprep.subr.bf16.mxu0 0
        %6417 = vmatpush2.bf16.msra.mxu0 %v6337
        %6418 = vmatprep.mubr.bf16.mxu0 %v6354
        %6419 = vmatmul.mubr.bf16.gmra.mxu0 %v6045
        %v6420 = vpop.f32.mrf.mxu0
        %v6421 = vadd.f32 0.0, %v6420
        %v6422 = vpop.f32.mrf.mxu0
        %v6423 = vpop.f32.mrf.mxu0
        %v6424 = vadd.f32 0.0, %v6423
        %v6425 = vpop.f32.mrf.mxu0
        %6426 = vmatprep.mubr.bf16.mxu0 %v6356
        %6427 = vmatmul.mubr.bf16.gmra.mxu0 %v6048
        %v6428 = vpop.f32.mrf.mxu0
        %v6429 = vadd.f32 0.0, %v6428
        %v6430 = vpop.f32.mrf.mxu0
        %v6431 = vpop.f32.mrf.mxu0
        %v6432 = vadd.f32 0.0, %v6431
        %v6433 = vpop.f32.mrf.mxu0
        %6434 = vmatprep.mubr.bf16.mxu0 %v6358
        %6435 = vmatmul.mubr.bf16.gmra.mxu0 %v6051
        %v6436 = vpop.f32.mrf.mxu0
        %v6437 = vadd.f32 0.0, %v6436
        %v6438 = vpop.f32.mrf.mxu0
        %v6439 = vpop.f32.mrf.mxu0
        %v6440 = vadd.f32 0.0, %v6439
        %v6441 = vpop.f32.mrf.mxu0
        %6442 = vmatprep.mubr.bf16.mxu0 %v6360
        %6443 = vmatmul.mubr.bf16.gmra.mxu0 %v6054
        %v6444 = vpop.f32.mrf.mxu0
        %v6445 = vadd.f32 0.0, %v6444
        %v6446 = vpop.f32.mrf.mxu0
        %v6447 = vpop.f32.mrf.mxu0
        %v6448 = vadd.f32 0.0, %v6447
        %v6449 = vpop.f32.mrf.mxu0
        %6450 = vmatprep.mubr.bf16.mxu0 %v6362
        %6451 = vmatmul.mubr.bf16.gmra.mxu0 %v6057
        %v6452 = vpop.f32.mrf.mxu0
        %v6453 = vadd.f32 0.0, %v6452
        %v6454 = vpop.f32.mrf.mxu0
        %v6455 = vpop.f32.mrf.mxu0
        %v6456 = vadd.f32 0.0, %v6455
        %v6457 = vpop.f32.mrf.mxu0
        %6458 = vmatprep.mubr.bf16.mxu0 %v6364
        %6459 = vmatmul.mubr.bf16.gmra.mxu0 %v6060
        %v6460 = vpop.f32.mrf.mxu0
        %v6461 = vadd.f32 0.0, %v6460
        %v6462 = vpop.f32.mrf.mxu0
        %v6463 = vpop.f32.mrf.mxu0
        %v6464 = vadd.f32 0.0, %v6463
        %v6465 = vpop.f32.mrf.mxu0
        %6466 = vmatprep.mubr.bf16.mxu0 %v6366
        %6467 = vmatmul.mubr.bf16.gmra.mxu0 %v6063
        %v6468 = vpop.f32.mrf.mxu0
        %v6469 = vadd.f32 0.0, %v6468
        %v6470 = vpop.f32.mrf.mxu0
        %v6471 = vpop.f32.mrf.mxu0
        %v6472 = vadd.f32 0.0, %v6471
        %v6473 = vpop.f32.mrf.mxu0
        %6474 = vmatprep.mubr.bf16.mxu0 %v6368
        %6475 = vmatmul.mubr.bf16.gmra.mxu0 %v6066
        %v6476 = vpop.f32.mrf.mxu0
        %v6477 = vadd.f32 0.0, %v6476
        %v6478 = vpop.f32.mrf.mxu0
        %v6479 = vpop.f32.mrf.mxu0
        %v6480 = vadd.f32 0.0, %v6479
        %v6481 = vpop.f32.mrf.mxu0
        %6482 = vmatprep.mubr.bf16.mxu0 %v6370
        %6483 = vmatmul.mubr.bf16.gmra.mxu0 %v6069
        %v6484 = vpop.f32.mrf.mxu0
        %v6485 = vadd.f32 0.0, %v6484
        %v6486 = vpop.f32.mrf.mxu0
        %v6487 = vpop.f32.mrf.mxu0
        %v6488 = vadd.f32 0.0, %v6487
        %v6489 = vpop.f32.mrf.mxu0
        %6490 = vmatprep.mubr.bf16.mxu0 %v6372
        %6491 = vmatmul.mubr.bf16.gmra.mxu0 %v6072
        %v6492 = vpop.f32.mrf.mxu0
        %v6493 = vadd.f32 0.0, %v6492
        %v6494 = vpop.f32.mrf.mxu0
        %v6495 = vpop.f32.mrf.mxu0
        %v6496 = vadd.f32 0.0, %v6495
        %v6497 = vpop.f32.mrf.mxu0
        %6498 = vmatprep.mubr.bf16.mxu0 %v6374
        %6499 = vmatmul.mubr.bf16.gmra.mxu0 %v6075
        %v6500 = vpop.f32.mrf.mxu0
        %v6501 = vadd.f32 0.0, %v6500
        %v6502 = vpop.f32.mrf.mxu0
        %v6503 = vpop.f32.mrf.mxu0
        %v6504 = vadd.f32 0.0, %v6503
        %v6505 = vpop.f32.mrf.mxu0
        %6506 = vmatprep.mubr.bf16.mxu0 %v6376
        %6507 = vmatmul.mubr.bf16.gmra.mxu0 %v6078
        %v6508 = vpop.f32.mrf.mxu0
        %v6509 = vadd.f32 0.0, %v6508
        %v6510 = vpop.f32.mrf.mxu0
        %v6511 = vpop.f32.mrf.mxu0
        %v6512 = vadd.f32 0.0, %v6511
        %v6513 = vpop.f32.mrf.mxu0
        %6514 = vmatprep.mubr.bf16.mxu0 %v6378
        %6515 = vmatmul.mubr.bf16.gmra.mxu0 %v6081
        %v6516 = vpop.f32.mrf.mxu0
        %v6517 = vadd.f32 0.0, %v6516
        %v6518 = vpop.f32.mrf.mxu0
        %v6519 = vpop.f32.mrf.mxu0
        %v6520 = vadd.f32 0.0, %v6519
        %v6521 = vpop.f32.mrf.mxu0
        %6522 = vmatprep.mubr.bf16.mxu0 %v6380
        %6523 = vmatmul.mubr.bf16.gmra.mxu0 %v6084
        %v6524 = vpop.f32.mrf.mxu0
        %v6525 = vadd.f32 0.0, %v6524
        %v6526 = vpop.f32.mrf.mxu0
        %v6527 = vpop.f32.mrf.mxu0
        %v6528 = vadd.f32 0.0, %v6527
        %v6529 = vpop.f32.mrf.mxu0
        %6530 = vmatprep.mubr.bf16.mxu0 %v6382
        %6531 = vmatmul.mubr.bf16.gmra.mxu0 %v6087
        %v6532 = vpop.f32.mrf.mxu0
        %v6533 = vadd.f32 0.0, %v6532
        %v6534 = vpop.f32.mrf.mxu0
        %v6535 = vpop.f32.mrf.mxu0
        %v6536 = vadd.f32 0.0, %v6535
        %v6537 = vpop.f32.mrf.mxu0
        %6538 = vmatprep.mubr.bf16.mxu0 %v6384
        %6539 = vmatmul.mubr.bf16.gmra.mxu0 %v6090
        %v6540 = vpop.f32.mrf.mxu0
        %v6541 = vadd.f32 0.0, %v6540
        %v6542 = vpop.f32.mrf.mxu0
        %v6543 = vpop.f32.mrf.mxu0
        %v6544 = vadd.f32 0.0, %v6543
        %v6545 = vpop.f32.mrf.mxu0
        %6546 = vdwg.mxu0
        %v6547 = vld [vmem:[%s2] sm:$0x1]
        %v6549 = vlaneseq
        %v6550 = vshrl.u32 %v6549, 7
        %v6551 = vsub.s32 0, %v6550
        %v6552 = vrot.slane %v6547, %v6551
        %v6554 = vmul.f32 %v6421, %v6552
        %v6555 = vmul.f32 %v6424, %v6552
        %v6556 = vmul.f32 %v6429, %v6552
        %v6557 = vmul.f32 %v6432, %v6552
        %v6558 = vmul.f32 %v6437, %v6552
        %v6559 = vmul.f32 %v6440, %v6552
        %v6560 = vmul.f32 %v6445, %v6552
        %v6561 = vmul.f32 %v6448, %v6552
        %v6562 = vmul.f32 %v6453, %v6552
        %v6563 = vmul.f32 %v6456, %v6552
        %v6564 = vmul.f32 %v6461, %v6552
        %v6565 = vmul.f32 %v6464, %v6552
        %v6566 = vmul.f32 %v6469, %v6552
        %v6567 = vmul.f32 %v6472, %v6552
        %v6568 = vmul.f32 %v6477, %v6552
        %v6569 = vmul.f32 %v6480, %v6552
        %v6570 = vmul.f32 %v6485, %v6552
        %v6571 = vmul.f32 %v6488, %v6552
        %v6572 = vmul.f32 %v6493, %v6552
        %v6573 = vmul.f32 %v6496, %v6552
        %v6574 = vmul.f32 %v6501, %v6552
        %v6575 = vmul.f32 %v6504, %v6552
        %v6576 = vmul.f32 %v6509, %v6552
        %v6577 = vmul.f32 %v6512, %v6552
        %v6578 = vmul.f32 %v6517, %v6552
        %v6579 = vmul.f32 %v6520, %v6552
        %v6580 = vmul.f32 %v6525, %v6552
        %v6581 = vmul.f32 %v6528, %v6552
        %v6582 = vmul.f32 %v6533, %v6552
        %v6583 = vmul.f32 %v6536, %v6552
        %v6584 = vmul.f32 %v6541, %v6552
        %v6585 = vmul.f32 %v6544, %v6552
        %v6586 = vld [vmem:[%s3] sm:$0x1]
        %v6588 = vlaneseq
        %v6589 = vshrl.u32 %v6588, 7
        %v6590 = vsub.s32 0, %v6589
        %v6591 = vrot.slane %v6586, %v6590
        %v6593 = vadd.f32 %v6554, %v6591
        %v6594 = vadd.f32 %v6555, %v6591
        %v6595 = vadd.f32 %v6556, %v6591
        %v6596 = vadd.f32 %v6557, %v6591
        %v6597 = vadd.f32 %v6558, %v6591
        %v6598 = vadd.f32 %v6559, %v6591
        %v6599 = vadd.f32 %v6560, %v6591
        %v6600 = vadd.f32 %v6561, %v6591
        %v6601 = vadd.f32 %v6562, %v6591
        %v6602 = vadd.f32 %v6563, %v6591
        %v6603 = vadd.f32 %v6564, %v6591
        %v6604 = vadd.f32 %v6565, %v6591
        %v6605 = vadd.f32 %v6566, %v6591
        %v6606 = vadd.f32 %v6567, %v6591
        %v6607 = vadd.f32 %v6568, %v6591
        %v6608 = vadd.f32 %v6569, %v6591
        %v6609 = vadd.f32 %v6570, %v6591
        %v6610 = vadd.f32 %v6571, %v6591
        %v6611 = vadd.f32 %v6572, %v6591
        %v6612 = vadd.f32 %v6573, %v6591
        %v6613 = vadd.f32 %v6574, %v6591
        %v6614 = vadd.f32 %v6575, %v6591
        %v6615 = vadd.f32 %v6576, %v6591
        %v6616 = vadd.f32 %v6577, %v6591
        %v6617 = vadd.f32 %v6578, %v6591
        %v6618 = vadd.f32 %v6579, %v6591
        %v6619 = vadd.f32 %v6580, %v6591
        %v6620 = vadd.f32 %v6581, %v6591
        %v6621 = vadd.f32 %v6582, %v6591
        %v6622 = vadd.f32 %v6583, %v6591
        %v6623 = vadd.f32 %v6584, %v6591
        %v6624 = vadd.f32 %v6585, %v6591
        %v6625 = vmax.f32 %v6593, 0.0
        %v6626 = vmax.f32 %v6594, 0.0
        %v6627 = vmax.f32 %v6595, 0.0
        %v6628 = vmax.f32 %v6596, 0.0
        %v6629 = vmax.f32 %v6597, 0.0
        %v6630 = vmax.f32 %v6598, 0.0
        %v6631 = vmax.f32 %v6599, 0.0
        %v6632 = vmax.f32 %v6600, 0.0
        %v6633 = vmax.f32 %v6601, 0.0
        %v6634 = vmax.f32 %v6602, 0.0
        %v6635 = vmax.f32 %v6603, 0.0
        %v6636 = vmax.f32 %v6604, 0.0
        %v6637 = vmax.f32 %v6605, 0.0
        %v6638 = vmax.f32 %v6606, 0.0
        %v6639 = vmax.f32 %v6607, 0.0
        %v6640 = vmax.f32 %v6608, 0.0
        %v6641 = vmax.f32 %v6609, 0.0
        %v6642 = vmax.f32 %v6610, 0.0
        %v6643 = vmax.f32 %v6611, 0.0
        %v6644 = vmax.f32 %v6612, 0.0
        %v6645 = vmax.f32 %v6613, 0.0
        %v6646 = vmax.f32 %v6614, 0.0
        %v6647 = vmax.f32 %v6615, 0.0
        %v6648 = vmax.f32 %v6616, 0.0
        %v6649 = vmax.f32 %v6617, 0.0
        %v6650 = vmax.f32 %v6618, 0.0
        %v6651 = vmax.f32 %v6619, 0.0
        %v6652 = vmax.f32 %v6620, 0.0
        %v6653 = vmax.f32 %v6621, 0.0
        %v6654 = vmax.f32 %v6622, 0.0
        %v6655 = vmax.f32 %v6623, 0.0
        %v6656 = vmax.f32 %v6624, 0.0
        %6657 = vst [vmem:[#allocation2 + $0x1] sm:$0xff] %v6625
        %6658 = vst [vmem:[#allocation2 + $0x9] sm:$0xff] %v6626
        %6659 = vst [vmem:[#allocation2 + $0x19] sm:$0xff] %v6627
        %6660 = vst [vmem:[#allocation2 + $0x21] sm:$0xff] %v6628
        %6661 = vst [vmem:[#allocation2 + $0x31] sm:$0xff] %v6629
        %6662 = vst [vmem:[#allocation2 + $0x39] sm:$0xff] %v6630
        %6663 = vst [vmem:[#allocation2 + $0x49] sm:$0xff] %v6631
        %6664 = vst [vmem:[#allocation2 + $0x51] sm:$0xff] %v6632
        %6665 = vst [vmem:[#allocation2 + $0x61] sm:$0xff] %v6633
        %6666 = vst [vmem:[#allocation2 + $0x69] sm:$0xff] %v6634
        %6667 = vst [vmem:[#allocation2 + $0x79] sm:$0xff] %v6635
        %6668 = vst [vmem:[#allocation2 + $0x81] sm:$0xff] %v6636
        %6669 = vst [vmem:[#allocation2 + $0x91] sm:$0xff] %v6637
        %6670 = vst [vmem:[#allocation2 + $0x99] sm:$0xff] %v6638
        %6671 = vst [vmem:[#allocation2 + $0xa9] sm:$0xff] %v6639
        %6672 = vst [vmem:[#allocation2 + $0xb1] sm:$0xff] %v6640
        %6673 = vst [vmem:[#allocation2 + $0xc1] sm:$0xff] %v6641
        %6674 = vst [vmem:[#allocation2 + $0xc9] sm:$0xff] %v6642
        %6675 = vst [vmem:[#allocation2 + $0xd9] sm:$0xff] %v6643
        %6676 = vst [vmem:[#allocation2 + $0xe1] sm:$0xff] %v6644
        %6677 = vst [vmem:[#allocation2 + $0xf1] sm:$0xff] %v6645
        %6678 = vst [vmem:[#allocation2 + $0xf9] sm:$0xff] %v6646
        %6679 = vst [vmem:[#allocation2 + $0x109] sm:$0xff] %v6647
        %6680 = vst [vmem:[#allocation2 + $0x111] sm:$0xff] %v6648
        %6681 = vst [vmem:[#allocation2 + $0x121] sm:$0xff] %v6649
        %6682 = vst [vmem:[#allocation2 + $0x129] sm:$0xff] %v6650
        %6683 = vst [vmem:[#allocation2 + $0x139] sm:$0xff] %v6651
        %6684 = vst [vmem:[#allocation2 + $0x141] sm:$0xff] %v6652
        %6685 = vst [vmem:[#allocation2 + $0x151] sm:$0xff] %v6653
        %6686 = vst [vmem:[#allocation2 + $0x159] sm:$0xff] %v6654
        %6687 = vst [vmem:[#allocation2 + $0x169] sm:$0xff] %v6655
        %6688 = vst [vmem:[#allocation2 + $0x171] sm:$0xff] %v6656
        %v6689 = vld [vmem:[#allocation2] ss:$2 sm:$0xff]
        %s6690 = scalar_lea.vmem [#allocation2], 24
        %v6691 = vld [vmem:[%s6690] ss:$2 sm:$0xff]
        %s6692 = scalar_lea.vmem [#allocation2], 48
        %v6693 = vld [vmem:[%s6692] ss:$2 sm:$0xff]
        %s6694 = scalar_lea.vmem [#allocation2], 72
        %v6695 = vld [vmem:[%s6694] ss:$2 sm:$0xff]
        %s6696 = scalar_lea.vmem [#allocation2], 96
        %v6697 = vld [vmem:[%s6696] ss:$2 sm:$0xff]
        %s6698 = scalar_lea.vmem [#allocation2], 120
        %v6699 = vld [vmem:[%s6698] ss:$2 sm:$0xff]
        %s6700 = scalar_lea.vmem [#allocation2], 144
        %v6701 = vld [vmem:[%s6700] ss:$2 sm:$0xff]
        %s6702 = scalar_lea.vmem [#allocation2], 168
        %v6703 = vld [vmem:[%s6702] ss:$2 sm:$0xff]
        %s6704 = scalar_lea.vmem [#allocation2], 192
        %v6705 = vld [vmem:[%s6704] ss:$2 sm:$0xff]
        %s6706 = scalar_lea.vmem [#allocation2], 216
        %v6707 = vld [vmem:[%s6706] ss:$2 sm:$0xff]
        %s6708 = scalar_lea.vmem [#allocation2], 240
        %v6709 = vld [vmem:[%s6708] ss:$2 sm:$0xff]
        %s6710 = scalar_lea.vmem [#allocation2], 264
        %v6711 = vld [vmem:[%s6710] ss:$2 sm:$0xff]
        %s6712 = scalar_lea.vmem [#allocation2], 288
        %v6713 = vld [vmem:[%s6712] ss:$2 sm:$0xff]
        %s6714 = scalar_lea.vmem [#allocation2], 312
        %v6715 = vld [vmem:[%s6714] ss:$2 sm:$0xff]
        %s6716 = scalar_lea.vmem [#allocation2], 336
        %v6717 = vld [vmem:[%s6716] ss:$2 sm:$0xff]
        %s6718 = scalar_lea.vmem [#allocation2], 360
        %v6719 = vld [vmem:[%s6718] ss:$2 sm:$0xff]
        %s6720 = scalar_lea.vmem [#allocation2], 1
        %v6721 = vld [vmem:[%s6720] ss:$2 sm:$0xff]
        %s6722 = scalar_lea.vmem [#allocation2], 25
        %v6723 = vld [vmem:[%s6722] ss:$2 sm:$0xff]
        %s6724 = scalar_lea.vmem [#allocation2], 49
        %v6725 = vld [vmem:[%s6724] ss:$2 sm:$0xff]
        %s6726 = scalar_lea.vmem [#allocation2], 73
        %v6727 = vld [vmem:[%s6726] ss:$2 sm:$0xff]
        %s6728 = scalar_lea.vmem [#allocation2], 97
        %v6729 = vld [vmem:[%s6728] ss:$2 sm:$0xff]
        %s6730 = scalar_lea.vmem [#allocation2], 121
        %v6731 = vld [vmem:[%s6730] ss:$2 sm:$0xff]
        %s6732 = scalar_lea.vmem [#allocation2], 145
        %v6733 = vld [vmem:[%s6732] ss:$2 sm:$0xff]
        %s6734 = scalar_lea.vmem [#allocation2], 169
        %v6735 = vld [vmem:[%s6734] ss:$2 sm:$0xff]
        %s6736 = scalar_lea.vmem [#allocation2], 193
        %v6737 = vld [vmem:[%s6736] ss:$2 sm:$0xff]
        %s6738 = scalar_lea.vmem [#allocation2], 217
        %v6739 = vld [vmem:[%s6738] ss:$2 sm:$0xff]
        %s6740 = scalar_lea.vmem [#allocation2], 241
        %v6741 = vld [vmem:[%s6740] ss:$2 sm:$0xff]
        %s6742 = scalar_lea.vmem [#allocation2], 265
        %v6743 = vld [vmem:[%s6742] ss:$2 sm:$0xff]
        %s6744 = scalar_lea.vmem [#allocation2], 289
        %v6745 = vld [vmem:[%s6744] ss:$2 sm:$0xff]
        %s6746 = scalar_lea.vmem [#allocation2], 313
        %v6747 = vld [vmem:[%s6746] ss:$2 sm:$0xff]
        %s6748 = scalar_lea.vmem [#allocation2], 337
        %v6749 = vld [vmem:[%s6748] ss:$2 sm:$0xff]
        %s6750 = scalar_lea.vmem [#allocation2], 361
        %v6751 = vld [vmem:[%s6750] ss:$2 sm:$0xff]
        %v6752 = vmax.f32 %v6689, %v6721
        %v6753 = vmax.f32 %v6691, %v6723
        %v6754 = vmax.f32 %v6693, %v6725
        %v6755 = vmax.f32 %v6695, %v6727
        %v6756 = vmax.f32 %v6697, %v6729
        %v6757 = vmax.f32 %v6699, %v6731
        %v6758 = vmax.f32 %v6701, %v6733
        %v6759 = vmax.f32 %v6703, %v6735
        %v6760 = vmax.f32 %v6705, %v6737
        %v6761 = vmax.f32 %v6707, %v6739
        %v6762 = vmax.f32 %v6709, %v6741
        %v6763 = vmax.f32 %v6711, %v6743
        %v6764 = vmax.f32 %v6713, %v6745
        %v6765 = vmax.f32 %v6715, %v6747
        %v6766 = vmax.f32 %v6717, %v6749
        %v6767 = vmax.f32 %v6719, %v6751
        %s6768 = scalar_lea.vmem [#allocation2], 2
        %v6769 = vld [vmem:[%s6768] ss:$2 sm:$0xff]
        %s6770 = scalar_lea.vmem [#allocation2], 26
        %v6771 = vld [vmem:[%s6770] ss:$2 sm:$0xff]
        %s6772 = scalar_lea.vmem [#allocation2], 50
        %v6773 = vld [vmem:[%s6772] ss:$2 sm:$0xff]
        %s6774 = scalar_lea.vmem [#allocation2], 74
        %v6775 = vld [vmem:[%s6774] ss:$2 sm:$0xff]
        %s6776 = scalar_lea.vmem [#allocation2], 98
        %v6777 = vld [vmem:[%s6776] ss:$2 sm:$0xff]
        %s6778 = scalar_lea.vmem [#allocation2], 122
        %v6779 = vld [vmem:[%s6778] ss:$2 sm:$0xff]
        %s6780 = scalar_lea.vmem [#allocation2], 146
        %v6781 = vld [vmem:[%s6780] ss:$2 sm:$0xff]
        %s6782 = scalar_lea.vmem [#allocation2], 170
        %v6783 = vld [vmem:[%s6782] ss:$2 sm:$0xff]
        %s6784 = scalar_lea.vmem [#allocation2], 194
        %v6785 = vld [vmem:[%s6784] ss:$2 sm:$0xff]
        %s6786 = scalar_lea.vmem [#allocation2], 218
        %v6787 = vld [vmem:[%s6786] ss:$2 sm:$0xff]
        %s6788 = scalar_lea.vmem [#allocation2], 242
        %v6789 = vld [vmem:[%s6788] ss:$2 sm:$0xff]
        %s6790 = scalar_lea.vmem [#allocation2], 266
        %v6791 = vld [vmem:[%s6790] ss:$2 sm:$0xff]
        %s6792 = scalar_lea.vmem [#allocation2], 290
        %v6793 = vld [vmem:[%s6792] ss:$2 sm:$0xff]
        %s6794 = scalar_lea.vmem [#allocation2], 314
        %v6795 = vld [vmem:[%s6794] ss:$2 sm:$0xff]
        %s6796 = scalar_lea.vmem [#allocation2], 338
        %v6797 = vld [vmem:[%s6796] ss:$2 sm:$0xff]
        %s6798 = scalar_lea.vmem [#allocation2], 362
        %v6799 = vld [vmem:[%s6798] ss:$2 sm:$0xff]
        %v6800 = vmax.f32 %v6752, %v6769
        %v6801 = vmax.f32 %v6753, %v6771
        %v6802 = vmax.f32 %v6754, %v6773
        %v6803 = vmax.f32 %v6755, %v6775
        %v6804 = vmax.f32 %v6756, %v6777
        %v6805 = vmax.f32 %v6757, %v6779
        %v6806 = vmax.f32 %v6758, %v6781
        %v6807 = vmax.f32 %v6759, %v6783
        %v6808 = vmax.f32 %v6760, %v6785
        %v6809 = vmax.f32 %v6761, %v6787
        %v6810 = vmax.f32 %v6762, %v6789
        %v6811 = vmax.f32 %v6763, %v6791
        %v6812 = vmax.f32 %v6764, %v6793
        %v6813 = vmax.f32 %v6765, %v6795
        %v6814 = vmax.f32 %v6766, %v6797
        %v6815 = vmax.f32 %v6767, %v6799
        %s6816 = scalar_lea.vmem [#allocation3], 8
        %6817 = vst [vmem:[%s6816] sm:$0xff] %v6801
        %6818 = vst [vmem:[%s6816 + $0x8] sm:$0xff] %v6803
        %6819 = vst [vmem:[%s6816 + $0x10] sm:$0xff] %v6805
        %6820 = vst [vmem:[%s6816 + $0x18] sm:$0xff] %v6807
        %6821 = vst [vmem:[%s6816 + $0x20] sm:$0xff] %v6809
        %6822 = vst [vmem:[%s6816 + $0x28] sm:$0xff] %v6811
        %6823 = vst [vmem:[%s6816 + $0x30] sm:$0xff] %v6813
        %6824 = vst [vmem:[%s6816 + $0x38] sm:$0xff] %v6815
        %v6825 = vmax.f32 %v6800, %v6801
        %v6826 = vmax.f32 %v6802, %v6803
        %v6827 = vmax.f32 %v6804, %v6805
        %v6828 = vmax.f32 %v6806, %v6807
        %v6829 = vmax.f32 %v6808, %v6809
        %v6830 = vmax.f32 %v6810, %v6811
        %v6831 = vmax.f32 %v6812, %v6813
        %v6832 = vmax.f32 %v6814, %v6815
        %v6833 = vld [vmem:[#allocation3] sm:$0xff]
        %v6834 = vld [vmem:[#allocation3 + $0x8] sm:$0xff]
        %v6835 = vld [vmem:[#allocation3 + $0x10] sm:$0xff]
        %v6836 = vld [vmem:[#allocation3 + $0x18] sm:$0xff]
        %v6837 = vld [vmem:[#allocation3 + $0x20] sm:$0xff]
        %v6838 = vld [vmem:[#allocation3 + $0x28] sm:$0xff]
        %v6839 = vld [vmem:[#allocation3 + $0x30] sm:$0xff]
        %v6840 = vld [vmem:[#allocation3 + $0x38] sm:$0xff]
        %v6841 = vmax.f32 %v6825, %v6833
        %v6842 = vmax.f32 %v6826, %v6834
        %v6843 = vmax.f32 %v6827, %v6835
        %v6844 = vmax.f32 %v6828, %v6836
        %v6845 = vmax.f32 %v6829, %v6837
        %v6846 = vmax.f32 %v6830, %v6838
        %v6847 = vmax.f32 %v6831, %v6839
        %v6848 = vmax.f32 %v6832, %v6840
        %s6849 = scalar_lea.vmem [#allocation4], 16
        %6850 = vst [vmem:[%s6849 + $0x1] sm:$0xff] %v6841
        %6851 = vst [vmem:[%s6849 + $0x11] sm:$0xff] %v6842
        %6852 = vst [vmem:[%s6849 + $0x21] sm:$0xff] %v6843
        %6853 = vst [vmem:[%s6849 + $0x31] sm:$0xff] %v6844
        %6854 = vst [vmem:[%s6849 + $0x41] sm:$0xff] %v6845
        %6855 = vst [vmem:[%s6849 + $0x51] sm:$0xff] %v6846
        %6856 = vst [vmem:[%s6849 + $0x61] sm:$0xff] %v6847
        %6857 = vst [vmem:[%s6849 + $0x71] sm:$0xff] %v6848
        %v6858 = vld [vmem:[#allocation4] sm:$0xff]
        %v6859 = vld [vmem:[#allocation4 + $0x10] sm:$0xff]
        %v6860 = vld [vmem:[#allocation4 + $0x20] sm:$0xff]
        %v6861 = vld [vmem:[#allocation4 + $0x30] sm:$0xff]
        %v6862 = vld [vmem:[#allocation4 + $0x40] sm:$0xff]
        %v6863 = vld [vmem:[#allocation4 + $0x50] sm:$0xff]
        %v6864 = vld [vmem:[#allocation4 + $0x60] sm:$0xff]
        %v6865 = vld [vmem:[#allocation4 + $0x70] sm:$0xff]
        %v6866 = vld [vmem:[#allocation4 + $0x1] sm:$0xff]
        %v6867 = vld [vmem:[#allocation4 + $0x11] sm:$0xff]
        %v6868 = vld [vmem:[#allocation4 + $0x21] sm:$0xff]
        %v6869 = vld [vmem:[#allocation4 + $0x31] sm:$0xff]
        %v6870 = vld [vmem:[#allocation4 + $0x41] sm:$0xff]
        %v6871 = vld [vmem:[#allocation4 + $0x51] sm:$0xff]
        %v6872 = vld [vmem:[#allocation4 + $0x61] sm:$0xff]
        %v6873 = vld [vmem:[#allocation4 + $0x71] sm:$0xff]
        %v6874 = vld [vmem:[#allocation4 + $0x2] sm:$0xff]
        %v6875 = vld [vmem:[#allocation4 + $0x12] sm:$0xff]
        %v6876 = vld [vmem:[#allocation4 + $0x22] sm:$0xff]
        %v6877 = vld [vmem:[#allocation4 + $0x32] sm:$0xff]
        %v6878 = vld [vmem:[#allocation4 + $0x42] sm:$0xff]
        %v6879 = vld [vmem:[#allocation4 + $0x52] sm:$0xff]
        %v6880 = vld [vmem:[#allocation4 + $0x62] sm:$0xff]
        %v6881 = vld [vmem:[#allocation4 + $0x72] sm:$0xff]
        %v6882 = vld [vmem:[%s6849] sm:$0xff]
        %v6883 = vld [vmem:[%s6849 + $0x10] sm:$0xff]
        %v6884 = vld [vmem:[%s6849 + $0x20] sm:$0xff]
        %v6885 = vld [vmem:[%s6849 + $0x30] sm:$0xff]
        %v6886 = vld [vmem:[%s6849 + $0x40] sm:$0xff]
        %v6887 = vld [vmem:[%s6849 + $0x50] sm:$0xff]
        %v6888 = vld [vmem:[%s6849 + $0x60] sm:$0xff]
        %v6889 = vld [vmem:[%s6849 + $0x70] sm:$0xff]
        %v6890 = vld [vmem:[%s6849 + $0x1] sm:$0xff]
        %v6891 = vld [vmem:[%s6849 + $0x11] sm:$0xff]
        %v6892 = vld [vmem:[%s6849 + $0x21] sm:$0xff]
        %v6893 = vld [vmem:[%s6849 + $0x31] sm:$0xff]
        %v6894 = vld [vmem:[%s6849 + $0x41] sm:$0xff]
        %v6895 = vld [vmem:[%s6849 + $0x51] sm:$0xff]
        %v6896 = vld [vmem:[%s6849 + $0x61] sm:$0xff]
        %v6897 = vld [vmem:[%s6849 + $0x71] sm:$0xff]
        %v6898 = vld [vmem:[%s6849 + $0x2] sm:$0xff]
        %v6899 = vld [vmem:[%s6849 + $0x12] sm:$0xff]
        %v6900 = vld [vmem:[%s6849 + $0x22] sm:$0xff]
        %v6901 = vld [vmem:[%s6849 + $0x32] sm:$0xff]
        %v6902 = vld [vmem:[%s6849 + $0x42] sm:$0xff]
        %v6903 = vld [vmem:[%s6849 + $0x52] sm:$0xff]
        %v6904 = vld [vmem:[%s6849 + $0x62] sm:$0xff]
        %v6905 = vld [vmem:[%s6849 + $0x72] sm:$0xff]
        %s6906 = scalar_lea.vmem [#allocation4], 32
        %v6907 = vld [vmem:[%s6906] sm:$0xff]
        %v6908 = vld [vmem:[%s6906 + $0x10] sm:$0xff]
        %v6909 = vld [vmem:[%s6906 + $0x20] sm:$0xff]
        %v6910 = vld [vmem:[%s6906 + $0x30] sm:$0xff]
        %v6911 = vld [vmem:[%s6906 + $0x40] sm:$0xff]
        %v6912 = vld [vmem:[%s6906 + $0x50] sm:$0xff]
        %v6913 = vld [vmem:[%s6906 + $0x60] sm:$0xff]
        %v6914 = vld [vmem:[%s6906 + $0x70] sm:$0xff]
        %v6915 = vld [vmem:[%s6906 + $0x1] sm:$0xff]
        %v6916 = vld [vmem:[%s6906 + $0x11] sm:$0xff]
        %v6917 = vld [vmem:[%s6906 + $0x21] sm:$0xff]
        %v6918 = vld [vmem:[%s6906 + $0x31] sm:$0xff]
        %v6919 = vld [vmem:[%s6906 + $0x41] sm:$0xff]
        %v6920 = vld [vmem:[%s6906 + $0x51] sm:$0xff]
        %v6921 = vld [vmem:[%s6906 + $0x61] sm:$0xff]
        %v6922 = vld [vmem:[%s6906 + $0x71] sm:$0xff]
        %v6923 = vld [vmem:[%s6906 + $0x2] sm:$0xff]
        %v6924 = vld [vmem:[%s6906 + $0x12] sm:$0xff]
        %v6925 = vld [vmem:[%s6906 + $0x22] sm:$0xff]
        %v6926 = vld [vmem:[%s6906 + $0x32] sm:$0xff]
        %v6927 = vld [vmem:[%s6906 + $0x42] sm:$0xff]
        %v6928 = vld [vmem:[%s6906 + $0x52] sm:$0xff]
        %v6929 = vld [vmem:[%s6906 + $0x62] sm:$0xff]
        %v6930 = vld [vmem:[%s6906 + $0x72] sm:$0xff]
        %v6931 = vpack.c.bf16 %v6859, %v6858
        %v6932 = vpack.c.bf16 %v6867, %v6866
        %v6933 = vpack.c.bf16 %v6875, %v6874
        %v6934 = vpack.c.bf16 %v6883, %v6882
        %v6935 = vpack.c.bf16 %v6891, %v6890
        %v6936 = vpack.c.bf16 %v6899, %v6898
        %v6937 = vpack.c.bf16 %v6908, %v6907
        %v6938 = vpack.c.bf16 %v6916, %v6915
        %v6939 = vpack.c.bf16 %v6924, %v6923
        %v6940 = vpack.c.bf16 %v6861, %v6860
        %v6941 = vpack.c.bf16 %v6869, %v6868
        %v6942 = vpack.c.bf16 %v6877, %v6876
        %v6943 = vpack.c.bf16 %v6885, %v6884
        %v6944 = vpack.c.bf16 %v6893, %v6892
        %v6945 = vpack.c.bf16 %v6901, %v6900
        %v6946 = vpack.c.bf16 %v6910, %v6909
        %v6947 = vpack.c.bf16 %v6918, %v6917
        %v6948 = vpack.c.bf16 %v6926, %v6925
        %v6949 = vpack.c.bf16 %v6863, %v6862
        %v6950 = vpack.c.bf16 %v6871, %v6870
        %v6951 = vpack.c.bf16 %v6879, %v6878
        %v6952 = vpack.c.bf16 %v6887, %v6886
        %v6953 = vpack.c.bf16 %v6895, %v6894
        %v6954 = vpack.c.bf16 %v6903, %v6902
        %v6955 = vpack.c.bf16 %v6912, %v6911
        %v6956 = vpack.c.bf16 %v6920, %v6919
        %v6957 = vpack.c.bf16 %v6928, %v6927
        %v6958 = vpack.c.bf16 %v6865, %v6864
        %v6959 = vpack.c.bf16 %v6873, %v6872
        %v6960 = vpack.c.bf16 %v6881, %v6880
        %v6961 = vpack.c.bf16 %v6889, %v6888
        %v6962 = vpack.c.bf16 %v6897, %v6896
        %v6963 = vpack.c.bf16 %v6905, %v6904
        %v6964 = vpack.c.bf16 %v6914, %v6913
        %v6965 = vpack.c.bf16 %v6922, %v6921
        %v6966 = vpack.c.bf16 %v6930, %v6929
        %v6967 = vld [vmem:[%s4] sm:$0xf]
        %v6968 = vld [vmem:[%s4 + $0x4] sm:$0xf]
        %v6969 = vld [vmem:[%s4 + $0x8] sm:$0xf]
        %v6970 = vld [vmem:[%s4 + $0xc] sm:$0xf]
        %v6971 = vld [vmem:[%s4 + $0x10] sm:$0xf]
        %v6972 = vld [vmem:[%s4 + $0x14] sm:$0xf]
        %v6973 = vld [vmem:[%s4 + $0x18] sm:$0xf]
        %v6974 = vld [vmem:[%s4 + $0x1c] sm:$0xf]
        %v6975 = vld [vmem:[%s4 + $0x20] sm:$0xf]
        %v6976 = vld [vmem:[%s4 + $0x24] sm:$0xf]
        %v6977 = vld [vmem:[%s4 + $0x28] sm:$0xf]
        %v6978 = vld [vmem:[%s4 + $0x2c] sm:$0xf]
        %v6979 = vld [vmem:[%s4 + $0x30] sm:$0xf]
        %v6980 = vld [vmem:[%s4 + $0x34] sm:$0xf]
        %v6981 = vld [vmem:[%s4 + $0x38] sm:$0xf]
        %v6982 = vld [vmem:[%s4 + $0x3c] sm:$0xf]
        %v6983 = vld [vmem:[%s4 + $0x40] sm:$0xf]
        %v6984 = vld [vmem:[%s4 + $0x44] sm:$0xf]
        %v6985 = vld [vmem:[%s4 + $0x48] sm:$0xf]
        %v6986 = vld [vmem:[%s4 + $0x4c] sm:$0xf]
        %v6987 = vld [vmem:[%s4 + $0x50] sm:$0xf]
        %v6988 = vld [vmem:[%s4 + $0x54] sm:$0xf]
        %v6989 = vld [vmem:[%s4 + $0x58] sm:$0xf]
        %v6990 = vld [vmem:[%s4 + $0x5c] sm:$0xf]
        %v6991 = vld [vmem:[%s4 + $0x60] sm:$0xf]
        %v6992 = vld [vmem:[%s4 + $0x64] sm:$0xf]
        %v6993 = vld [vmem:[%s4 + $0x68] sm:$0xf]
        %v6994 = vld [vmem:[%s4 + $0x6c] sm:$0xf]
        %v6995 = vld [vmem:[%s4 + $0x70] sm:$0xf]
        %v6996 = vld [vmem:[%s4 + $0x74] sm:$0xf]
        %v6997 = vld [vmem:[%s4 + $0x78] sm:$0xf]
        %v6998 = vld [vmem:[%s4 + $0x7c] sm:$0xf]
        %v6999 = vld [vmem:[%s4 + $0x80] sm:$0xf]
        %v7000 = vld [vmem:[%s4 + $0x84] sm:$0xf]
        %v7001 = vld [vmem:[%s4 + $0x88] sm:$0xf]
        %v7002 = vld [vmem:[%s4 + $0x8c] sm:$0xf]
        %v7003 = vld [vmem:[%s4 + $0x90] sm:$0xf]
        %v7004 = vld [vmem:[%s4 + $0x94] sm:$0xf]
        %v7005 = vld [vmem:[%s4 + $0x98] sm:$0xf]
        %v7006 = vld [vmem:[%s4 + $0x9c] sm:$0xf]
        %v7007 = vld [vmem:[%s4 + $0xa0] sm:$0xf]
        %v7008 = vld [vmem:[%s4 + $0xa4] sm:$0xf]
        %v7009 = vld [vmem:[%s4 + $0xa8] sm:$0xf]
        %v7010 = vld [vmem:[%s4 + $0xac] sm:$0xf]
        %v7011 = vld [vmem:[%s4 + $0xb0] sm:$0xf]
        %v7012 = vld [vmem:[%s4 + $0xb4] sm:$0xf]
        %v7013 = vld [vmem:[%s4 + $0xb8] sm:$0xf]
        %v7014 = vld [vmem:[%s4 + $0xbc] sm:$0xf]
        %v7015 = vld [vmem:[%s4 + $0xc0] sm:$0xf]
        %v7016 = vld [vmem:[%s4 + $0xc4] sm:$0xf]
        %v7017 = vld [vmem:[%s4 + $0xc8] sm:$0xf]
        %v7018 = vld [vmem:[%s4 + $0xcc] sm:$0xf]
        %v7019 = vld [vmem:[%s4 + $0xd0] sm:$0xf]
        %v7020 = vld [vmem:[%s4 + $0xd4] sm:$0xf]
        %v7021 = vld [vmem:[%s4 + $0xd8] sm:$0xf]
        %v7022 = vld [vmem:[%s4 + $0xdc] sm:$0xf]
        %v7023 = vld [vmem:[%s4 + $0xe0] sm:$0xf]
        %v7024 = vld [vmem:[%s4 + $0xe4] sm:$0xf]
        %v7025 = vld [vmem:[%s4 + $0xe8] sm:$0xf]
        %v7026 = vld [vmem:[%s4 + $0xec] sm:$0xf]
        %v7027 = vld [vmem:[%s4 + $0xf0] sm:$0xf]
        %v7028 = vld [vmem:[%s4 + $0xf4] sm:$0xf]
        %v7029 = vld [vmem:[%s4 + $0xf8] sm:$0xf]
        %v7030 = vld [vmem:[%s4 + $0xfc] sm:$0xf]
        %v7031 = vld [vmem:[%s4 + $0x100] sm:$0xf]
        %v7032 = vld [vmem:[%s4 + $0x104] sm:$0xf]
        %v7033 = vld [vmem:[%s4 + $0x108] sm:$0xf]
        %v7034 = vld [vmem:[%s4 + $0x10c] sm:$0xf]
        %v7035 = vld [vmem:[%s4 + $0x110] sm:$0xf]
        %v7036 = vld [vmem:[%s4 + $0x114] sm:$0xf]
        %v7037 = vld [vmem:[%s4 + $0x118] sm:$0xf]
        %v7038 = vld [vmem:[%s4 + $0x11c] sm:$0xf]
        %v7039 = vld [vmem:[%s4 + $0x120] sm:$0xf]
        %v7040 = vld [vmem:[%s4 + $0x124] sm:$0xf]
        %v7041 = vld [vmem:[%s4 + $0x128] sm:$0xf]
        %v7042 = vld [vmem:[%s4 + $0x12c] sm:$0xf]
        %v7043 = vld [vmem:[%s4 + $0x130] sm:$0xf]
        %v7044 = vld [vmem:[%s4 + $0x134] sm:$0xf]
        %v7045 = vld [vmem:[%s4 + $0x138] sm:$0xf]
        %v7046 = vld [vmem:[%s4 + $0x13c] sm:$0xf]
        %v7047 = vld [vmem:[%s4 + $0x140] sm:$0xf]
        %v7048 = vld [vmem:[%s4 + $0x144] sm:$0xf]
        %v7049 = vld [vmem:[%s4 + $0x148] sm:$0xf]
        %v7050 = vld [vmem:[%s4 + $0x14c] sm:$0xf]
        %v7051 = vld [vmem:[%s4 + $0x150] sm:$0xf]
        %v7052 = vld [vmem:[%s4 + $0x154] sm:$0xf]
        %v7053 = vld [vmem:[%s4 + $0x158] sm:$0xf]
        %v7054 = vld [vmem:[%s4 + $0x15c] sm:$0xf]
        %v7055 = vld [vmem:[%s4 + $0x160] sm:$0xf]
        %v7056 = vld [vmem:[%s4 + $0x164] sm:$0xf]
        %v7057 = vld [vmem:[%s4 + $0x168] sm:$0xf]
        %v7058 = vld [vmem:[%s4 + $0x16c] sm:$0xf]
        %v7059 = vld [vmem:[%s4 + $0x170] sm:$0xf]
        %v7060 = vld [vmem:[%s4 + $0x174] sm:$0xf]
        %v7061 = vld [vmem:[%s4 + $0x178] sm:$0xf]
        %v7062 = vld [vmem:[%s4 + $0x17c] sm:$0xf]
        %v7063 = vld [vmem:[%s4 + $0x180] sm:$0xf]
        %v7064 = vld [vmem:[%s4 + $0x184] sm:$0xf]
        %v7065 = vld [vmem:[%s4 + $0x188] sm:$0xf]
        %v7066 = vld [vmem:[%s4 + $0x18c] sm:$0xf]
        %v7067 = vld [vmem:[%s4 + $0x190] sm:$0xf]
        %v7068 = vld [vmem:[%s4 + $0x194] sm:$0xf]
        %v7069 = vld [vmem:[%s4 + $0x198] sm:$0xf]
        %v7070 = vld [vmem:[%s4 + $0x19c] sm:$0xf]
        %v7071 = vld [vmem:[%s4 + $0x1a0] sm:$0xf]
        %v7072 = vld [vmem:[%s4 + $0x1a4] sm:$0xf]
        %v7073 = vld [vmem:[%s4 + $0x1a8] sm:$0xf]
        %v7074 = vld [vmem:[%s4 + $0x1ac] sm:$0xf]
        %v7075 = vld [vmem:[%s4 + $0x1b0] sm:$0xf]
        %v7076 = vld [vmem:[%s4 + $0x1b4] sm:$0xf]
        %v7077 = vld [vmem:[%s4 + $0x1b8] sm:$0xf]
        %v7078 = vld [vmem:[%s4 + $0x1bc] sm:$0xf]
        %v7079 = vld [vmem:[%s4 + $0x1c0] sm:$0xf]
        %v7080 = vld [vmem:[%s4 + $0x1c4] sm:$0xf]
        %v7081 = vld [vmem:[%s4 + $0x1c8] sm:$0xf]
        %v7082 = vld [vmem:[%s4 + $0x1cc] sm:$0xf]
        %v7083 = vld [vmem:[%s4 + $0x1d0] sm:$0xf]
        %v7084 = vld [vmem:[%s4 + $0x1d4] sm:$0xf]
        %v7085 = vld [vmem:[%s4 + $0x1d8] sm:$0xf]
        %v7086 = vld [vmem:[%s4 + $0x1dc] sm:$0xf]
        %v7087 = vld [vmem:[%s4 + $0x1e0] sm:$0xf]
        %v7088 = vld [vmem:[%s4 + $0x1e4] sm:$0xf]
        %v7089 = vld [vmem:[%s4 + $0x1e8] sm:$0xf]
        %v7090 = vld [vmem:[%s4 + $0x1ec] sm:$0xf]
        %v7091 = vld [vmem:[%s4 + $0x1f0] sm:$0xf]
        %v7092 = vld [vmem:[%s4 + $0x1f4] sm:$0xf]
        %v7093 = vld [vmem:[%s4 + $0x1f8] sm:$0xf]
        %v7094 = vld [vmem:[%s4 + $0x1fc] sm:$0xf]
        %v7095 = vld [vmem:[%s4 + $0x200] sm:$0xf]
        %v7096 = vld [vmem:[%s4 + $0x204] sm:$0xf]
        %v7097 = vld [vmem:[%s4 + $0x208] sm:$0xf]
        %v7098 = vld [vmem:[%s4 + $0x20c] sm:$0xf]
        %v7099 = vld [vmem:[%s4 + $0x210] sm:$0xf]
        %v7100 = vld [vmem:[%s4 + $0x214] sm:$0xf]
        %v7101 = vld [vmem:[%s4 + $0x218] sm:$0xf]
        %v7102 = vld [vmem:[%s4 + $0x21c] sm:$0xf]
        %v7103 = vld [vmem:[%s4 + $0x220] sm:$0xf]
        %v7104 = vld [vmem:[%s4 + $0x224] sm:$0xf]
        %v7105 = vld [vmem:[%s4 + $0x228] sm:$0xf]
        %v7106 = vld [vmem:[%s4 + $0x22c] sm:$0xf]
        %v7107 = vld [vmem:[%s4 + $0x230] sm:$0xf]
        %v7108 = vld [vmem:[%s4 + $0x234] sm:$0xf]
        %v7109 = vld [vmem:[%s4 + $0x238] sm:$0xf]
        %v7110 = vld [vmem:[%s4 + $0x23c] sm:$0xf]
        %v7255 = vunpack.c.l.b16 %v6967
        %v7256 = vunpack.c.l.b16 %v6968
        %v7257 = vunpack.c.l.b16 %v6969
        %v7258 = vunpack.c.l.b16 %v6970
        %v7259 = vunpack.c.l.b16 %v6971
        %v7260 = vunpack.c.l.b16 %v6972
        %v7261 = vunpack.c.l.b16 %v6973
        %v7262 = vunpack.c.l.b16 %v6974
        %v7263 = vunpack.c.l.b16 %v6975
        %v7264 = vunpack.c.l.b16 %v6976
        %v7265 = vunpack.c.l.b16 %v6977
        %v7266 = vunpack.c.l.b16 %v6978
        %v7267 = vunpack.c.l.b16 %v6979
        %v7268 = vunpack.c.l.b16 %v6980
        %v7269 = vunpack.c.l.b16 %v6981
        %v7270 = vunpack.c.l.b16 %v6982
        %v7271 = vunpack.c.l.b16 %v6983
        %v7272 = vunpack.c.l.b16 %v6984
        %v7273 = vunpack.c.l.b16 %v6985
        %v7274 = vunpack.c.l.b16 %v6986
        %v7275 = vunpack.c.l.b16 %v6987
        %v7276 = vunpack.c.l.b16 %v6988
        %v7277 = vunpack.c.l.b16 %v6989
        %v7278 = vunpack.c.l.b16 %v6990
        %v7279 = vunpack.c.l.b16 %v6991
        %v7280 = vunpack.c.l.b16 %v6992
        %v7281 = vunpack.c.l.b16 %v6993
        %v7282 = vunpack.c.l.b16 %v6994
        %v7283 = vunpack.c.l.b16 %v6995
        %v7284 = vunpack.c.l.b16 %v6996
        %v7285 = vunpack.c.l.b16 %v6997
        %v7286 = vunpack.c.l.b16 %v6998
        %v7287 = vunpack.c.l.b16 %v6999
        %v7288 = vunpack.c.l.b16 %v7000
        %v7289 = vunpack.c.l.b16 %v7001
        %v7290 = vunpack.c.l.b16 %v7002
        %v7291 = vunpack.c.l.b16 %v7003
        %v7292 = vunpack.c.l.b16 %v7004
        %v7293 = vunpack.c.l.b16 %v7005
        %v7294 = vunpack.c.l.b16 %v7006
        %v7295 = vunpack.c.l.b16 %v7007
        %v7296 = vunpack.c.l.b16 %v7008
        %v7297 = vunpack.c.l.b16 %v7009
        %v7298 = vunpack.c.l.b16 %v7010
        %v7299 = vunpack.c.l.b16 %v7011
        %v7300 = vunpack.c.l.b16 %v7012
        %v7301 = vunpack.c.l.b16 %v7013
        %v7302 = vunpack.c.l.b16 %v7014
        %v7303 = vunpack.c.l.b16 %v7015
        %v7304 = vunpack.c.l.b16 %v7016
        %v7305 = vunpack.c.l.b16 %v7017
        %v7306 = vunpack.c.l.b16 %v7018
        %v7307 = vunpack.c.l.b16 %v7019
        %v7308 = vunpack.c.l.b16 %v7020
        %v7309 = vunpack.c.l.b16 %v7021
        %v7310 = vunpack.c.l.b16 %v7022
        %v7311 = vunpack.c.l.b16 %v7023
        %v7312 = vunpack.c.l.b16 %v7024
        %v7313 = vunpack.c.l.b16 %v7025
        %v7314 = vunpack.c.l.b16 %v7026
        %v7315 = vunpack.c.l.b16 %v7027
        %v7316 = vunpack.c.l.b16 %v7028
        %v7317 = vunpack.c.l.b16 %v7029
        %v7318 = vunpack.c.l.b16 %v7030
        %v7319 = vunpack.c.l.b16 %v7031
        %v7320 = vunpack.c.l.b16 %v7032
        %v7321 = vunpack.c.l.b16 %v7033
        %v7322 = vunpack.c.l.b16 %v7034
        %v7323 = vunpack.c.l.b16 %v7035
        %v7324 = vunpack.c.l.b16 %v7036
        %v7325 = vunpack.c.l.b16 %v7037
        %v7326 = vunpack.c.l.b16 %v7038
        %v7327 = vunpack.c.l.b16 %v7039
        %v7328 = vunpack.c.l.b16 %v7040
        %v7329 = vunpack.c.l.b16 %v7041
        %v7330 = vunpack.c.l.b16 %v7042
        %v7331 = vunpack.c.l.b16 %v7043
        %v7332 = vunpack.c.l.b16 %v7044
        %v7333 = vunpack.c.l.b16 %v7045
        %v7334 = vunpack.c.l.b16 %v7046
        %v7335 = vunpack.c.l.b16 %v7047
        %v7336 = vunpack.c.l.b16 %v7048
        %v7337 = vunpack.c.l.b16 %v7049
        %v7338 = vunpack.c.l.b16 %v7050
        %v7339 = vunpack.c.l.b16 %v7051
        %v7340 = vunpack.c.l.b16 %v7052
        %v7341 = vunpack.c.l.b16 %v7053
        %v7342 = vunpack.c.l.b16 %v7054
        %v7343 = vunpack.c.l.b16 %v7055
        %v7344 = vunpack.c.l.b16 %v7056
        %v7345 = vunpack.c.l.b16 %v7057
        %v7346 = vunpack.c.l.b16 %v7058
        %v7347 = vunpack.c.l.b16 %v7059
        %v7348 = vunpack.c.l.b16 %v7060
        %v7349 = vunpack.c.l.b16 %v7061
        %v7350 = vunpack.c.l.b16 %v7062
        %v7351 = vunpack.c.l.b16 %v7063
        %v7352 = vunpack.c.l.b16 %v7064
        %v7353 = vunpack.c.l.b16 %v7065
        %v7354 = vunpack.c.l.b16 %v7066
        %v7355 = vunpack.c.l.b16 %v7067
        %v7356 = vunpack.c.l.b16 %v7068
        %v7357 = vunpack.c.l.b16 %v7069
        %v7358 = vunpack.c.l.b16 %v7070
        %v7359 = vunpack.c.l.b16 %v7071
        %v7360 = vunpack.c.l.b16 %v7072
        %v7361 = vunpack.c.l.b16 %v7073
        %v7362 = vunpack.c.l.b16 %v7074
        %v7363 = vunpack.c.l.b16 %v7075
        %v7364 = vunpack.c.l.b16 %v7076
        %v7365 = vunpack.c.l.b16 %v7077
        %v7366 = vunpack.c.l.b16 %v7078
        %v7367 = vunpack.c.l.b16 %v7079
        %v7368 = vunpack.c.l.b16 %v7080
        %v7369 = vunpack.c.l.b16 %v7081
        %v7370 = vunpack.c.l.b16 %v7082
        %v7371 = vunpack.c.l.b16 %v7083
        %v7372 = vunpack.c.l.b16 %v7084
        %v7373 = vunpack.c.l.b16 %v7085
        %v7374 = vunpack.c.l.b16 %v7086
        %v7375 = vunpack.c.l.b16 %v7087
        %v7376 = vunpack.c.l.b16 %v7088
        %v7377 = vunpack.c.l.b16 %v7089
        %v7378 = vunpack.c.l.b16 %v7090
        %v7379 = vunpack.c.l.b16 %v7091
        %v7380 = vunpack.c.l.b16 %v7092
        %v7381 = vunpack.c.l.b16 %v7093
        %v7382 = vunpack.c.l.b16 %v7094
        %v7383 = vunpack.c.l.b16 %v7095
        %v7384 = vunpack.c.l.b16 %v7096
        %v7385 = vunpack.c.l.b16 %v7097
        %v7386 = vunpack.c.l.b16 %v7098
        %v7387 = vunpack.c.l.b16 %v7099
        %v7388 = vunpack.c.l.b16 %v7100
        %v7389 = vunpack.c.l.b16 %v7101
        %v7390 = vunpack.c.l.b16 %v7102
        %v7391 = vunpack.c.l.b16 %v7103
        %v7392 = vunpack.c.l.b16 %v7104
        %v7393 = vunpack.c.l.b16 %v7105
        %v7394 = vunpack.c.l.b16 %v7106
        %v7395 = vunpack.c.l.b16 %v7107
        %v7396 = vunpack.c.l.b16 %v7108
        %v7397 = vunpack.c.l.b16 %v7109
        %v7398 = vunpack.c.l.b16 %v7110
        %v7399 = vpack.c.b16 %v7256, %v7255
        %v7400 = vpack.c.b16 %v7258, %v7257
        %v7401 = vpack.c.b16 %v7260, %v7259
        %v7402 = vpack.c.b16 %v7262, %v7261
        %v7403 = vpack.c.b16 %v7264, %v7263
        %v7404 = vpack.c.b16 %v7266, %v7265
        %v7405 = vpack.c.b16 %v7268, %v7267
        %v7406 = vpack.c.b16 %v7270, %v7269
        %v7407 = vpack.c.b16 %v7272, %v7271
        %v7408 = vpack.c.b16 %v7274, %v7273
        %v7409 = vpack.c.b16 %v7276, %v7275
        %v7410 = vpack.c.b16 %v7278, %v7277
        %v7411 = vpack.c.b16 %v7280, %v7279
        %v7412 = vpack.c.b16 %v7282, %v7281
        %v7413 = vpack.c.b16 %v7284, %v7283
        %v7414 = vpack.c.b16 %v7286, %v7285
        %v7415 = vpack.c.b16 %v7288, %v7287
        %v7416 = vpack.c.b16 %v7290, %v7289
        %v7417 = vpack.c.b16 %v7292, %v7291
        %v7418 = vpack.c.b16 %v7294, %v7293
        %v7419 = vpack.c.b16 %v7296, %v7295
        %v7420 = vpack.c.b16 %v7298, %v7297
        %v7421 = vpack.c.b16 %v7300, %v7299
        %v7422 = vpack.c.b16 %v7302, %v7301
        %v7423 = vpack.c.b16 %v7304, %v7303
        %v7424 = vpack.c.b16 %v7306, %v7305
        %v7425 = vpack.c.b16 %v7308, %v7307
        %v7426 = vpack.c.b16 %v7310, %v7309
        %v7427 = vpack.c.b16 %v7312, %v7311
        %v7428 = vpack.c.b16 %v7314, %v7313
        %v7429 = vpack.c.b16 %v7316, %v7315
        %v7430 = vpack.c.b16 %v7318, %v7317
        %v7431 = vpack.c.b16 %v7320, %v7319
        %v7432 = vpack.c.b16 %v7322, %v7321
        %v7433 = vpack.c.b16 %v7324, %v7323
        %v7434 = vpack.c.b16 %v7326, %v7325
        %v7435 = vpack.c.b16 %v7328, %v7327
        %v7436 = vpack.c.b16 %v7330, %v7329
        %v7437 = vpack.c.b16 %v7332, %v7331
        %v7438 = vpack.c.b16 %v7334, %v7333
        %v7439 = vpack.c.b16 %v7336, %v7335
        %v7440 = vpack.c.b16 %v7338, %v7337
        %v7441 = vpack.c.b16 %v7340, %v7339
        %v7442 = vpack.c.b16 %v7342, %v7341
        %v7443 = vpack.c.b16 %v7344, %v7343
        %v7444 = vpack.c.b16 %v7346, %v7345
        %v7445 = vpack.c.b16 %v7348, %v7347
        %v7446 = vpack.c.b16 %v7350, %v7349
        %v7447 = vpack.c.b16 %v7352, %v7351
        %v7448 = vpack.c.b16 %v7354, %v7353
        %v7449 = vpack.c.b16 %v7356, %v7355
        %v7450 = vpack.c.b16 %v7358, %v7357
        %v7451 = vpack.c.b16 %v7360, %v7359
        %v7452 = vpack.c.b16 %v7362, %v7361
        %v7453 = vpack.c.b16 %v7364, %v7363
        %v7454 = vpack.c.b16 %v7366, %v7365
        %v7455 = vpack.c.b16 %v7368, %v7367
        %v7456 = vpack.c.b16 %v7370, %v7369
        %v7457 = vpack.c.b16 %v7372, %v7371
        %v7458 = vpack.c.b16 %v7374, %v7373
        %v7459 = vpack.c.b16 %v7376, %v7375
        %v7460 = vpack.c.b16 %v7378, %v7377
        %v7461 = vpack.c.b16 %v7380, %v7379
        %v7462 = vpack.c.b16 %v7382, %v7381
        %v7463 = vpack.c.b16 %v7384, %v7383
        %v7464 = vpack.c.b16 %v7386, %v7385
        %v7465 = vpack.c.b16 %v7388, %v7387
        %v7466 = vpack.c.b16 %v7390, %v7389
        %v7467 = vpack.c.b16 %v7392, %v7391
        %v7468 = vpack.c.b16 %v7394, %v7393
        %v7469 = vpack.c.b16 %v7396, %v7395
        %v7470 = vpack.c.b16 %v7398, %v7397
        %7543 = vmatprep.subr.bf16.mxu0 0
        %7544 = vmatpush1.bf16.msra.mxu0 %v7406
        %7545 = vmatprep.subr.bf16.mxu0 0
        %7546 = vmatpush1.bf16.msra.mxu0 %v7405
        %7547 = vmatprep.subr.bf16.mxu0 0
        %7548 = vmatpush1.bf16.msra.mxu0 %v7404
        %7549 = vmatprep.subr.bf16.mxu0 0
        %7550 = vmatpush1.bf16.msra.mxu0 %v7403
        %7551 = vmatprep.subr.bf16.mxu0 0
        %7552 = vmatpush1.bf16.msra.mxu0 %v7402
        %7553 = vmatprep.subr.bf16.mxu0 0
        %7554 = vmatpush1.bf16.msra.mxu0 %v7401
        %7555 = vmatprep.subr.bf16.mxu0 0
        %7556 = vmatpush1.bf16.msra.mxu0 %v7400
        %7557 = vmatprep.subr.bf16.mxu0 0
        %7558 = vmatpush1.bf16.msra.mxu0 %v7399
        %7559 = vmatprep.subr.bf16.mxu0 0
        %7560 = vmatpush2.bf16.msra.mxu0 %v7414
        %7561 = vmatprep.subr.bf16.mxu0 0
        %7562 = vmatpush2.bf16.msra.mxu0 %v7413
        %7563 = vmatprep.subr.bf16.mxu0 0
        %7564 = vmatpush2.bf16.msra.mxu0 %v7412
        %7565 = vmatprep.subr.bf16.mxu0 0
        %7566 = vmatpush2.bf16.msra.mxu0 %v7411
        %7567 = vmatprep.subr.bf16.mxu0 0
        %7568 = vmatpush2.bf16.msra.mxu0 %v7410
        %7569 = vmatprep.subr.bf16.mxu0 0
        %7570 = vmatpush2.bf16.msra.mxu0 %v7409
        %7571 = vmatprep.subr.bf16.mxu0 0
        %7572 = vmatpush2.bf16.msra.mxu0 %v7408
        %7573 = vmatprep.subr.bf16.mxu0 0
        %7574 = vmatpush2.bf16.msra.mxu0 %v7407
        %7575 = vmatprep.mubr.bf16.mxu0 %v6932
        %7576 = vmatmul.mubr.bf16.gmra.mxu0 %v6931
        %v7577 = vpop.f32.mrf.mxu0
        %v7578 = vadd.f32 0.0, %v7577
        %v7579 = vpop.f32.mrf.mxu0
        %v7580 = vpop.f32.mrf.mxu0
        %v7581 = vadd.f32 0.0, %v7580
        %v7582 = vpop.f32.mrf.mxu0
        %7583 = vmatprep.mubr.bf16.mxu0 %v6941
        %7584 = vmatmul.mubr.bf16.gmra.mxu0 %v6940
        %v7585 = vpop.f32.mrf.mxu0
        %v7586 = vadd.f32 0.0, %v7585
        %v7587 = vpop.f32.mrf.mxu0
        %v7588 = vpop.f32.mrf.mxu0
        %v7589 = vadd.f32 0.0, %v7588
        %v7590 = vpop.f32.mrf.mxu0
        %7591 = vmatprep.mubr.bf16.mxu0 %v6950
        %7592 = vmatmul.mubr.bf16.gmra.mxu0 %v6949
        %v7593 = vpop.f32.mrf.mxu0
        %v7594 = vadd.f32 0.0, %v7593
        %v7595 = vpop.f32.mrf.mxu0
        %v7596 = vpop.f32.mrf.mxu0
        %v7597 = vadd.f32 0.0, %v7596
        %v7598 = vpop.f32.mrf.mxu0
        %7599 = vmatprep.mubr.bf16.mxu0 %v6959
        %7600 = vmatmul.mubr.bf16.gmra.mxu0 %v6958
        %v7601 = vpop.f32.mrf.mxu0
        %v7602 = vadd.f32 0.0, %v7601
        %v7603 = vpop.f32.mrf.mxu0
        %v7604 = vpop.f32.mrf.mxu0
        %v7605 = vadd.f32 0.0, %v7604
        %v7606 = vpop.f32.mrf.mxu0
        %7607 = vdwg.mxu0
        %7608 = vmatprep.subr.bf16.mxu0 0
        %7609 = vmatpush1.bf16.msra.mxu0 %v7422
        %7610 = vmatprep.subr.bf16.mxu0 0
        %7611 = vmatpush1.bf16.msra.mxu0 %v7421
        %7612 = vmatprep.subr.bf16.mxu0 0
        %7613 = vmatpush1.bf16.msra.mxu0 %v7420
        %7614 = vmatprep.subr.bf16.mxu0 0
        %7615 = vmatpush1.bf16.msra.mxu0 %v7419
        %7616 = vmatprep.subr.bf16.mxu0 0
        %7617 = vmatpush1.bf16.msra.mxu0 %v7418
        %7618 = vmatprep.subr.bf16.mxu0 0
        %7619 = vmatpush1.bf16.msra.mxu0 %v7417
        %7620 = vmatprep.subr.bf16.mxu0 0
        %7621 = vmatpush1.bf16.msra.mxu0 %v7416
        %7622 = vmatprep.subr.bf16.mxu0 0
        %7623 = vmatpush1.bf16.msra.mxu0 %v7415
        %7624 = vmatprep.subr.bf16.mxu0 0
        %7625 = vmatpush2.bf16.msra.mxu0 %v7430
        %7626 = vmatprep.subr.bf16.mxu0 0
        %7627 = vmatpush2.bf16.msra.mxu0 %v7429
        %7628 = vmatprep.subr.bf16.mxu0 0
        %7629 = vmatpush2.bf16.msra.mxu0 %v7428
        %7630 = vmatprep.subr.bf16.mxu0 0
        %7631 = vmatpush2.bf16.msra.mxu0 %v7427
        %7632 = vmatprep.subr.bf16.mxu0 0
        %7633 = vmatpush2.bf16.msra.mxu0 %v7426
        %7634 = vmatprep.subr.bf16.mxu0 0
        %7635 = vmatpush2.bf16.msra.mxu0 %v7425
        %7636 = vmatprep.subr.bf16.mxu0 0
        %7637 = vmatpush2.bf16.msra.mxu0 %v7424
        %7638 = vmatprep.subr.bf16.mxu0 0
        %7639 = vmatpush2.bf16.msra.mxu0 %v7423
        %7640 = vmatprep.mubr.bf16.mxu0 %v6934
        %7641 = vmatmul.mubr.bf16.gmra.mxu0 %v6933
        %v7642 = vpop.f32.mrf.mxu0
        %v7643 = vadd.f32 %v7578, %v7642
        %v7644 = vpop.f32.mrf.mxu0
        %v7645 = vpop.f32.mrf.mxu0
        %v7646 = vadd.f32 %v7581, %v7645
        %v7647 = vpop.f32.mrf.mxu0
        %7648 = vmatprep.mubr.bf16.mxu0 %v6943
        %7649 = vmatmul.mubr.bf16.gmra.mxu0 %v6942
        %v7650 = vpop.f32.mrf.mxu0
        %v7651 = vadd.f32 %v7586, %v7650
        %v7652 = vpop.f32.mrf.mxu0
        %v7653 = vpop.f32.mrf.mxu0
        %v7654 = vadd.f32 %v7589, %v7653
        %v7655 = vpop.f32.mrf.mxu0
        %7656 = vmatprep.mubr.bf16.mxu0 %v6952
        %7657 = vmatmul.mubr.bf16.gmra.mxu0 %v6951
        %v7658 = vpop.f32.mrf.mxu0
        %v7659 = vadd.f32 %v7594, %v7658
        %v7660 = vpop.f32.mrf.mxu0
        %v7661 = vpop.f32.mrf.mxu0
        %v7662 = vadd.f32 %v7597, %v7661
        %v7663 = vpop.f32.mrf.mxu0
        %7664 = vmatprep.mubr.bf16.mxu0 %v6961
        %7665 = vmatmul.mubr.bf16.gmra.mxu0 %v6960
        %v7666 = vpop.f32.mrf.mxu0
        %v7667 = vadd.f32 %v7602, %v7666
        %v7668 = vpop.f32.mrf.mxu0
        %v7669 = vpop.f32.mrf.mxu0
        %v7670 = vadd.f32 %v7605, %v7669
        %v7671 = vpop.f32.mrf.mxu0
        %7672 = vdwg.mxu0
        %7673 = vmatprep.subr.bf16.mxu0 0
        %7674 = vmatpush1.bf16.msra.mxu0 %v7438
        %7675 = vmatprep.subr.bf16.mxu0 0
        %7676 = vmatpush1.bf16.msra.mxu0 %v7437
        %7677 = vmatprep.subr.bf16.mxu0 0
        %7678 = vmatpush1.bf16.msra.mxu0 %v7436
        %7679 = vmatprep.subr.bf16.mxu0 0
        %7680 = vmatpush1.bf16.msra.mxu0 %v7435
        %7681 = vmatprep.subr.bf16.mxu0 0
        %7682 = vmatpush1.bf16.msra.mxu0 %v7434
        %7683 = vmatprep.subr.bf16.mxu0 0
        %7684 = vmatpush1.bf16.msra.mxu0 %v7433
        %7685 = vmatprep.subr.bf16.mxu0 0
        %7686 = vmatpush1.bf16.msra.mxu0 %v7432
        %7687 = vmatprep.subr.bf16.mxu0 0
        %7688 = vmatpush1.bf16.msra.mxu0 %v7431
        %7689 = vmatprep.subr.bf16.mxu0 0
        %7690 = vmatpush2.bf16.msra.mxu0 %v7446
        %7691 = vmatprep.subr.bf16.mxu0 0
        %7692 = vmatpush2.bf16.msra.mxu0 %v7445
        %7693 = vmatprep.subr.bf16.mxu0 0
        %7694 = vmatpush2.bf16.msra.mxu0 %v7444
        %7695 = vmatprep.subr.bf16.mxu0 0
        %7696 = vmatpush2.bf16.msra.mxu0 %v7443
        %7697 = vmatprep.subr.bf16.mxu0 0
        %7698 = vmatpush2.bf16.msra.mxu0 %v7442
        %7699 = vmatprep.subr.bf16.mxu0 0
        %7700 = vmatpush2.bf16.msra.mxu0 %v7441
        %7701 = vmatprep.subr.bf16.mxu0 0
        %7702 = vmatpush2.bf16.msra.mxu0 %v7440
        %7703 = vmatprep.subr.bf16.mxu0 0
        %7704 = vmatpush2.bf16.msra.mxu0 %v7439
        %7705 = vmatprep.mubr.bf16.mxu0 %v6936
        %7706 = vmatmul.mubr.bf16.gmra.mxu0 %v6935
        %v7707 = vpop.f32.mrf.mxu0
        %v7708 = vadd.f32 %v7643, %v7707
        %v7709 = vpop.f32.mrf.mxu0
        %v7710 = vpop.f32.mrf.mxu0
        %v7711 = vadd.f32 %v7646, %v7710
        %v7712 = vpop.f32.mrf.mxu0
        %7713 = vmatprep.mubr.bf16.mxu0 %v6945
        %7714 = vmatmul.mubr.bf16.gmra.mxu0 %v6944
        %v7715 = vpop.f32.mrf.mxu0
        %v7716 = vadd.f32 %v7651, %v7715
        %v7717 = vpop.f32.mrf.mxu0
        %v7718 = vpop.f32.mrf.mxu0
        %v7719 = vadd.f32 %v7654, %v7718
        %v7720 = vpop.f32.mrf.mxu0
        %7721 = vmatprep.mubr.bf16.mxu0 %v6954
        %7722 = vmatmul.mubr.bf16.gmra.mxu0 %v6953
        %v7723 = vpop.f32.mrf.mxu0
        %v7724 = vadd.f32 %v7659, %v7723
        %v7725 = vpop.f32.mrf.mxu0
        %v7726 = vpop.f32.mrf.mxu0
        %v7727 = vadd.f32 %v7662, %v7726
        %v7728 = vpop.f32.mrf.mxu0
        %7729 = vmatprep.mubr.bf16.mxu0 %v6963
        %7730 = vmatmul.mubr.bf16.gmra.mxu0 %v6962
        %v7731 = vpop.f32.mrf.mxu0
        %v7732 = vadd.f32 %v7667, %v7731
        %v7733 = vpop.f32.mrf.mxu0
        %v7734 = vpop.f32.mrf.mxu0
        %v7735 = vadd.f32 %v7670, %v7734
        %v7736 = vpop.f32.mrf.mxu0
        %7737 = vdwg.mxu0
        %7738 = vmatprep.subr.bf16.mxu0 0
        %7739 = vmatpush1.bf16.msra.mxu0 %v7454
        %7740 = vmatprep.subr.bf16.mxu0 0
        %7741 = vmatpush1.bf16.msra.mxu0 %v7453
        %7742 = vmatprep.subr.bf16.mxu0 0
        %7743 = vmatpush1.bf16.msra.mxu0 %v7452
        %7744 = vmatprep.subr.bf16.mxu0 0
        %7745 = vmatpush1.bf16.msra.mxu0 %v7451
        %7746 = vmatprep.subr.bf16.mxu0 0
        %7747 = vmatpush1.bf16.msra.mxu0 %v7450
        %7748 = vmatprep.subr.bf16.mxu0 0
        %7749 = vmatpush1.bf16.msra.mxu0 %v7449
        %7750 = vmatprep.subr.bf16.mxu0 0
        %7751 = vmatpush1.bf16.msra.mxu0 %v7448
        %7752 = vmatprep.subr.bf16.mxu0 0
        %7753 = vmatpush1.bf16.msra.mxu0 %v7447
        %7754 = vmatprep.subr.bf16.mxu0 0
        %7755 = vmatpush2.bf16.msra.mxu0 %v7462
        %7756 = vmatprep.subr.bf16.mxu0 0
        %7757 = vmatpush2.bf16.msra.mxu0 %v7461
        %7758 = vmatprep.subr.bf16.mxu0 0
        %7759 = vmatpush2.bf16.msra.mxu0 %v7460
        %7760 = vmatprep.subr.bf16.mxu0 0
        %7761 = vmatpush2.bf16.msra.mxu0 %v7459
        %7762 = vmatprep.subr.bf16.mxu0 0
        %7763 = vmatpush2.bf16.msra.mxu0 %v7458
        %7764 = vmatprep.subr.bf16.mxu0 0
        %7765 = vmatpush2.bf16.msra.mxu0 %v7457
        %7766 = vmatprep.subr.bf16.mxu0 0
        %7767 = vmatpush2.bf16.msra.mxu0 %v7456
        %7768 = vmatprep.subr.bf16.mxu0 0
        %7769 = vmatpush2.bf16.msra.mxu0 %v7455
        %7770 = vmatprep.mubr.bf16.mxu0 %v6938
        %7771 = vmatmul.mubr.bf16.gmra.mxu0 %v6937
        %v7772 = vpop.f32.mrf.mxu0
        %v7773 = vadd.f32 %v7708, %v7772
        %v7774 = vpop.f32.mrf.mxu0
        %v7775 = vpop.f32.mrf.mxu0
        %v7776 = vadd.f32 %v7711, %v7775
        %v7777 = vpop.f32.mrf.mxu0
        %7778 = vmatprep.mubr.bf16.mxu0 %v6947
        %7779 = vmatmul.mubr.bf16.gmra.mxu0 %v6946
        %v7780 = vpop.f32.mrf.mxu0
        %v7781 = vadd.f32 %v7716, %v7780
        %v7782 = vpop.f32.mrf.mxu0
        %v7783 = vpop.f32.mrf.mxu0
        %v7784 = vadd.f32 %v7719, %v7783
        %v7785 = vpop.f32.mrf.mxu0
        %7786 = vmatprep.mubr.bf16.mxu0 %v6956
        %7787 = vmatmul.mubr.bf16.gmra.mxu0 %v6955
        %v7788 = vpop.f32.mrf.mxu0
        %v7789 = vadd.f32 %v7724, %v7788
        %v7790 = vpop.f32.mrf.mxu0
        %v7791 = vpop.f32.mrf.mxu0
        %v7792 = vadd.f32 %v7727, %v7791
        %v7793 = vpop.f32.mrf.mxu0
        %7794 = vmatprep.mubr.bf16.mxu0 %v6965
        %7795 = vmatmul.mubr.bf16.gmra.mxu0 %v6964
        %v7796 = vpop.f32.mrf.mxu0
        %v7797 = vadd.f32 %v7732, %v7796
        %v7798 = vpop.f32.mrf.mxu0
        %v7799 = vpop.f32.mrf.mxu0
        %v7800 = vadd.f32 %v7735, %v7799
        %v7801 = vpop.f32.mrf.mxu0
        %7802 = vdwg.mxu0
        %7803 = vmatprep.subr.bf16.mxu0 0
        %7804 = vmatpush1.bf16.msra.mxu0 %v7470
        %7805 = vmatprep.subr.bf16.mxu0 0
        %7806 = vmatpush1.bf16.msra.mxu0 %v7469
        %7807 = vmatprep.subr.bf16.mxu0 0
        %7808 = vmatpush1.bf16.msra.mxu0 %v7468
        %7809 = vmatprep.subr.bf16.mxu0 0
        %7810 = vmatpush1.bf16.msra.mxu0 %v7467
        %7811 = vmatprep.subr.bf16.mxu0 0
        %7812 = vmatpush1.bf16.msra.mxu0 %v7466
        %7813 = vmatprep.subr.bf16.mxu0 0
        %7814 = vmatpush1.bf16.msra.mxu0 %v7465
        %7815 = vmatprep.subr.bf16.mxu0 0
        %7816 = vmatpush1.bf16.msra.mxu0 %v7464
        %7817 = vmatprep.subr.bf16.mxu0 0
        %7818 = vmatpush1.bf16.msra.mxu0 %v7463
        %7819 = vmatprep.subr.bf16.mxu0 0
        %7820 = vmatpush2.bf16.msra.mxu0 0
        %7821 = vmatprep.subr.bf16.mxu0 0
        %7822 = vmatpush2.bf16.msra.mxu0 0
        %7823 = vmatprep.subr.bf16.mxu0 0
        %7824 = vmatpush2.bf16.msra.mxu0 0
        %7825 = vmatprep.subr.bf16.mxu0 0
        %7826 = vmatpush2.bf16.msra.mxu0 0
        %7827 = vmatprep.subr.bf16.mxu0 0
        %7828 = vmatpush2.bf16.msra.mxu0 0
        %7829 = vmatprep.subr.bf16.mxu0 0
        %7830 = vmatpush2.bf16.msra.mxu0 0
        %7831 = vmatprep.subr.bf16.mxu0 0
        %7832 = vmatpush2.bf16.msra.mxu0 0
        %7833 = vmatprep.subr.bf16.mxu0 0
        %7834 = vmatpush2.bf16.msra.mxu0 0
        %7835 = vmatprep.mubr.bf16.mxu0 0
        %7836 = vmatmul.mubr.bf16.gmra.mxu0 %v6939
        %v7837 = vpop.f32.mrf.mxu0
        %v7838 = vadd.f32 %v7773, %v7837
        %v7839 = vpop.f32.mrf.mxu0
        %v7840 = vpop.f32.mrf.mxu0
        %v7841 = vadd.f32 %v7776, %v7840
        %v7842 = vpop.f32.mrf.mxu0
        %7843 = vmatprep.mubr.bf16.mxu0 0
        %7844 = vmatmul.mubr.bf16.gmra.mxu0 %v6948
        %v7845 = vpop.f32.mrf.mxu0
        %v7846 = vadd.f32 %v7781, %v7845
        %v7847 = vpop.f32.mrf.mxu0
        %v7848 = vpop.f32.mrf.mxu0
        %v7849 = vadd.f32 %v7784, %v7848
        %v7850 = vpop.f32.mrf.mxu0
        %7851 = vmatprep.mubr.bf16.mxu0 0
        %7852 = vmatmul.mubr.bf16.gmra.mxu0 %v6957
        %v7853 = vpop.f32.mrf.mxu0
        %v7854 = vadd.f32 %v7789, %v7853
        %v7855 = vpop.f32.mrf.mxu0
        %v7856 = vpop.f32.mrf.mxu0
        %v7857 = vadd.f32 %v7792, %v7856
        %v7858 = vpop.f32.mrf.mxu0
        %7859 = vmatprep.mubr.bf16.mxu0 0
        %7860 = vmatmul.mubr.bf16.gmra.mxu0 %v6966
        %v7861 = vpop.f32.mrf.mxu0
        %v7862 = vadd.f32 %v7797, %v7861
        %v7863 = vpop.f32.mrf.mxu0
        %v7864 = vpop.f32.mrf.mxu0
        %v7865 = vadd.f32 %v7800, %v7864
        %v7866 = vpop.f32.mrf.mxu0
        %7867 = vdwg.mxu0
        %v7868 = vld [vmem:[%s5] sm:$0x1]
        %v7870 = vlaneseq
        %v7871 = vshrl.u32 %v7870, 7
        %v7872 = vsub.s32 0, %v7871
        %v7873 = vrot.slane %v7868, %v7872
        %v7875 = vmul.f32 %v7838, %v7873
        %v7876 = vmul.f32 %v7841, %v7873
        %v7877 = vmul.f32 %v7846, %v7873
        %v7878 = vmul.f32 %v7849, %v7873
        %v7879 = vmul.f32 %v7854, %v7873
        %v7880 = vmul.f32 %v7857, %v7873
        %v7881 = vmul.f32 %v7862, %v7873
        %v7882 = vmul.f32 %v7865, %v7873
        %v7883 = vld [vmem:[%s6] sm:$0x1]
        %v7885 = vlaneseq
        %v7886 = vshrl.u32 %v7885, 7
        %v7887 = vsub.s32 0, %v7886
        %v7888 = vrot.slane %v7883, %v7887
        %v7890 = vadd.f32 %v7875, %v7888
        %v7891 = vadd.f32 %v7876, %v7888
        %v7892 = vadd.f32 %v7877, %v7888
        %v7893 = vadd.f32 %v7878, %v7888
        %v7894 = vadd.f32 %v7879, %v7888
        %v7895 = vadd.f32 %v7880, %v7888
        %v7896 = vadd.f32 %v7881, %v7888
        %v7897 = vadd.f32 %v7882, %v7888
        %v7898 = vmax.f32 %v7890, 0.0
        %v7899 = vmax.f32 %v7891, 0.0
        %v7900 = vmax.f32 %v7892, 0.0
        %v7901 = vmax.f32 %v7893, 0.0
        %v7902 = vmax.f32 %v7894, 0.0
        %v7903 = vmax.f32 %v7895, 0.0
        %v7904 = vmax.f32 %v7896, 0.0
        %v7905 = vmax.f32 %v7897, 0.0
        %7906 = vst [vmem:[%s6849 + $0x1] sm:$0xff] %v7898
        %7907 = vst [vmem:[%s6849 + $0x11] sm:$0xff] %v7899
        %7908 = vst [vmem:[%s6849 + $0x21] sm:$0xff] %v7900
        %7909 = vst [vmem:[%s6849 + $0x31] sm:$0xff] %v7901
        %7910 = vst [vmem:[%s6849 + $0x41] sm:$0xff] %v7902
        %7911 = vst [vmem:[%s6849 + $0x51] sm:$0xff] %v7903
        %7912 = vst [vmem:[%s6849 + $0x61] sm:$0xff] %v7904
        %7913 = vst [vmem:[%s6849 + $0x71] sm:$0xff] %v7905
        %v7914 = vld [vmem:[#allocation4] sm:$0xff]
        %v7915 = vld [vmem:[#allocation4 + $0x10] sm:$0xff]
        %v7916 = vld [vmem:[#allocation4 + $0x20] sm:$0xff]
        %v7917 = vld [vmem:[#allocation4 + $0x30] sm:$0xff]
        %v7918 = vld [vmem:[#allocation4 + $0x40] sm:$0xff]
        %v7919 = vld [vmem:[#allocation4 + $0x50] sm:$0xff]
        %v7920 = vld [vmem:[#allocation4 + $0x60] sm:$0xff]
        %v7921 = vld [vmem:[#allocation4 + $0x70] sm:$0xff]
        %v7922 = vld [vmem:[#allocation4 + $0x1] sm:$0xff]
        %v7923 = vld [vmem:[#allocation4 + $0x11] sm:$0xff]
        %v7924 = vld [vmem:[#allocation4 + $0x21] sm:$0xff]
        %v7925 = vld [vmem:[#allocation4 + $0x31] sm:$0xff]
        %v7926 = vld [vmem:[#allocation4 + $0x41] sm:$0xff]
        %v7927 = vld [vmem:[#allocation4 + $0x51] sm:$0xff]
        %v7928 = vld [vmem:[#allocation4 + $0x61] sm:$0xff]
        %v7929 = vld [vmem:[#allocation4 + $0x71] sm:$0xff]
        %v7930 = vld [vmem:[#allocation4 + $0x2] sm:$0xff]
        %v7931 = vld [vmem:[#allocation4 + $0x12] sm:$0xff]
        %v7932 = vld [vmem:[#allocation4 + $0x22] sm:$0xff]
        %v7933 = vld [vmem:[#allocation4 + $0x32] sm:$0xff]
        %v7934 = vld [vmem:[#allocation4 + $0x42] sm:$0xff]
        %v7935 = vld [vmem:[#allocation4 + $0x52] sm:$0xff]
        %v7936 = vld [vmem:[#allocation4 + $0x62] sm:$0xff]
        %v7937 = vld [vmem:[#allocation4 + $0x72] sm:$0xff]
        %v7938 = vld [vmem:[%s6849] sm:$0xff]
        %v7939 = vld [vmem:[%s6849 + $0x10] sm:$0xff]
        %v7940 = vld [vmem:[%s6849 + $0x20] sm:$0xff]
        %v7941 = vld [vmem:[%s6849 + $0x30] sm:$0xff]
        %v7942 = vld [vmem:[%s6849 + $0x40] sm:$0xff]
        %v7943 = vld [vmem:[%s6849 + $0x50] sm:$0xff]
        %v7944 = vld [vmem:[%s6849 + $0x60] sm:$0xff]
        %v7945 = vld [vmem:[%s6849 + $0x70] sm:$0xff]
        %v7946 = vld [vmem:[%s6849 + $0x1] sm:$0xff]
        %v7947 = vld [vmem:[%s6849 + $0x11] sm:$0xff]
        %v7948 = vld [vmem:[%s6849 + $0x21] sm:$0xff]
        %v7949 = vld [vmem:[%s6849 + $0x31] sm:$0xff]
        %v7950 = vld [vmem:[%s6849 + $0x41] sm:$0xff]
        %v7951 = vld [vmem:[%s6849 + $0x51] sm:$0xff]
        %v7952 = vld [vmem:[%s6849 + $0x61] sm:$0xff]
        %v7953 = vld [vmem:[%s6849 + $0x71] sm:$0xff]
        %v7954 = vld [vmem:[%s6849 + $0x2] sm:$0xff]
        %v7955 = vld [vmem:[%s6849 + $0x12] sm:$0xff]
        %v7956 = vld [vmem:[%s6849 + $0x22] sm:$0xff]
        %v7957 = vld [vmem:[%s6849 + $0x32] sm:$0xff]
        %v7958 = vld [vmem:[%s6849 + $0x42] sm:$0xff]
        %v7959 = vld [vmem:[%s6849 + $0x52] sm:$0xff]
        %v7960 = vld [vmem:[%s6849 + $0x62] sm:$0xff]
        %v7961 = vld [vmem:[%s6849 + $0x72] sm:$0xff]
        %v7962 = vld [vmem:[%s6906] sm:$0xff]
        %v7963 = vld [vmem:[%s6906 + $0x10] sm:$0xff]
        %v7964 = vld [vmem:[%s6906 + $0x20] sm:$0xff]
        %v7965 = vld [vmem:[%s6906 + $0x30] sm:$0xff]
        %v7966 = vld [vmem:[%s6906 + $0x40] sm:$0xff]
        %v7967 = vld [vmem:[%s6906 + $0x50] sm:$0xff]
        %v7968 = vld [vmem:[%s6906 + $0x60] sm:$0xff]
        %v7969 = vld [vmem:[%s6906 + $0x70] sm:$0xff]
        %v7970 = vld [vmem:[%s6906 + $0x1] sm:$0xff]
        %v7971 = vld [vmem:[%s6906 + $0x11] sm:$0xff]
        %v7972 = vld [vmem:[%s6906 + $0x21] sm:$0xff]
        %v7973 = vld [vmem:[%s6906 + $0x31] sm:$0xff]
        %v7974 = vld [vmem:[%s6906 + $0x41] sm:$0xff]
        %v7975 = vld [vmem:[%s6906 + $0x51] sm:$0xff]
        %v7976 = vld [vmem:[%s6906 + $0x61] sm:$0xff]
        %v7977 = vld [vmem:[%s6906 + $0x71] sm:$0xff]
        %v7978 = vld [vmem:[%s6906 + $0x2] sm:$0xff]
        %v7979 = vld [vmem:[%s6906 + $0x12] sm:$0xff]
        %v7980 = vld [vmem:[%s6906 + $0x22] sm:$0xff]
        %v7981 = vld [vmem:[%s6906 + $0x32] sm:$0xff]
        %v7982 = vld [vmem:[%s6906 + $0x42] sm:$0xff]
        %v7983 = vld [vmem:[%s6906 + $0x52] sm:$0xff]
        %v7984 = vld [vmem:[%s6906 + $0x62] sm:$0xff]
        %v7985 = vld [vmem:[%s6906 + $0x72] sm:$0xff]
        %v7986 = vpack.c.bf16 %v7915, %v7914
        %v7987 = vpack.c.bf16 %v7923, %v7922
        %v7988 = vpack.c.bf16 %v7931, %v7930
        %v7989 = vpack.c.bf16 %v7939, %v7938
        %v7990 = vpack.c.bf16 %v7947, %v7946
        %v7991 = vpack.c.bf16 %v7955, %v7954
        %v7992 = vpack.c.bf16 %v7963, %v7962
        %v7993 = vpack.c.bf16 %v7971, %v7970
        %v7994 = vpack.c.bf16 %v7979, %v7978
        %v7995 = vpack.c.bf16 %v7917, %v7916
        %v7996 = vpack.c.bf16 %v7925, %v7924
        %v7997 = vpack.c.bf16 %v7933, %v7932
        %v7998 = vpack.c.bf16 %v7941, %v7940
        %v7999 = vpack.c.bf16 %v7949, %v7948
        %v8000 = vpack.c.bf16 %v7957, %v7956
        %v8001 = vpack.c.bf16 %v7965, %v7964
        %v8002 = vpack.c.bf16 %v7973, %v7972
        %v8003 = vpack.c.bf16 %v7981, %v7980
        %v8004 = vpack.c.bf16 %v7919, %v7918
        %v8005 = vpack.c.bf16 %v7927, %v7926
        %v8006 = vpack.c.bf16 %v7935, %v7934
        %v8007 = vpack.c.bf16 %v7943, %v7942
        %v8008 = vpack.c.bf16 %v7951, %v7950
        %v8009 = vpack.c.bf16 %v7959, %v7958
        %v8010 = vpack.c.bf16 %v7967, %v7966
        %v8011 = vpack.c.bf16 %v7975, %v7974
        %v8012 = vpack.c.bf16 %v7983, %v7982
        %v8013 = vpack.c.bf16 %v7921, %v7920
        %v8014 = vpack.c.bf16 %v7929, %v7928
        %v8015 = vpack.c.bf16 %v7937, %v7936
        %v8016 = vpack.c.bf16 %v7945, %v7944
        %v8017 = vpack.c.bf16 %v7953, %v7952
        %v8018 = vpack.c.bf16 %v7961, %v7960
        %v8019 = vpack.c.bf16 %v7969, %v7968
        %v8020 = vpack.c.bf16 %v7977, %v7976
        %v8021 = vpack.c.bf16 %v7985, %v7984
        %v8022 = vld [vmem:[%s7] sm:$0xf]
        %v8023 = vld [vmem:[%s7 + $0x4] sm:$0xf]
        %v8024 = vld [vmem:[%s7 + $0x8] sm:$0xf]
        %v8025 = vld [vmem:[%s7 + $0xc] sm:$0xf]
        %v8026 = vld [vmem:[%s7 + $0x10] sm:$0xf]
        %v8027 = vld [vmem:[%s7 + $0x14] sm:$0xf]
        %v8028 = vld [vmem:[%s7 + $0x18] sm:$0xf]
        %v8029 = vld [vmem:[%s7 + $0x1c] sm:$0xf]
        %v8030 = vld [vmem:[%s7 + $0x20] sm:$0xf]
        %v8031 = vld [vmem:[%s7 + $0x24] sm:$0xf]
        %v8032 = vld [vmem:[%s7 + $0x28] sm:$0xf]
        %v8033 = vld [vmem:[%s7 + $0x2c] sm:$0xf]
        %v8034 = vld [vmem:[%s7 + $0x30] sm:$0xf]
        %v8035 = vld [vmem:[%s7 + $0x34] sm:$0xf]
        %v8036 = vld [vmem:[%s7 + $0x38] sm:$0xf]
        %v8037 = vld [vmem:[%s7 + $0x3c] sm:$0xf]
        %v8038 = vld [vmem:[%s7 + $0x40] sm:$0xf]
        %v8039 = vld [vmem:[%s7 + $0x44] sm:$0xf]
        %v8040 = vld [vmem:[%s7 + $0x48] sm:$0xf]
        %v8041 = vld [vmem:[%s7 + $0x4c] sm:$0xf]
        %v8042 = vld [vmem:[%s7 + $0x50] sm:$0xf]
        %v8043 = vld [vmem:[%s7 + $0x54] sm:$0xf]
        %v8044 = vld [vmem:[%s7 + $0x58] sm:$0xf]
        %v8045 = vld [vmem:[%s7 + $0x5c] sm:$0xf]
        %v8046 = vld [vmem:[%s7 + $0x60] sm:$0xf]
        %v8047 = vld [vmem:[%s7 + $0x64] sm:$0xf]
        %v8048 = vld [vmem:[%s7 + $0x68] sm:$0xf]
        %v8049 = vld [vmem:[%s7 + $0x6c] sm:$0xf]
        %v8050 = vld [vmem:[%s7 + $0x70] sm:$0xf]
        %v8051 = vld [vmem:[%s7 + $0x74] sm:$0xf]
        %v8052 = vld [vmem:[%s7 + $0x78] sm:$0xf]
        %v8053 = vld [vmem:[%s7 + $0x7c] sm:$0xf]
        %v8054 = vld [vmem:[%s7 + $0x80] sm:$0xf]
        %v8055 = vld [vmem:[%s7 + $0x84] sm:$0xf]
        %v8056 = vld [vmem:[%s7 + $0x88] sm:$0xf]
        %v8057 = vld [vmem:[%s7 + $0x8c] sm:$0xf]
        %v8058 = vld [vmem:[%s7 + $0x90] sm:$0xf]
        %v8059 = vld [vmem:[%s7 + $0x94] sm:$0xf]
        %v8060 = vld [vmem:[%s7 + $0x98] sm:$0xf]
        %v8061 = vld [vmem:[%s7 + $0x9c] sm:$0xf]
        %v8062 = vld [vmem:[%s7 + $0xa0] sm:$0xf]
        %v8063 = vld [vmem:[%s7 + $0xa4] sm:$0xf]
        %v8064 = vld [vmem:[%s7 + $0xa8] sm:$0xf]
        %v8065 = vld [vmem:[%s7 + $0xac] sm:$0xf]
        %v8066 = vld [vmem:[%s7 + $0xb0] sm:$0xf]
        %v8067 = vld [vmem:[%s7 + $0xb4] sm:$0xf]
        %v8068 = vld [vmem:[%s7 + $0xb8] sm:$0xf]
        %v8069 = vld [vmem:[%s7 + $0xbc] sm:$0xf]
        %v8070 = vld [vmem:[%s7 + $0xc0] sm:$0xf]
        %v8071 = vld [vmem:[%s7 + $0xc4] sm:$0xf]
        %v8072 = vld [vmem:[%s7 + $0xc8] sm:$0xf]
        %v8073 = vld [vmem:[%s7 + $0xcc] sm:$0xf]
        %v8074 = vld [vmem:[%s7 + $0xd0] sm:$0xf]
        %v8075 = vld [vmem:[%s7 + $0xd4] sm:$0xf]
        %v8076 = vld [vmem:[%s7 + $0xd8] sm:$0xf]
        %v8077 = vld [vmem:[%s7 + $0xdc] sm:$0xf]
        %v8078 = vld [vmem:[%s7 + $0xe0] sm:$0xf]
        %v8079 = vld [vmem:[%s7 + $0xe4] sm:$0xf]
        %v8080 = vld [vmem:[%s7 + $0xe8] sm:$0xf]
        %v8081 = vld [vmem:[%s7 + $0xec] sm:$0xf]
        %v8082 = vld [vmem:[%s7 + $0xf0] sm:$0xf]
        %v8083 = vld [vmem:[%s7 + $0xf4] sm:$0xf]
        %v8084 = vld [vmem:[%s7 + $0xf8] sm:$0xf]
        %v8085 = vld [vmem:[%s7 + $0xfc] sm:$0xf]
        %v8086 = vld [vmem:[%s7 + $0x100] sm:$0xf]
        %v8087 = vld [vmem:[%s7 + $0x104] sm:$0xf]
        %v8088 = vld [vmem:[%s7 + $0x108] sm:$0xf]
        %v8089 = vld [vmem:[%s7 + $0x10c] sm:$0xf]
        %v8090 = vld [vmem:[%s7 + $0x110] sm:$0xf]
        %v8091 = vld [vmem:[%s7 + $0x114] sm:$0xf]
        %v8092 = vld [vmem:[%s7 + $0x118] sm:$0xf]
        %v8093 = vld [vmem:[%s7 + $0x11c] sm:$0xf]
        %v8094 = vld [vmem:[%s7 + $0x120] sm:$0xf]
        %v8095 = vld [vmem:[%s7 + $0x124] sm:$0xf]
        %v8096 = vld [vmem:[%s7 + $0x128] sm:$0xf]
        %v8097 = vld [vmem:[%s7 + $0x12c] sm:$0xf]
        %v8098 = vld [vmem:[%s7 + $0x130] sm:$0xf]
        %v8099 = vld [vmem:[%s7 + $0x134] sm:$0xf]
        %v8100 = vld [vmem:[%s7 + $0x138] sm:$0xf]
        %v8101 = vld [vmem:[%s7 + $0x13c] sm:$0xf]
        %v8102 = vld [vmem:[%s7 + $0x140] sm:$0xf]
        %v8103 = vld [vmem:[%s7 + $0x144] sm:$0xf]
        %v8104 = vld [vmem:[%s7 + $0x148] sm:$0xf]
        %v8105 = vld [vmem:[%s7 + $0x14c] sm:$0xf]
        %v8106 = vld [vmem:[%s7 + $0x150] sm:$0xf]
        %v8107 = vld [vmem:[%s7 + $0x154] sm:$0xf]
        %v8108 = vld [vmem:[%s7 + $0x158] sm:$0xf]
        %v8109 = vld [vmem:[%s7 + $0x15c] sm:$0xf]
        %v8110 = vld [vmem:[%s7 + $0x160] sm:$0xf]
        %v8111 = vld [vmem:[%s7 + $0x164] sm:$0xf]
        %v8112 = vld [vmem:[%s7 + $0x168] sm:$0xf]
        %v8113 = vld [vmem:[%s7 + $0x16c] sm:$0xf]
        %v8114 = vld [vmem:[%s7 + $0x170] sm:$0xf]
        %v8115 = vld [vmem:[%s7 + $0x174] sm:$0xf]
        %v8116 = vld [vmem:[%s7 + $0x178] sm:$0xf]
        %v8117 = vld [vmem:[%s7 + $0x17c] sm:$0xf]
        %v8118 = vld [vmem:[%s7 + $0x180] sm:$0xf]
        %v8119 = vld [vmem:[%s7 + $0x184] sm:$0xf]
        %v8120 = vld [vmem:[%s7 + $0x188] sm:$0xf]
        %v8121 = vld [vmem:[%s7 + $0x18c] sm:$0xf]
        %v8122 = vld [vmem:[%s7 + $0x190] sm:$0xf]
        %v8123 = vld [vmem:[%s7 + $0x194] sm:$0xf]
        %v8124 = vld [vmem:[%s7 + $0x198] sm:$0xf]
        %v8125 = vld [vmem:[%s7 + $0x19c] sm:$0xf]
        %v8126 = vld [vmem:[%s7 + $0x1a0] sm:$0xf]
        %v8127 = vld [vmem:[%s7 + $0x1a4] sm:$0xf]
        %v8128 = vld [vmem:[%s7 + $0x1a8] sm:$0xf]
        %v8129 = vld [vmem:[%s7 + $0x1ac] sm:$0xf]
        %v8130 = vld [vmem:[%s7 + $0x1b0] sm:$0xf]
        %v8131 = vld [vmem:[%s7 + $0x1b4] sm:$0xf]
        %v8132 = vld [vmem:[%s7 + $0x1b8] sm:$0xf]
        %v8133 = vld [vmem:[%s7 + $0x1bc] sm:$0xf]
        %v8134 = vld [vmem:[%s7 + $0x1c0] sm:$0xf]
        %v8135 = vld [vmem:[%s7 + $0x1c4] sm:$0xf]
        %v8136 = vld [vmem:[%s7 + $0x1c8] sm:$0xf]
        %v8137 = vld [vmem:[%s7 + $0x1cc] sm:$0xf]
        %v8138 = vld [vmem:[%s7 + $0x1d0] sm:$0xf]
        %v8139 = vld [vmem:[%s7 + $0x1d4] sm:$0xf]
        %v8140 = vld [vmem:[%s7 + $0x1d8] sm:$0xf]
        %v8141 = vld [vmem:[%s7 + $0x1dc] sm:$0xf]
        %v8142 = vld [vmem:[%s7 + $0x1e0] sm:$0xf]
        %v8143 = vld [vmem:[%s7 + $0x1e4] sm:$0xf]
        %v8144 = vld [vmem:[%s7 + $0x1e8] sm:$0xf]
        %v8145 = vld [vmem:[%s7 + $0x1ec] sm:$0xf]
        %v8146 = vld [vmem:[%s7 + $0x1f0] sm:$0xf]
        %v8147 = vld [vmem:[%s7 + $0x1f4] sm:$0xf]
        %v8148 = vld [vmem:[%s7 + $0x1f8] sm:$0xf]
        %v8149 = vld [vmem:[%s7 + $0x1fc] sm:$0xf]
        %v8150 = vld [vmem:[%s7 + $0x200] sm:$0xf]
        %v8151 = vld [vmem:[%s7 + $0x204] sm:$0xf]
        %v8152 = vld [vmem:[%s7 + $0x208] sm:$0xf]
        %v8153 = vld [vmem:[%s7 + $0x20c] sm:$0xf]
        %v8154 = vld [vmem:[%s7 + $0x210] sm:$0xf]
        %v8155 = vld [vmem:[%s7 + $0x214] sm:$0xf]
        %v8156 = vld [vmem:[%s7 + $0x218] sm:$0xf]
        %v8157 = vld [vmem:[%s7 + $0x21c] sm:$0xf]
        %v8158 = vld [vmem:[%s7 + $0x220] sm:$0xf]
        %v8159 = vld [vmem:[%s7 + $0x224] sm:$0xf]
        %v8160 = vld [vmem:[%s7 + $0x228] sm:$0xf]
        %v8161 = vld [vmem:[%s7 + $0x22c] sm:$0xf]
        %v8162 = vld [vmem:[%s7 + $0x230] sm:$0xf]
        %v8163 = vld [vmem:[%s7 + $0x234] sm:$0xf]
        %v8164 = vld [vmem:[%s7 + $0x238] sm:$0xf]
        %v8165 = vld [vmem:[%s7 + $0x23c] sm:$0xf]
        %v8310 = vunpack.c.l.b16 %v8022
        %v8311 = vunpack.c.l.b16 %v8023
        %v8312 = vunpack.c.l.b16 %v8024
        %v8313 = vunpack.c.l.b16 %v8025
        %v8314 = vunpack.c.l.b16 %v8026
        %v8315 = vunpack.c.l.b16 %v8027
        %v8316 = vunpack.c.l.b16 %v8028
        %v8317 = vunpack.c.l.b16 %v8029
        %v8318 = vunpack.c.l.b16 %v8030
        %v8319 = vunpack.c.l.b16 %v8031
        %v8320 = vunpack.c.l.b16 %v8032
        %v8321 = vunpack.c.l.b16 %v8033
        %v8322 = vunpack.c.l.b16 %v8034
        %v8323 = vunpack.c.l.b16 %v8035
        %v8324 = vunpack.c.l.b16 %v8036
        %v8325 = vunpack.c.l.b16 %v8037
        %v8326 = vunpack.c.l.b16 %v8038
        %v8327 = vunpack.c.l.b16 %v8039
        %v8328 = vunpack.c.l.b16 %v8040
        %v8329 = vunpack.c.l.b16 %v8041
        %v8330 = vunpack.c.l.b16 %v8042
        %v8331 = vunpack.c.l.b16 %v8043
        %v8332 = vunpack.c.l.b16 %v8044
        %v8333 = vunpack.c.l.b16 %v8045
        %v8334 = vunpack.c.l.b16 %v8046
        %v8335 = vunpack.c.l.b16 %v8047
        %v8336 = vunpack.c.l.b16 %v8048
        %v8337 = vunpack.c.l.b16 %v8049
        %v8338 = vunpack.c.l.b16 %v8050
        %v8339 = vunpack.c.l.b16 %v8051
        %v8340 = vunpack.c.l.b16 %v8052
        %v8341 = vunpack.c.l.b16 %v8053
        %v8342 = vunpack.c.l.b16 %v8054
        %v8343 = vunpack.c.l.b16 %v8055
        %v8344 = vunpack.c.l.b16 %v8056
        %v8345 = vunpack.c.l.b16 %v8057
        %v8346 = vunpack.c.l.b16 %v8058
        %v8347 = vunpack.c.l.b16 %v8059
        %v8348 = vunpack.c.l.b16 %v8060
        %v8349 = vunpack.c.l.b16 %v8061
        %v8350 = vunpack.c.l.b16 %v8062
        %v8351 = vunpack.c.l.b16 %v8063
        %v8352 = vunpack.c.l.b16 %v8064
        %v8353 = vunpack.c.l.b16 %v8065
        %v8354 = vunpack.c.l.b16 %v8066
        %v8355 = vunpack.c.l.b16 %v8067
        %v8356 = vunpack.c.l.b16 %v8068
        %v8357 = vunpack.c.l.b16 %v8069
        %v8358 = vunpack.c.l.b16 %v8070
        %v8359 = vunpack.c.l.b16 %v8071
        %v8360 = vunpack.c.l.b16 %v8072
        %v8361 = vunpack.c.l.b16 %v8073
        %v8362 = vunpack.c.l.b16 %v8074
        %v8363 = vunpack.c.l.b16 %v8075
        %v8364 = vunpack.c.l.b16 %v8076
        %v8365 = vunpack.c.l.b16 %v8077
        %v8366 = vunpack.c.l.b16 %v8078
        %v8367 = vunpack.c.l.b16 %v8079
        %v8368 = vunpack.c.l.b16 %v8080
        %v8369 = vunpack.c.l.b16 %v8081
        %v8370 = vunpack.c.l.b16 %v8082
        %v8371 = vunpack.c.l.b16 %v8083
        %v8372 = vunpack.c.l.b16 %v8084
        %v8373 = vunpack.c.l.b16 %v8085
        %v8374 = vunpack.c.l.b16 %v8086
        %v8375 = vunpack.c.l.b16 %v8087
        %v8376 = vunpack.c.l.b16 %v8088
        %v8377 = vunpack.c.l.b16 %v8089
        %v8378 = vunpack.c.l.b16 %v8090
        %v8379 = vunpack.c.l.b16 %v8091
        %v8380 = vunpack.c.l.b16 %v8092
        %v8381 = vunpack.c.l.b16 %v8093
        %v8382 = vunpack.c.l.b16 %v8094
        %v8383 = vunpack.c.l.b16 %v8095
        %v8384 = vunpack.c.l.b16 %v8096
        %v8385 = vunpack.c.l.b16 %v8097
        %v8386 = vunpack.c.l.b16 %v8098
        %v8387 = vunpack.c.l.b16 %v8099
        %v8388 = vunpack.c.l.b16 %v8100
        %v8389 = vunpack.c.l.b16 %v8101
        %v8390 = vunpack.c.l.b16 %v8102
        %v8391 = vunpack.c.l.b16 %v8103
        %v8392 = vunpack.c.l.b16 %v8104
        %v8393 = vunpack.c.l.b16 %v8105
        %v8394 = vunpack.c.l.b16 %v8106
        %v8395 = vunpack.c.l.b16 %v8107
        %v8396 = vunpack.c.l.b16 %v8108
        %v8397 = vunpack.c.l.b16 %v8109
        %v8398 = vunpack.c.l.b16 %v8110
        %v8399 = vunpack.c.l.b16 %v8111
        %v8400 = vunpack.c.l.b16 %v8112
        %v8401 = vunpack.c.l.b16 %v8113
        %v8402 = vunpack.c.l.b16 %v8114
        %v8403 = vunpack.c.l.b16 %v8115
        %v8404 = vunpack.c.l.b16 %v8116
        %v8405 = vunpack.c.l.b16 %v8117
        %v8406 = vunpack.c.l.b16 %v8118
        %v8407 = vunpack.c.l.b16 %v8119
        %v8408 = vunpack.c.l.b16 %v8120
        %v8409 = vunpack.c.l.b16 %v8121
        %v8410 = vunpack.c.l.b16 %v8122
        %v8411 = vunpack.c.l.b16 %v8123
        %v8412 = vunpack.c.l.b16 %v8124
        %v8413 = vunpack.c.l.b16 %v8125
        %v8414 = vunpack.c.l.b16 %v8126
        %v8415 = vunpack.c.l.b16 %v8127
        %v8416 = vunpack.c.l.b16 %v8128
        %v8417 = vunpack.c.l.b16 %v8129
        %v8418 = vunpack.c.l.b16 %v8130
        %v8419 = vunpack.c.l.b16 %v8131
        %v8420 = vunpack.c.l.b16 %v8132
        %v8421 = vunpack.c.l.b16 %v8133
        %v8422 = vunpack.c.l.b16 %v8134
        %v8423 = vunpack.c.l.b16 %v8135
        %v8424 = vunpack.c.l.b16 %v8136
        %v8425 = vunpack.c.l.b16 %v8137
        %v8426 = vunpack.c.l.b16 %v8138
        %v8427 = vunpack.c.l.b16 %v8139
        %v8428 = vunpack.c.l.b16 %v8140
        %v8429 = vunpack.c.l.b16 %v8141
        %v8430 = vunpack.c.l.b16 %v8142
        %v8431 = vunpack.c.l.b16 %v8143
        %v8432 = vunpack.c.l.b16 %v8144
        %v8433 = vunpack.c.l.b16 %v8145
        %v8434 = vunpack.c.l.b16 %v8146
        %v8435 = vunpack.c.l.b16 %v8147
        %v8436 = vunpack.c.l.b16 %v8148
        %v8437 = vunpack.c.l.b16 %v8149
        %v8438 = vunpack.c.l.b16 %v8150
        %v8439 = vunpack.c.l.b16 %v8151
        %v8440 = vunpack.c.l.b16 %v8152
        %v8441 = vunpack.c.l.b16 %v8153
        %v8442 = vunpack.c.l.b16 %v8154
        %v8443 = vunpack.c.l.b16 %v8155
        %v8444 = vunpack.c.l.b16 %v8156
        %v8445 = vunpack.c.l.b16 %v8157
        %v8446 = vunpack.c.l.b16 %v8158
        %v8447 = vunpack.c.l.b16 %v8159
        %v8448 = vunpack.c.l.b16 %v8160
        %v8449 = vunpack.c.l.b16 %v8161
        %v8450 = vunpack.c.l.b16 %v8162
        %v8451 = vunpack.c.l.b16 %v8163
        %v8452 = vunpack.c.l.b16 %v8164
        %v8453 = vunpack.c.l.b16 %v8165
        %v8454 = vpack.c.b16 %v8311, %v8310
        %v8455 = vpack.c.b16 %v8313, %v8312
        %v8456 = vpack.c.b16 %v8315, %v8314
        %v8457 = vpack.c.b16 %v8317, %v8316
        %v8458 = vpack.c.b16 %v8319, %v8318
        %v8459 = vpack.c.b16 %v8321, %v8320
        %v8460 = vpack.c.b16 %v8323, %v8322
        %v8461 = vpack.c.b16 %v8325, %v8324
        %v8462 = vpack.c.b16 %v8327, %v8326
        %v8463 = vpack.c.b16 %v8329, %v8328
        %v8464 = vpack.c.b16 %v8331, %v8330
        %v8465 = vpack.c.b16 %v8333, %v8332
        %v8466 = vpack.c.b16 %v8335, %v8334
        %v8467 = vpack.c.b16 %v8337, %v8336
        %v8468 = vpack.c.b16 %v8339, %v8338
        %v8469 = vpack.c.b16 %v8341, %v8340
        %v8470 = vpack.c.b16 %v8343, %v8342
        %v8471 = vpack.c.b16 %v8345, %v8344
        %v8472 = vpack.c.b16 %v8347, %v8346
        %v8473 = vpack.c.b16 %v8349, %v8348
        %v8474 = vpack.c.b16 %v8351, %v8350
        %v8475 = vpack.c.b16 %v8353, %v8352
        %v8476 = vpack.c.b16 %v8355, %v8354
        %v8477 = vpack.c.b16 %v8357, %v8356
        %v8478 = vpack.c.b16 %v8359, %v8358
        %v8479 = vpack.c.b16 %v8361, %v8360
        %v8480 = vpack.c.b16 %v8363, %v8362
        %v8481 = vpack.c.b16 %v8365, %v8364
        %v8482 = vpack.c.b16 %v8367, %v8366
        %v8483 = vpack.c.b16 %v8369, %v8368
        %v8484 = vpack.c.b16 %v8371, %v8370
        %v8485 = vpack.c.b16 %v8373, %v8372
        %v8486 = vpack.c.b16 %v8375, %v8374
        %v8487 = vpack.c.b16 %v8377, %v8376
        %v8488 = vpack.c.b16 %v8379, %v8378
        %v8489 = vpack.c.b16 %v8381, %v8380
        %v8490 = vpack.c.b16 %v8383, %v8382
        %v8491 = vpack.c.b16 %v8385, %v8384
        %v8492 = vpack.c.b16 %v8387, %v8386
        %v8493 = vpack.c.b16 %v8389, %v8388
        %v8494 = vpack.c.b16 %v8391, %v8390
        %v8495 = vpack.c.b16 %v8393, %v8392
        %v8496 = vpack.c.b16 %v8395, %v8394
        %v8497 = vpack.c.b16 %v8397, %v8396
        %v8498 = vpack.c.b16 %v8399, %v8398
        %v8499 = vpack.c.b16 %v8401, %v8400
        %v8500 = vpack.c.b16 %v8403, %v8402
        %v8501 = vpack.c.b16 %v8405, %v8404
        %v8502 = vpack.c.b16 %v8407, %v8406
        %v8503 = vpack.c.b16 %v8409, %v8408
        %v8504 = vpack.c.b16 %v8411, %v8410
        %v8505 = vpack.c.b16 %v8413, %v8412
        %v8506 = vpack.c.b16 %v8415, %v8414
        %v8507 = vpack.c.b16 %v8417, %v8416
        %v8508 = vpack.c.b16 %v8419, %v8418
        %v8509 = vpack.c.b16 %v8421, %v8420
        %v8510 = vpack.c.b16 %v8423, %v8422
        %v8511 = vpack.c.b16 %v8425, %v8424
        %v8512 = vpack.c.b16 %v8427, %v8426
        %v8513 = vpack.c.b16 %v8429, %v8428
        %v8514 = vpack.c.b16 %v8431, %v8430
        %v8515 = vpack.c.b16 %v8433, %v8432
        %v8516 = vpack.c.b16 %v8435, %v8434
        %v8517 = vpack.c.b16 %v8437, %v8436
        %v8518 = vpack.c.b16 %v8439, %v8438
        %v8519 = vpack.c.b16 %v8441, %v8440
        %v8520 = vpack.c.b16 %v8443, %v8442
        %v8521 = vpack.c.b16 %v8445, %v8444
        %v8522 = vpack.c.b16 %v8447, %v8446
        %v8523 = vpack.c.b16 %v8449, %v8448
        %v8524 = vpack.c.b16 %v8451, %v8450
        %v8525 = vpack.c.b16 %v8453, %v8452
        %8598 = vmatprep.subr.bf16.mxu0 0
        %8599 = vmatpush1.bf16.msra.mxu0 %v8461
        %8600 = vmatprep.subr.bf16.mxu0 0
        %8601 = vmatpush1.bf16.msra.mxu0 %v8460
        %8602 = vmatprep.subr.bf16.mxu0 0
        %8603 = vmatpush1.bf16.msra.mxu0 %v8459
        %8604 = vmatprep.subr.bf16.mxu0 0
        %8605 = vmatpush1.bf16.msra.mxu0 %v8458
        %8606 = vmatprep.subr.bf16.mxu0 0
        %8607 = vmatpush1.bf16.msra.mxu0 %v8457
        %8608 = vmatprep.subr.bf16.mxu0 0
        %8609 = vmatpush1.bf16.msra.mxu0 %v8456
        %8610 = vmatprep.subr.bf16.mxu0 0
        %8611 = vmatpush1.bf16.msra.mxu0 %v8455
        %8612 = vmatprep.subr.bf16.mxu0 0
        %8613 = vmatpush1.bf16.msra.mxu0 %v8454
        %8614 = vmatprep.subr.bf16.mxu0 0
        %8615 = vmatpush2.bf16.msra.mxu0 %v8469
        %8616 = vmatprep.subr.bf16.mxu0 0
        %8617 = vmatpush2.bf16.msra.mxu0 %v8468
        %8618 = vmatprep.subr.bf16.mxu0 0
        %8619 = vmatpush2.bf16.msra.mxu0 %v8467
        %8620 = vmatprep.subr.bf16.mxu0 0
        %8621 = vmatpush2.bf16.msra.mxu0 %v8466
        %8622 = vmatprep.subr.bf16.mxu0 0
        %8623 = vmatpush2.bf16.msra.mxu0 %v8465
        %8624 = vmatprep.subr.bf16.mxu0 0
        %8625 = vmatpush2.bf16.msra.mxu0 %v8464
        %8626 = vmatprep.subr.bf16.mxu0 0
        %8627 = vmatpush2.bf16.msra.mxu0 %v8463
        %8628 = vmatprep.subr.bf16.mxu0 0
        %8629 = vmatpush2.bf16.msra.mxu0 %v8462
        %8630 = vmatprep.mubr.bf16.mxu0 %v7987
        %8631 = vmatmul.mubr.bf16.gmra.mxu0 %v7986
        %v8632 = vpop.f32.mrf.mxu0
        %v8633 = vadd.f32 0.0, %v8632
        %v8634 = vpop.f32.mrf.mxu0
        %v8635 = vpop.f32.mrf.mxu0
        %v8636 = vadd.f32 0.0, %v8635
        %v8637 = vpop.f32.mrf.mxu0
        %8638 = vmatprep.mubr.bf16.mxu0 %v7996
        %8639 = vmatmul.mubr.bf16.gmra.mxu0 %v7995
        %v8640 = vpop.f32.mrf.mxu0
        %v8641 = vadd.f32 0.0, %v8640
        %v8642 = vpop.f32.mrf.mxu0
        %v8643 = vpop.f32.mrf.mxu0
        %v8644 = vadd.f32 0.0, %v8643
        %v8645 = vpop.f32.mrf.mxu0
        %8646 = vmatprep.mubr.bf16.mxu0 %v8005
        %8647 = vmatmul.mubr.bf16.gmra.mxu0 %v8004
        %v8648 = vpop.f32.mrf.mxu0
        %v8649 = vadd.f32 0.0, %v8648
        %v8650 = vpop.f32.mrf.mxu0
        %v8651 = vpop.f32.mrf.mxu0
        %v8652 = vadd.f32 0.0, %v8651
        %v8653 = vpop.f32.mrf.mxu0
        %8654 = vmatprep.mubr.bf16.mxu0 %v8014
        %8655 = vmatmul.mubr.bf16.gmra.mxu0 %v8013
        %v8656 = vpop.f32.mrf.mxu0
        %v8657 = vadd.f32 0.0, %v8656
        %v8658 = vpop.f32.mrf.mxu0
        %v8659 = vpop.f32.mrf.mxu0
        %v8660 = vadd.f32 0.0, %v8659
        %v8661 = vpop.f32.mrf.mxu0
        %8662 = vdwg.mxu0
        %8663 = vmatprep.subr.bf16.mxu0 0
        %8664 = vmatpush1.bf16.msra.mxu0 %v8477
        %8665 = vmatprep.subr.bf16.mxu0 0
        %8666 = vmatpush1.bf16.msra.mxu0 %v8476
        %8667 = vmatprep.subr.bf16.mxu0 0
        %8668 = vmatpush1.bf16.msra.mxu0 %v8475
        %8669 = vmatprep.subr.bf16.mxu0 0
        %8670 = vmatpush1.bf16.msra.mxu0 %v8474
        %8671 = vmatprep.subr.bf16.mxu0 0
        %8672 = vmatpush1.bf16.msra.mxu0 %v8473
        %8673 = vmatprep.subr.bf16.mxu0 0
        %8674 = vmatpush1.bf16.msra.mxu0 %v8472
        %8675 = vmatprep.subr.bf16.mxu0 0
        %8676 = vmatpush1.bf16.msra.mxu0 %v8471
        %8677 = vmatprep.subr.bf16.mxu0 0
        %8678 = vmatpush1.bf16.msra.mxu0 %v8470
        %8679 = vmatprep.subr.bf16.mxu0 0
        %8680 = vmatpush2.bf16.msra.mxu0 %v8485
        %8681 = vmatprep.subr.bf16.mxu0 0
        %8682 = vmatpush2.bf16.msra.mxu0 %v8484
        %8683 = vmatprep.subr.bf16.mxu0 0
        %8684 = vmatpush2.bf16.msra.mxu0 %v8483
        %8685 = vmatprep.subr.bf16.mxu0 0
        %8686 = vmatpush2.bf16.msra.mxu0 %v8482
        %8687 = vmatprep.subr.bf16.mxu0 0
        %8688 = vmatpush2.bf16.msra.mxu0 %v8481
        %8689 = vmatprep.subr.bf16.mxu0 0
        %8690 = vmatpush2.bf16.msra.mxu0 %v8480
        %8691 = vmatprep.subr.bf16.mxu0 0
        %8692 = vmatpush2.bf16.msra.mxu0 %v8479
        %8693 = vmatprep.subr.bf16.mxu0 0
        %8694 = vmatpush2.bf16.msra.mxu0 %v8478
        %8695 = vmatprep.mubr.bf16.mxu0 %v7989
        %8696 = vmatmul.mubr.bf16.gmra.mxu0 %v7988
        %v8697 = vpop.f32.mrf.mxu0
        %v8698 = vadd.f32 %v8633, %v8697
        %v8699 = vpop.f32.mrf.mxu0
        %v8700 = vpop.f32.mrf.mxu0
        %v8701 = vadd.f32 %v8636, %v8700
        %v8702 = vpop.f32.mrf.mxu0
        %8703 = vmatprep.mubr.bf16.mxu0 %v7998
        %8704 = vmatmul.mubr.bf16.gmra.mxu0 %v7997
        %v8705 = vpop.f32.mrf.mxu0
        %v8706 = vadd.f32 %v8641, %v8705
        %v8707 = vpop.f32.mrf.mxu0
        %v8708 = vpop.f32.mrf.mxu0
        %v8709 = vadd.f32 %v8644, %v8708
        %v8710 = vpop.f32.mrf.mxu0
        %8711 = vmatprep.mubr.bf16.mxu0 %v8007
        %8712 = vmatmul.mubr.bf16.gmra.mxu0 %v8006
        %v8713 = vpop.f32.mrf.mxu0
        %v8714 = vadd.f32 %v8649, %v8713
        %v8715 = vpop.f32.mrf.mxu0
        %v8716 = vpop.f32.mrf.mxu0
        %v8717 = vadd.f32 %v8652, %v8716
        %v8718 = vpop.f32.mrf.mxu0
        %8719 = vmatprep.mubr.bf16.mxu0 %v8016
        %8720 = vmatmul.mubr.bf16.gmra.mxu0 %v8015
        %v8721 = vpop.f32.mrf.mxu0
        %v8722 = vadd.f32 %v8657, %v8721
        %v8723 = vpop.f32.mrf.mxu0
        %v8724 = vpop.f32.mrf.mxu0
        %v8725 = vadd.f32 %v8660, %v8724
        %v8726 = vpop.f32.mrf.mxu0
        %8727 = vdwg.mxu0
        %8728 = vmatprep.subr.bf16.mxu0 0
        %8729 = vmatpush1.bf16.msra.mxu0 %v8493
        %8730 = vmatprep.subr.bf16.mxu0 0
        %8731 = vmatpush1.bf16.msra.mxu0 %v8492
        %8732 = vmatprep.subr.bf16.mxu0 0
        %8733 = vmatpush1.bf16.msra.mxu0 %v8491
        %8734 = vmatprep.subr.bf16.mxu0 0
        %8735 = vmatpush1.bf16.msra.mxu0 %v8490
        %8736 = vmatprep.subr.bf16.mxu0 0
        %8737 = vmatpush1.bf16.msra.mxu0 %v8489
        %8738 = vmatprep.subr.bf16.mxu0 0
        %8739 = vmatpush1.bf16.msra.mxu0 %v8488
        %8740 = vmatprep.subr.bf16.mxu0 0
        %8741 = vmatpush1.bf16.msra.mxu0 %v8487
        %8742 = vmatprep.subr.bf16.mxu0 0
        %8743 = vmatpush1.bf16.msra.mxu0 %v8486
        %8744 = vmatprep.subr.bf16.mxu0 0
        %8745 = vmatpush2.bf16.msra.mxu0 %v8501
        %8746 = vmatprep.subr.bf16.mxu0 0
        %8747 = vmatpush2.bf16.msra.mxu0 %v8500
        %8748 = vmatprep.subr.bf16.mxu0 0
        %8749 = vmatpush2.bf16.msra.mxu0 %v8499
        %8750 = vmatprep.subr.bf16.mxu0 0
        %8751 = vmatpush2.bf16.msra.mxu0 %v8498
        %8752 = vmatprep.subr.bf16.mxu0 0
        %8753 = vmatpush2.bf16.msra.mxu0 %v8497
        %8754 = vmatprep.subr.bf16.mxu0 0
        %8755 = vmatpush2.bf16.msra.mxu0 %v8496
        %8756 = vmatprep.subr.bf16.mxu0 0
        %8757 = vmatpush2.bf16.msra.mxu0 %v8495
        %8758 = vmatprep.subr.bf16.mxu0 0
        %8759 = vmatpush2.bf16.msra.mxu0 %v8494
        %8760 = vmatprep.mubr.bf16.mxu0 %v7991
        %8761 = vmatmul.mubr.bf16.gmra.mxu0 %v7990
        %v8762 = vpop.f32.mrf.mxu0
        %v8763 = vadd.f32 %v8698, %v8762
        %v8764 = vpop.f32.mrf.mxu0
        %v8765 = vpop.f32.mrf.mxu0
        %v8766 = vadd.f32 %v8701, %v8765
        %v8767 = vpop.f32.mrf.mxu0
        %8768 = vmatprep.mubr.bf16.mxu0 %v8000
        %8769 = vmatmul.mubr.bf16.gmra.mxu0 %v7999
        %v8770 = vpop.f32.mrf.mxu0
        %v8771 = vadd.f32 %v8706, %v8770
        %v8772 = vpop.f32.mrf.mxu0
        %v8773 = vpop.f32.mrf.mxu0
        %v8774 = vadd.f32 %v8709, %v8773
        %v8775 = vpop.f32.mrf.mxu0
        %8776 = vmatprep.mubr.bf16.mxu0 %v8009
        %8777 = vmatmul.mubr.bf16.gmra.mxu0 %v8008
        %v8778 = vpop.f32.mrf.mxu0
        %v8779 = vadd.f32 %v8714, %v8778
        %v8780 = vpop.f32.mrf.mxu0
        %v8781 = vpop.f32.mrf.mxu0
        %v8782 = vadd.f32 %v8717, %v8781
        %v8783 = vpop.f32.mrf.mxu0
        %8784 = vmatprep.mubr.bf16.mxu0 %v8018
        %8785 = vmatmul.mubr.bf16.gmra.mxu0 %v8017
        %v8786 = vpop.f32.mrf.mxu0
        %v8787 = vadd.f32 %v8722, %v8786
        %v8788 = vpop.f32.mrf.mxu0
        %v8789 = vpop.f32.mrf.mxu0
        %v8790 = vadd.f32 %v8725, %v8789
        %v8791 = vpop.f32.mrf.mxu0
        %8792 = vdwg.mxu0
        %8793 = vmatprep.subr.bf16.mxu0 0
        %8794 = vmatpush1.bf16.msra.mxu0 %v8509
        %8795 = vmatprep.subr.bf16.mxu0 0
        %8796 = vmatpush1.bf16.msra.mxu0 %v8508
        %8797 = vmatprep.subr.bf16.mxu0 0
        %8798 = vmatpush1.bf16.msra.mxu0 %v8507
        %8799 = vmatprep.subr.bf16.mxu0 0
        %8800 = vmatpush1.bf16.msra.mxu0 %v8506
        %8801 = vmatprep.subr.bf16.mxu0 0
        %8802 = vmatpush1.bf16.msra.mxu0 %v8505
        %8803 = vmatprep.subr.bf16.mxu0 0
        %8804 = vmatpush1.bf16.msra.mxu0 %v8504
        %8805 = vmatprep.subr.bf16.mxu0 0
        %8806 = vmatpush1.bf16.msra.mxu0 %v8503
        %8807 = vmatprep.subr.bf16.mxu0 0
        %8808 = vmatpush1.bf16.msra.mxu0 %v8502
        %8809 = vmatprep.subr.bf16.mxu0 0
        %8810 = vmatpush2.bf16.msra.mxu0 %v8517
        %8811 = vmatprep.subr.bf16.mxu0 0
        %8812 = vmatpush2.bf16.msra.mxu0 %v8516
        %8813 = vmatprep.subr.bf16.mxu0 0
        %8814 = vmatpush2.bf16.msra.mxu0 %v8515
        %8815 = vmatprep.subr.bf16.mxu0 0
        %8816 = vmatpush2.bf16.msra.mxu0 %v8514
        %8817 = vmatprep.subr.bf16.mxu0 0
        %8818 = vmatpush2.bf16.msra.mxu0 %v8513
        %8819 = vmatprep.subr.bf16.mxu0 0
        %8820 = vmatpush2.bf16.msra.mxu0 %v8512
        %8821 = vmatprep.subr.bf16.mxu0 0
        %8822 = vmatpush2.bf16.msra.mxu0 %v8511
        %8823 = vmatprep.subr.bf16.mxu0 0
        %8824 = vmatpush2.bf16.msra.mxu0 %v8510
        %8825 = vmatprep.mubr.bf16.mxu0 %v7993
        %8826 = vmatmul.mubr.bf16.gmra.mxu0 %v7992
        %v8827 = vpop.f32.mrf.mxu0
        %v8828 = vadd.f32 %v8763, %v8827
        %v8829 = vpop.f32.mrf.mxu0
        %v8830 = vpop.f32.mrf.mxu0
        %v8831 = vadd.f32 %v8766, %v8830
        %v8832 = vpop.f32.mrf.mxu0
        %8833 = vmatprep.mubr.bf16.mxu0 %v8002
        %8834 = vmatmul.mubr.bf16.gmra.mxu0 %v8001
        %v8835 = vpop.f32.mrf.mxu0
        %v8836 = vadd.f32 %v8771, %v8835
        %v8837 = vpop.f32.mrf.mxu0
        %v8838 = vpop.f32.mrf.mxu0
        %v8839 = vadd.f32 %v8774, %v8838
        %v8840 = vpop.f32.mrf.mxu0
        %8841 = vmatprep.mubr.bf16.mxu0 %v8011
        %8842 = vmatmul.mubr.bf16.gmra.mxu0 %v8010
        %v8843 = vpop.f32.mrf.mxu0
        %v8844 = vadd.f32 %v8779, %v8843
        %v8845 = vpop.f32.mrf.mxu0
        %v8846 = vpop.f32.mrf.mxu0
        %v8847 = vadd.f32 %v8782, %v8846
        %v8848 = vpop.f32.mrf.mxu0
        %8849 = vmatprep.mubr.bf16.mxu0 %v8020
        %8850 = vmatmul.mubr.bf16.gmra.mxu0 %v8019
        %v8851 = vpop.f32.mrf.mxu0
        %v8852 = vadd.f32 %v8787, %v8851
        %v8853 = vpop.f32.mrf.mxu0
        %v8854 = vpop.f32.mrf.mxu0
        %v8855 = vadd.f32 %v8790, %v8854
        %v8856 = vpop.f32.mrf.mxu0
        %8857 = vdwg.mxu0
        %8858 = vmatprep.subr.bf16.mxu0 0
        %8859 = vmatpush1.bf16.msra.mxu0 %v8525
        %8860 = vmatprep.subr.bf16.mxu0 0
        %8861 = vmatpush1.bf16.msra.mxu0 %v8524
        %8862 = vmatprep.subr.bf16.mxu0 0
        %8863 = vmatpush1.bf16.msra.mxu0 %v8523
        %8864 = vmatprep.subr.bf16.mxu0 0
        %8865 = vmatpush1.bf16.msra.mxu0 %v8522
        %8866 = vmatprep.subr.bf16.mxu0 0
        %8867 = vmatpush1.bf16.msra.mxu0 %v8521
        %8868 = vmatprep.subr.bf16.mxu0 0
        %8869 = vmatpush1.bf16.msra.mxu0 %v8520
        %8870 = vmatprep.subr.bf16.mxu0 0
        %8871 = vmatpush1.bf16.msra.mxu0 %v8519
        %8872 = vmatprep.subr.bf16.mxu0 0
        %8873 = vmatpush1.bf16.msra.mxu0 %v8518
        %8874 = vmatprep.subr.bf16.mxu0 0
        %8875 = vmatpush2.bf16.msra.mxu0 0
        %8876 = vmatprep.subr.bf16.mxu0 0
        %8877 = vmatpush2.bf16.msra.mxu0 0
        %8878 = vmatprep.subr.bf16.mxu0 0
        %8879 = vmatpush2.bf16.msra.mxu0 0
        %8880 = vmatprep.subr.bf16.mxu0 0
        %8881 = vmatpush2.bf16.msra.mxu0 0
        %8882 = vmatprep.subr.bf16.mxu0 0
        %8883 = vmatpush2.bf16.msra.mxu0 0
        %8884 = vmatprep.subr.bf16.mxu0 0
        %8885 = vmatpush2.bf16.msra.mxu0 0
        %8886 = vmatprep.subr.bf16.mxu0 0
        %8887 = vmatpush2.bf16.msra.mxu0 0
        %8888 = vmatprep.subr.bf16.mxu0 0
        %8889 = vmatpush2.bf16.msra.mxu0 0
        %8890 = vmatprep.mubr.bf16.mxu0 0
        %8891 = vmatmul.mubr.bf16.gmra.mxu0 %v7994
        %v8892 = vpop.f32.mrf.mxu0
        %v8893 = vadd.f32 %v8828, %v8892
        %v8894 = vpop.f32.mrf.mxu0
        %v8895 = vpop.f32.mrf.mxu0
        %v8896 = vadd.f32 %v8831, %v8895
        %v8897 = vpop.f32.mrf.mxu0
        %8898 = vmatprep.mubr.bf16.mxu0 0
        %8899 = vmatmul.mubr.bf16.gmra.mxu0 %v8003
        %v8900 = vpop.f32.mrf.mxu0
        %v8901 = vadd.f32 %v8836, %v8900
        %v8902 = vpop.f32.mrf.mxu0
        %v8903 = vpop.f32.mrf.mxu0
        %v8904 = vadd.f32 %v8839, %v8903
        %v8905 = vpop.f32.mrf.mxu0
        %8906 = vmatprep.mubr.bf16.mxu0 0
        %8907 = vmatmul.mubr.bf16.gmra.mxu0 %v8012
        %v8908 = vpop.f32.mrf.mxu0
        %v8909 = vadd.f32 %v8844, %v8908
        %v8910 = vpop.f32.mrf.mxu0
        %v8911 = vpop.f32.mrf.mxu0
        %v8912 = vadd.f32 %v8847, %v8911
        %v8913 = vpop.f32.mrf.mxu0
        %8914 = vmatprep.mubr.bf16.mxu0 0
        %8915 = vmatmul.mubr.bf16.gmra.mxu0 %v8021
        %v8916 = vpop.f32.mrf.mxu0
        %v8917 = vadd.f32 %v8852, %v8916
        %v8918 = vpop.f32.mrf.mxu0
        %v8919 = vpop.f32.mrf.mxu0
        %v8920 = vadd.f32 %v8855, %v8919
        %v8921 = vpop.f32.mrf.mxu0
        %8922 = vdwg.mxu0
        %v8923 = vld [vmem:[%s8] sm:$0x1]
        %v8925 = vlaneseq
        %v8926 = vshrl.u32 %v8925, 7
        %v8927 = vsub.s32 0, %v8926
        %v8928 = vrot.slane %v8923, %v8927
        %v8930 = vmul.f32 %v8893, %v8928
        %v8931 = vmul.f32 %v8896, %v8928
        %v8932 = vmul.f32 %v8901, %v8928
        %v8933 = vmul.f32 %v8904, %v8928
        %v8934 = vmul.f32 %v8909, %v8928
        %v8935 = vmul.f32 %v8912, %v8928
        %v8936 = vmul.f32 %v8917, %v8928
        %v8937 = vmul.f32 %v8920, %v8928
        %v8938 = vld [vmem:[%s9] sm:$0x1]
        %v8940 = vlaneseq
        %v8941 = vshrl.u32 %v8940, 7
        %v8942 = vsub.s32 0, %v8941
        %v8943 = vrot.slane %v8938, %v8942
        %v8945 = vadd.f32 %v8930, %v8943
        %v8946 = vadd.f32 %v8931, %v8943
        %v8947 = vadd.f32 %v8932, %v8943
        %v8948 = vadd.f32 %v8933, %v8943
        %v8949 = vadd.f32 %v8934, %v8943
        %v8950 = vadd.f32 %v8935, %v8943
        %v8951 = vadd.f32 %v8936, %v8943
        %v8952 = vadd.f32 %v8937, %v8943
        %v8953 = vadd.f32 %v8945, %v6841
        %v8954 = vadd.f32 %v8946, %v6842
        %v8955 = vadd.f32 %v8947, %v6843
        %v8956 = vadd.f32 %v8948, %v6844
        %v8957 = vadd.f32 %v8949, %v6845
        %v8958 = vadd.f32 %v8950, %v6846
        %v8959 = vadd.f32 %v8951, %v6847
        %v8960 = vadd.f32 %v8952, %v6848
        %v8961 = vmax.f32 %v8953, 0.0
        %v8962 = vmax.f32 %v8954, 0.0
        %v8963 = vmax.f32 %v8955, 0.0
        %v8964 = vmax.f32 %v8956, 0.0
        %v8965 = vmax.f32 %v8957, 0.0
        %v8966 = vmax.f32 %v8958, 0.0
        %v8967 = vmax.f32 %v8959, 0.0
        %v8968 = vmax.f32 %v8960, 0.0
        %8969 = vst [vmem:[%s383] sm:$0xff] %v8961
        %8970 = vst [vmem:[%s383 + $0x8] sm:$0xff] %v8962
        %8971 = vst [vmem:[%s383 + $0x10] sm:$0xff] %v8963
        %8972 = vst [vmem:[%s383 + $0x18] sm:$0xff] %v8964
        %8973 = vst [vmem:[%s383 + $0x20] sm:$0xff] %v8965
        %8974 = vst [vmem:[%s383 + $0x28] sm:$0xff] %v8966
        %8975 = vst [vmem:[%s383 + $0x30] sm:$0xff] %v8967
        %8976 = vst [vmem:[%s383 + $0x38] sm:$0xff] %v8968
        %v8977 = vadd.f32 %v8961, %v8962
        %v8978 = vadd.f32 %v8977, %v8963
        %v8979 = vadd.f32 %v8978, %v8964
        %v8980 = vadd.f32 %v8979, %v8965
        %v8981 = vadd.f32 %v8980, %v8966
        %v8982 = vadd.f32 %v8981, %v8967
        %v8983 = vadd.f32 %v8982, %v8968
        %v8984 = vrot.slane %v8983, 4
        %v8985 = vadd.f32 %v8983, %v8984
        %v8986 = vrot.slane %v8985, 2
        %v8987 = vadd.f32 %v8985, %v8986
        %v8988 = vrot.slane %v8987, 1
        %v8989 = vadd.f32 %v8987, %v8988
        %v8990 = vrcp.pop 64.0
        %v8991 = vmul.f32 %v8989, %v8990
        %8992 = vst [vmem:[%s389] sm:$0x1] %v8991
        %s8993 = sand.u32 %s252, 1
        %s8994 = scalar_lea.sflag [#allocation6], %s8993
        %s8995 = sand.u32 %s252, 1
        %s8996 = smul.addr %s8995, 64
        %s8997 = scalar_lea.vmem [#allocation5], %s8996
        %s8998 = sand.u32 %s278, 1
        %s8999 = scalar_lea.sflag [#allocation8], %s8998
        %s9000 = sand.u32 %s278, 1
        %s9001 = scalar_lea.vmem [#allocation7], %s9000
        // Predicated region
        $region61: #{wrapped_model_forward.1} parent=59 // pred_check
          %p9002 = pneg %p262
        $region62: #{wrapped_model_forward.1} parent=59 // pred_check_branch
          %9004 = sbr.rel (%p9002) target = $region64
        $region63: #{wrapped_model_forward.1} parent=59 // pred_region
          %s9006 = ssub.s32 1024, 1024
          %9007 = vsyncadd %s8994, %s9006
          %s9008 = smul.addr %s29, 8
          %s9009 = smul.addr %s9008, 128
          %s9010 = scalar_lea.hbm %s10, %s9009
          %s9011 = sshll.u32 %s8997, 4
          %s9012 = int_to_ptr.vmem [resolvable:$true] %s9011
          %9017 = dma.vmem_to_hbm [thread:$0]  %s9012, 1024, %s9010, %s8994, 128, 128, 8
        $region64: #{wrapped_model_forward.1} parent=59 // pred_fallthru
          _
        // Predicated region
        $region65: #{wrapped_model_forward.1} parent=59 // pred_check
          %p9018 = pneg %p288
        $region66: #{wrapped_model_forward.1} parent=59 // pred_check_branch
          %9020 = sbr.rel (%p9018) target = $region68
        $region67: #{wrapped_model_forward.1} parent=59 // pred_region
          %s9022 = ssub.s32 16, 16
          %9023 = vsyncadd %s8999, %s9022
          %s9024 = smul.addr %s29, 16
          %s9025 = scalar_lea.hbm %s11, %s9024
          %s9027 = sshll.u32 %s9001, 4
          %s9028 = int_to_ptr.vmem [resolvable:$true] %s9027
          %9030 = dma.vmem_to_hbm [thread:$0]  %s9028, 16, %s9025, %s8999
        $region68: #{wrapped_model_forward.1} parent=59 // pred_fallthru
          _
      $region60: #{wrapped_model_forward.1} parent=5 // pred_fallthru
        _
      %p9031 = scmp.le.s32.totalorder 2, %s24
      // Predicated region
      $region69: #{wrapped_model_forward.1} parent=5 // pred_check
        %p9032 = pneg %p9031
      $region70: #{wrapped_model_forward.1} parent=5 // pred_check_branch
        %9034 = sbr.rel (%p9032) target = $region72
      $region71: #{wrapped_model_forward.1} parent=5 // pred_region
        %s9035 = ssub.s32 %s24, 2
        // Predicated region
        $region73: #{wrapped_model_forward.1} parent=71 // pred_check
          %p9036 = pneg %p268
        $region74: #{wrapped_model_forward.1} parent=71 // pred_check_branch
          %9038 = sbr.rel (%p9036) target = $region76
        $region75: #{wrapped_model_forward.1} parent=71 // pred_region
          %s9039 = sand.u32 %s253, 1
          %s9040 = scalar_lea.sflag [#allocation6], %s9039
          %s9041 = sand.u32 %s253, 1
          %s9042 = smul.addr %s9041, 64
          %s9043 = scalar_lea.vmem [#allocation5], %s9042
          %9044 = dma.done %s9040, 1024
        $region76: #{wrapped_model_forward.1} parent=71 // pred_fallthru
          _
        // Predicated region
        $region77: #{wrapped_model_forward.1} parent=71 // pred_check
          %p9045 = pneg %p294
        $region78: #{wrapped_model_forward.1} parent=71 // pred_check_branch
          %9047 = sbr.rel (%p9045) target = $region80
        $region79: #{wrapped_model_forward.1} parent=71 // pred_region
          %s9048 = sand.u32 %s279, 1
          %s9049 = scalar_lea.sflag [#allocation8], %s9048
          %s9050 = sand.u32 %s279, 1
          %s9051 = scalar_lea.vmem [#allocation7], %s9050
          %9052 = dma.done %s9049, 16
        $region80: #{wrapped_model_forward.1} parent=71 // pred_fallthru
          _
      $region72: #{wrapped_model_forward.1} parent=5 // pred_fallthru
        _
    $region6: #{wrapped_model_forward.1} parent=1 // loop_footer
      %s28 = sadd.s32 1, %s24
    $region7: #{wrapped_model_forward.1} parent=1 // loop_footer_branch
      %23 = sbr.rel target = $region3
    $region8: #{wrapped_model_forward.1} parent=1 // loop_exit
      _
    %9053 = vsyncpa [#allocation6], 1
    %s9054 = scalar_lea.sflag [#allocation6], 1
    %9055 = vsyncpa %s9054, 1
    %9056 = vsyncpa [#allocation8], 1
    %s9057 = scalar_lea.sflag [#allocation8], 1
    %9058 = vsyncpa %s9057, 1

</llo_original>
